<compile_context>
chip_gen: v7x
topology: tpu7x:2x2x1
jax: 0.10.0
libtpu: 0.0.40
codegen_flags: <defaults>
</compile_context>

<pallas_src>
import functools
import math

import jax
import jax.numpy as jnp
from jax.experimental import pallas as pl
from jax.experimental.pallas import tpu as pltpu


_LAT_PAD = 128  # fused mu/log-sigma head padded to one full lane tile


def _round_up(n, m):
    return (n + m - 1) // m * m


# ----------------------------------------------------------------------------
# Fused VAE forward kernel: whole model in one kernel invocation.
# ----------------------------------------------------------------------------
def _vae_kernel(
    latent_dims, segs,
    # operands (VMEM: small, land before the body starts)
    x_ref, eps_ref, sb_ref, e1w_ref, e45w_ref, d1w_ref,
    # operands (HBM, streamed manually)
    e2w_hbm, e3w_hbm, d2w_hbm, d3w_hbm, d4w_hbm,
    # outputs
    o_ref, kl_ref,
    # scratch
    e2w_v, e3w_v, d2w_v, d3w_v, d4w_v, dma_sems,
):
    f32, bf16 = jnp.float32, jnp.bfloat16

    # Issue all large-weight DMAs immediately (in order of use) so they stream
    # while the early layers compute.
    staged = [(e2w_hbm, e2w_v), (e3w_hbm, e3w_v), (d2w_hbm, d2w_v),
              (d3w_hbm, d3w_v), (d4w_hbm, d4w_v)]
    copies = []
    for i, (src, dst) in enumerate(staged):
        cp = pltpu.make_async_copy(src, dst, dma_sems.at[i])
        cp.start()
        copies.append(cp)

    def dense(h, w_i8, name, act):
        off, n = segs[name]
        # int8 -> bf16 dequant on the VPU (cheap vs. the DMA we saved),
        # MXU bf16 matmul with f32 accumulation, per-output-channel dequant
        # scale + bias in the f32 epilogue.
        y = jnp.dot(h.astype(bf16), w_i8.astype(bf16),
                    preferred_element_type=f32)
        y = y * sb_ref[0:1, off:off + n] + sb_ref[1:2, off:off + n]
        if act == "relu":
            y = jnp.maximum(y, 0.0)
        elif act == "sigmoid":
            y = jax.nn.sigmoid(y)
        return y

    # ------------------------------ encoder ------------------------------
    h = dense(x_ref[...], e1w_ref[...], "e1", "relu")
    copies[0].wait()
    h = dense(h, e2w_v[...], "e2", "relu")
    copies[1].wait()
    h = dense(h, e3w_v[...], "e3", "relu")

    y45 = dense(h, e45w_ref[...], "e45", "none")      # fused mu / log-sigma head
    mu = y45[:, :latent_dims]
    log_sigma = y45[:, latent_dims:2 * latent_dims]
    sigma = jnp.exp(log_sigma)

    # reparameterization: z = mu + sigma * eps
    z = mu + sigma * eps_ref[...]

    # KL side output (self.kl in the PyTorch module); log(sigma) == log_sigma.
    kl_ref[...] = jnp.sum(sigma * sigma + mu * mu - log_sigma - 0.5,
                          keepdims=True)

    # ------------------------------ decoder ------------------------------
    h = dense(z, d1w_ref[...], "d1", "relu")
    copies[2].wait()
    h = dense(h, d2w_v[...], "d2", "relu")
    copies[3].wait()
    h = dense(h, d3w_v[...], "d3", "relu")
    copies[4].wait()
    y = dense(h, d4w_v[...], "d4", "sigmoid")
    o_ref[...] = y.astype(o_ref.dtype)


_LAYER_ORDER = ("e1", "e2", "e3", "e45", "d1", "d2", "d3", "d4")


def vae_forward(params, x, eps):
    """Fused VAE forward: (reconstruction, kl) = decoder(reparam(encoder(x)))."""
    M, input_size = x.shape
    latent_dims = eps.shape[1]

    # Per-layer (offset, width) into the concatenated scale/bias operand.
    segs, off = {}, 0
    for name in _LAYER_ORDER:
        n = params[name][0].shape[1]
        segs[name] = (off, n)
        off += _round_up(n, 128)
    total = off

    # Row 0 = per-output-channel dequant scales, row 1 = biases.
    sb = jnp.zeros((2, total), jnp.float32)
    for name in _LAYER_ORDER:
        _, scale, bias = params[name]
        o, n = segs[name]
        sb = sb.at[0, o:o + n].set(scale.reshape(-1))
        sb = sb.at[1, o:o + n].set(bias.reshape(-1))

    e1w = params["e1"][0]
    e2w = params["e2"][0]
    e3w = params["e3"][0]
    e45w = params["e45"][0]
    d1w = params["d1"][0]
    d2w = params["d2"][0]
    d3w = params["d3"][0]
    d4w = params["d4"][0]

    vmem = pl.BlockSpec(memory_space=pltpu.MemorySpace.VMEM)
    hbm = pl.BlockSpec(memory_space=pl.ANY)

    kernel = functools.partial(_vae_kernel, latent_dims, segs)

    out, kl = pl.pallas_call(
        kernel,
        out_shape=(
            jax.ShapeDtypeStruct((M, input_size), jnp.float32),
            jax.ShapeDtypeStruct((1, 1), jnp.float32),
        ),
        in_specs=[vmem, vmem, vmem, vmem, vmem, vmem,   # x, eps, sb, e1w, e45w, d1w
                  hbm, hbm, hbm, hbm, hbm],             # e2w, e3w, d2w, d3w, d4w
        out_specs=(vmem, vmem),
        scratch_shapes=[
            pltpu.VMEM(e2w.shape, jnp.int8),
            pltpu.VMEM(e3w.shape, jnp.int8),
            pltpu.VMEM(d2w.shape, jnp.int8),
            pltpu.VMEM(d3w.shape, jnp.int8),
            pltpu.VMEM(d4w.shape, jnp.int8),
            pltpu.SemaphoreType.DMA((5,)),
        ],
        compiler_params=pltpu.CompilerParams(
            # ~6.3 MiB int8 weights + <1 MiB operands + bf16 dequant temps;
            # 24 MiB leaves margin yet stays well under v7x's 64 MiB VMEM.
            vmem_limit_bytes=24 * 1024 * 1024,
        ),
    )(x, eps, sb, e1w, e45w, d1w, e2w, e3w, d2w, d3w, d4w)
    return out, kl


# ----------------------------------------------------------------------------
# Parameter init (mimics PyTorch nn.Linear default uniform init) + int8
# per-output-channel symmetric quantization of the weights.
# ----------------------------------------------------------------------------
def _init_linear_q(key, fan_in, fan_out):
    kw, kb = jax.random.split(key)
    bound = 1.0 / math.sqrt(fan_in)
    w = jax.random.uniform(kw, (fan_in, fan_out), jnp.float32, -bound, bound)
    b = jax.random.uniform(kb, (fan_out,), jnp.float32, -bound, bound)
    amax = jnp.max(jnp.abs(w), axis=0, keepdims=True)          # (1, out)
    scale = jnp.maximum(amax, 1e-8) / 127.0
    w_i8 = jnp.clip(jnp.round(w / scale), -127, 127).astype(jnp.int8)
    return w_i8, scale.astype(jnp.float32), b.reshape(1, fan_out)


def init_vae_params(key, latent_dims, input_size):
    assert 2 * latent_dims <= _LAT_PAD
    keys = jax.random.split(key, 9)
    p = {}
    # encoder
    p["e1"] = _init_linear_q(keys[0], input_size, 2048)
    p["e2"] = _init_linear_q(keys[1], 2048, 1024)
    p["e3"] = _init_linear_q(keys[2], 1024, 512)
    e4 = _init_linear_q(keys[3], 512, latent_dims)   # mu head
    e5 = _init_linear_q(keys[4], 512, latent_dims)   # log-sigma head
    # fuse mu / log-sigma heads into one matmul; pad out-dim to a full lane tile
    pad = _LAT_PAD - 2 * latent_dims
    p["e45"] = (
        jnp.pad(jnp.concatenate([e4[0], e5[0]], axis=1), ((0, 0), (0, pad))),
        jnp.pad(jnp.concatenate([e4[1], e5[1]], axis=1), ((0, 0), (0, pad))),
        jnp.pad(jnp.concatenate([e4[2], e5[2]], axis=1), ((0, 0), (0, pad))),
    )
    # decoder
    p["d1"] = _init_linear_q(keys[5], latent_dims, 512)
    p["d2"] = _init_linear_q(keys[6], 512, 1024)
    p["d3"] = _init_linear_q(keys[7], 1024, 2048)
    p["d4"] = _init_linear_q(keys[8], 2048, input_size)
    return p


# ----------------------------------------------------------------------------
# Pure-JAX reference (same dequant-int8 / bf16-matmul / f32-accum math).
# ----------------------------------------------------------------------------
def _ref_dense(h, w_i8, scale, bias, act):
    y = jnp.dot(h.astype(jnp.bfloat16), w_i8.astype(jnp.bfloat16),
                preferred_element_type=jnp.float32)
    y = y * scale + bias
    if act == "relu":
        return jnp.maximum(y, 0.0)
    if act == "sigmoid":
        return jax.nn.sigmoid(y)
    return y


def vae_forward_ref(params, x, eps):
    latent_dims = eps.shape[1]
    h = _ref_dense(x, *params["e1"], "relu")
    h = _ref_dense(h, *params["e2"], "relu")
    h = _ref_dense(h, *params["e3"], "relu")
    y45 = _ref_dense(h, *params["e45"], "none")
    mu = y45[:, :latent_dims]
    log_sigma = y45[:, latent_dims:2 * latent_dims]
    sigma = jnp.exp(log_sigma)
    z = mu + sigma * eps
    kl = jnp.sum(sigma ** 2 + mu ** 2 - log_sigma - 0.5)
    h = _ref_dense(z, *params["d1"], "relu")
    h = _ref_dense(h, *params["d2"], "relu")
    h = _ref_dense(h, *params["d3"], "relu")
    return _ref_dense(h, *params["d4"], "sigmoid"), kl


if __name__ == "__main__":
    batch = 2
    input_size = 256
    latent_dims = 16

    root = jax.random.PRNGKey(0)
    k_params, k_x, k_eps = jax.random.split(root, 3)

    params = init_vae_params(k_params, latent_dims, input_size)
    x = jax.random.uniform(k_x, (batch, input_size), jnp.float32)
    # deterministic stand-in for self.N.sample(mu.shape)
    eps = jax.random.normal(k_eps, (batch, latent_dims), jnp.float32)

    out, kl = jax.block_until_ready(vae_forward(params, x, eps))

    assert out.shape == (batch, input_size)
    assert kl.shape == (1, 1)
    assert bool(jnp.all(jnp.isfinite(out)))
    assert bool(jnp.all((out >= 0.0) & (out <= 1.0)))  # sigmoid output range

    ref_out, ref_kl = jax.block_until_ready(vae_forward_ref(params, x, eps))
    assert bool(jnp.allclose(out, ref_out, atol=2e-2, rtol=2e-2))
    assert bool(jnp.allclose(kl[0, 0], ref_kl, atol=1e-1, rtol=2e-2))

    print("KERNEL_OK")
</pallas_src>

<mosaic_0001>
module attributes {stable_mosaic.version = 11 : i64} {
  func.func @_vae_kernel(%arg0: memref<2x256xf32, #tpu.memory_space<vmem>>, %arg1: memref<2x16xf32, #tpu.memory_space<vmem>>, %arg2: memref<2x7552xf32, #tpu.memory_space<vmem>>, %arg3: memref<256x2048xi8, #tpu.memory_space<vmem>>, %arg4: memref<512x128xi8, #tpu.memory_space<vmem>>, %arg5: memref<16x512xi8, #tpu.memory_space<vmem>>, %arg6: memref<2048x1024xi8, #tpu.memory_space<any>>, %arg7: memref<1024x512xi8, #tpu.memory_space<any>>, %arg8: memref<512x1024xi8, #tpu.memory_space<any>>, %arg9: memref<1024x2048xi8, #tpu.memory_space<any>>, %arg10: memref<2048x256xi8, #tpu.memory_space<any>>, %arg11: memref<2x256xf32, #tpu.memory_space<vmem>>, %arg12: memref<1x1xf32, #tpu.memory_space<vmem>>, %arg13: memref<2048x1024xi8, #tpu.memory_space<vmem>>, %arg14: memref<1024x512xi8, #tpu.memory_space<vmem>>, %arg15: memref<512x1024xi8, #tpu.memory_space<vmem>>, %arg16: memref<1024x2048xi8, #tpu.memory_space<vmem>>, %arg17: memref<2048x256xi8, #tpu.memory_space<vmem>>, %arg18: memref<5x!tpu.dma_semaphore, #tpu.memory_space<semaphore_mem>>) attributes {dimension_semantics = [], scalar_prefetch = 0 : i64, scratch_operands = 6 : i64, tpu.core_type = #tpu.core_type<tc>} {
    %c0_i32 = arith.constant 0 : i32
    %0 = tpu.memref_slice %arg18[%c0_i32] : memref<5x!tpu.dma_semaphore, #tpu.memory_space<semaphore_mem>> -> memref<1x!tpu.dma_semaphore, #tpu.memory_space<semaphore_mem>>
    %1 = tpu.memref_squeeze %0 : memref<1x!tpu.dma_semaphore, #tpu.memory_space<semaphore_mem>> -> memref<!tpu.dma_semaphore, #tpu.memory_space<semaphore_mem>>
    tpu.enqueue_dma source(%arg6 : memref<2048x1024xi8, #tpu.memory_space<any>>) target(%arg13 : memref<2048x1024xi8, #tpu.memory_space<vmem>>) target_semaphore(%1 : memref<!tpu.dma_semaphore, #tpu.memory_space<semaphore_mem>>)
    %c1_i32 = arith.constant 1 : i32
    %2 = tpu.memref_slice %arg18[%c1_i32] : memref<5x!tpu.dma_semaphore, #tpu.memory_space<semaphore_mem>> -> memref<1x!tpu.dma_semaphore, #tpu.memory_space<semaphore_mem>>
    %3 = tpu.memref_squeeze %2 : memref<1x!tpu.dma_semaphore, #tpu.memory_space<semaphore_mem>> -> memref<!tpu.dma_semaphore, #tpu.memory_space<semaphore_mem>>
    tpu.enqueue_dma source(%arg7 : memref<1024x512xi8, #tpu.memory_space<any>>) target(%arg14 : memref<1024x512xi8, #tpu.memory_space<vmem>>) target_semaphore(%3 : memref<!tpu.dma_semaphore, #tpu.memory_space<semaphore_mem>>)
    %c2_i32 = arith.constant 2 : i32
    %4 = tpu.memref_slice %arg18[%c2_i32] : memref<5x!tpu.dma_semaphore, #tpu.memory_space<semaphore_mem>> -> memref<1x!tpu.dma_semaphore, #tpu.memory_space<semaphore_mem>>
    %5 = tpu.memref_squeeze %4 : memref<1x!tpu.dma_semaphore, #tpu.memory_space<semaphore_mem>> -> memref<!tpu.dma_semaphore, #tpu.memory_space<semaphore_mem>>
    tpu.enqueue_dma source(%arg8 : memref<512x1024xi8, #tpu.memory_space<any>>) target(%arg15 : memref<512x1024xi8, #tpu.memory_space<vmem>>) target_semaphore(%5 : memref<!tpu.dma_semaphore, #tpu.memory_space<semaphore_mem>>)
    %c3_i32 = arith.constant 3 : i32
    %6 = tpu.memref_slice %arg18[%c3_i32] : memref<5x!tpu.dma_semaphore, #tpu.memory_space<semaphore_mem>> -> memref<1x!tpu.dma_semaphore, #tpu.memory_space<semaphore_mem>>
    %7 = tpu.memref_squeeze %6 : memref<1x!tpu.dma_semaphore, #tpu.memory_space<semaphore_mem>> -> memref<!tpu.dma_semaphore, #tpu.memory_space<semaphore_mem>>
    tpu.enqueue_dma source(%arg9 : memref<1024x2048xi8, #tpu.memory_space<any>>) target(%arg16 : memref<1024x2048xi8, #tpu.memory_space<vmem>>) target_semaphore(%7 : memref<!tpu.dma_semaphore, #tpu.memory_space<semaphore_mem>>)
    %c4_i32 = arith.constant 4 : i32
    %8 = tpu.memref_slice %arg18[%c4_i32] : memref<5x!tpu.dma_semaphore, #tpu.memory_space<semaphore_mem>> -> memref<1x!tpu.dma_semaphore, #tpu.memory_space<semaphore_mem>>
    %9 = tpu.memref_squeeze %8 : memref<1x!tpu.dma_semaphore, #tpu.memory_space<semaphore_mem>> -> memref<!tpu.dma_semaphore, #tpu.memory_space<semaphore_mem>>
    tpu.enqueue_dma source(%arg10 : memref<2048x256xi8, #tpu.memory_space<any>>) target(%arg17 : memref<2048x256xi8, #tpu.memory_space<vmem>>) target_semaphore(%9 : memref<!tpu.dma_semaphore, #tpu.memory_space<semaphore_mem>>)
    %c0 = arith.constant 0 : index
    %c0_0 = arith.constant 0 : index
    %10 = vector.load %arg0[%c0, %c0_0] : memref<2x256xf32, #tpu.memory_space<vmem>>, vector<2x256xf32>
    %c0_1 = arith.constant 0 : index
    %c0_2 = arith.constant 0 : index
    %11 = vector.load %arg3[%c0_1, %c0_2] : memref<256x2048xi8, #tpu.memory_space<vmem>>, vector<256x2048xi8>
    %12 = arith.truncf %10 : vector<2x256xf32> to vector<2x256xbf16>
    %13 = arith.sitofp %11 : vector<256x2048xi8> to vector<256x2048xbf16>
    %cst = arith.constant dense<0.000000e+00> : vector<2x2048xf32>
    %14 = tpu.matmul %12, %13, %cst {dimension_numbers = #tpu.dot_dimension_numbers<[1], [0], [0], [1], [0, 0, 1, 1], [], []>} : vector<2x256xbf16>, vector<256x2048xbf16>, vector<2x2048xf32> -> vector<2x2048xf32>
    %c0_3 = arith.constant 0 : index
    %c0_4 = arith.constant 0 : index
    %15 = vector.load %arg2[%c0_3, %c0_4] : memref<2x7552xf32, #tpu.memory_space<vmem>>, vector<1x2048xf32>
    %16 = vector.broadcast %15 : vector<1x2048xf32> to vector<2x2048xf32>
    %17 = arith.mulf %14, %16 : vector<2x2048xf32>
    %c1 = arith.constant 1 : index
    %c0_5 = arith.constant 0 : index
    %18 = vector.load %arg2[%c1, %c0_5] : memref<2x7552xf32, #tpu.memory_space<vmem>>, vector<1x2048xf32>
    %19 = vector.broadcast %18 : vector<1x2048xf32> to vector<2x2048xf32>
    %20 = arith.addf %17, %19 : vector<2x2048xf32>
    %cst_6 = arith.constant 0.000000e+00 : f32
    %21 = vector.broadcast %cst_6 : f32 to vector<2x2048xf32>
    %22 = arith.maximumf %20, %21 : vector<2x2048xf32>
    %c0_i32_7 = arith.constant 0 : i32
    %23 = tpu.memref_slice %arg18[%c0_i32_7] : memref<5x!tpu.dma_semaphore, #tpu.memory_space<semaphore_mem>> -> memref<1x!tpu.dma_semaphore, #tpu.memory_space<semaphore_mem>>
    %24 = tpu.memref_squeeze %23 : memref<1x!tpu.dma_semaphore, #tpu.memory_space<semaphore_mem>> -> memref<!tpu.dma_semaphore, #tpu.memory_space<semaphore_mem>>
    tpu.wait_dma2 semaphore(%24 : memref<!tpu.dma_semaphore, #tpu.memory_space<semaphore_mem>>) src(%arg6 : memref<2048x1024xi8, #tpu.memory_space<any>>) dst(%arg13 : memref<2048x1024xi8, #tpu.memory_space<vmem>>)
    %c0_8 = arith.constant 0 : index
    %c0_9 = arith.constant 0 : index
    %25 = vector.load %arg13[%c0_8, %c0_9] : memref<2048x1024xi8, #tpu.memory_space<vmem>>, vector<2048x1024xi8>
    %26 = arith.truncf %22 : vector<2x2048xf32> to vector<2x2048xbf16>
    %27 = arith.sitofp %25 : vector<2048x1024xi8> to vector<2048x1024xbf16>
    %cst_10 = arith.constant dense<0.000000e+00> : vector<2x1024xf32>
    %28 = tpu.matmul %26, %27, %cst_10 {dimension_numbers = #tpu.dot_dimension_numbers<[1], [0], [0], [1], [0, 0, 1, 1], [], []>} : vector<2x2048xbf16>, vector<2048x1024xbf16>, vector<2x1024xf32> -> vector<2x1024xf32>
    %c0_11 = arith.constant 0 : index
    %c2048 = arith.constant 2048 : index
    %29 = vector.load %arg2[%c0_11, %c2048] : memref<2x7552xf32, #tpu.memory_space<vmem>>, vector<1x1024xf32>
    %30 = vector.broadcast %29 : vector<1x1024xf32> to vector<2x1024xf32>
    %31 = arith.mulf %28, %30 : vector<2x1024xf32>
    %c1_12 = arith.constant 1 : index
    %c2048_13 = arith.constant 2048 : index
    %32 = vector.load %arg2[%c1_12, %c2048_13] : memref<2x7552xf32, #tpu.memory_space<vmem>>, vector<1x1024xf32>
    %33 = vector.broadcast %32 : vector<1x1024xf32> to vector<2x1024xf32>
    %34 = arith.addf %31, %33 : vector<2x1024xf32>
    %cst_14 = arith.constant 0.000000e+00 : f32
    %35 = vector.broadcast %cst_14 : f32 to vector<2x1024xf32>
    %36 = arith.maximumf %34, %35 : vector<2x1024xf32>
    %c1_i32_15 = arith.constant 1 : i32
    %37 = tpu.memref_slice %arg18[%c1_i32_15] : memref<5x!tpu.dma_semaphore, #tpu.memory_space<semaphore_mem>> -> memref<1x!tpu.dma_semaphore, #tpu.memory_space<semaphore_mem>>
    %38 = tpu.memref_squeeze %37 : memref<1x!tpu.dma_semaphore, #tpu.memory_space<semaphore_mem>> -> memref<!tpu.dma_semaphore, #tpu.memory_space<semaphore_mem>>
    tpu.wait_dma2 semaphore(%38 : memref<!tpu.dma_semaphore, #tpu.memory_space<semaphore_mem>>) src(%arg7 : memref<1024x512xi8, #tpu.memory_space<any>>) dst(%arg14 : memref<1024x512xi8, #tpu.memory_space<vmem>>)
    %c0_16 = arith.constant 0 : index
    %c0_17 = arith.constant 0 : index
    %39 = vector.load %arg14[%c0_16, %c0_17] : memref<1024x512xi8, #tpu.memory_space<vmem>>, vector<1024x512xi8>
    %40 = arith.truncf %36 : vector<2x1024xf32> to vector<2x1024xbf16>
    %41 = arith.sitofp %39 : vector<1024x512xi8> to vector<1024x512xbf16>
    %cst_18 = arith.constant dense<0.000000e+00> : vector<2x512xf32>
    %42 = tpu.matmul %40, %41, %cst_18 {dimension_numbers = #tpu.dot_dimension_numbers<[1], [0], [0], [1], [0, 0, 1, 1], [], []>} : vector<2x1024xbf16>, vector<1024x512xbf16>, vector<2x512xf32> -> vector<2x512xf32>
    %c0_19 = arith.constant 0 : index
    %c3072 = arith.constant 3072 : index
    %43 = vector.load %arg2[%c0_19, %c3072] : memref<2x7552xf32, #tpu.memory_space<vmem>>, vector<1x512xf32>
    %44 = vector.broadcast %43 : vector<1x512xf32> to vector<2x512xf32>
    %45 = arith.mulf %42, %44 : vector<2x512xf32>
    %c1_20 = arith.constant 1 : index
    %c3072_21 = arith.constant 3072 : index
    %46 = vector.load %arg2[%c1_20, %c3072_21] : memref<2x7552xf32, #tpu.memory_space<vmem>>, vector<1x512xf32>
    %47 = vector.broadcast %46 : vector<1x512xf32> to vector<2x512xf32>
    %48 = arith.addf %45, %47 : vector<2x512xf32>
    %cst_22 = arith.constant 0.000000e+00 : f32
    %49 = vector.broadcast %cst_22 : f32 to vector<2x512xf32>
    %50 = arith.maximumf %48, %49 : vector<2x512xf32>
    %c0_23 = arith.constant 0 : index
    %c0_24 = arith.constant 0 : index
    %51 = vector.load %arg4[%c0_23, %c0_24] : memref<512x128xi8, #tpu.memory_space<vmem>>, vector<512x128xi8>
    %52 = arith.truncf %50 : vector<2x512xf32> to vector<2x512xbf16>
    %53 = arith.sitofp %51 : vector<512x128xi8> to vector<512x128xbf16>
    %cst_25 = arith.constant dense<0.000000e+00> : vector<2x128xf32>
    %54 = tpu.matmul %52, %53, %cst_25 {dimension_numbers = #tpu.dot_dimension_numbers<[1], [0], [0], [1], [0, 0, 1, 1], [], []>} : vector<2x512xbf16>, vector<512x128xbf16>, vector<2x128xf32> -> vector<2x128xf32>
    %c0_26 = arith.constant 0 : index
    %c3584 = arith.constant 3584 : index
    %55 = vector.load %arg2[%c0_26, %c3584] : memref<2x7552xf32, #tpu.memory_space<vmem>>, vector<1x128xf32>
    %56 = vector.broadcast %55 : vector<1x128xf32> to vector<2x128xf32>
    %57 = arith.mulf %54, %56 : vector<2x128xf32>
    %c1_27 = arith.constant 1 : index
    %c3584_28 = arith.constant 3584 : index
    %58 = vector.load %arg2[%c1_27, %c3584_28] : memref<2x7552xf32, #tpu.memory_space<vmem>>, vector<1x128xf32>
    %59 = vector.broadcast %58 : vector<1x128xf32> to vector<2x128xf32>
    %60 = arith.addf %57, %59 : vector<2x128xf32>
    %61 = vector.extract_strided_slice %60 {offsets = [0, 0], sizes = [2, 16], strides = [1, 1]} : vector<2x128xf32> to vector<2x16xf32>
    %62 = vector.extract_strided_slice %60 {offsets = [0, 16], sizes = [2, 16], strides = [1, 1]} : vector<2x128xf32> to vector<2x16xf32>
    %63 = math.exp %62 : vector<2x16xf32>
    %c0_29 = arith.constant 0 : index
    %c0_30 = arith.constant 0 : index
    %64 = vector.load %arg1[%c0_29, %c0_30] : memref<2x16xf32, #tpu.memory_space<vmem>>, vector<2x16xf32>
    %65 = arith.mulf %63, %64 : vector<2x16xf32>
    %66 = arith.addf %61, %65 : vector<2x16xf32>
    %67 = arith.mulf %63, %63 : vector<2x16xf32>
    %68 = arith.mulf %61, %61 : vector<2x16xf32>
    %69 = arith.addf %67, %68 : vector<2x16xf32>
    %70 = arith.subf %69, %62 : vector<2x16xf32>
    %cst_31 = arith.constant 5.000000e-01 : f32
    %71 = vector.broadcast %cst_31 : f32 to vector<2x16xf32>
    %72 = arith.subf %70, %71 : vector<2x16xf32>
    %73 = vector.shape_cast %72 : vector<2x16xf32> to vector<1x2x16xf32>
    %cst_32 = arith.constant dense<0.000000e+00> : vector<1xf32>
    %74 = vector.multi_reduction <add>, %73, %cst_32 [1, 2] : vector<1x2x16xf32> to vector<1xf32>
    %75 = vector.shape_cast %74 : vector<1xf32> to vector<1x1x1xf32>
    %76 = vector.extract %75[0, 0, 0] : f32 from vector<1x1x1xf32>
    %77 = vector.broadcast %76 : f32 to vector<1x1xf32>
    %c0_33 = arith.constant 0 : index
    %c0_34 = arith.constant 0 : index
    %78 = vector.load %arg12[%c0_33, %c0_34] : memref<1x1xf32, #tpu.memory_space<vmem>>, vector<1x1xf32>
    tpu.vector_store %arg12[%c0_33, %c0_34], %77 {strides = array<i32>} : memref<1x1xf32, #tpu.memory_space<vmem>>, vector<1x1xf32>,
    %c0_35 = arith.constant 0 : index
    %c0_36 = arith.constant 0 : index
    %79 = vector.load %arg5[%c0_35, %c0_36] : memref<16x512xi8, #tpu.memory_space<vmem>>, vector<16x512xi8>
    %80 = arith.truncf %66 : vector<2x16xf32> to vector<2x16xbf16>
    %81 = arith.sitofp %79 : vector<16x512xi8> to vector<16x512xbf16>
    %cst_37 = arith.constant dense<0.000000e+00> : vector<2x512xf32>
    %82 = tpu.matmul %80, %81, %cst_37 {dimension_numbers = #tpu.dot_dimension_numbers<[1], [0], [0], [1], [0, 0, 1, 1], [], []>} : vector<2x16xbf16>, vector<16x512xbf16>, vector<2x512xf32> -> vector<2x512xf32>
    %c0_38 = arith.constant 0 : index
    %c3712 = arith.constant 3712 : index
    %83 = vector.load %arg2[%c0_38, %c3712] : memref<2x7552xf32, #tpu.memory_space<vmem>>, vector<1x512xf32>
    %84 = vector.broadcast %83 : vector<1x512xf32> to vector<2x512xf32>
    %85 = arith.mulf %82, %84 : vector<2x512xf32>
    %c1_39 = arith.constant 1 : index
    %c3712_40 = arith.constant 3712 : index
    %86 = vector.load %arg2[%c1_39, %c3712_40] : memref<2x7552xf32, #tpu.memory_space<vmem>>, vector<1x512xf32>
    %87 = vector.broadcast %86 : vector<1x512xf32> to vector<2x512xf32>
    %88 = arith.addf %85, %87 : vector<2x512xf32>
    %cst_41 = arith.constant 0.000000e+00 : f32
    %89 = vector.broadcast %cst_41 : f32 to vector<2x512xf32>
    %90 = arith.maximumf %88, %89 : vector<2x512xf32>
    %c2_i32_42 = arith.constant 2 : i32
    %91 = tpu.memref_slice %arg18[%c2_i32_42] : memref<5x!tpu.dma_semaphore, #tpu.memory_space<semaphore_mem>> -> memref<1x!tpu.dma_semaphore, #tpu.memory_space<semaphore_mem>>
    %92 = tpu.memref_squeeze %91 : memref<1x!tpu.dma_semaphore, #tpu.memory_space<semaphore_mem>> -> memref<!tpu.dma_semaphore, #tpu.memory_space<semaphore_mem>>
    tpu.wait_dma2 semaphore(%92 : memref<!tpu.dma_semaphore, #tpu.memory_space<semaphore_mem>>) src(%arg8 : memref<512x1024xi8, #tpu.memory_space<any>>) dst(%arg15 : memref<512x1024xi8, #tpu.memory_space<vmem>>)
    %c0_43 = arith.constant 0 : index
    %c0_44 = arith.constant 0 : index
    %93 = vector.load %arg15[%c0_43, %c0_44] : memref<512x1024xi8, #tpu.memory_space<vmem>>, vector<512x1024xi8>
    %94 = arith.truncf %90 : vector<2x512xf32> to vector<2x512xbf16>
    %95 = arith.sitofp %93 : vector<512x1024xi8> to vector<512x1024xbf16>
    %cst_45 = arith.constant dense<0.000000e+00> : vector<2x1024xf32>
    %96 = tpu.matmul %94, %95, %cst_45 {dimension_numbers = #tpu.dot_dimension_numbers<[1], [0], [0], [1], [0, 0, 1, 1], [], []>} : vector<2x512xbf16>, vector<512x1024xbf16>, vector<2x1024xf32> -> vector<2x1024xf32>
    %c0_46 = arith.constant 0 : index
    %c4224 = arith.constant 4224 : index
    %97 = vector.load %arg2[%c0_46, %c4224] : memref<2x7552xf32, #tpu.memory_space<vmem>>, vector<1x1024xf32>
    %98 = vector.broadcast %97 : vector<1x1024xf32> to vector<2x1024xf32>
    %99 = arith.mulf %96, %98 : vector<2x1024xf32>
    %c1_47 = arith.constant 1 : index
    %c4224_48 = arith.constant 4224 : index
    %100 = vector.load %arg2[%c1_47, %c4224_48] : memref<2x7552xf32, #tpu.memory_space<vmem>>, vector<1x1024xf32>
    %101 = vector.broadcast %100 : vector<1x1024xf32> to vector<2x1024xf32>
    %102 = arith.addf %99, %101 : vector<2x1024xf32>
    %cst_49 = arith.constant 0.000000e+00 : f32
    %103 = vector.broadcast %cst_49 : f32 to vector<2x1024xf32>
    %104 = arith.maximumf %102, %103 : vector<2x1024xf32>
    %c3_i32_50 = arith.constant 3 : i32
    %105 = tpu.memref_slice %arg18[%c3_i32_50] : memref<5x!tpu.dma_semaphore, #tpu.memory_space<semaphore_mem>> -> memref<1x!tpu.dma_semaphore, #tpu.memory_space<semaphore_mem>>
    %106 = tpu.memref_squeeze %105 : memref<1x!tpu.dma_semaphore, #tpu.memory_space<semaphore_mem>> -> memref<!tpu.dma_semaphore, #tpu.memory_space<semaphore_mem>>
    tpu.wait_dma2 semaphore(%106 : memref<!tpu.dma_semaphore, #tpu.memory_space<semaphore_mem>>) src(%arg9 : memref<1024x2048xi8, #tpu.memory_space<any>>) dst(%arg16 : memref<1024x2048xi8, #tpu.memory_space<vmem>>)
    %c0_51 = arith.constant 0 : index
    %c0_52 = arith.constant 0 : index
    %107 = vector.load %arg16[%c0_51, %c0_52] : memref<1024x2048xi8, #tpu.memory_space<vmem>>, vector<1024x2048xi8>
    %108 = arith.truncf %104 : vector<2x1024xf32> to vector<2x1024xbf16>
    %109 = arith.sitofp %107 : vector<1024x2048xi8> to vector<1024x2048xbf16>
    %cst_53 = arith.constant dense<0.000000e+00> : vector<2x2048xf32>
    %110 = tpu.matmul %108, %109, %cst_53 {dimension_numbers = #tpu.dot_dimension_numbers<[1], [0], [0], [1], [0, 0, 1, 1], [], []>} : vector<2x1024xbf16>, vector<1024x2048xbf16>, vector<2x2048xf32> -> vector<2x2048xf32>
    %c0_54 = arith.constant 0 : index
    %c5248 = arith.constant 5248 : index
    %111 = vector.load %arg2[%c0_54, %c5248] : memref<2x7552xf32, #tpu.memory_space<vmem>>, vector<1x2048xf32>
    %112 = vector.broadcast %111 : vector<1x2048xf32> to vector<2x2048xf32>
    %113 = arith.mulf %110, %112 : vector<2x2048xf32>
    %c1_55 = arith.constant 1 : index
    %c5248_56 = arith.constant 5248 : index
    %114 = vector.load %arg2[%c1_55, %c5248_56] : memref<2x7552xf32, #tpu.memory_space<vmem>>, vector<1x2048xf32>
    %115 = vector.broadcast %114 : vector<1x2048xf32> to vector<2x2048xf32>
    %116 = arith.addf %113, %115 : vector<2x2048xf32>
    %cst_57 = arith.constant 0.000000e+00 : f32
    %117 = vector.broadcast %cst_57 : f32 to vector<2x2048xf32>
    %118 = arith.maximumf %116, %117 : vector<2x2048xf32>
    %c4_i32_58 = arith.constant 4 : i32
    %119 = tpu.memref_slice %arg18[%c4_i32_58] : memref<5x!tpu.dma_semaphore, #tpu.memory_space<semaphore_mem>> -> memref<1x!tpu.dma_semaphore, #tpu.memory_space<semaphore_mem>>
    %120 = tpu.memref_squeeze %119 : memref<1x!tpu.dma_semaphore, #tpu.memory_space<semaphore_mem>> -> memref<!tpu.dma_semaphore, #tpu.memory_space<semaphore_mem>>
    tpu.wait_dma2 semaphore(%120 : memref<!tpu.dma_semaphore, #tpu.memory_space<semaphore_mem>>) src(%arg10 : memref<2048x256xi8, #tpu.memory_space<any>>) dst(%arg17 : memref<2048x256xi8, #tpu.memory_space<vmem>>)
    %c0_59 = arith.constant 0 : index
    %c0_60 = arith.constant 0 : index
    %121 = vector.load %arg17[%c0_59, %c0_60] : memref<2048x256xi8, #tpu.memory_space<vmem>>, vector<2048x256xi8>
    %122 = arith.truncf %118 : vector<2x2048xf32> to vector<2x2048xbf16>
    %123 = arith.sitofp %121 : vector<2048x256xi8> to vector<2048x256xbf16>
    %cst_61 = arith.constant dense<0.000000e+00> : vector<2x256xf32>
    %124 = tpu.matmul %122, %123, %cst_61 {dimension_numbers = #tpu.dot_dimension_numbers<[1], [0], [0], [1], [0, 0, 1, 1], [], []>} : vector<2x2048xbf16>, vector<2048x256xbf16>, vector<2x256xf32> -> vector<2x256xf32>
    %c0_62 = arith.constant 0 : index
    %c7296 = arith.constant 7296 : index
    %125 = vector.load %arg2[%c0_62, %c7296] : memref<2x7552xf32, #tpu.memory_space<vmem>>, vector<1x256xf32>
    %126 = vector.broadcast %125 : vector<1x256xf32> to vector<2x256xf32>
    %127 = arith.mulf %124, %126 : vector<2x256xf32>
    %c1_63 = arith.constant 1 : index
    %c7296_64 = arith.constant 7296 : index
    %128 = vector.load %arg2[%c1_63, %c7296_64] : memref<2x7552xf32, #tpu.memory_space<vmem>>, vector<1x256xf32>
    %129 = vector.broadcast %128 : vector<1x256xf32> to vector<2x256xf32>
    %130 = arith.addf %127, %129 : vector<2x256xf32>
    %131 = arith.negf %130 : vector<2x256xf32>
    %132 = math.exp %131 : vector<2x256xf32>
    %cst_65 = arith.constant 1.000000e+00 : f32
    %133 = vector.broadcast %cst_65 : f32 to vector<2x256xf32>
    %134 = arith.addf %133, %132 : vector<2x256xf32>
    %135 = arith.divf %133, %134 : vector<2x256xf32>
    %c0_66 = arith.constant 0 : index
    %c0_67 = arith.constant 0 : index
    %136 = vector.load %arg11[%c0_66, %c0_67] : memref<2x256xf32, #tpu.memory_space<vmem>>, vector<2x256xf32>
    tpu.vector_store %arg11[%c0_66, %c0_67], %135 {strides = array<i32>} : memref<2x256xf32, #tpu.memory_space<vmem>>, vector<2x256xf32>,
    return
  }
}

</mosaic_0001>

<llo_original>
// kernel: tpu_custom_call.1
$region0: #{tpu_custom_call.1}
  #allocation0 [shape = 'u32[]', space=smem, size = 0x4, offset = 0x4, fixed_abs, tag = 'smem constant byte address 0x4 - core index']
  #allocation1 [shape = 'u32[144,128]{1,0:T(1,128)}', space=vmem, size = 0x12000, scoped, tag = 'internal scratch']
  #allocation2 [shape = 's8[2048,1024]{1,0:T(32,128)(4,1)}', space=vmem, size = 0x200000, scoped, tag = 'scratch operand']
  #allocation3 [shape = 's8[1024,512]{1,0:T(32,128)(4,1)}', space=vmem, size = 0x80000, scoped, tag = 'scratch operand']
  #allocation4 [shape = 's8[512,1024]{1,0:T(32,128)(4,1)}', space=vmem, size = 0x80000, scoped, tag = 'scratch operand']
  #allocation5 [shape = 's8[1024,2048]{1,0:T(32,128)(4,1)}', space=vmem, size = 0x200000, scoped, tag = 'scratch operand']
  #allocation6 [shape = 's8[2048,256]{1,0:T(32,128)(4,1)}', space=vmem, size = 0x80000, scoped, tag = 'scratch operand']
  #allocation7 [shape = 's32[5]{0}', space=sflag, size = 0x14, scoped, tag = 'scratch operand']
  #allocation22 [shape = 's32[]', space=sflag, size = 0x4, offset = 0, fixed_abs, tag = 'sflag constant byte address 0x0 - dummy sync flag']
  #allocation23 [shape = 's32[]', space=sflag, size = 0x4, offset = 0, fixed_abs, tag = 'sflag constant byte address 0x0 - dummy sync flag']
  #allocation24 [shape = 'u32[]', space=smem, size = 0x4, offset = 0x44, fixed_abs, tag = 'smem constant byte address 0x44 - assertion arg 0']
  #allocation25 [shape = 'u32[]', space=smem, size = 0x4, offset = 0x48, fixed_abs, tag = 'smem constant byte address 0x48 - assertion arg 1']
  #allocation26 [shape = 's32[]', space=sflag, size = 0x4, offset = 0, fixed_abs, tag = 'sflag constant byte address 0x0 - dummy sync flag']
  #allocation27 [shape = 's32[]', space=sflag, size = 0x4, offset = 0, fixed_abs, tag = 'sflag constant byte address 0x0 - dummy sync flag']
  #allocation28 [shape = 's32[]', space=sflag, size = 0x4, offset = 0, fixed_abs, tag = 'sflag constant byte address 0x0 - dummy sync flag']
  #allocation29 [shape = 's32[]', space=sflag, size = 0x4, offset = 0, fixed_abs, tag = 'sflag constant byte address 0x0 - dummy sync flag']
  #allocation30 [shape = 's32[]', space=sflag, size = 0x4, offset = 0, fixed_abs, tag = 'sflag constant byte address 0x0 - dummy sync flag']
  #allocation31 [shape = 's32[]', space=sflag, size = 0x4, offset = 0, fixed_abs, tag = 'sflag constant byte address 0x0 - dummy sync flag']
  #allocation32 [shape = 's32[]', space=sflag, size = 0x4, offset = 0, fixed_abs, tag = 'sflag constant byte address 0x0 - dummy sync flag']
  #allocation33 [shape = 's32[]', space=sflag, size = 0x4, offset = 0, fixed_abs, tag = 'sflag constant byte address 0x0 - dummy sync flag']
  %s0 = inlined_call_operand.hbm [shape: f32[2,256], index: 0, kind: input, shape index: {}]
  %s1 = inlined_call_operand.hbm [shape: f32[2,16], index: 1, kind: input, shape index: {}]
  %s2 = inlined_call_operand.hbm [shape: f32[2,7552], index: 2, kind: input, shape index: {}]
  %s3 = inlined_call_operand.hbm [shape: s8[256,2048], index: 3, kind: input, shape index: {}]
  %s4 = inlined_call_operand.hbm [shape: s8[512,128], index: 4, kind: input, shape index: {}]
  %s5 = inlined_call_operand.hbm [shape: s8[16,512], index: 5, kind: input, shape index: {}]
  %s6 = inlined_call_operand.hbm [shape: s8[2048,1024], index: 6, kind: input, shape index: {}]
  %s7 = inlined_call_operand.hbm [shape: s8[1024,512], index: 7, kind: input, shape index: {}]
  %s8 = inlined_call_operand.hbm [shape: s8[512,1024], index: 8, kind: input, shape index: {}]
  %s9 = inlined_call_operand.hbm [shape: s8[1024,2048], index: 9, kind: input, shape index: {}]
  %s10 = inlined_call_operand.hbm [shape: s8[2048,256], index: 10, kind: input, shape index: {}]
  %s11 = inlined_call_operand.hbm [shape: f32[2,256], index: 11, kind: output, shape index: {0}]
  %s12 = inlined_call_operand.hbm [shape: f32[1,1], index: 12, kind: output, shape index: {1}]
  %13 = xla_tuple %s11, %s12
  %s14 = sld [smem:[#allocation0]]
  $region86: #{tpu_custom_call.1} parent=0
    _
  %s16 = ssub.s32 1, %s14
  %s17 = scalar_select 0, %s16, %s14
  $region1: #{tpu_custom_call.1} parent=0
    #allocation8 [shape = 'u8[2048]{0}', space=vmem, size = 0x800, scoped, tag = 'input window, operand 0, single buffered']
    #allocation9 [shape = 's32[1]{0}', space=sflag, size = 0x4, scoped, tag = 'scoped memory for tpu_custom_call.1']
    #allocation10 [shape = 's32[1]{0}', space=sflag, size = 0x4, scoped, tag = 'scoped memory for tpu_custom_call.1']
    #allocation11 [shape = 'u8[1024]{0}', space=vmem, size = 0x400, scoped, tag = 'input window, operand 1, single buffered']
    #allocation12 [shape = 's32[1]{0}', space=sflag, size = 0x4, scoped, tag = 'scoped memory for tpu_custom_call.1']
    #allocation13 [shape = 'u8[60416]{0}', space=vmem, size = 0xec00, scoped, tag = 'input window, operand 2, single buffered']
    #allocation14 [shape = 'u8[524288]{0}', space=vmem, size = 0x80000, scoped, tag = 'input window, operand 3, single buffered']
    #allocation15 [shape = 's32[1]{0}', space=sflag, size = 0x4, scoped, tag = 'scoped memory for tpu_custom_call.1']
    #allocation16 [shape = 'u8[65536]{0}', space=vmem, size = 0x10000, scoped, tag = 'input window, operand 4, single buffered']
    #allocation17 [shape = 'u8[8192]{0}', space=vmem, size = 0x2000, scoped, tag = 'input window, operand 5, single buffered']
    #allocation18 [shape = 's32[1]{0}', space=sflag, size = 0x4, scoped, tag = 'scoped memory for tpu_custom_call.1']
    #allocation19 [shape = 'u8[2048]{0}', space=vmem, size = 0x800, scoped, tag = 'output window, operand 0, single buffered']
    #allocation20 [shape = 'u8[512]{0}', space=vmem, size = 0x400, scoped, tag = 'output window, operand 1, single buffered']
    #allocation21 [shape = 's32[1]{0}', space=sflag, size = 0x4, scoped, tag = 'scoped memory for tpu_custom_call.1']
    %18 = vsyncpa [#allocation9], 0
    %19 = vsyncpa [#allocation12], 0
    %20 = vsyncpa [#allocation15], 0
    %21 = vsyncpa [#allocation18], 0
    %22 = vsyncpa [#allocation10], 0
    %23 = vsyncpa [#allocation21], 0
    // Predicated region
    $region2: #{tpu_custom_call.1} parent=1 // pred_check
      _
    $region3: #{tpu_custom_call.1} parent=1 // pred_check_branch
      %25 = sbr.rel (0) target = $region5
    $region4: #{tpu_custom_call.1} parent=1 // pred_region
      %s27 = ssub.s32 64, 64
      %28 = vsyncadd [#allocation9], %s27
      %s30 = sshll.u32 [#allocation8], 4
      %s31 = int_to_ptr.vmem [resolvable:$true] %s30
      %33 = dma.hbm_to_vmem [thread:$0]  %s0, 64, %s31, [#allocation9]
    $region5: #{tpu_custom_call.1} parent=1 // pred_fallthru
      _
    // Predicated region
    $region6: #{tpu_custom_call.1} parent=1 // pred_check
      _
    $region7: #{tpu_custom_call.1} parent=1 // pred_check_branch
      %35 = sbr.rel (0) target = $region9
    $region8: #{tpu_custom_call.1} parent=1 // pred_region
      %s37 = ssub.s32 32, 32
      %38 = vsyncadd [#allocation12], %s37
      %s40 = sshll.u32 [#allocation11], 4
      %s41 = int_to_ptr.vmem [resolvable:$true] %s40
      %43 = dma.hbm_to_vmem [thread:$0]  %s1, 32, %s41, [#allocation12]
    $region9: #{tpu_custom_call.1} parent=1 // pred_fallthru
      _
    // Predicated region
    $region10: #{tpu_custom_call.1} parent=1 // pred_check
      _
    $region11: #{tpu_custom_call.1} parent=1 // pred_check_branch
      %45 = sbr.rel (0) target = $region13
    $region12: #{tpu_custom_call.1} parent=1 // pred_region
      %s47 = ssub.s32 1888, 1888
      %48 = vsyncadd [#allocation12], %s47
      %s50 = sshll.u32 [#allocation13], 4
      %s51 = int_to_ptr.vmem [resolvable:$true] %s50
      %53 = dma.hbm_to_vmem [thread:$0]  %s2, 1888, %s51, [#allocation12]
    $region13: #{tpu_custom_call.1} parent=1 // pred_fallthru
      _
    // Predicated region
    $region14: #{tpu_custom_call.1} parent=1 // pred_check
      _
    $region15: #{tpu_custom_call.1} parent=1 // pred_check_branch
      %55 = sbr.rel (0) target = $region17
    $region16: #{tpu_custom_call.1} parent=1 // pred_region
      %s57 = ssub.s32 16384, 16384
      %58 = vsyncadd [#allocation15], %s57
      %s59 = sshll.u32 [#allocation14], 4
      %s60 = int_to_ptr.vmem [resolvable:$true] %s59
      %65 = dma.hbm_to_vmem [thread:$0]  %s3, 16384, %s60, [#allocation15], 2048, 2048, 128
    $region17: #{tpu_custom_call.1} parent=1 // pred_fallthru
      _
    // Predicated region
    $region18: #{tpu_custom_call.1} parent=1 // pred_check
      _
    $region19: #{tpu_custom_call.1} parent=1 // pred_check_branch
      %67 = sbr.rel (0) target = $region21
    $region20: #{tpu_custom_call.1} parent=1 // pred_region
      %s69 = ssub.s32 2048, 2048
      %70 = vsyncadd [#allocation15], %s69
      %s71 = sshll.u32 [#allocation16], 4
      %s72 = int_to_ptr.vmem [resolvable:$true] %s71
      %77 = dma.hbm_to_vmem [thread:$0]  %s4, 2048, %s72, [#allocation15], 128, 128, 8
    $region21: #{tpu_custom_call.1} parent=1 // pred_fallthru
      _
    // Predicated region
    $region22: #{tpu_custom_call.1} parent=1 // pred_check
      _
    $region23: #{tpu_custom_call.1} parent=1 // pred_check_branch
      %79 = sbr.rel (0) target = $region25
    $region24: #{tpu_custom_call.1} parent=1 // pred_region
      %s81 = ssub.s32 256, 256
      %82 = vsyncadd [#allocation18], %s81
      %s83 = sshll.u32 [#allocation17], 4
      %s84 = int_to_ptr.vmem [resolvable:$true] %s83
      %89 = dma.hbm_to_vmem [thread:$0]  %s5, 256, %s84, [#allocation18], 128, 128, 8
    $region25: #{tpu_custom_call.1} parent=1 // pred_fallthru
      _
    // Predicated region
    $region26: #{tpu_custom_call.1} parent=1 // pred_check
      _
    $region27: #{tpu_custom_call.1} parent=1 // pred_check_branch
      %91 = sbr.rel (0) target = $region29
    $region28: #{tpu_custom_call.1} parent=1 // pred_region
      %92 = dma.done [#allocation9], 64
    $region29: #{tpu_custom_call.1} parent=1 // pred_fallthru
      _
    // Predicated region
    $region30: #{tpu_custom_call.1} parent=1 // pred_check
      _
    $region31: #{tpu_custom_call.1} parent=1 // pred_check_branch
      %94 = sbr.rel (0) target = $region33
    $region32: #{tpu_custom_call.1} parent=1 // pred_region
      %95 = dma.done [#allocation12], 32
    $region33: #{tpu_custom_call.1} parent=1 // pred_fallthru
      _
    // Predicated region
    $region34: #{tpu_custom_call.1} parent=1 // pred_check
      _
    $region35: #{tpu_custom_call.1} parent=1 // pred_check_branch
      %97 = sbr.rel (0) target = $region37
    $region36: #{tpu_custom_call.1} parent=1 // pred_region
      %98 = dma.done [#allocation12], 1888
    $region37: #{tpu_custom_call.1} parent=1 // pred_fallthru
      _
    // Predicated region
    $region38: #{tpu_custom_call.1} parent=1 // pred_check
      _
    $region39: #{tpu_custom_call.1} parent=1 // pred_check_branch
      %100 = sbr.rel (0) target = $region41
    $region40: #{tpu_custom_call.1} parent=1 // pred_region
      %101 = dma.done [#allocation15], 16384
    $region41: #{tpu_custom_call.1} parent=1 // pred_fallthru
      _
    // Predicated region
    $region42: #{tpu_custom_call.1} parent=1 // pred_check
      _
    $region43: #{tpu_custom_call.1} parent=1 // pred_check_branch
      %103 = sbr.rel (0) target = $region45
    $region44: #{tpu_custom_call.1} parent=1 // pred_region
      %104 = dma.done [#allocation15], 2048
    $region45: #{tpu_custom_call.1} parent=1 // pred_fallthru
      _
    // Predicated region
    $region46: #{tpu_custom_call.1} parent=1 // pred_check
      _
    $region47: #{tpu_custom_call.1} parent=1 // pred_check_branch
      %106 = sbr.rel (0) target = $region49
    $region48: #{tpu_custom_call.1} parent=1 // pred_region
      %107 = dma.done [#allocation18], 256
    $region49: #{tpu_custom_call.1} parent=1 // pred_fallthru
      _
    // Predicated region
    $region50: #{tpu_custom_call.1} parent=1 // pred_check
      _
    $region51: #{tpu_custom_call.1} parent=1 // pred_check_branch
      %110 = sbr.rel target = $region53
    $region52: #{tpu_custom_call.1} parent=1 // pred_region
      %111 = sst [smem:[#allocation24]] [#allocation23]
      %112 = sst [smem:[#allocation25]] [#allocation22]
    $region53: #{tpu_custom_call.1} parent=1 // pred_fallthru
      _
    %114 = shalt.err (0)
    %s116 = sshll.u32 [#allocation2], 4
    %s117 = int_to_ptr.vmem [resolvable:$true] %s116
    %119 = dma.hbm_to_vmem [thread:$0]  %s6, 65536, %s117, [#allocation7]
    %s120 = scalar_lea.sflag [#allocation7], 1
    // Predicated region
    $region54: #{tpu_custom_call.1} parent=1 // pred_check
      _
    $region55: #{tpu_custom_call.1} parent=1 // pred_check_branch
      %122 = sbr.rel target = $region57
    $region56: #{tpu_custom_call.1} parent=1 // pred_region
      %123 = sst [smem:[#allocation24]] [#allocation27]
      %124 = sst [smem:[#allocation25]] [#allocation26]
    $region57: #{tpu_custom_call.1} parent=1 // pred_fallthru
      _
    %126 = shalt.err (0)
    %s128 = sshll.u32 [#allocation3], 4
    %s129 = int_to_ptr.vmem [resolvable:$true] %s128
    %131 = dma.hbm_to_vmem [thread:$0]  %s7, 16384, %s129, %s120
    %s132 = scalar_lea.sflag [#allocation7], 2
    // Predicated region
    $region58: #{tpu_custom_call.1} parent=1 // pred_check
      _
    $region59: #{tpu_custom_call.1} parent=1 // pred_check_branch
      %134 = sbr.rel target = $region61
    $region60: #{tpu_custom_call.1} parent=1 // pred_region
      %135 = sst [smem:[#allocation24]] [#allocation29]
      %136 = sst [smem:[#allocation25]] [#allocation28]
    $region61: #{tpu_custom_call.1} parent=1 // pred_fallthru
      _
    %138 = shalt.err (0)
    %s140 = sshll.u32 [#allocation4], 4
    %s141 = int_to_ptr.vmem [resolvable:$true] %s140
    %143 = dma.hbm_to_vmem [thread:$0]  %s8, 16384, %s141, %s132
    %s144 = scalar_lea.sflag [#allocation7], 3
    // Predicated region
    $region62: #{tpu_custom_call.1} parent=1 // pred_check
      _
    $region63: #{tpu_custom_call.1} parent=1 // pred_check_branch
      %146 = sbr.rel target = $region65
    $region64: #{tpu_custom_call.1} parent=1 // pred_region
      %147 = sst [smem:[#allocation24]] [#allocation31]
      %148 = sst [smem:[#allocation25]] [#allocation30]
    $region65: #{tpu_custom_call.1} parent=1 // pred_fallthru
      _
    %150 = shalt.err (0)
    %s152 = sshll.u32 [#allocation5], 4
    %s153 = int_to_ptr.vmem [resolvable:$true] %s152
    %155 = dma.hbm_to_vmem [thread:$0]  %s9, 65536, %s153, %s144
    %s156 = scalar_lea.sflag [#allocation7], 4
    // Predicated region
    $region66: #{tpu_custom_call.1} parent=1 // pred_check
      _
    $region67: #{tpu_custom_call.1} parent=1 // pred_check_branch
      %158 = sbr.rel target = $region69
    $region68: #{tpu_custom_call.1} parent=1 // pred_region
      %159 = sst [smem:[#allocation24]] [#allocation33]
      %160 = sst [smem:[#allocation25]] [#allocation32]
    $region69: #{tpu_custom_call.1} parent=1 // pred_fallthru
      _
    %162 = shalt.err (0)
    %s164 = sshll.u32 [#allocation6], 4
    %s165 = int_to_ptr.vmem [resolvable:$true] %s164
    %167 = dma.hbm_to_vmem [thread:$0]  %s10, 16384, %s165, %s156
    %v168 = vld [vmem:[#allocation8] sm:$0xf]
    %v169 = vld [vmem:[#allocation14] sm:$0xff]
    %v170 = vld [vmem:[#allocation14 + $0x8] sm:$0xff]
    %v171 = vld [vmem:[#allocation14 + $0x10] sm:$0xff]
    %v172 = vld [vmem:[#allocation14 + $0x18] sm:$0xff]
    %v173 = vld [vmem:[#allocation14 + $0x20] sm:$0xff]
    %v174 = vld [vmem:[#allocation14 + $0x28] sm:$0xff]
    %v175 = vld [vmem:[#allocation14 + $0x30] sm:$0xff]
    %v176 = vld [vmem:[#allocation14 + $0x38] sm:$0xff]
    %v177 = vld [vmem:[#allocation14 + $0x40] sm:$0xff]
    %v178 = vld [vmem:[#allocation14 + $0x48] sm:$0xff]
    %v179 = vld [vmem:[#allocation14 + $0x50] sm:$0xff]
    %v180 = vld [vmem:[#allocation14 + $0x58] sm:$0xff]
    %v181 = vld [vmem:[#allocation14 + $0x60] sm:$0xff]
    %v182 = vld [vmem:[#allocation14 + $0x68] sm:$0xff]
    %v183 = vld [vmem:[#allocation14 + $0x70] sm:$0xff]
    %v184 = vld [vmem:[#allocation14 + $0x78] sm:$0xff]
    %v185 = vld [vmem:[#allocation14 + $0x80] sm:$0xff]
    %v186 = vld [vmem:[#allocation14 + $0x88] sm:$0xff]
    %v187 = vld [vmem:[#allocation14 + $0x90] sm:$0xff]
    %v188 = vld [vmem:[#allocation14 + $0x98] sm:$0xff]
    %v189 = vld [vmem:[#allocation14 + $0xa0] sm:$0xff]
    %v190 = vld [vmem:[#allocation14 + $0xa8] sm:$0xff]
    %v191 = vld [vmem:[#allocation14 + $0xb0] sm:$0xff]
    %v192 = vld [vmem:[#allocation14 + $0xb8] sm:$0xff]
    %v193 = vld [vmem:[#allocation14 + $0xc0] sm:$0xff]
    %v194 = vld [vmem:[#allocation14 + $0xc8] sm:$0xff]
    %v195 = vld [vmem:[#allocation14 + $0xd0] sm:$0xff]
    %v196 = vld [vmem:[#allocation14 + $0xd8] sm:$0xff]
    %v197 = vld [vmem:[#allocation14 + $0xe0] sm:$0xff]
    %v198 = vld [vmem:[#allocation14 + $0xe8] sm:$0xff]
    %v199 = vld [vmem:[#allocation14 + $0xf0] sm:$0xff]
    %v200 = vld [vmem:[#allocation14 + $0xf8] sm:$0xff]
    %v201 = vld [vmem:[#allocation14 + $0x100] sm:$0xff]
    %v202 = vld [vmem:[#allocation14 + $0x108] sm:$0xff]
    %v203 = vld [vmem:[#allocation14 + $0x110] sm:$0xff]
    %v204 = vld [vmem:[#allocation14 + $0x118] sm:$0xff]
    %v205 = vld [vmem:[#allocation14 + $0x120] sm:$0xff]
    %v206 = vld [vmem:[#allocation14 + $0x128] sm:$0xff]
    %v207 = vld [vmem:[#allocation14 + $0x130] sm:$0xff]
    %v208 = vld [vmem:[#allocation14 + $0x138] sm:$0xff]
    %v209 = vld [vmem:[#allocation14 + $0x140] sm:$0xff]
    %v210 = vld [vmem:[#allocation14 + $0x148] sm:$0xff]
    %v211 = vld [vmem:[#allocation14 + $0x150] sm:$0xff]
    %v212 = vld [vmem:[#allocation14 + $0x158] sm:$0xff]
    %v213 = vld [vmem:[#allocation14 + $0x160] sm:$0xff]
    %v214 = vld [vmem:[#allocation14 + $0x168] sm:$0xff]
    %v215 = vld [vmem:[#allocation14 + $0x170] sm:$0xff]
    %v216 = vld [vmem:[#allocation14 + $0x178] sm:$0xff]
    %v217 = vld [vmem:[#allocation14 + $0x180] sm:$0xff]
    %v218 = vld [vmem:[#allocation14 + $0x188] sm:$0xff]
    %v219 = vld [vmem:[#allocation14 + $0x190] sm:$0xff]
    %v220 = vld [vmem:[#allocation14 + $0x198] sm:$0xff]
    %v221 = vld [vmem:[#allocation14 + $0x1a0] sm:$0xff]
    %v222 = vld [vmem:[#allocation14 + $0x1a8] sm:$0xff]
    %v223 = vld [vmem:[#allocation14 + $0x1b0] sm:$0xff]
    %v224 = vld [vmem:[#allocation14 + $0x1b8] sm:$0xff]
    %v225 = vld [vmem:[#allocation14 + $0x1c0] sm:$0xff]
    %v226 = vld [vmem:[#allocation14 + $0x1c8] sm:$0xff]
    %v227 = vld [vmem:[#allocation14 + $0x1d0] sm:$0xff]
    %v228 = vld [vmem:[#allocation14 + $0x1d8] sm:$0xff]
    %v229 = vld [vmem:[#allocation14 + $0x1e0] sm:$0xff]
    %v230 = vld [vmem:[#allocation14 + $0x1e8] sm:$0xff]
    %v231 = vld [vmem:[#allocation14 + $0x1f0] sm:$0xff]
    %v232 = vld [vmem:[#allocation14 + $0x1f8] sm:$0xff]
    %v233 = vld [vmem:[#allocation14 + $0x200] sm:$0xff]
    %v234 = vld [vmem:[#allocation14 + $0x208] sm:$0xff]
    %v235 = vld [vmem:[#allocation14 + $0x210] sm:$0xff]
    %v236 = vld [vmem:[#allocation14 + $0x218] sm:$0xff]
    %v237 = vld [vmem:[#allocation14 + $0x220] sm:$0xff]
    %v238 = vld [vmem:[#allocation14 + $0x228] sm:$0xff]
    %v239 = vld [vmem:[#allocation14 + $0x230] sm:$0xff]
    %v240 = vld [vmem:[#allocation14 + $0x238] sm:$0xff]
    %v241 = vld [vmem:[#allocation14 + $0x240] sm:$0xff]
    %v242 = vld [vmem:[#allocation14 + $0x248] sm:$0xff]
    %v243 = vld [vmem:[#allocation14 + $0x250] sm:$0xff]
    %v244 = vld [vmem:[#allocation14 + $0x258] sm:$0xff]
    %v245 = vld [vmem:[#allocation14 + $0x260] sm:$0xff]
    %v246 = vld [vmem:[#allocation14 + $0x268] sm:$0xff]
    %v247 = vld [vmem:[#allocation14 + $0x270] sm:$0xff]
    %v248 = vld [vmem:[#allocation14 + $0x278] sm:$0xff]
    %v249 = vld [vmem:[#allocation14 + $0x280] sm:$0xff]
    %v250 = vld [vmem:[#allocation14 + $0x288] sm:$0xff]
    %v251 = vld [vmem:[#allocation14 + $0x290] sm:$0xff]
    %v252 = vld [vmem:[#allocation14 + $0x298] sm:$0xff]
    %v253 = vld [vmem:[#allocation14 + $0x2a0] sm:$0xff]
    %v254 = vld [vmem:[#allocation14 + $0x2a8] sm:$0xff]
    %v255 = vld [vmem:[#allocation14 + $0x2b0] sm:$0xff]
    %v256 = vld [vmem:[#allocation14 + $0x2b8] sm:$0xff]
    %v257 = vld [vmem:[#allocation14 + $0x2c0] sm:$0xff]
    %v258 = vld [vmem:[#allocation14 + $0x2c8] sm:$0xff]
    %v259 = vld [vmem:[#allocation14 + $0x2d0] sm:$0xff]
    %v260 = vld [vmem:[#allocation14 + $0x2d8] sm:$0xff]
    %v261 = vld [vmem:[#allocation14 + $0x2e0] sm:$0xff]
    %v262 = vld [vmem:[#allocation14 + $0x2e8] sm:$0xff]
    %v263 = vld [vmem:[#allocation14 + $0x2f0] sm:$0xff]
    %v264 = vld [vmem:[#allocation14 + $0x2f8] sm:$0xff]
    %v265 = vld [vmem:[#allocation14 + $0x300] sm:$0xff]
    %v266 = vld [vmem:[#allocation14 + $0x308] sm:$0xff]
    %v267 = vld [vmem:[#allocation14 + $0x310] sm:$0xff]
    %v268 = vld [vmem:[#allocation14 + $0x318] sm:$0xff]
    %v269 = vld [vmem:[#allocation14 + $0x320] sm:$0xff]
    %v270 = vld [vmem:[#allocation14 + $0x328] sm:$0xff]
    %v271 = vld [vmem:[#allocation14 + $0x330] sm:$0xff]
    %v272 = vld [vmem:[#allocation14 + $0x338] sm:$0xff]
    %v273 = vld [vmem:[#allocation14 + $0x340] sm:$0xff]
    %v274 = vld [vmem:[#allocation14 + $0x348] sm:$0xff]
    %v275 = vld [vmem:[#allocation14 + $0x350] sm:$0xff]
    %v276 = vld [vmem:[#allocation14 + $0x358] sm:$0xff]
    %v277 = vld [vmem:[#allocation14 + $0x360] sm:$0xff]
    %v278 = vld [vmem:[#allocation14 + $0x368] sm:$0xff]
    %v279 = vld [vmem:[#allocation14 + $0x370] sm:$0xff]
    %v280 = vld [vmem:[#allocation14 + $0x378] sm:$0xff]
    %v281 = vld [vmem:[#allocation14 + $0x380] sm:$0xff]
    %v282 = vld [vmem:[#allocation14 + $0x388] sm:$0xff]
    %v283 = vld [vmem:[#allocation14 + $0x390] sm:$0xff]
    %v284 = vld [vmem:[#allocation14 + $0x398] sm:$0xff]
    %v285 = vld [vmem:[#allocation14 + $0x3a0] sm:$0xff]
    %v286 = vld [vmem:[#allocation14 + $0x3a8] sm:$0xff]
    %v287 = vld [vmem:[#allocation14 + $0x3b0] sm:$0xff]
    %v288 = vld [vmem:[#allocation14 + $0x3b8] sm:$0xff]
    %v289 = vld [vmem:[#allocation14 + $0x3c0] sm:$0xff]
    %v290 = vld [vmem:[#allocation14 + $0x3c8] sm:$0xff]
    %v291 = vld [vmem:[#allocation14 + $0x3d0] sm:$0xff]
    %v292 = vld [vmem:[#allocation14 + $0x3d8] sm:$0xff]
    %v293 = vld [vmem:[#allocation14 + $0x3e0] sm:$0xff]
    %v294 = vld [vmem:[#allocation14 + $0x3e8] sm:$0xff]
    %v295 = vld [vmem:[#allocation14 + $0x3f0] sm:$0xff]
    %v296 = vld [vmem:[#allocation14 + $0x3f8] sm:$0xff]
    %v299 = vunpack.c.l.s4 1983009808
    %v300 = vunpack.c.0.s8 %v299
    %v301 = vlaneseq
    %v302 = vshrl.u32 %v301, 7
    %v303 = vsub.s32 %v300, %v302
    %v304 = vrot.slane %v168, %v303
    %v305 = vcombine.high %v304, %v304
    %v308 = vpack.c.bf16 %v304, %v304
    %v309 = vpack.c.bf16 %v305, %v305
    %v310 = vunpack.c.l.s8.bf16 %v169
    %v311 = vunpack.c.l.s8.bf16 %v170
    %v312 = vunpack.c.l.s8.bf16 %v171
    %v313 = vunpack.c.l.s8.bf16 %v172
    %v314 = vunpack.c.l.s8.bf16 %v173
    %v315 = vunpack.c.l.s8.bf16 %v174
    %v316 = vunpack.c.l.s8.bf16 %v175
    %v317 = vunpack.c.l.s8.bf16 %v176
    %v318 = vunpack.c.l.s8.bf16 %v177
    %v319 = vunpack.c.l.s8.bf16 %v178
    %v320 = vunpack.c.l.s8.bf16 %v179
    %v321 = vunpack.c.l.s8.bf16 %v180
    %v322 = vunpack.c.l.s8.bf16 %v181
    %v323 = vunpack.c.l.s8.bf16 %v182
    %v324 = vunpack.c.l.s8.bf16 %v183
    %v325 = vunpack.c.l.s8.bf16 %v184
    %v326 = vunpack.c.h.s8.bf16 %v169
    %v327 = vunpack.c.h.s8.bf16 %v170
    %v328 = vunpack.c.h.s8.bf16 %v171
    %v329 = vunpack.c.h.s8.bf16 %v172
    %v330 = vunpack.c.h.s8.bf16 %v173
    %v331 = vunpack.c.h.s8.bf16 %v174
    %v332 = vunpack.c.h.s8.bf16 %v175
    %v333 = vunpack.c.h.s8.bf16 %v176
    %v334 = vunpack.c.h.s8.bf16 %v177
    %v335 = vunpack.c.h.s8.bf16 %v178
    %v336 = vunpack.c.h.s8.bf16 %v179
    %v337 = vunpack.c.h.s8.bf16 %v180
    %v338 = vunpack.c.h.s8.bf16 %v181
    %v339 = vunpack.c.h.s8.bf16 %v182
    %v340 = vunpack.c.h.s8.bf16 %v183
    %v341 = vunpack.c.h.s8.bf16 %v184
    %v342 = vunpack.c.l.s8.bf16 %v185
    %v343 = vunpack.c.l.s8.bf16 %v186
    %v344 = vunpack.c.l.s8.bf16 %v187
    %v345 = vunpack.c.l.s8.bf16 %v188
    %v346 = vunpack.c.l.s8.bf16 %v189
    %v347 = vunpack.c.l.s8.bf16 %v190
    %v348 = vunpack.c.l.s8.bf16 %v191
    %v349 = vunpack.c.l.s8.bf16 %v192
    %v350 = vunpack.c.l.s8.bf16 %v193
    %v351 = vunpack.c.l.s8.bf16 %v194
    %v352 = vunpack.c.l.s8.bf16 %v195
    %v353 = vunpack.c.l.s8.bf16 %v196
    %v354 = vunpack.c.l.s8.bf16 %v197
    %v355 = vunpack.c.l.s8.bf16 %v198
    %v356 = vunpack.c.l.s8.bf16 %v199
    %v357 = vunpack.c.l.s8.bf16 %v200
    %v358 = vunpack.c.h.s8.bf16 %v185
    %v359 = vunpack.c.h.s8.bf16 %v186
    %v360 = vunpack.c.h.s8.bf16 %v187
    %v361 = vunpack.c.h.s8.bf16 %v188
    %v362 = vunpack.c.h.s8.bf16 %v189
    %v363 = vunpack.c.h.s8.bf16 %v190
    %v364 = vunpack.c.h.s8.bf16 %v191
    %v365 = vunpack.c.h.s8.bf16 %v192
    %v366 = vunpack.c.h.s8.bf16 %v193
    %v367 = vunpack.c.h.s8.bf16 %v194
    %v368 = vunpack.c.h.s8.bf16 %v195
    %v369 = vunpack.c.h.s8.bf16 %v196
    %v370 = vunpack.c.h.s8.bf16 %v197
    %v371 = vunpack.c.h.s8.bf16 %v198
    %v372 = vunpack.c.h.s8.bf16 %v199
    %v373 = vunpack.c.h.s8.bf16 %v200
    %v374 = vunpack.c.l.s8.bf16 %v201
    %v375 = vunpack.c.l.s8.bf16 %v202
    %v376 = vunpack.c.l.s8.bf16 %v203
    %v377 = vunpack.c.l.s8.bf16 %v204
    %v378 = vunpack.c.l.s8.bf16 %v205
    %v379 = vunpack.c.l.s8.bf16 %v206
    %v380 = vunpack.c.l.s8.bf16 %v207
    %v381 = vunpack.c.l.s8.bf16 %v208
    %v382 = vunpack.c.l.s8.bf16 %v209
    %v383 = vunpack.c.l.s8.bf16 %v210
    %v384 = vunpack.c.l.s8.bf16 %v211
    %v385 = vunpack.c.l.s8.bf16 %v212
    %v386 = vunpack.c.l.s8.bf16 %v213
    %v387 = vunpack.c.l.s8.bf16 %v214
    %v388 = vunpack.c.l.s8.bf16 %v215
    %v389 = vunpack.c.l.s8.bf16 %v216
    %v390 = vunpack.c.h.s8.bf16 %v201
    %v391 = vunpack.c.h.s8.bf16 %v202
    %v392 = vunpack.c.h.s8.bf16 %v203
    %v393 = vunpack.c.h.s8.bf16 %v204
    %v394 = vunpack.c.h.s8.bf16 %v205
    %v395 = vunpack.c.h.s8.bf16 %v206
    %v396 = vunpack.c.h.s8.bf16 %v207
    %v397 = vunpack.c.h.s8.bf16 %v208
    %v398 = vunpack.c.h.s8.bf16 %v209
    %v399 = vunpack.c.h.s8.bf16 %v210
    %v400 = vunpack.c.h.s8.bf16 %v211
    %v401 = vunpack.c.h.s8.bf16 %v212
    %v402 = vunpack.c.h.s8.bf16 %v213
    %v403 = vunpack.c.h.s8.bf16 %v214
    %v404 = vunpack.c.h.s8.bf16 %v215
    %v405 = vunpack.c.h.s8.bf16 %v216
    %v406 = vunpack.c.l.s8.bf16 %v217
    %v407 = vunpack.c.l.s8.bf16 %v218
    %v408 = vunpack.c.l.s8.bf16 %v219
    %v409 = vunpack.c.l.s8.bf16 %v220
    %v410 = vunpack.c.l.s8.bf16 %v221
    %v411 = vunpack.c.l.s8.bf16 %v222
    %v412 = vunpack.c.l.s8.bf16 %v223
    %v413 = vunpack.c.l.s8.bf16 %v224
    %v414 = vunpack.c.l.s8.bf16 %v225
    %v415 = vunpack.c.l.s8.bf16 %v226
    %v416 = vunpack.c.l.s8.bf16 %v227
    %v417 = vunpack.c.l.s8.bf16 %v228
    %v418 = vunpack.c.l.s8.bf16 %v229
    %v419 = vunpack.c.l.s8.bf16 %v230
    %v420 = vunpack.c.l.s8.bf16 %v231
    %v421 = vunpack.c.l.s8.bf16 %v232
    %v422 = vunpack.c.h.s8.bf16 %v217
    %v423 = vunpack.c.h.s8.bf16 %v218
    %v424 = vunpack.c.h.s8.bf16 %v219
    %v425 = vunpack.c.h.s8.bf16 %v220
    %v426 = vunpack.c.h.s8.bf16 %v221
    %v427 = vunpack.c.h.s8.bf16 %v222
    %v428 = vunpack.c.h.s8.bf16 %v223
    %v429 = vunpack.c.h.s8.bf16 %v224
    %v430 = vunpack.c.h.s8.bf16 %v225
    %v431 = vunpack.c.h.s8.bf16 %v226
    %v432 = vunpack.c.h.s8.bf16 %v227
    %v433 = vunpack.c.h.s8.bf16 %v228
    %v434 = vunpack.c.h.s8.bf16 %v229
    %v435 = vunpack.c.h.s8.bf16 %v230
    %v436 = vunpack.c.h.s8.bf16 %v231
    %v437 = vunpack.c.h.s8.bf16 %v232
    %v438 = vunpack.c.l.s8.bf16 %v233
    %v439 = vunpack.c.l.s8.bf16 %v234
    %v440 = vunpack.c.l.s8.bf16 %v235
    %v441 = vunpack.c.l.s8.bf16 %v236
    %v442 = vunpack.c.l.s8.bf16 %v237
    %v443 = vunpack.c.l.s8.bf16 %v238
    %v444 = vunpack.c.l.s8.bf16 %v239
    %v445 = vunpack.c.l.s8.bf16 %v240
    %v446 = vunpack.c.l.s8.bf16 %v241
    %v447 = vunpack.c.l.s8.bf16 %v242
    %v448 = vunpack.c.l.s8.bf16 %v243
    %v449 = vunpack.c.l.s8.bf16 %v244
    %v450 = vunpack.c.l.s8.bf16 %v245
    %v451 = vunpack.c.l.s8.bf16 %v246
    %v452 = vunpack.c.l.s8.bf16 %v247
    %v453 = vunpack.c.l.s8.bf16 %v248
    %v454 = vunpack.c.h.s8.bf16 %v233
    %v455 = vunpack.c.h.s8.bf16 %v234
    %v456 = vunpack.c.h.s8.bf16 %v235
    %v457 = vunpack.c.h.s8.bf16 %v236
    %v458 = vunpack.c.h.s8.bf16 %v237
    %v459 = vunpack.c.h.s8.bf16 %v238
    %v460 = vunpack.c.h.s8.bf16 %v239
    %v461 = vunpack.c.h.s8.bf16 %v240
    %v462 = vunpack.c.h.s8.bf16 %v241
    %v463 = vunpack.c.h.s8.bf16 %v242
    %v464 = vunpack.c.h.s8.bf16 %v243
    %v465 = vunpack.c.h.s8.bf16 %v244
    %v466 = vunpack.c.h.s8.bf16 %v245
    %v467 = vunpack.c.h.s8.bf16 %v246
    %v468 = vunpack.c.h.s8.bf16 %v247
    %v469 = vunpack.c.h.s8.bf16 %v248
    %v470 = vunpack.c.l.s8.bf16 %v249
    %v471 = vunpack.c.l.s8.bf16 %v250
    %v472 = vunpack.c.l.s8.bf16 %v251
    %v473 = vunpack.c.l.s8.bf16 %v252
    %v474 = vunpack.c.l.s8.bf16 %v253
    %v475 = vunpack.c.l.s8.bf16 %v254
    %v476 = vunpack.c.l.s8.bf16 %v255
    %v477 = vunpack.c.l.s8.bf16 %v256
    %v478 = vunpack.c.l.s8.bf16 %v257
    %v479 = vunpack.c.l.s8.bf16 %v258
    %v480 = vunpack.c.l.s8.bf16 %v259
    %v481 = vunpack.c.l.s8.bf16 %v260
    %v482 = vunpack.c.l.s8.bf16 %v261
    %v483 = vunpack.c.l.s8.bf16 %v262
    %v484 = vunpack.c.l.s8.bf16 %v263
    %v485 = vunpack.c.l.s8.bf16 %v264
    %v486 = vunpack.c.h.s8.bf16 %v249
    %v487 = vunpack.c.h.s8.bf16 %v250
    %v488 = vunpack.c.h.s8.bf16 %v251
    %v489 = vunpack.c.h.s8.bf16 %v252
    %v490 = vunpack.c.h.s8.bf16 %v253
    %v491 = vunpack.c.h.s8.bf16 %v254
    %v492 = vunpack.c.h.s8.bf16 %v255
    %v493 = vunpack.c.h.s8.bf16 %v256
    %v494 = vunpack.c.h.s8.bf16 %v257
    %v495 = vunpack.c.h.s8.bf16 %v258
    %v496 = vunpack.c.h.s8.bf16 %v259
    %v497 = vunpack.c.h.s8.bf16 %v260
    %v498 = vunpack.c.h.s8.bf16 %v261
    %v499 = vunpack.c.h.s8.bf16 %v262
    %v500 = vunpack.c.h.s8.bf16 %v263
    %v501 = vunpack.c.h.s8.bf16 %v264
    %v502 = vunpack.c.l.s8.bf16 %v265
    %v503 = vunpack.c.l.s8.bf16 %v266
    %v504 = vunpack.c.l.s8.bf16 %v267
    %v505 = vunpack.c.l.s8.bf16 %v268
    %v506 = vunpack.c.l.s8.bf16 %v269
    %v507 = vunpack.c.l.s8.bf16 %v270
    %v508 = vunpack.c.l.s8.bf16 %v271
    %v509 = vunpack.c.l.s8.bf16 %v272
    %v510 = vunpack.c.l.s8.bf16 %v273
    %v511 = vunpack.c.l.s8.bf16 %v274
    %v512 = vunpack.c.l.s8.bf16 %v275
    %v513 = vunpack.c.l.s8.bf16 %v276
    %v514 = vunpack.c.l.s8.bf16 %v277
    %v515 = vunpack.c.l.s8.bf16 %v278
    %v516 = vunpack.c.l.s8.bf16 %v279
    %v517 = vunpack.c.l.s8.bf16 %v280
    %v518 = vunpack.c.h.s8.bf16 %v265
    %v519 = vunpack.c.h.s8.bf16 %v266
    %v520 = vunpack.c.h.s8.bf16 %v267
    %v521 = vunpack.c.h.s8.bf16 %v268
    %v522 = vunpack.c.h.s8.bf16 %v269
    %v523 = vunpack.c.h.s8.bf16 %v270
    %v524 = vunpack.c.h.s8.bf16 %v271
    %v525 = vunpack.c.h.s8.bf16 %v272
    %v526 = vunpack.c.h.s8.bf16 %v273
    %v527 = vunpack.c.h.s8.bf16 %v274
    %v528 = vunpack.c.h.s8.bf16 %v275
    %v529 = vunpack.c.h.s8.bf16 %v276
    %v530 = vunpack.c.h.s8.bf16 %v277
    %v531 = vunpack.c.h.s8.bf16 %v278
    %v532 = vunpack.c.h.s8.bf16 %v279
    %v533 = vunpack.c.h.s8.bf16 %v280
    %v534 = vunpack.c.l.s8.bf16 %v281
    %v535 = vunpack.c.l.s8.bf16 %v282
    %v536 = vunpack.c.l.s8.bf16 %v283
    %v537 = vunpack.c.l.s8.bf16 %v284
    %v538 = vunpack.c.l.s8.bf16 %v285
    %v539 = vunpack.c.l.s8.bf16 %v286
    %v540 = vunpack.c.l.s8.bf16 %v287
    %v541 = vunpack.c.l.s8.bf16 %v288
    %v542 = vunpack.c.l.s8.bf16 %v289
    %v543 = vunpack.c.l.s8.bf16 %v290
    %v544 = vunpack.c.l.s8.bf16 %v291
    %v545 = vunpack.c.l.s8.bf16 %v292
    %v546 = vunpack.c.l.s8.bf16 %v293
    %v547 = vunpack.c.l.s8.bf16 %v294
    %v548 = vunpack.c.l.s8.bf16 %v295
    %v549 = vunpack.c.l.s8.bf16 %v296
    %v550 = vunpack.c.h.s8.bf16 %v281
    %v551 = vunpack.c.h.s8.bf16 %v282
    %v552 = vunpack.c.h.s8.bf16 %v283
    %v553 = vunpack.c.h.s8.bf16 %v284
    %v554 = vunpack.c.h.s8.bf16 %v285
    %v555 = vunpack.c.h.s8.bf16 %v286
    %v556 = vunpack.c.h.s8.bf16 %v287
    %v557 = vunpack.c.h.s8.bf16 %v288
    %v558 = vunpack.c.h.s8.bf16 %v289
    %v559 = vunpack.c.h.s8.bf16 %v290
    %v560 = vunpack.c.h.s8.bf16 %v291
    %v561 = vunpack.c.h.s8.bf16 %v292
    %v562 = vunpack.c.h.s8.bf16 %v293
    %v563 = vunpack.c.h.s8.bf16 %v294
    %v564 = vunpack.c.h.s8.bf16 %v295
    %v565 = vunpack.c.h.s8.bf16 %v296
    %566 = vmatprep.subr.bf16.mxu0 %v311
    %567 = vmatpush1.bf16.msra.mxu0 %v310
    %568 = vmatprep.subr.bf16.mxu0 %v327
    %569 = vmatpush1.bf16.msra.mxu0 %v326
    %570 = vmatprep.subr.bf16.mxu0 %v343
    %571 = vmatpush1.bf16.msra.mxu0 %v342
    %572 = vmatprep.subr.bf16.mxu0 %v359
    %573 = vmatpush1.bf16.msra.mxu0 %v358
    %574 = vmatprep.subr.bf16.mxu0 %v375
    %575 = vmatpush1.bf16.msra.mxu0 %v374
    %576 = vmatprep.subr.bf16.mxu0 %v391
    %577 = vmatpush1.bf16.msra.mxu0 %v390
    %578 = vmatprep.subr.bf16.mxu0 %v407
    %579 = vmatpush1.bf16.msra.mxu0 %v406
    %580 = vmatprep.subr.bf16.mxu0 %v423
    %581 = vmatpush1.bf16.msra.mxu0 %v422
    %582 = vmatprep.subr.bf16.mxu0 %v439
    %583 = vmatpush1.bf16.msra.mxu0 %v438
    %584 = vmatprep.subr.bf16.mxu0 %v455
    %585 = vmatpush1.bf16.msra.mxu0 %v454
    %586 = vmatprep.subr.bf16.mxu0 %v471
    %587 = vmatpush1.bf16.msra.mxu0 %v470
    %588 = vmatprep.subr.bf16.mxu0 %v487
    %589 = vmatpush1.bf16.msra.mxu0 %v486
    %590 = vmatprep.subr.bf16.mxu0 %v503
    %591 = vmatpush1.bf16.msra.mxu0 %v502
    %592 = vmatprep.subr.bf16.mxu0 %v519
    %593 = vmatpush1.bf16.msra.mxu0 %v518
    %594 = vmatprep.subr.bf16.mxu0 %v535
    %595 = vmatpush1.bf16.msra.mxu0 %v534
    %596 = vmatprep.subr.bf16.mxu0 %v551
    %597 = vmatpush1.bf16.msra.mxu0 %v550
    %598 = vmatprep.mubr.bf16.mxu0 %v309
    %599 = vmatmul.mubr.bf16.gmra.mrb[0].mxu0 %v308
    %v600 = vpop.f32.mrb[0].mxu0
    %v601 = vadd.f32 0.0, %v600
    %v602 = vpop.f32.mrb[0].mxu0
    %v603 = vadd.f32 0.0, %v602
    %v604 = vpop.f32.mrb[0].mxu0
    %v605 = vpop.f32.mrb[0].mxu0
    %606 = vdwg.mxu0
    %607 = vmatprep.subr.bf16.mxu0 %v313
    %608 = vmatpush1.bf16.msra.mxu0 %v312
    %609 = vmatprep.subr.bf16.mxu0 %v329
    %610 = vmatpush1.bf16.msra.mxu0 %v328
    %611 = vmatprep.subr.bf16.mxu0 %v345
    %612 = vmatpush1.bf16.msra.mxu0 %v344
    %613 = vmatprep.subr.bf16.mxu0 %v361
    %614 = vmatpush1.bf16.msra.mxu0 %v360
    %615 = vmatprep.subr.bf16.mxu0 %v377
    %616 = vmatpush1.bf16.msra.mxu0 %v376
    %617 = vmatprep.subr.bf16.mxu0 %v393
    %618 = vmatpush1.bf16.msra.mxu0 %v392
    %619 = vmatprep.subr.bf16.mxu0 %v409
    %620 = vmatpush1.bf16.msra.mxu0 %v408
    %621 = vmatprep.subr.bf16.mxu0 %v425
    %622 = vmatpush1.bf16.msra.mxu0 %v424
    %623 = vmatprep.subr.bf16.mxu0 %v441
    %624 = vmatpush1.bf16.msra.mxu0 %v440
    %625 = vmatprep.subr.bf16.mxu0 %v457
    %626 = vmatpush1.bf16.msra.mxu0 %v456
    %627 = vmatprep.subr.bf16.mxu0 %v473
    %628 = vmatpush1.bf16.msra.mxu0 %v472
    %629 = vmatprep.subr.bf16.mxu0 %v489
    %630 = vmatpush1.bf16.msra.mxu0 %v488
    %631 = vmatprep.subr.bf16.mxu0 %v505
    %632 = vmatpush1.bf16.msra.mxu0 %v504
    %633 = vmatprep.subr.bf16.mxu0 %v521
    %634 = vmatpush1.bf16.msra.mxu0 %v520
    %635 = vmatprep.subr.bf16.mxu0 %v537
    %636 = vmatpush1.bf16.msra.mxu0 %v536
    %637 = vmatprep.subr.bf16.mxu0 %v553
    %638 = vmatpush1.bf16.msra.mxu0 %v552
    %639 = vmatprep.mubr.bf16.mxu0 %v309
    %640 = vmatmul.mubr.bf16.gmra.mrb[0].mxu0 %v308
    %v641 = vpop.f32.mrb[0].mxu0
    %v642 = vadd.f32 0.0, %v641
    %v643 = vpop.f32.mrb[0].mxu0
    %v644 = vadd.f32 0.0, %v643
    %v645 = vpop.f32.mrb[0].mxu0
    %v646 = vpop.f32.mrb[0].mxu0
    %647 = vdwg.mxu0
    %648 = vmatprep.subr.bf16.mxu0 %v315
    %649 = vmatpush1.bf16.msra.mxu0 %v314
    %650 = vmatprep.subr.bf16.mxu0 %v331
    %651 = vmatpush1.bf16.msra.mxu0 %v330
    %652 = vmatprep.subr.bf16.mxu0 %v347
    %653 = vmatpush1.bf16.msra.mxu0 %v346
    %654 = vmatprep.subr.bf16.mxu0 %v363
    %655 = vmatpush1.bf16.msra.mxu0 %v362
    %656 = vmatprep.subr.bf16.mxu0 %v379
    %657 = vmatpush1.bf16.msra.mxu0 %v378
    %658 = vmatprep.subr.bf16.mxu0 %v395
    %659 = vmatpush1.bf16.msra.mxu0 %v394
    %660 = vmatprep.subr.bf16.mxu0 %v411
    %661 = vmatpush1.bf16.msra.mxu0 %v410
    %662 = vmatprep.subr.bf16.mxu0 %v427
    %663 = vmatpush1.bf16.msra.mxu0 %v426
    %664 = vmatprep.subr.bf16.mxu0 %v443
    %665 = vmatpush1.bf16.msra.mxu0 %v442
    %666 = vmatprep.subr.bf16.mxu0 %v459
    %667 = vmatpush1.bf16.msra.mxu0 %v458
    %668 = vmatprep.subr.bf16.mxu0 %v475
    %669 = vmatpush1.bf16.msra.mxu0 %v474
    %670 = vmatprep.subr.bf16.mxu0 %v491
    %671 = vmatpush1.bf16.msra.mxu0 %v490
    %672 = vmatprep.subr.bf16.mxu0 %v507
    %673 = vmatpush1.bf16.msra.mxu0 %v506
    %674 = vmatprep.subr.bf16.mxu0 %v523
    %675 = vmatpush1.bf16.msra.mxu0 %v522
    %676 = vmatprep.subr.bf16.mxu0 %v539
    %677 = vmatpush1.bf16.msra.mxu0 %v538
    %678 = vmatprep.subr.bf16.mxu0 %v555
    %679 = vmatpush1.bf16.msra.mxu0 %v554
    %680 = vmatprep.mubr.bf16.mxu0 %v309
    %681 = vmatmul.mubr.bf16.gmra.mrb[0].mxu0 %v308
    %v682 = vpop.f32.mrb[0].mxu0
    %v683 = vadd.f32 0.0, %v682
    %v684 = vpop.f32.mrb[0].mxu0
    %v685 = vadd.f32 0.0, %v684
    %v686 = vpop.f32.mrb[0].mxu0
    %v687 = vpop.f32.mrb[0].mxu0
    %688 = vdwg.mxu0
    %689 = vmatprep.subr.bf16.mxu0 %v317
    %690 = vmatpush1.bf16.msra.mxu0 %v316
    %691 = vmatprep.subr.bf16.mxu0 %v333
    %692 = vmatpush1.bf16.msra.mxu0 %v332
    %693 = vmatprep.subr.bf16.mxu0 %v349
    %694 = vmatpush1.bf16.msra.mxu0 %v348
    %695 = vmatprep.subr.bf16.mxu0 %v365
    %696 = vmatpush1.bf16.msra.mxu0 %v364
    %697 = vmatprep.subr.bf16.mxu0 %v381
    %698 = vmatpush1.bf16.msra.mxu0 %v380
    %699 = vmatprep.subr.bf16.mxu0 %v397
    %700 = vmatpush1.bf16.msra.mxu0 %v396
    %701 = vmatprep.subr.bf16.mxu0 %v413
    %702 = vmatpush1.bf16.msra.mxu0 %v412
    %703 = vmatprep.subr.bf16.mxu0 %v429
    %704 = vmatpush1.bf16.msra.mxu0 %v428
    %705 = vmatprep.subr.bf16.mxu0 %v445
    %706 = vmatpush1.bf16.msra.mxu0 %v444
    %707 = vmatprep.subr.bf16.mxu0 %v461
    %708 = vmatpush1.bf16.msra.mxu0 %v460
    %709 = vmatprep.subr.bf16.mxu0 %v477
    %710 = vmatpush1.bf16.msra.mxu0 %v476
    %711 = vmatprep.subr.bf16.mxu0 %v493
    %712 = vmatpush1.bf16.msra.mxu0 %v492
    %713 = vmatprep.subr.bf16.mxu0 %v509
    %714 = vmatpush1.bf16.msra.mxu0 %v508
    %715 = vmatprep.subr.bf16.mxu0 %v525
    %716 = vmatpush1.bf16.msra.mxu0 %v524
    %717 = vmatprep.subr.bf16.mxu0 %v541
    %718 = vmatpush1.bf16.msra.mxu0 %v540
    %719 = vmatprep.subr.bf16.mxu0 %v557
    %720 = vmatpush1.bf16.msra.mxu0 %v556
    %721 = vmatprep.mubr.bf16.mxu0 %v309
    %722 = vmatmul.mubr.bf16.gmra.mrb[0].mxu0 %v308
    %v723 = vpop.f32.mrb[0].mxu0
    %v724 = vadd.f32 0.0, %v723
    %v725 = vpop.f32.mrb[0].mxu0
    %v726 = vadd.f32 0.0, %v725
    %v727 = vpop.f32.mrb[0].mxu0
    %v728 = vpop.f32.mrb[0].mxu0
    %729 = vdwg.mxu0
    %730 = vmatprep.subr.bf16.mxu0 %v319
    %731 = vmatpush1.bf16.msra.mxu0 %v318
    %732 = vmatprep.subr.bf16.mxu0 %v335
    %733 = vmatpush1.bf16.msra.mxu0 %v334
    %734 = vmatprep.subr.bf16.mxu0 %v351
    %735 = vmatpush1.bf16.msra.mxu0 %v350
    %736 = vmatprep.subr.bf16.mxu0 %v367
    %737 = vmatpush1.bf16.msra.mxu0 %v366
    %738 = vmatprep.subr.bf16.mxu0 %v383
    %739 = vmatpush1.bf16.msra.mxu0 %v382
    %740 = vmatprep.subr.bf16.mxu0 %v399
    %741 = vmatpush1.bf16.msra.mxu0 %v398
    %742 = vmatprep.subr.bf16.mxu0 %v415
    %743 = vmatpush1.bf16.msra.mxu0 %v414
    %744 = vmatprep.subr.bf16.mxu0 %v431
    %745 = vmatpush1.bf16.msra.mxu0 %v430
    %746 = vmatprep.subr.bf16.mxu0 %v447
    %747 = vmatpush1.bf16.msra.mxu0 %v446
    %748 = vmatprep.subr.bf16.mxu0 %v463
    %749 = vmatpush1.bf16.msra.mxu0 %v462
    %750 = vmatprep.subr.bf16.mxu0 %v479
    %751 = vmatpush1.bf16.msra.mxu0 %v478
    %752 = vmatprep.subr.bf16.mxu0 %v495
    %753 = vmatpush1.bf16.msra.mxu0 %v494
    %754 = vmatprep.subr.bf16.mxu0 %v511
    %755 = vmatpush1.bf16.msra.mxu0 %v510
    %756 = vmatprep.subr.bf16.mxu0 %v527
    %757 = vmatpush1.bf16.msra.mxu0 %v526
    %758 = vmatprep.subr.bf16.mxu0 %v543
    %759 = vmatpush1.bf16.msra.mxu0 %v542
    %760 = vmatprep.subr.bf16.mxu0 %v559
    %761 = vmatpush1.bf16.msra.mxu0 %v558
    %762 = vmatprep.mubr.bf16.mxu0 %v309
    %763 = vmatmul.mubr.bf16.gmra.mrb[0].mxu0 %v308
    %v764 = vpop.f32.mrb[0].mxu0
    %v765 = vadd.f32 0.0, %v764
    %v766 = vpop.f32.mrb[0].mxu0
    %v767 = vadd.f32 0.0, %v766
    %v768 = vpop.f32.mrb[0].mxu0
    %v769 = vpop.f32.mrb[0].mxu0
    %770 = vdwg.mxu0
    %771 = vmatprep.subr.bf16.mxu0 %v321
    %772 = vmatpush1.bf16.msra.mxu0 %v320
    %773 = vmatprep.subr.bf16.mxu0 %v337
    %774 = vmatpush1.bf16.msra.mxu0 %v336
    %775 = vmatprep.subr.bf16.mxu0 %v353
    %776 = vmatpush1.bf16.msra.mxu0 %v352
    %777 = vmatprep.subr.bf16.mxu0 %v369
    %778 = vmatpush1.bf16.msra.mxu0 %v368
    %779 = vmatprep.subr.bf16.mxu0 %v385
    %780 = vmatpush1.bf16.msra.mxu0 %v384
    %781 = vmatprep.subr.bf16.mxu0 %v401
    %782 = vmatpush1.bf16.msra.mxu0 %v400
    %783 = vmatprep.subr.bf16.mxu0 %v417
    %784 = vmatpush1.bf16.msra.mxu0 %v416
    %785 = vmatprep.subr.bf16.mxu0 %v433
    %786 = vmatpush1.bf16.msra.mxu0 %v432
    %787 = vmatprep.subr.bf16.mxu0 %v449
    %788 = vmatpush1.bf16.msra.mxu0 %v448
    %789 = vmatprep.subr.bf16.mxu0 %v465
    %790 = vmatpush1.bf16.msra.mxu0 %v464
    %791 = vmatprep.subr.bf16.mxu0 %v481
    %792 = vmatpush1.bf16.msra.mxu0 %v480
    %793 = vmatprep.subr.bf16.mxu0 %v497
    %794 = vmatpush1.bf16.msra.mxu0 %v496
    %795 = vmatprep.subr.bf16.mxu0 %v513
    %796 = vmatpush1.bf16.msra.mxu0 %v512
    %797 = vmatprep.subr.bf16.mxu0 %v529
    %798 = vmatpush1.bf16.msra.mxu0 %v528
    %799 = vmatprep.subr.bf16.mxu0 %v545
    %800 = vmatpush1.bf16.msra.mxu0 %v544
    %801 = vmatprep.subr.bf16.mxu0 %v561
    %802 = vmatpush1.bf16.msra.mxu0 %v560
    %803 = vmatprep.mubr.bf16.mxu0 %v309
    %804 = vmatmul.mubr.bf16.gmra.mrb[0].mxu0 %v308
    %v805 = vpop.f32.mrb[0].mxu0
    %v806 = vadd.f32 0.0, %v805
    %v807 = vpop.f32.mrb[0].mxu0
    %v808 = vadd.f32 0.0, %v807
    %v809 = vpop.f32.mrb[0].mxu0
    %v810 = vpop.f32.mrb[0].mxu0
    %811 = vdwg.mxu0
    %812 = vmatprep.subr.bf16.mxu0 %v323
    %813 = vmatpush1.bf16.msra.mxu0 %v322
    %814 = vmatprep.subr.bf16.mxu0 %v339
    %815 = vmatpush1.bf16.msra.mxu0 %v338
    %816 = vmatprep.subr.bf16.mxu0 %v355
    %817 = vmatpush1.bf16.msra.mxu0 %v354
    %818 = vmatprep.subr.bf16.mxu0 %v371
    %819 = vmatpush1.bf16.msra.mxu0 %v370
    %820 = vmatprep.subr.bf16.mxu0 %v387
    %821 = vmatpush1.bf16.msra.mxu0 %v386
    %822 = vmatprep.subr.bf16.mxu0 %v403
    %823 = vmatpush1.bf16.msra.mxu0 %v402
    %824 = vmatprep.subr.bf16.mxu0 %v419
    %825 = vmatpush1.bf16.msra.mxu0 %v418
    %826 = vmatprep.subr.bf16.mxu0 %v435
    %827 = vmatpush1.bf16.msra.mxu0 %v434
    %828 = vmatprep.subr.bf16.mxu0 %v451
    %829 = vmatpush1.bf16.msra.mxu0 %v450
    %830 = vmatprep.subr.bf16.mxu0 %v467
    %831 = vmatpush1.bf16.msra.mxu0 %v466
    %832 = vmatprep.subr.bf16.mxu0 %v483
    %833 = vmatpush1.bf16.msra.mxu0 %v482
    %834 = vmatprep.subr.bf16.mxu0 %v499
    %835 = vmatpush1.bf16.msra.mxu0 %v498
    %836 = vmatprep.subr.bf16.mxu0 %v515
    %837 = vmatpush1.bf16.msra.mxu0 %v514
    %838 = vmatprep.subr.bf16.mxu0 %v531
    %839 = vmatpush1.bf16.msra.mxu0 %v530
    %840 = vmatprep.subr.bf16.mxu0 %v547
    %841 = vmatpush1.bf16.msra.mxu0 %v546
    %842 = vmatprep.subr.bf16.mxu0 %v563
    %843 = vmatpush1.bf16.msra.mxu0 %v562
    %844 = vmatprep.mubr.bf16.mxu0 %v309
    %845 = vmatmul.mubr.bf16.gmra.mrb[0].mxu0 %v308
    %v846 = vpop.f32.mrb[0].mxu0
    %v847 = vadd.f32 0.0, %v846
    %v848 = vpop.f32.mrb[0].mxu0
    %v849 = vadd.f32 0.0, %v848
    %v850 = vpop.f32.mrb[0].mxu0
    %v851 = vpop.f32.mrb[0].mxu0
    %852 = vdwg.mxu0
    %853 = vmatprep.subr.bf16.mxu0 %v325
    %854 = vmatpush1.bf16.msra.mxu0 %v324
    %855 = vmatprep.subr.bf16.mxu0 %v341
    %856 = vmatpush1.bf16.msra.mxu0 %v340
    %857 = vmatprep.subr.bf16.mxu0 %v357
    %858 = vmatpush1.bf16.msra.mxu0 %v356
    %859 = vmatprep.subr.bf16.mxu0 %v373
    %860 = vmatpush1.bf16.msra.mxu0 %v372
    %861 = vmatprep.subr.bf16.mxu0 %v389
    %862 = vmatpush1.bf16.msra.mxu0 %v388
    %863 = vmatprep.subr.bf16.mxu0 %v405
    %864 = vmatpush1.bf16.msra.mxu0 %v404
    %865 = vmatprep.subr.bf16.mxu0 %v421
    %866 = vmatpush1.bf16.msra.mxu0 %v420
    %867 = vmatprep.subr.bf16.mxu0 %v437
    %868 = vmatpush1.bf16.msra.mxu0 %v436
    %869 = vmatprep.subr.bf16.mxu0 %v453
    %870 = vmatpush1.bf16.msra.mxu0 %v452
    %871 = vmatprep.subr.bf16.mxu0 %v469
    %872 = vmatpush1.bf16.msra.mxu0 %v468
    %873 = vmatprep.subr.bf16.mxu0 %v485
    %874 = vmatpush1.bf16.msra.mxu0 %v484
    %875 = vmatprep.subr.bf16.mxu0 %v501
    %876 = vmatpush1.bf16.msra.mxu0 %v500
    %877 = vmatprep.subr.bf16.mxu0 %v517
    %878 = vmatpush1.bf16.msra.mxu0 %v516
    %879 = vmatprep.subr.bf16.mxu0 %v533
    %880 = vmatpush1.bf16.msra.mxu0 %v532
    %881 = vmatprep.subr.bf16.mxu0 %v549
    %882 = vmatpush1.bf16.msra.mxu0 %v548
    %883 = vmatprep.subr.bf16.mxu0 %v565
    %884 = vmatpush1.bf16.msra.mxu0 %v564
    %885 = vmatprep.mubr.bf16.mxu0 %v309
    %886 = vmatmul.mubr.bf16.gmra.mrb[0].mxu0 %v308
    %v887 = vpop.f32.mrb[0].mxu0
    %v888 = vadd.f32 0.0, %v887
    %v889 = vpop.f32.mrb[0].mxu0
    %v890 = vadd.f32 0.0, %v889
    %v891 = vpop.f32.mrb[0].mxu0
    %v892 = vpop.f32.mrb[0].mxu0
    %893 = vdwg.mxu0
    %v894 = vld [vmem:[#allocation13] ss:$2 sm:$0xff]
    %s895 = scalar_lea.vmem [#allocation13], 16
    %v896 = vld [vmem:[%s895] ss:$2 sm:$0xff]
    %v899 = vlaneseq
    %v900 = vshrl.u32 %v899, 7
    %v901 = vsub.s32 0, %v900
    %v902 = vrot.slane %v894, %v901
    %v903 = vlaneseq
    %v904 = vshrl.u32 %v903, 7
    %v905 = vsub.s32 1, %v904
    %v906 = vrot.slane %v894, %v905
    %v907 = vlaneseq
    %v908 = vshrl.u32 %v907, 7
    %v909 = vsub.s32 2, %v908
    %v910 = vrot.slane %v894, %v909
    %v911 = vlaneseq
    %v912 = vshrl.u32 %v911, 7
    %v913 = vsub.s32 3, %v912
    %v914 = vrot.slane %v894, %v913
    %v915 = vlaneseq
    %v916 = vshrl.u32 %v915, 7
    %v917 = vsub.s32 4, %v916
    %v918 = vrot.slane %v894, %v917
    %v919 = vlaneseq
    %v920 = vshrl.u32 %v919, 7
    %v921 = vsub.s32 5, %v920
    %v922 = vrot.slane %v894, %v921
    %v923 = vlaneseq
    %v924 = vshrl.u32 %v923, 7
    %v925 = vsub.s32 6, %v924
    %v926 = vrot.slane %v894, %v925
    %v927 = vlaneseq
    %v928 = vshrl.u32 %v927, 7
    %v929 = vsub.s32 7, %v928
    %v930 = vrot.slane %v894, %v929
    %v931 = vlaneseq
    %v932 = vshrl.u32 %v931, 7
    %v933 = vsub.s32 0, %v932
    %v934 = vrot.slane %v896, %v933
    %v935 = vlaneseq
    %v936 = vshrl.u32 %v935, 7
    %v937 = vsub.s32 1, %v936
    %v938 = vrot.slane %v896, %v937
    %v939 = vlaneseq
    %v940 = vshrl.u32 %v939, 7
    %v941 = vsub.s32 2, %v940
    %v942 = vrot.slane %v896, %v941
    %v943 = vlaneseq
    %v944 = vshrl.u32 %v943, 7
    %v945 = vsub.s32 3, %v944
    %v946 = vrot.slane %v896, %v945
    %v947 = vlaneseq
    %v948 = vshrl.u32 %v947, 7
    %v949 = vsub.s32 4, %v948
    %v950 = vrot.slane %v896, %v949
    %v951 = vlaneseq
    %v952 = vshrl.u32 %v951, 7
    %v953 = vsub.s32 5, %v952
    %v954 = vrot.slane %v896, %v953
    %v955 = vlaneseq
    %v956 = vshrl.u32 %v955, 7
    %v957 = vsub.s32 6, %v956
    %v958 = vrot.slane %v896, %v957
    %v959 = vlaneseq
    %v960 = vshrl.u32 %v959, 7
    %v961 = vsub.s32 7, %v960
    %v962 = vrot.slane %v896, %v961
    %v979 = vmul.f32 %v601, %v902
    %v980 = vmul.f32 %v603, %v906
    %v981 = vmul.f32 %v642, %v910
    %v982 = vmul.f32 %v644, %v914
    %v983 = vmul.f32 %v683, %v918
    %v984 = vmul.f32 %v685, %v922
    %v985 = vmul.f32 %v724, %v926
    %v986 = vmul.f32 %v726, %v930
    %v987 = vmul.f32 %v765, %v934
    %v988 = vmul.f32 %v767, %v938
    %v989 = vmul.f32 %v806, %v942
    %v990 = vmul.f32 %v808, %v946
    %v991 = vmul.f32 %v847, %v950
    %v992 = vmul.f32 %v849, %v954
    %v993 = vmul.f32 %v888, %v958
    %v994 = vmul.f32 %v890, %v962
    %s995 = scalar_lea.vmem [#allocation13], 1
    %v996 = vld [vmem:[%s995] ss:$2 sm:$0xff]
    %s997 = scalar_lea.vmem [#allocation13], 17
    %v998 = vld [vmem:[%s997] ss:$2 sm:$0xff]
    %v1001 = vlaneseq
    %v1002 = vshrl.u32 %v1001, 7
    %v1003 = vsub.s32 0, %v1002
    %v1004 = vrot.slane %v996, %v1003
    %v1005 = vlaneseq
    %v1006 = vshrl.u32 %v1005, 7
    %v1007 = vsub.s32 1, %v1006
    %v1008 = vrot.slane %v996, %v1007
    %v1009 = vlaneseq
    %v1010 = vshrl.u32 %v1009, 7
    %v1011 = vsub.s32 2, %v1010
    %v1012 = vrot.slane %v996, %v1011
    %v1013 = vlaneseq
    %v1014 = vshrl.u32 %v1013, 7
    %v1015 = vsub.s32 3, %v1014
    %v1016 = vrot.slane %v996, %v1015
    %v1017 = vlaneseq
    %v1018 = vshrl.u32 %v1017, 7
    %v1019 = vsub.s32 4, %v1018
    %v1020 = vrot.slane %v996, %v1019
    %v1021 = vlaneseq
    %v1022 = vshrl.u32 %v1021, 7
    %v1023 = vsub.s32 5, %v1022
    %v1024 = vrot.slane %v996, %v1023
    %v1025 = vlaneseq
    %v1026 = vshrl.u32 %v1025, 7
    %v1027 = vsub.s32 6, %v1026
    %v1028 = vrot.slane %v996, %v1027
    %v1029 = vlaneseq
    %v1030 = vshrl.u32 %v1029, 7
    %v1031 = vsub.s32 7, %v1030
    %v1032 = vrot.slane %v996, %v1031
    %v1033 = vlaneseq
    %v1034 = vshrl.u32 %v1033, 7
    %v1035 = vsub.s32 0, %v1034
    %v1036 = vrot.slane %v998, %v1035
    %v1037 = vlaneseq
    %v1038 = vshrl.u32 %v1037, 7
    %v1039 = vsub.s32 1, %v1038
    %v1040 = vrot.slane %v998, %v1039
    %v1041 = vlaneseq
    %v1042 = vshrl.u32 %v1041, 7
    %v1043 = vsub.s32 2, %v1042
    %v1044 = vrot.slane %v998, %v1043
    %v1045 = vlaneseq
    %v1046 = vshrl.u32 %v1045, 7
    %v1047 = vsub.s32 3, %v1046
    %v1048 = vrot.slane %v998, %v1047
    %v1049 = vlaneseq
    %v1050 = vshrl.u32 %v1049, 7
    %v1051 = vsub.s32 4, %v1050
    %v1052 = vrot.slane %v998, %v1051
    %v1053 = vlaneseq
    %v1054 = vshrl.u32 %v1053, 7
    %v1055 = vsub.s32 5, %v1054
    %v1056 = vrot.slane %v998, %v1055
    %v1057 = vlaneseq
    %v1058 = vshrl.u32 %v1057, 7
    %v1059 = vsub.s32 6, %v1058
    %v1060 = vrot.slane %v998, %v1059
    %v1061 = vlaneseq
    %v1062 = vshrl.u32 %v1061, 7
    %v1063 = vsub.s32 7, %v1062
    %v1064 = vrot.slane %v998, %v1063
    %v1081 = vadd.f32 %v979, %v1004
    %v1082 = vadd.f32 %v980, %v1008
    %v1083 = vadd.f32 %v981, %v1012
    %v1084 = vadd.f32 %v982, %v1016
    %v1085 = vadd.f32 %v983, %v1020
    %v1086 = vadd.f32 %v984, %v1024
    %v1087 = vadd.f32 %v985, %v1028
    %v1088 = vadd.f32 %v986, %v1032
    %v1089 = vadd.f32 %v987, %v1036
    %v1090 = vadd.f32 %v988, %v1040
    %v1091 = vadd.f32 %v989, %v1044
    %v1092 = vadd.f32 %v990, %v1048
    %v1093 = vadd.f32 %v991, %v1052
    %v1094 = vadd.f32 %v992, %v1056
    %v1095 = vadd.f32 %v993, %v1060
    %v1096 = vadd.f32 %v994, %v1064
    %v1097 = vmax.f32 %v1081, 0.0
    %v1098 = vmax.f32 %v1082, 0.0
    %v1099 = vmax.f32 %v1083, 0.0
    %v1100 = vmax.f32 %v1084, 0.0
    %v1101 = vmax.f32 %v1085, 0.0
    %v1102 = vmax.f32 %v1086, 0.0
    %v1103 = vmax.f32 %v1087, 0.0
    %v1104 = vmax.f32 %v1088, 0.0
    %v1105 = vmax.f32 %v1089, 0.0
    %v1106 = vmax.f32 %v1090, 0.0
    %v1107 = vmax.f32 %v1091, 0.0
    %v1108 = vmax.f32 %v1092, 0.0
    %v1109 = vmax.f32 %v1093, 0.0
    %v1110 = vmax.f32 %v1094, 0.0
    %v1111 = vmax.f32 %v1095, 0.0
    %v1112 = vmax.f32 %v1096, 0.0
    %s1113 = smul.u32 2, 256
    %s1114 = smul.u32 %s1113, 8
    %s1115 = sshll.u32 %s1114, 4
    %1116 = dma.done [#allocation7], %s1115
    %v1117 = vld [vmem:[#allocation2] sm:$0xff]
    %v1118 = vld [vmem:[#allocation2 + $0x8] sm:$0xff]
    %v1119 = vld [vmem:[#allocation2 + $0x10] sm:$0xff]
    %v1120 = vld [vmem:[#allocation2 + $0x18] sm:$0xff]
    %v1121 = vld [vmem:[#allocation2 + $0x20] sm:$0xff]
    %v1122 = vld [vmem:[#allocation2 + $0x28] sm:$0xff]
    %v1123 = vld [vmem:[#allocation2 + $0x30] sm:$0xff]
    %v1124 = vld [vmem:[#allocation2 + $0x38] sm:$0xff]
    %v1125 = vld [vmem:[#allocation2 + $0x40] sm:$0xff]
    %v1126 = vld [vmem:[#allocation2 + $0x48] sm:$0xff]
    %v1127 = vld [vmem:[#allocation2 + $0x50] sm:$0xff]
    %v1128 = vld [vmem:[#allocation2 + $0x58] sm:$0xff]
    %v1129 = vld [vmem:[#allocation2 + $0x60] sm:$0xff]
    %v1130 = vld [vmem:[#allocation2 + $0x68] sm:$0xff]
    %v1131 = vld [vmem:[#allocation2 + $0x70] sm:$0xff]
    %v1132 = vld [vmem:[#allocation2 + $0x78] sm:$0xff]
    %v1133 = vld [vmem:[#allocation2 + $0x80] sm:$0xff]
    %v1134 = vld [vmem:[#allocation2 + $0x88] sm:$0xff]
    %v1135 = vld [vmem:[#allocation2 + $0x90] sm:$0xff]
    %v1136 = vld [vmem:[#allocation2 + $0x98] sm:$0xff]
    %v1137 = vld [vmem:[#allocation2 + $0xa0] sm:$0xff]
    %v1138 = vld [vmem:[#allocation2 + $0xa8] sm:$0xff]
    %v1139 = vld [vmem:[#allocation2 + $0xb0] sm:$0xff]
    %v1140 = vld [vmem:[#allocation2 + $0xb8] sm:$0xff]
    %v1141 = vld [vmem:[#allocation2 + $0xc0] sm:$0xff]
    %v1142 = vld [vmem:[#allocation2 + $0xc8] sm:$0xff]
    %v1143 = vld [vmem:[#allocation2 + $0xd0] sm:$0xff]
    %v1144 = vld [vmem:[#allocation2 + $0xd8] sm:$0xff]
    %v1145 = vld [vmem:[#allocation2 + $0xe0] sm:$0xff]
    %v1146 = vld [vmem:[#allocation2 + $0xe8] sm:$0xff]
    %v1147 = vld [vmem:[#allocation2 + $0xf0] sm:$0xff]
    %v1148 = vld [vmem:[#allocation2 + $0xf8] sm:$0xff]
    %v1149 = vld [vmem:[#allocation2 + $0x100] sm:$0xff]
    %v1150 = vld [vmem:[#allocation2 + $0x108] sm:$0xff]
    %v1151 = vld [vmem:[#allocation2 + $0x110] sm:$0xff]
    %v1152 = vld [vmem:[#allocation2 + $0x118] sm:$0xff]
    %v1153 = vld [vmem:[#allocation2 + $0x120] sm:$0xff]
    %v1154 = vld [vmem:[#allocation2 + $0x128] sm:$0xff]
    %v1155 = vld [vmem:[#allocation2 + $0x130] sm:$0xff]
    %v1156 = vld [vmem:[#allocation2 + $0x138] sm:$0xff]
    %v1157 = vld [vmem:[#allocation2 + $0x140] sm:$0xff]
    %v1158 = vld [vmem:[#allocation2 + $0x148] sm:$0xff]
    %v1159 = vld [vmem:[#allocation2 + $0x150] sm:$0xff]
    %v1160 = vld [vmem:[#allocation2 + $0x158] sm:$0xff]
    %v1161 = vld [vmem:[#allocation2 + $0x160] sm:$0xff]
    %v1162 = vld [vmem:[#allocation2 + $0x168] sm:$0xff]
    %v1163 = vld [vmem:[#allocation2 + $0x170] sm:$0xff]
    %v1164 = vld [vmem:[#allocation2 + $0x178] sm:$0xff]
    %v1165 = vld [vmem:[#allocation2 + $0x180] sm:$0xff]
    %v1166 = vld [vmem:[#allocation2 + $0x188] sm:$0xff]
    %v1167 = vld [vmem:[#allocation2 + $0x190] sm:$0xff]
    %v1168 = vld [vmem:[#allocation2 + $0x198] sm:$0xff]
    %v1169 = vld [vmem:[#allocation2 + $0x1a0] sm:$0xff]
    %v1170 = vld [vmem:[#allocation2 + $0x1a8] sm:$0xff]
    %v1171 = vld [vmem:[#allocation2 + $0x1b0] sm:$0xff]
    %v1172 = vld [vmem:[#allocation2 + $0x1b8] sm:$0xff]
    %v1173 = vld [vmem:[#allocation2 + $0x1c0] sm:$0xff]
    %v1174 = vld [vmem:[#allocation2 + $0x1c8] sm:$0xff]
    %v1175 = vld [vmem:[#allocation2 + $0x1d0] sm:$0xff]
    %v1176 = vld [vmem:[#allocation2 + $0x1d8] sm:$0xff]
    %v1177 = vld [vmem:[#allocation2 + $0x1e0] sm:$0xff]
    %v1178 = vld [vmem:[#allocation2 + $0x1e8] sm:$0xff]
    %v1179 = vld [vmem:[#allocation2 + $0x1f0] sm:$0xff]
    %v1180 = vld [vmem:[#allocation2 + $0x1f8] sm:$0xff]
    %v1181 = vld [vmem:[#allocation2 + $0x200] sm:$0xff]
    %v1182 = vld [vmem:[#allocation2 + $0x208] sm:$0xff]
    %v1183 = vld [vmem:[#allocation2 + $0x210] sm:$0xff]
    %v1184 = vld [vmem:[#allocation2 + $0x218] sm:$0xff]
    %v1185 = vld [vmem:[#allocation2 + $0x220] sm:$0xff]
    %v1186 = vld [vmem:[#allocation2 + $0x228] sm:$0xff]
    %v1187 = vld [vmem:[#allocation2 + $0x230] sm:$0xff]
    %v1188 = vld [vmem:[#allocation2 + $0x238] sm:$0xff]
    %v1189 = vld [vmem:[#allocation2 + $0x240] sm:$0xff]
    %v1190 = vld [vmem:[#allocation2 + $0x248] sm:$0xff]
    %v1191 = vld [vmem:[#allocation2 + $0x250] sm:$0xff]
    %v1192 = vld [vmem:[#allocation2 + $0x258] sm:$0xff]
    %v1193 = vld [vmem:[#allocation2 + $0x260] sm:$0xff]
    %v1194 = vld [vmem:[#allocation2 + $0x268] sm:$0xff]
    %v1195 = vld [vmem:[#allocation2 + $0x270] sm:$0xff]
    %v1196 = vld [vmem:[#allocation2 + $0x278] sm:$0xff]
    %v1197 = vld [vmem:[#allocation2 + $0x280] sm:$0xff]
    %v1198 = vld [vmem:[#allocation2 + $0x288] sm:$0xff]
    %v1199 = vld [vmem:[#allocation2 + $0x290] sm:$0xff]
    %v1200 = vld [vmem:[#allocation2 + $0x298] sm:$0xff]
    %v1201 = vld [vmem:[#allocation2 + $0x2a0] sm:$0xff]
    %v1202 = vld [vmem:[#allocation2 + $0x2a8] sm:$0xff]
    %v1203 = vld [vmem:[#allocation2 + $0x2b0] sm:$0xff]
    %v1204 = vld [vmem:[#allocation2 + $0x2b8] sm:$0xff]
    %v1205 = vld [vmem:[#allocation2 + $0x2c0] sm:$0xff]
    %v1206 = vld [vmem:[#allocation2 + $0x2c8] sm:$0xff]
    %v1207 = vld [vmem:[#allocation2 + $0x2d0] sm:$0xff]
    %v1208 = vld [vmem:[#allocation2 + $0x2d8] sm:$0xff]
    %v1209 = vld [vmem:[#allocation2 + $0x2e0] sm:$0xff]
    %v1210 = vld [vmem:[#allocation2 + $0x2e8] sm:$0xff]
    %v1211 = vld [vmem:[#allocation2 + $0x2f0] sm:$0xff]
    %v1212 = vld [vmem:[#allocation2 + $0x2f8] sm:$0xff]
    %v1213 = vld [vmem:[#allocation2 + $0x300] sm:$0xff]
    %v1214 = vld [vmem:[#allocation2 + $0x308] sm:$0xff]
    %v1215 = vld [vmem:[#allocation2 + $0x310] sm:$0xff]
    %v1216 = vld [vmem:[#allocation2 + $0x318] sm:$0xff]
    %v1217 = vld [vmem:[#allocation2 + $0x320] sm:$0xff]
    %v1218 = vld [vmem:[#allocation2 + $0x328] sm:$0xff]
    %v1219 = vld [vmem:[#allocation2 + $0x330] sm:$0xff]
    %v1220 = vld [vmem:[#allocation2 + $0x338] sm:$0xff]
    %v1221 = vld [vmem:[#allocation2 + $0x340] sm:$0xff]
    %v1222 = vld [vmem:[#allocation2 + $0x348] sm:$0xff]
    %v1223 = vld [vmem:[#allocation2 + $0x350] sm:$0xff]
    %v1224 = vld [vmem:[#allocation2 + $0x358] sm:$0xff]
    %v1225 = vld [vmem:[#allocation2 + $0x360] sm:$0xff]
    %v1226 = vld [vmem:[#allocation2 + $0x368] sm:$0xff]
    %v1227 = vld [vmem:[#allocation2 + $0x370] sm:$0xff]
    %v1228 = vld [vmem:[#allocation2 + $0x378] sm:$0xff]
    %v1229 = vld [vmem:[#allocation2 + $0x380] sm:$0xff]
    %v1230 = vld [vmem:[#allocation2 + $0x388] sm:$0xff]
    %v1231 = vld [vmem:[#allocation2 + $0x390] sm:$0xff]
    %v1232 = vld [vmem:[#allocation2 + $0x398] sm:$0xff]
    %v1233 = vld [vmem:[#allocation2 + $0x3a0] sm:$0xff]
    %v1234 = vld [vmem:[#allocation2 + $0x3a8] sm:$0xff]
    %v1235 = vld [vmem:[#allocation2 + $0x3b0] sm:$0xff]
    %v1236 = vld [vmem:[#allocation2 + $0x3b8] sm:$0xff]
    %v1237 = vld [vmem:[#allocation2 + $0x3c0] sm:$0xff]
    %v1238 = vld [vmem:[#allocation2 + $0x3c8] sm:$0xff]
    %v1239 = vld [vmem:[#allocation2 + $0x3d0] sm:$0xff]
    %v1240 = vld [vmem:[#allocation2 + $0x3d8] sm:$0xff]
    %v1241 = vld [vmem:[#allocation2 + $0x3e0] sm:$0xff]
    %v1242 = vld [vmem:[#allocation2 + $0x3e8] sm:$0xff]
    %v1243 = vld [vmem:[#allocation2 + $0x3f0] sm:$0xff]
    %v1244 = vld [vmem:[#allocation2 + $0x3f8] sm:$0xff]
    %v1245 = vld [vmem:[#allocation2 + $0x400] sm:$0xff]
    %v1246 = vld [vmem:[#allocation2 + $0x408] sm:$0xff]
    %v1247 = vld [vmem:[#allocation2 + $0x410] sm:$0xff]
    %v1248 = vld [vmem:[#allocation2 + $0x418] sm:$0xff]
    %v1249 = vld [vmem:[#allocation2 + $0x420] sm:$0xff]
    %v1250 = vld [vmem:[#allocation2 + $0x428] sm:$0xff]
    %v1251 = vld [vmem:[#allocation2 + $0x430] sm:$0xff]
    %v1252 = vld [vmem:[#allocation2 + $0x438] sm:$0xff]
    %v1253 = vld [vmem:[#allocation2 + $0x440] sm:$0xff]
    %v1254 = vld [vmem:[#allocation2 + $0x448] sm:$0xff]
    %v1255 = vld [vmem:[#allocation2 + $0x450] sm:$0xff]
    %v1256 = vld [vmem:[#allocation2 + $0x458] sm:$0xff]
    %v1257 = vld [vmem:[#allocation2 + $0x460] sm:$0xff]
    %v1258 = vld [vmem:[#allocation2 + $0x468] sm:$0xff]
    %v1259 = vld [vmem:[#allocation2 + $0x470] sm:$0xff]
    %v1260 = vld [vmem:[#allocation2 + $0x478] sm:$0xff]
    %v1261 = vld [vmem:[#allocation2 + $0x480] sm:$0xff]
    %v1262 = vld [vmem:[#allocation2 + $0x488] sm:$0xff]
    %v1263 = vld [vmem:[#allocation2 + $0x490] sm:$0xff]
    %v1264 = vld [vmem:[#allocation2 + $0x498] sm:$0xff]
    %v1265 = vld [vmem:[#allocation2 + $0x4a0] sm:$0xff]
    %v1266 = vld [vmem:[#allocation2 + $0x4a8] sm:$0xff]
    %v1267 = vld [vmem:[#allocation2 + $0x4b0] sm:$0xff]
    %v1268 = vld [vmem:[#allocation2 + $0x4b8] sm:$0xff]
    %v1269 = vld [vmem:[#allocation2 + $0x4c0] sm:$0xff]
    %v1270 = vld [vmem:[#allocation2 + $0x4c8] sm:$0xff]
    %v1271 = vld [vmem:[#allocation2 + $0x4d0] sm:$0xff]
    %v1272 = vld [vmem:[#allocation2 + $0x4d8] sm:$0xff]
    %v1273 = vld [vmem:[#allocation2 + $0x4e0] sm:$0xff]
    %v1274 = vld [vmem:[#allocation2 + $0x4e8] sm:$0xff]
    %v1275 = vld [vmem:[#allocation2 + $0x4f0] sm:$0xff]
    %v1276 = vld [vmem:[#allocation2 + $0x4f8] sm:$0xff]
    %v1277 = vld [vmem:[#allocation2 + $0x500] sm:$0xff]
    %v1278 = vld [vmem:[#allocation2 + $0x508] sm:$0xff]
    %v1279 = vld [vmem:[#allocation2 + $0x510] sm:$0xff]
    %v1280 = vld [vmem:[#allocation2 + $0x518] sm:$0xff]
    %v1281 = vld [vmem:[#allocation2 + $0x520] sm:$0xff]
    %v1282 = vld [vmem:[#allocation2 + $0x528] sm:$0xff]
    %v1283 = vld [vmem:[#allocation2 + $0x530] sm:$0xff]
    %v1284 = vld [vmem:[#allocation2 + $0x538] sm:$0xff]
    %v1285 = vld [vmem:[#allocation2 + $0x540] sm:$0xff]
    %v1286 = vld [vmem:[#allocation2 + $0x548] sm:$0xff]
    %v1287 = vld [vmem:[#allocation2 + $0x550] sm:$0xff]
    %v1288 = vld [vmem:[#allocation2 + $0x558] sm:$0xff]
    %v1289 = vld [vmem:[#allocation2 + $0x560] sm:$0xff]
    %v1290 = vld [vmem:[#allocation2 + $0x568] sm:$0xff]
    %v1291 = vld [vmem:[#allocation2 + $0x570] sm:$0xff]
    %v1292 = vld [vmem:[#allocation2 + $0x578] sm:$0xff]
    %v1293 = vld [vmem:[#allocation2 + $0x580] sm:$0xff]
    %v1294 = vld [vmem:[#allocation2 + $0x588] sm:$0xff]
    %v1295 = vld [vmem:[#allocation2 + $0x590] sm:$0xff]
    %v1296 = vld [vmem:[#allocation2 + $0x598] sm:$0xff]
    %v1297 = vld [vmem:[#allocation2 + $0x5a0] sm:$0xff]
    %v1298 = vld [vmem:[#allocation2 + $0x5a8] sm:$0xff]
    %v1299 = vld [vmem:[#allocation2 + $0x5b0] sm:$0xff]
    %v1300 = vld [vmem:[#allocation2 + $0x5b8] sm:$0xff]
    %v1301 = vld [vmem:[#allocation2 + $0x5c0] sm:$0xff]
    %v1302 = vld [vmem:[#allocation2 + $0x5c8] sm:$0xff]
    %v1303 = vld [vmem:[#allocation2 + $0x5d0] sm:$0xff]
    %v1304 = vld [vmem:[#allocation2 + $0x5d8] sm:$0xff]
    %v1305 = vld [vmem:[#allocation2 + $0x5e0] sm:$0xff]
    %v1306 = vld [vmem:[#allocation2 + $0x5e8] sm:$0xff]
    %v1307 = vld [vmem:[#allocation2 + $0x5f0] sm:$0xff]
    %v1308 = vld [vmem:[#allocation2 + $0x5f8] sm:$0xff]
    %v1309 = vld [vmem:[#allocation2 + $0x600] sm:$0xff]
    %v1310 = vld [vmem:[#allocation2 + $0x608] sm:$0xff]
    %v1311 = vld [vmem:[#allocation2 + $0x610] sm:$0xff]
    %v1312 = vld [vmem:[#allocation2 + $0x618] sm:$0xff]
    %v1313 = vld [vmem:[#allocation2 + $0x620] sm:$0xff]
    %v1314 = vld [vmem:[#allocation2 + $0x628] sm:$0xff]
    %v1315 = vld [vmem:[#allocation2 + $0x630] sm:$0xff]
    %v1316 = vld [vmem:[#allocation2 + $0x638] sm:$0xff]
    %v1317 = vld [vmem:[#allocation2 + $0x640] sm:$0xff]
    %v1318 = vld [vmem:[#allocation2 + $0x648] sm:$0xff]
    %v1319 = vld [vmem:[#allocation2 + $0x650] sm:$0xff]
    %v1320 = vld [vmem:[#allocation2 + $0x658] sm:$0xff]
    %v1321 = vld [vmem:[#allocation2 + $0x660] sm:$0xff]
    %v1322 = vld [vmem:[#allocation2 + $0x668] sm:$0xff]
    %v1323 = vld [vmem:[#allocation2 + $0x670] sm:$0xff]
    %v1324 = vld [vmem:[#allocation2 + $0x678] sm:$0xff]
    %v1325 = vld [vmem:[#allocation2 + $0x680] sm:$0xff]
    %v1326 = vld [vmem:[#allocation2 + $0x688] sm:$0xff]
    %v1327 = vld [vmem:[#allocation2 + $0x690] sm:$0xff]
    %v1328 = vld [vmem:[#allocation2 + $0x698] sm:$0xff]
    %v1329 = vld [vmem:[#allocation2 + $0x6a0] sm:$0xff]
    %v1330 = vld [vmem:[#allocation2 + $0x6a8] sm:$0xff]
    %v1331 = vld [vmem:[#allocation2 + $0x6b0] sm:$0xff]
    %v1332 = vld [vmem:[#allocation2 + $0x6b8] sm:$0xff]
    %v1333 = vld [vmem:[#allocation2 + $0x6c0] sm:$0xff]
    %v1334 = vld [vmem:[#allocation2 + $0x6c8] sm:$0xff]
    %v1335 = vld [vmem:[#allocation2 + $0x6d0] sm:$0xff]
    %v1336 = vld [vmem:[#allocation2 + $0x6d8] sm:$0xff]
    %v1337 = vld [vmem:[#allocation2 + $0x6e0] sm:$0xff]
    %v1338 = vld [vmem:[#allocation2 + $0x6e8] sm:$0xff]
    %v1339 = vld [vmem:[#allocation2 + $0x6f0] sm:$0xff]
    %v1340 = vld [vmem:[#allocation2 + $0x6f8] sm:$0xff]
    %v1341 = vld [vmem:[#allocation2 + $0x700] sm:$0xff]
    %v1342 = vld [vmem:[#allocation2 + $0x708] sm:$0xff]
    %v1343 = vld [vmem:[#allocation2 + $0x710] sm:$0xff]
    %v1344 = vld [vmem:[#allocation2 + $0x718] sm:$0xff]
    %v1345 = vld [vmem:[#allocation2 + $0x720] sm:$0xff]
    %v1346 = vld [vmem:[#allocation2 + $0x728] sm:$0xff]
    %v1347 = vld [vmem:[#allocation2 + $0x730] sm:$0xff]
    %v1348 = vld [vmem:[#allocation2 + $0x738] sm:$0xff]
    %v1349 = vld [vmem:[#allocation2 + $0x740] sm:$0xff]
    %v1350 = vld [vmem:[#allocation2 + $0x748] sm:$0xff]
    %v1351 = vld [vmem:[#allocation2 + $0x750] sm:$0xff]
    %v1352 = vld [vmem:[#allocation2 + $0x758] sm:$0xff]
    %v1353 = vld [vmem:[#allocation2 + $0x760] sm:$0xff]
    %v1354 = vld [vmem:[#allocation2 + $0x768] sm:$0xff]
    %v1355 = vld [vmem:[#allocation2 + $0x770] sm:$0xff]
    %v1356 = vld [vmem:[#allocation2 + $0x778] sm:$0xff]
    %v1357 = vld [vmem:[#allocation2 + $0x780] sm:$0xff]
    %v1358 = vld [vmem:[#allocation2 + $0x788] sm:$0xff]
    %v1359 = vld [vmem:[#allocation2 + $0x790] sm:$0xff]
    %v1360 = vld [vmem:[#allocation2 + $0x798] sm:$0xff]
    %v1361 = vld [vmem:[#allocation2 + $0x7a0] sm:$0xff]
    %v1362 = vld [vmem:[#allocation2 + $0x7a8] sm:$0xff]
    %v1363 = vld [vmem:[#allocation2 + $0x7b0] sm:$0xff]
    %v1364 = vld [vmem:[#allocation2 + $0x7b8] sm:$0xff]
    %v1365 = vld [vmem:[#allocation2 + $0x7c0] sm:$0xff]
    %v1366 = vld [vmem:[#allocation2 + $0x7c8] sm:$0xff]
    %v1367 = vld [vmem:[#allocation2 + $0x7d0] sm:$0xff]
    %v1368 = vld [vmem:[#allocation2 + $0x7d8] sm:$0xff]
    %v1369 = vld [vmem:[#allocation2 + $0x7e0] sm:$0xff]
    %v1370 = vld [vmem:[#allocation2 + $0x7e8] sm:$0xff]
    %v1371 = vld [vmem:[#allocation2 + $0x7f0] sm:$0xff]
    %v1372 = vld [vmem:[#allocation2 + $0x7f8] sm:$0xff]
    %v1373 = vld [vmem:[#allocation2 + $0x800] sm:$0xff]
    %v1374 = vld [vmem:[#allocation2 + $0x808] sm:$0xff]
    %v1375 = vld [vmem:[#allocation2 + $0x810] sm:$0xff]
    %v1376 = vld [vmem:[#allocation2 + $0x818] sm:$0xff]
    %v1377 = vld [vmem:[#allocation2 + $0x820] sm:$0xff]
    %v1378 = vld [vmem:[#allocation2 + $0x828] sm:$0xff]
    %v1379 = vld [vmem:[#allocation2 + $0x830] sm:$0xff]
    %v1380 = vld [vmem:[#allocation2 + $0x838] sm:$0xff]
    %v1381 = vld [vmem:[#allocation2 + $0x840] sm:$0xff]
    %v1382 = vld [vmem:[#allocation2 + $0x848] sm:$0xff]
    %v1383 = vld [vmem:[#allocation2 + $0x850] sm:$0xff]
    %v1384 = vld [vmem:[#allocation2 + $0x858] sm:$0xff]
    %v1385 = vld [vmem:[#allocation2 + $0x860] sm:$0xff]
    %v1386 = vld [vmem:[#allocation2 + $0x868] sm:$0xff]
    %v1387 = vld [vmem:[#allocation2 + $0x870] sm:$0xff]
    %v1388 = vld [vmem:[#allocation2 + $0x878] sm:$0xff]
    %v1389 = vld [vmem:[#allocation2 + $0x880] sm:$0xff]
    %v1390 = vld [vmem:[#allocation2 + $0x888] sm:$0xff]
    %v1391 = vld [vmem:[#allocation2 + $0x890] sm:$0xff]
    %v1392 = vld [vmem:[#allocation2 + $0x898] sm:$0xff]
    %v1393 = vld [vmem:[#allocation2 + $0x8a0] sm:$0xff]
    %v1394 = vld [vmem:[#allocation2 + $0x8a8] sm:$0xff]
    %v1395 = vld [vmem:[#allocation2 + $0x8b0] sm:$0xff]
    %v1396 = vld [vmem:[#allocation2 + $0x8b8] sm:$0xff]
    %v1397 = vld [vmem:[#allocation2 + $0x8c0] sm:$0xff]
    %v1398 = vld [vmem:[#allocation2 + $0x8c8] sm:$0xff]
    %v1399 = vld [vmem:[#allocation2 + $0x8d0] sm:$0xff]
    %v1400 = vld [vmem:[#allocation2 + $0x8d8] sm:$0xff]
    %v1401 = vld [vmem:[#allocation2 + $0x8e0] sm:$0xff]
    %v1402 = vld [vmem:[#allocation2 + $0x8e8] sm:$0xff]
    %v1403 = vld [vmem:[#allocation2 + $0x8f0] sm:$0xff]
    %v1404 = vld [vmem:[#allocation2 + $0x8f8] sm:$0xff]
    %v1405 = vld [vmem:[#allocation2 + $0x900] sm:$0xff]
    %v1406 = vld [vmem:[#allocation2 + $0x908] sm:$0xff]
    %v1407 = vld [vmem:[#allocation2 + $0x910] sm:$0xff]
    %v1408 = vld [vmem:[#allocation2 + $0x918] sm:$0xff]
    %v1409 = vld [vmem:[#allocation2 + $0x920] sm:$0xff]
    %v1410 = vld [vmem:[#allocation2 + $0x928] sm:$0xff]
    %v1411 = vld [vmem:[#allocation2 + $0x930] sm:$0xff]
    %v1412 = vld [vmem:[#allocation2 + $0x938] sm:$0xff]
    %v1413 = vld [vmem:[#allocation2 + $0x940] sm:$0xff]
    %v1414 = vld [vmem:[#allocation2 + $0x948] sm:$0xff]
    %v1415 = vld [vmem:[#allocation2 + $0x950] sm:$0xff]
    %v1416 = vld [vmem:[#allocation2 + $0x958] sm:$0xff]
    %v1417 = vld [vmem:[#allocation2 + $0x960] sm:$0xff]
    %v1418 = vld [vmem:[#allocation2 + $0x968] sm:$0xff]
    %v1419 = vld [vmem:[#allocation2 + $0x970] sm:$0xff]
    %v1420 = vld [vmem:[#allocation2 + $0x978] sm:$0xff]
    %v1421 = vld [vmem:[#allocation2 + $0x980] sm:$0xff]
    %v1422 = vld [vmem:[#allocation2 + $0x988] sm:$0xff]
    %v1423 = vld [vmem:[#allocation2 + $0x990] sm:$0xff]
    %v1424 = vld [vmem:[#allocation2 + $0x998] sm:$0xff]
    %v1425 = vld [vmem:[#allocation2 + $0x9a0] sm:$0xff]
    %v1426 = vld [vmem:[#allocation2 + $0x9a8] sm:$0xff]
    %v1427 = vld [vmem:[#allocation2 + $0x9b0] sm:$0xff]
    %v1428 = vld [vmem:[#allocation2 + $0x9b8] sm:$0xff]
    %v1429 = vld [vmem:[#allocation2 + $0x9c0] sm:$0xff]
    %v1430 = vld [vmem:[#allocation2 + $0x9c8] sm:$0xff]
    %v1431 = vld [vmem:[#allocation2 + $0x9d0] sm:$0xff]
    %v1432 = vld [vmem:[#allocation2 + $0x9d8] sm:$0xff]
    %v1433 = vld [vmem:[#allocation2 + $0x9e0] sm:$0xff]
    %v1434 = vld [vmem:[#allocation2 + $0x9e8] sm:$0xff]
    %v1435 = vld [vmem:[#allocation2 + $0x9f0] sm:$0xff]
    %v1436 = vld [vmem:[#allocation2 + $0x9f8] sm:$0xff]
    %v1437 = vld [vmem:[#allocation2 + $0xa00] sm:$0xff]
    %v1438 = vld [vmem:[#allocation2 + $0xa08] sm:$0xff]
    %v1439 = vld [vmem:[#allocation2 + $0xa10] sm:$0xff]
    %v1440 = vld [vmem:[#allocation2 + $0xa18] sm:$0xff]
    %v1441 = vld [vmem:[#allocation2 + $0xa20] sm:$0xff]
    %v1442 = vld [vmem:[#allocation2 + $0xa28] sm:$0xff]
    %v1443 = vld [vmem:[#allocation2 + $0xa30] sm:$0xff]
    %v1444 = vld [vmem:[#allocation2 + $0xa38] sm:$0xff]
    %v1445 = vld [vmem:[#allocation2 + $0xa40] sm:$0xff]
    %v1446 = vld [vmem:[#allocation2 + $0xa48] sm:$0xff]
    %v1447 = vld [vmem:[#allocation2 + $0xa50] sm:$0xff]
    %v1448 = vld [vmem:[#allocation2 + $0xa58] sm:$0xff]
    %v1449 = vld [vmem:[#allocation2 + $0xa60] sm:$0xff]
    %v1450 = vld [vmem:[#allocation2 + $0xa68] sm:$0xff]
    %v1451 = vld [vmem:[#allocation2 + $0xa70] sm:$0xff]
    %v1452 = vld [vmem:[#allocation2 + $0xa78] sm:$0xff]
    %v1453 = vld [vmem:[#allocation2 + $0xa80] sm:$0xff]
    %v1454 = vld [vmem:[#allocation2 + $0xa88] sm:$0xff]
    %v1455 = vld [vmem:[#allocation2 + $0xa90] sm:$0xff]
    %v1456 = vld [vmem:[#allocation2 + $0xa98] sm:$0xff]
    %v1457 = vld [vmem:[#allocation2 + $0xaa0] sm:$0xff]
    %v1458 = vld [vmem:[#allocation2 + $0xaa8] sm:$0xff]
    %v1459 = vld [vmem:[#allocation2 + $0xab0] sm:$0xff]
    %v1460 = vld [vmem:[#allocation2 + $0xab8] sm:$0xff]
    %v1461 = vld [vmem:[#allocation2 + $0xac0] sm:$0xff]
    %v1462 = vld [vmem:[#allocation2 + $0xac8] sm:$0xff]
    %v1463 = vld [vmem:[#allocation2 + $0xad0] sm:$0xff]
    %v1464 = vld [vmem:[#allocation2 + $0xad8] sm:$0xff]
    %v1465 = vld [vmem:[#allocation2 + $0xae0] sm:$0xff]
    %v1466 = vld [vmem:[#allocation2 + $0xae8] sm:$0xff]
    %v1467 = vld [vmem:[#allocation2 + $0xaf0] sm:$0xff]
    %v1468 = vld [vmem:[#allocation2 + $0xaf8] sm:$0xff]
    %v1469 = vld [vmem:[#allocation2 + $0xb00] sm:$0xff]
    %v1470 = vld [vmem:[#allocation2 + $0xb08] sm:$0xff]
    %v1471 = vld [vmem:[#allocation2 + $0xb10] sm:$0xff]
    %v1472 = vld [vmem:[#allocation2 + $0xb18] sm:$0xff]
    %v1473 = vld [vmem:[#allocation2 + $0xb20] sm:$0xff]
    %v1474 = vld [vmem:[#allocation2 + $0xb28] sm:$0xff]
    %v1475 = vld [vmem:[#allocation2 + $0xb30] sm:$0xff]
    %v1476 = vld [vmem:[#allocation2 + $0xb38] sm:$0xff]
    %v1477 = vld [vmem:[#allocation2 + $0xb40] sm:$0xff]
    %v1478 = vld [vmem:[#allocation2 + $0xb48] sm:$0xff]
    %v1479 = vld [vmem:[#allocation2 + $0xb50] sm:$0xff]
    %v1480 = vld [vmem:[#allocation2 + $0xb58] sm:$0xff]
    %v1481 = vld [vmem:[#allocation2 + $0xb60] sm:$0xff]
    %v1482 = vld [vmem:[#allocation2 + $0xb68] sm:$0xff]
    %v1483 = vld [vmem:[#allocation2 + $0xb70] sm:$0xff]
    %v1484 = vld [vmem:[#allocation2 + $0xb78] sm:$0xff]
    %v1485 = vld [vmem:[#allocation2 + $0xb80] sm:$0xff]
    %v1486 = vld [vmem:[#allocation2 + $0xb88] sm:$0xff]
    %v1487 = vld [vmem:[#allocation2 + $0xb90] sm:$0xff]
    %v1488 = vld [vmem:[#allocation2 + $0xb98] sm:$0xff]
    %v1489 = vld [vmem:[#allocation2 + $0xba0] sm:$0xff]
    %v1490 = vld [vmem:[#allocation2 + $0xba8] sm:$0xff]
    %v1491 = vld [vmem:[#allocation2 + $0xbb0] sm:$0xff]
    %v1492 = vld [vmem:[#allocation2 + $0xbb8] sm:$0xff]
    %v1493 = vld [vmem:[#allocation2 + $0xbc0] sm:$0xff]
    %v1494 = vld [vmem:[#allocation2 + $0xbc8] sm:$0xff]
    %v1495 = vld [vmem:[#allocation2 + $0xbd0] sm:$0xff]
    %v1496 = vld [vmem:[#allocation2 + $0xbd8] sm:$0xff]
    %v1497 = vld [vmem:[#allocation2 + $0xbe0] sm:$0xff]
    %v1498 = vld [vmem:[#allocation2 + $0xbe8] sm:$0xff]
    %v1499 = vld [vmem:[#allocation2 + $0xbf0] sm:$0xff]
    %v1500 = vld [vmem:[#allocation2 + $0xbf8] sm:$0xff]
    %v1501 = vld [vmem:[#allocation2 + $0xc00] sm:$0xff]
    %v1502 = vld [vmem:[#allocation2 + $0xc08] sm:$0xff]
    %v1503 = vld [vmem:[#allocation2 + $0xc10] sm:$0xff]
    %v1504 = vld [vmem:[#allocation2 + $0xc18] sm:$0xff]
    %v1505 = vld [vmem:[#allocation2 + $0xc20] sm:$0xff]
    %v1506 = vld [vmem:[#allocation2 + $0xc28] sm:$0xff]
    %v1507 = vld [vmem:[#allocation2 + $0xc30] sm:$0xff]
    %v1508 = vld [vmem:[#allocation2 + $0xc38] sm:$0xff]
    %v1509 = vld [vmem:[#allocation2 + $0xc40] sm:$0xff]
    %v1510 = vld [vmem:[#allocation2 + $0xc48] sm:$0xff]
    %v1511 = vld [vmem:[#allocation2 + $0xc50] sm:$0xff]
    %v1512 = vld [vmem:[#allocation2 + $0xc58] sm:$0xff]
    %v1513 = vld [vmem:[#allocation2 + $0xc60] sm:$0xff]
    %v1514 = vld [vmem:[#allocation2 + $0xc68] sm:$0xff]
    %v1515 = vld [vmem:[#allocation2 + $0xc70] sm:$0xff]
    %v1516 = vld [vmem:[#allocation2 + $0xc78] sm:$0xff]
    %v1517 = vld [vmem:[#allocation2 + $0xc80] sm:$0xff]
    %v1518 = vld [vmem:[#allocation2 + $0xc88] sm:$0xff]
    %v1519 = vld [vmem:[#allocation2 + $0xc90] sm:$0xff]
    %v1520 = vld [vmem:[#allocation2 + $0xc98] sm:$0xff]
    %v1521 = vld [vmem:[#allocation2 + $0xca0] sm:$0xff]
    %v1522 = vld [vmem:[#allocation2 + $0xca8] sm:$0xff]
    %v1523 = vld [vmem:[#allocation2 + $0xcb0] sm:$0xff]
    %v1524 = vld [vmem:[#allocation2 + $0xcb8] sm:$0xff]
    %v1525 = vld [vmem:[#allocation2 + $0xcc0] sm:$0xff]
    %v1526 = vld [vmem:[#allocation2 + $0xcc8] sm:$0xff]
    %v1527 = vld [vmem:[#allocation2 + $0xcd0] sm:$0xff]
    %v1528 = vld [vmem:[#allocation2 + $0xcd8] sm:$0xff]
    %v1529 = vld [vmem:[#allocation2 + $0xce0] sm:$0xff]
    %v1530 = vld [vmem:[#allocation2 + $0xce8] sm:$0xff]
    %v1531 = vld [vmem:[#allocation2 + $0xcf0] sm:$0xff]
    %v1532 = vld [vmem:[#allocation2 + $0xcf8] sm:$0xff]
    %v1533 = vld [vmem:[#allocation2 + $0xd00] sm:$0xff]
    %v1534 = vld [vmem:[#allocation2 + $0xd08] sm:$0xff]
    %v1535 = vld [vmem:[#allocation2 + $0xd10] sm:$0xff]
    %v1536 = vld [vmem:[#allocation2 + $0xd18] sm:$0xff]
    %v1537 = vld [vmem:[#allocation2 + $0xd20] sm:$0xff]
    %v1538 = vld [vmem:[#allocation2 + $0xd28] sm:$0xff]
    %v1539 = vld [vmem:[#allocation2 + $0xd30] sm:$0xff]
    %v1540 = vld [vmem:[#allocation2 + $0xd38] sm:$0xff]
    %v1541 = vld [vmem:[#allocation2 + $0xd40] sm:$0xff]
    %v1542 = vld [vmem:[#allocation2 + $0xd48] sm:$0xff]
    %v1543 = vld [vmem:[#allocation2 + $0xd50] sm:$0xff]
    %v1544 = vld [vmem:[#allocation2 + $0xd58] sm:$0xff]
    %v1545 = vld [vmem:[#allocation2 + $0xd60] sm:$0xff]
    %v1546 = vld [vmem:[#allocation2 + $0xd68] sm:$0xff]
    %v1547 = vld [vmem:[#allocation2 + $0xd70] sm:$0xff]
    %v1548 = vld [vmem:[#allocation2 + $0xd78] sm:$0xff]
    %v1549 = vld [vmem:[#allocation2 + $0xd80] sm:$0xff]
    %v1550 = vld [vmem:[#allocation2 + $0xd88] sm:$0xff]
    %v1551 = vld [vmem:[#allocation2 + $0xd90] sm:$0xff]
    %v1552 = vld [vmem:[#allocation2 + $0xd98] sm:$0xff]
    %v1553 = vld [vmem:[#allocation2 + $0xda0] sm:$0xff]
    %v1554 = vld [vmem:[#allocation2 + $0xda8] sm:$0xff]
    %v1555 = vld [vmem:[#allocation2 + $0xdb0] sm:$0xff]
    %v1556 = vld [vmem:[#allocation2 + $0xdb8] sm:$0xff]
    %v1557 = vld [vmem:[#allocation2 + $0xdc0] sm:$0xff]
    %v1558 = vld [vmem:[#allocation2 + $0xdc8] sm:$0xff]
    %v1559 = vld [vmem:[#allocation2 + $0xdd0] sm:$0xff]
    %v1560 = vld [vmem:[#allocation2 + $0xdd8] sm:$0xff]
    %v1561 = vld [vmem:[#allocation2 + $0xde0] sm:$0xff]
    %v1562 = vld [vmem:[#allocation2 + $0xde8] sm:$0xff]
    %v1563 = vld [vmem:[#allocation2 + $0xdf0] sm:$0xff]
    %v1564 = vld [vmem:[#allocation2 + $0xdf8] sm:$0xff]
    %v1565 = vld [vmem:[#allocation2 + $0xe00] sm:$0xff]
    %v1566 = vld [vmem:[#allocation2 + $0xe08] sm:$0xff]
    %v1567 = vld [vmem:[#allocation2 + $0xe10] sm:$0xff]
    %v1568 = vld [vmem:[#allocation2 + $0xe18] sm:$0xff]
    %v1569 = vld [vmem:[#allocation2 + $0xe20] sm:$0xff]
    %v1570 = vld [vmem:[#allocation2 + $0xe28] sm:$0xff]
    %v1571 = vld [vmem:[#allocation2 + $0xe30] sm:$0xff]
    %v1572 = vld [vmem:[#allocation2 + $0xe38] sm:$0xff]
    %v1573 = vld [vmem:[#allocation2 + $0xe40] sm:$0xff]
    %v1574 = vld [vmem:[#allocation2 + $0xe48] sm:$0xff]
    %v1575 = vld [vmem:[#allocation2 + $0xe50] sm:$0xff]
    %v1576 = vld [vmem:[#allocation2 + $0xe58] sm:$0xff]
    %v1577 = vld [vmem:[#allocation2 + $0xe60] sm:$0xff]
    %v1578 = vld [vmem:[#allocation2 + $0xe68] sm:$0xff]
    %v1579 = vld [vmem:[#allocation2 + $0xe70] sm:$0xff]
    %v1580 = vld [vmem:[#allocation2 + $0xe78] sm:$0xff]
    %v1581 = vld [vmem:[#allocation2 + $0xe80] sm:$0xff]
    %v1582 = vld [vmem:[#allocation2 + $0xe88] sm:$0xff]
    %v1583 = vld [vmem:[#allocation2 + $0xe90] sm:$0xff]
    %v1584 = vld [vmem:[#allocation2 + $0xe98] sm:$0xff]
    %v1585 = vld [vmem:[#allocation2 + $0xea0] sm:$0xff]
    %v1586 = vld [vmem:[#allocation2 + $0xea8] sm:$0xff]
    %v1587 = vld [vmem:[#allocation2 + $0xeb0] sm:$0xff]
    %v1588 = vld [vmem:[#allocation2 + $0xeb8] sm:$0xff]
    %v1589 = vld [vmem:[#allocation2 + $0xec0] sm:$0xff]
    %v1590 = vld [vmem:[#allocation2 + $0xec8] sm:$0xff]
    %v1591 = vld [vmem:[#allocation2 + $0xed0] sm:$0xff]
    %v1592 = vld [vmem:[#allocation2 + $0xed8] sm:$0xff]
    %v1593 = vld [vmem:[#allocation2 + $0xee0] sm:$0xff]
    %v1594 = vld [vmem:[#allocation2 + $0xee8] sm:$0xff]
    %v1595 = vld [vmem:[#allocation2 + $0xef0] sm:$0xff]
    %v1596 = vld [vmem:[#allocation2 + $0xef8] sm:$0xff]
    %v1597 = vld [vmem:[#allocation2 + $0xf00] sm:$0xff]
    %v1598 = vld [vmem:[#allocation2 + $0xf08] sm:$0xff]
    %v1599 = vld [vmem:[#allocation2 + $0xf10] sm:$0xff]
    %v1600 = vld [vmem:[#allocation2 + $0xf18] sm:$0xff]
    %v1601 = vld [vmem:[#allocation2 + $0xf20] sm:$0xff]
    %v1602 = vld [vmem:[#allocation2 + $0xf28] sm:$0xff]
    %v1603 = vld [vmem:[#allocation2 + $0xf30] sm:$0xff]
    %v1604 = vld [vmem:[#allocation2 + $0xf38] sm:$0xff]
    %v1605 = vld [vmem:[#allocation2 + $0xf40] sm:$0xff]
    %v1606 = vld [vmem:[#allocation2 + $0xf48] sm:$0xff]
    %v1607 = vld [vmem:[#allocation2 + $0xf50] sm:$0xff]
    %v1608 = vld [vmem:[#allocation2 + $0xf58] sm:$0xff]
    %v1609 = vld [vmem:[#allocation2 + $0xf60] sm:$0xff]
    %v1610 = vld [vmem:[#allocation2 + $0xf68] sm:$0xff]
    %v1611 = vld [vmem:[#allocation2 + $0xf70] sm:$0xff]
    %v1612 = vld [vmem:[#allocation2 + $0xf78] sm:$0xff]
    %v1613 = vld [vmem:[#allocation2 + $0xf80] sm:$0xff]
    %v1614 = vld [vmem:[#allocation2 + $0xf88] sm:$0xff]
    %v1615 = vld [vmem:[#allocation2 + $0xf90] sm:$0xff]
    %v1616 = vld [vmem:[#allocation2 + $0xf98] sm:$0xff]
    %v1617 = vld [vmem:[#allocation2 + $0xfa0] sm:$0xff]
    %v1618 = vld [vmem:[#allocation2 + $0xfa8] sm:$0xff]
    %v1619 = vld [vmem:[#allocation2 + $0xfb0] sm:$0xff]
    %v1620 = vld [vmem:[#allocation2 + $0xfb8] sm:$0xff]
    %v1621 = vld [vmem:[#allocation2 + $0xfc0] sm:$0xff]
    %v1622 = vld [vmem:[#allocation2 + $0xfc8] sm:$0xff]
    %v1623 = vld [vmem:[#allocation2 + $0xfd0] sm:$0xff]
    %v1624 = vld [vmem:[#allocation2 + $0xfd8] sm:$0xff]
    %v1625 = vld [vmem:[#allocation2 + $0xfe0] sm:$0xff]
    %v1626 = vld [vmem:[#allocation2 + $0xfe8] sm:$0xff]
    %v1627 = vld [vmem:[#allocation2 + $0xff0] sm:$0xff]
    %v1628 = vld [vmem:[#allocation2 + $0xff8] sm:$0xff]
    %v1629 = vpack.c.bf16 %v1097, %v1097
    %v1630 = vpack.c.bf16 %v1098, %v1098
    %v1631 = vpack.c.bf16 %v1099, %v1099
    %v1632 = vpack.c.bf16 %v1100, %v1100
    %v1633 = vpack.c.bf16 %v1101, %v1101
    %v1634 = vpack.c.bf16 %v1102, %v1102
    %v1635 = vpack.c.bf16 %v1103, %v1103
    %v1636 = vpack.c.bf16 %v1104, %v1104
    %v1637 = vpack.c.bf16 %v1105, %v1105
    %v1638 = vpack.c.bf16 %v1106, %v1106
    %v1639 = vpack.c.bf16 %v1107, %v1107
    %v1640 = vpack.c.bf16 %v1108, %v1108
    %v1641 = vpack.c.bf16 %v1109, %v1109
    %v1642 = vpack.c.bf16 %v1110, %v1110
    %v1643 = vpack.c.bf16 %v1111, %v1111
    %v1644 = vpack.c.bf16 %v1112, %v1112
    %v1645 = vunpack.c.l.s8.bf16 %v1117
    %v1646 = vunpack.c.l.s8.bf16 %v1118
    %v1647 = vunpack.c.l.s8.bf16 %v1119
    %v1648 = vunpack.c.l.s8.bf16 %v1120
    %v1649 = vunpack.c.l.s8.bf16 %v1121
    %v1650 = vunpack.c.l.s8.bf16 %v1122
    %v1651 = vunpack.c.l.s8.bf16 %v1123
    %v1652 = vunpack.c.l.s8.bf16 %v1124
    %v1653 = vunpack.c.h.s8.bf16 %v1117
    %v1654 = vunpack.c.h.s8.bf16 %v1118
    %v1655 = vunpack.c.h.s8.bf16 %v1119
    %v1656 = vunpack.c.h.s8.bf16 %v1120
    %v1657 = vunpack.c.h.s8.bf16 %v1121
    %v1658 = vunpack.c.h.s8.bf16 %v1122
    %v1659 = vunpack.c.h.s8.bf16 %v1123
    %v1660 = vunpack.c.h.s8.bf16 %v1124
    %v1661 = vunpack.c.l.s8.bf16 %v1125
    %v1662 = vunpack.c.l.s8.bf16 %v1126
    %v1663 = vunpack.c.l.s8.bf16 %v1127
    %v1664 = vunpack.c.l.s8.bf16 %v1128
    %v1665 = vunpack.c.l.s8.bf16 %v1129
    %v1666 = vunpack.c.l.s8.bf16 %v1130
    %v1667 = vunpack.c.l.s8.bf16 %v1131
    %v1668 = vunpack.c.l.s8.bf16 %v1132
    %v1669 = vunpack.c.h.s8.bf16 %v1125
    %v1670 = vunpack.c.h.s8.bf16 %v1126
    %v1671 = vunpack.c.h.s8.bf16 %v1127
    %v1672 = vunpack.c.h.s8.bf16 %v1128
    %v1673 = vunpack.c.h.s8.bf16 %v1129
    %v1674 = vunpack.c.h.s8.bf16 %v1130
    %v1675 = vunpack.c.h.s8.bf16 %v1131
    %v1676 = vunpack.c.h.s8.bf16 %v1132
    %v1677 = vunpack.c.l.s8.bf16 %v1133
    %v1678 = vunpack.c.l.s8.bf16 %v1134
    %v1679 = vunpack.c.l.s8.bf16 %v1135
    %v1680 = vunpack.c.l.s8.bf16 %v1136
    %v1681 = vunpack.c.l.s8.bf16 %v1137
    %v1682 = vunpack.c.l.s8.bf16 %v1138
    %v1683 = vunpack.c.l.s8.bf16 %v1139
    %v1684 = vunpack.c.l.s8.bf16 %v1140
    %v1685 = vunpack.c.h.s8.bf16 %v1133
    %v1686 = vunpack.c.h.s8.bf16 %v1134
    %v1687 = vunpack.c.h.s8.bf16 %v1135
    %v1688 = vunpack.c.h.s8.bf16 %v1136
    %v1689 = vunpack.c.h.s8.bf16 %v1137
    %v1690 = vunpack.c.h.s8.bf16 %v1138
    %v1691 = vunpack.c.h.s8.bf16 %v1139
    %v1692 = vunpack.c.h.s8.bf16 %v1140
    %v1693 = vunpack.c.l.s8.bf16 %v1141
    %v1694 = vunpack.c.l.s8.bf16 %v1142
    %v1695 = vunpack.c.l.s8.bf16 %v1143
    %v1696 = vunpack.c.l.s8.bf16 %v1144
    %v1697 = vunpack.c.l.s8.bf16 %v1145
    %v1698 = vunpack.c.l.s8.bf16 %v1146
    %v1699 = vunpack.c.l.s8.bf16 %v1147
    %v1700 = vunpack.c.l.s8.bf16 %v1148
    %v1701 = vunpack.c.h.s8.bf16 %v1141
    %v1702 = vunpack.c.h.s8.bf16 %v1142
    %v1703 = vunpack.c.h.s8.bf16 %v1143
    %v1704 = vunpack.c.h.s8.bf16 %v1144
    %v1705 = vunpack.c.h.s8.bf16 %v1145
    %v1706 = vunpack.c.h.s8.bf16 %v1146
    %v1707 = vunpack.c.h.s8.bf16 %v1147
    %v1708 = vunpack.c.h.s8.bf16 %v1148
    %v1709 = vunpack.c.l.s8.bf16 %v1149
    %v1710 = vunpack.c.l.s8.bf16 %v1150
    %v1711 = vunpack.c.l.s8.bf16 %v1151
    %v1712 = vunpack.c.l.s8.bf16 %v1152
    %v1713 = vunpack.c.l.s8.bf16 %v1153
    %v1714 = vunpack.c.l.s8.bf16 %v1154
    %v1715 = vunpack.c.l.s8.bf16 %v1155
    %v1716 = vunpack.c.l.s8.bf16 %v1156
    %v1717 = vunpack.c.h.s8.bf16 %v1149
    %v1718 = vunpack.c.h.s8.bf16 %v1150
    %v1719 = vunpack.c.h.s8.bf16 %v1151
    %v1720 = vunpack.c.h.s8.bf16 %v1152
    %v1721 = vunpack.c.h.s8.bf16 %v1153
    %v1722 = vunpack.c.h.s8.bf16 %v1154
    %v1723 = vunpack.c.h.s8.bf16 %v1155
    %v1724 = vunpack.c.h.s8.bf16 %v1156
    %v1725 = vunpack.c.l.s8.bf16 %v1157
    %v1726 = vunpack.c.l.s8.bf16 %v1158
    %v1727 = vunpack.c.l.s8.bf16 %v1159
    %v1728 = vunpack.c.l.s8.bf16 %v1160
    %v1729 = vunpack.c.l.s8.bf16 %v1161
    %v1730 = vunpack.c.l.s8.bf16 %v1162
    %v1731 = vunpack.c.l.s8.bf16 %v1163
    %v1732 = vunpack.c.l.s8.bf16 %v1164
    %v1733 = vunpack.c.h.s8.bf16 %v1157
    %v1734 = vunpack.c.h.s8.bf16 %v1158
    %v1735 = vunpack.c.h.s8.bf16 %v1159
    %v1736 = vunpack.c.h.s8.bf16 %v1160
    %v1737 = vunpack.c.h.s8.bf16 %v1161
    %v1738 = vunpack.c.h.s8.bf16 %v1162
    %v1739 = vunpack.c.h.s8.bf16 %v1163
    %v1740 = vunpack.c.h.s8.bf16 %v1164
    %v1741 = vunpack.c.l.s8.bf16 %v1165
    %v1742 = vunpack.c.l.s8.bf16 %v1166
    %v1743 = vunpack.c.l.s8.bf16 %v1167
    %v1744 = vunpack.c.l.s8.bf16 %v1168
    %v1745 = vunpack.c.l.s8.bf16 %v1169
    %v1746 = vunpack.c.l.s8.bf16 %v1170
    %v1747 = vunpack.c.l.s8.bf16 %v1171
    %v1748 = vunpack.c.l.s8.bf16 %v1172
    %v1749 = vunpack.c.h.s8.bf16 %v1165
    %v1750 = vunpack.c.h.s8.bf16 %v1166
    %v1751 = vunpack.c.h.s8.bf16 %v1167
    %v1752 = vunpack.c.h.s8.bf16 %v1168
    %v1753 = vunpack.c.h.s8.bf16 %v1169
    %v1754 = vunpack.c.h.s8.bf16 %v1170
    %v1755 = vunpack.c.h.s8.bf16 %v1171
    %v1756 = vunpack.c.h.s8.bf16 %v1172
    %v1757 = vunpack.c.l.s8.bf16 %v1173
    %v1758 = vunpack.c.l.s8.bf16 %v1174
    %v1759 = vunpack.c.l.s8.bf16 %v1175
    %v1760 = vunpack.c.l.s8.bf16 %v1176
    %v1761 = vunpack.c.l.s8.bf16 %v1177
    %v1762 = vunpack.c.l.s8.bf16 %v1178
    %v1763 = vunpack.c.l.s8.bf16 %v1179
    %v1764 = vunpack.c.l.s8.bf16 %v1180
    %v1765 = vunpack.c.h.s8.bf16 %v1173
    %v1766 = vunpack.c.h.s8.bf16 %v1174
    %v1767 = vunpack.c.h.s8.bf16 %v1175
    %v1768 = vunpack.c.h.s8.bf16 %v1176
    %v1769 = vunpack.c.h.s8.bf16 %v1177
    %v1770 = vunpack.c.h.s8.bf16 %v1178
    %v1771 = vunpack.c.h.s8.bf16 %v1179
    %v1772 = vunpack.c.h.s8.bf16 %v1180
    %v1773 = vunpack.c.l.s8.bf16 %v1181
    %v1774 = vunpack.c.l.s8.bf16 %v1182
    %v1775 = vunpack.c.l.s8.bf16 %v1183
    %v1776 = vunpack.c.l.s8.bf16 %v1184
    %v1777 = vunpack.c.l.s8.bf16 %v1185
    %v1778 = vunpack.c.l.s8.bf16 %v1186
    %v1779 = vunpack.c.l.s8.bf16 %v1187
    %v1780 = vunpack.c.l.s8.bf16 %v1188
    %v1781 = vunpack.c.h.s8.bf16 %v1181
    %v1782 = vunpack.c.h.s8.bf16 %v1182
    %v1783 = vunpack.c.h.s8.bf16 %v1183
    %v1784 = vunpack.c.h.s8.bf16 %v1184
    %v1785 = vunpack.c.h.s8.bf16 %v1185
    %v1786 = vunpack.c.h.s8.bf16 %v1186
    %v1787 = vunpack.c.h.s8.bf16 %v1187
    %v1788 = vunpack.c.h.s8.bf16 %v1188
    %v1789 = vunpack.c.l.s8.bf16 %v1189
    %v1790 = vunpack.c.l.s8.bf16 %v1190
    %v1791 = vunpack.c.l.s8.bf16 %v1191
    %v1792 = vunpack.c.l.s8.bf16 %v1192
    %v1793 = vunpack.c.l.s8.bf16 %v1193
    %v1794 = vunpack.c.l.s8.bf16 %v1194
    %v1795 = vunpack.c.l.s8.bf16 %v1195
    %v1796 = vunpack.c.l.s8.bf16 %v1196
    %v1797 = vunpack.c.h.s8.bf16 %v1189
    %v1798 = vunpack.c.h.s8.bf16 %v1190
    %v1799 = vunpack.c.h.s8.bf16 %v1191
    %v1800 = vunpack.c.h.s8.bf16 %v1192
    %v1801 = vunpack.c.h.s8.bf16 %v1193
    %v1802 = vunpack.c.h.s8.bf16 %v1194
    %v1803 = vunpack.c.h.s8.bf16 %v1195
    %v1804 = vunpack.c.h.s8.bf16 %v1196
    %v1805 = vunpack.c.l.s8.bf16 %v1197
    %v1806 = vunpack.c.l.s8.bf16 %v1198
    %v1807 = vunpack.c.l.s8.bf16 %v1199
    %v1808 = vunpack.c.l.s8.bf16 %v1200
    %v1809 = vunpack.c.l.s8.bf16 %v1201
    %v1810 = vunpack.c.l.s8.bf16 %v1202
    %v1811 = vunpack.c.l.s8.bf16 %v1203
    %v1812 = vunpack.c.l.s8.bf16 %v1204
    %v1813 = vunpack.c.h.s8.bf16 %v1197
    %v1814 = vunpack.c.h.s8.bf16 %v1198
    %v1815 = vunpack.c.h.s8.bf16 %v1199
    %v1816 = vunpack.c.h.s8.bf16 %v1200
    %v1817 = vunpack.c.h.s8.bf16 %v1201
    %v1818 = vunpack.c.h.s8.bf16 %v1202
    %v1819 = vunpack.c.h.s8.bf16 %v1203
    %v1820 = vunpack.c.h.s8.bf16 %v1204
    %v1821 = vunpack.c.l.s8.bf16 %v1205
    %v1822 = vunpack.c.l.s8.bf16 %v1206
    %v1823 = vunpack.c.l.s8.bf16 %v1207
    %v1824 = vunpack.c.l.s8.bf16 %v1208
    %v1825 = vunpack.c.l.s8.bf16 %v1209
    %v1826 = vunpack.c.l.s8.bf16 %v1210
    %v1827 = vunpack.c.l.s8.bf16 %v1211
    %v1828 = vunpack.c.l.s8.bf16 %v1212
    %v1829 = vunpack.c.h.s8.bf16 %v1205
    %v1830 = vunpack.c.h.s8.bf16 %v1206
    %v1831 = vunpack.c.h.s8.bf16 %v1207
    %v1832 = vunpack.c.h.s8.bf16 %v1208
    %v1833 = vunpack.c.h.s8.bf16 %v1209
    %v1834 = vunpack.c.h.s8.bf16 %v1210
    %v1835 = vunpack.c.h.s8.bf16 %v1211
    %v1836 = vunpack.c.h.s8.bf16 %v1212
    %v1837 = vunpack.c.l.s8.bf16 %v1213
    %v1838 = vunpack.c.l.s8.bf16 %v1214
    %v1839 = vunpack.c.l.s8.bf16 %v1215
    %v1840 = vunpack.c.l.s8.bf16 %v1216
    %v1841 = vunpack.c.l.s8.bf16 %v1217
    %v1842 = vunpack.c.l.s8.bf16 %v1218
    %v1843 = vunpack.c.l.s8.bf16 %v1219
    %v1844 = vunpack.c.l.s8.bf16 %v1220
    %v1845 = vunpack.c.h.s8.bf16 %v1213
    %v1846 = vunpack.c.h.s8.bf16 %v1214
    %v1847 = vunpack.c.h.s8.bf16 %v1215
    %v1848 = vunpack.c.h.s8.bf16 %v1216
    %v1849 = vunpack.c.h.s8.bf16 %v1217
    %v1850 = vunpack.c.h.s8.bf16 %v1218
    %v1851 = vunpack.c.h.s8.bf16 %v1219
    %v1852 = vunpack.c.h.s8.bf16 %v1220
    %v1853 = vunpack.c.l.s8.bf16 %v1221
    %v1854 = vunpack.c.l.s8.bf16 %v1222
    %v1855 = vunpack.c.l.s8.bf16 %v1223
    %v1856 = vunpack.c.l.s8.bf16 %v1224
    %v1857 = vunpack.c.l.s8.bf16 %v1225
    %v1858 = vunpack.c.l.s8.bf16 %v1226
    %v1859 = vunpack.c.l.s8.bf16 %v1227
    %v1860 = vunpack.c.l.s8.bf16 %v1228
    %v1861 = vunpack.c.h.s8.bf16 %v1221
    %v1862 = vunpack.c.h.s8.bf16 %v1222
    %v1863 = vunpack.c.h.s8.bf16 %v1223
    %v1864 = vunpack.c.h.s8.bf16 %v1224
    %v1865 = vunpack.c.h.s8.bf16 %v1225
    %v1866 = vunpack.c.h.s8.bf16 %v1226
    %v1867 = vunpack.c.h.s8.bf16 %v1227
    %v1868 = vunpack.c.h.s8.bf16 %v1228
    %v1869 = vunpack.c.l.s8.bf16 %v1229
    %v1870 = vunpack.c.l.s8.bf16 %v1230
    %v1871 = vunpack.c.l.s8.bf16 %v1231
    %v1872 = vunpack.c.l.s8.bf16 %v1232
    %v1873 = vunpack.c.l.s8.bf16 %v1233
    %v1874 = vunpack.c.l.s8.bf16 %v1234
    %v1875 = vunpack.c.l.s8.bf16 %v1235
    %v1876 = vunpack.c.l.s8.bf16 %v1236
    %v1877 = vunpack.c.h.s8.bf16 %v1229
    %v1878 = vunpack.c.h.s8.bf16 %v1230
    %v1879 = vunpack.c.h.s8.bf16 %v1231
    %v1880 = vunpack.c.h.s8.bf16 %v1232
    %v1881 = vunpack.c.h.s8.bf16 %v1233
    %v1882 = vunpack.c.h.s8.bf16 %v1234
    %v1883 = vunpack.c.h.s8.bf16 %v1235
    %v1884 = vunpack.c.h.s8.bf16 %v1236
    %v1885 = vunpack.c.l.s8.bf16 %v1237
    %v1886 = vunpack.c.l.s8.bf16 %v1238
    %v1887 = vunpack.c.l.s8.bf16 %v1239
    %v1888 = vunpack.c.l.s8.bf16 %v1240
    %v1889 = vunpack.c.l.s8.bf16 %v1241
    %v1890 = vunpack.c.l.s8.bf16 %v1242
    %v1891 = vunpack.c.l.s8.bf16 %v1243
    %v1892 = vunpack.c.l.s8.bf16 %v1244
    %v1893 = vunpack.c.h.s8.bf16 %v1237
    %v1894 = vunpack.c.h.s8.bf16 %v1238
    %v1895 = vunpack.c.h.s8.bf16 %v1239
    %v1896 = vunpack.c.h.s8.bf16 %v1240
    %v1897 = vunpack.c.h.s8.bf16 %v1241
    %v1898 = vunpack.c.h.s8.bf16 %v1242
    %v1899 = vunpack.c.h.s8.bf16 %v1243
    %v1900 = vunpack.c.h.s8.bf16 %v1244
    %v1901 = vunpack.c.l.s8.bf16 %v1245
    %v1902 = vunpack.c.l.s8.bf16 %v1246
    %v1903 = vunpack.c.l.s8.bf16 %v1247
    %v1904 = vunpack.c.l.s8.bf16 %v1248
    %v1905 = vunpack.c.l.s8.bf16 %v1249
    %v1906 = vunpack.c.l.s8.bf16 %v1250
    %v1907 = vunpack.c.l.s8.bf16 %v1251
    %v1908 = vunpack.c.l.s8.bf16 %v1252
    %v1909 = vunpack.c.h.s8.bf16 %v1245
    %v1910 = vunpack.c.h.s8.bf16 %v1246
    %v1911 = vunpack.c.h.s8.bf16 %v1247
    %v1912 = vunpack.c.h.s8.bf16 %v1248
    %v1913 = vunpack.c.h.s8.bf16 %v1249
    %v1914 = vunpack.c.h.s8.bf16 %v1250
    %v1915 = vunpack.c.h.s8.bf16 %v1251
    %v1916 = vunpack.c.h.s8.bf16 %v1252
    %v1917 = vunpack.c.l.s8.bf16 %v1253
    %v1918 = vunpack.c.l.s8.bf16 %v1254
    %v1919 = vunpack.c.l.s8.bf16 %v1255
    %v1920 = vunpack.c.l.s8.bf16 %v1256
    %v1921 = vunpack.c.l.s8.bf16 %v1257
    %v1922 = vunpack.c.l.s8.bf16 %v1258
    %v1923 = vunpack.c.l.s8.bf16 %v1259
    %v1924 = vunpack.c.l.s8.bf16 %v1260
    %v1925 = vunpack.c.h.s8.bf16 %v1253
    %v1926 = vunpack.c.h.s8.bf16 %v1254
    %v1927 = vunpack.c.h.s8.bf16 %v1255
    %v1928 = vunpack.c.h.s8.bf16 %v1256
    %v1929 = vunpack.c.h.s8.bf16 %v1257
    %v1930 = vunpack.c.h.s8.bf16 %v1258
    %v1931 = vunpack.c.h.s8.bf16 %v1259
    %v1932 = vunpack.c.h.s8.bf16 %v1260
    %v1933 = vunpack.c.l.s8.bf16 %v1261
    %v1934 = vunpack.c.l.s8.bf16 %v1262
    %v1935 = vunpack.c.l.s8.bf16 %v1263
    %v1936 = vunpack.c.l.s8.bf16 %v1264
    %v1937 = vunpack.c.l.s8.bf16 %v1265
    %v1938 = vunpack.c.l.s8.bf16 %v1266
    %v1939 = vunpack.c.l.s8.bf16 %v1267
    %v1940 = vunpack.c.l.s8.bf16 %v1268
    %v1941 = vunpack.c.h.s8.bf16 %v1261
    %v1942 = vunpack.c.h.s8.bf16 %v1262
    %v1943 = vunpack.c.h.s8.bf16 %v1263
    %v1944 = vunpack.c.h.s8.bf16 %v1264
    %v1945 = vunpack.c.h.s8.bf16 %v1265
    %v1946 = vunpack.c.h.s8.bf16 %v1266
    %v1947 = vunpack.c.h.s8.bf16 %v1267
    %v1948 = vunpack.c.h.s8.bf16 %v1268
    %v1949 = vunpack.c.l.s8.bf16 %v1269
    %v1950 = vunpack.c.l.s8.bf16 %v1270
    %v1951 = vunpack.c.l.s8.bf16 %v1271
    %v1952 = vunpack.c.l.s8.bf16 %v1272
    %v1953 = vunpack.c.l.s8.bf16 %v1273
    %v1954 = vunpack.c.l.s8.bf16 %v1274
    %v1955 = vunpack.c.l.s8.bf16 %v1275
    %v1956 = vunpack.c.l.s8.bf16 %v1276
    %v1957 = vunpack.c.h.s8.bf16 %v1269
    %v1958 = vunpack.c.h.s8.bf16 %v1270
    %v1959 = vunpack.c.h.s8.bf16 %v1271
    %v1960 = vunpack.c.h.s8.bf16 %v1272
    %v1961 = vunpack.c.h.s8.bf16 %v1273
    %v1962 = vunpack.c.h.s8.bf16 %v1274
    %v1963 = vunpack.c.h.s8.bf16 %v1275
    %v1964 = vunpack.c.h.s8.bf16 %v1276
    %v1965 = vunpack.c.l.s8.bf16 %v1277
    %v1966 = vunpack.c.l.s8.bf16 %v1278
    %v1967 = vunpack.c.l.s8.bf16 %v1279
    %v1968 = vunpack.c.l.s8.bf16 %v1280
    %v1969 = vunpack.c.l.s8.bf16 %v1281
    %v1970 = vunpack.c.l.s8.bf16 %v1282
    %v1971 = vunpack.c.l.s8.bf16 %v1283
    %v1972 = vunpack.c.l.s8.bf16 %v1284
    %v1973 = vunpack.c.h.s8.bf16 %v1277
    %v1974 = vunpack.c.h.s8.bf16 %v1278
    %v1975 = vunpack.c.h.s8.bf16 %v1279
    %v1976 = vunpack.c.h.s8.bf16 %v1280
    %v1977 = vunpack.c.h.s8.bf16 %v1281
    %v1978 = vunpack.c.h.s8.bf16 %v1282
    %v1979 = vunpack.c.h.s8.bf16 %v1283
    %v1980 = vunpack.c.h.s8.bf16 %v1284
    %v1981 = vunpack.c.l.s8.bf16 %v1285
    %v1982 = vunpack.c.l.s8.bf16 %v1286
    %v1983 = vunpack.c.l.s8.bf16 %v1287
    %v1984 = vunpack.c.l.s8.bf16 %v1288
    %v1985 = vunpack.c.l.s8.bf16 %v1289
    %v1986 = vunpack.c.l.s8.bf16 %v1290
    %v1987 = vunpack.c.l.s8.bf16 %v1291
    %v1988 = vunpack.c.l.s8.bf16 %v1292
    %v1989 = vunpack.c.h.s8.bf16 %v1285
    %v1990 = vunpack.c.h.s8.bf16 %v1286
    %v1991 = vunpack.c.h.s8.bf16 %v1287
    %v1992 = vunpack.c.h.s8.bf16 %v1288
    %v1993 = vunpack.c.h.s8.bf16 %v1289
    %v1994 = vunpack.c.h.s8.bf16 %v1290
    %v1995 = vunpack.c.h.s8.bf16 %v1291
    %v1996 = vunpack.c.h.s8.bf16 %v1292
    %v1997 = vunpack.c.l.s8.bf16 %v1293
    %v1998 = vunpack.c.l.s8.bf16 %v1294
    %v1999 = vunpack.c.l.s8.bf16 %v1295
    %v2000 = vunpack.c.l.s8.bf16 %v1296
    %v2001 = vunpack.c.l.s8.bf16 %v1297
    %v2002 = vunpack.c.l.s8.bf16 %v1298
    %v2003 = vunpack.c.l.s8.bf16 %v1299
    %v2004 = vunpack.c.l.s8.bf16 %v1300
    %v2005 = vunpack.c.h.s8.bf16 %v1293
    %v2006 = vunpack.c.h.s8.bf16 %v1294
    %v2007 = vunpack.c.h.s8.bf16 %v1295
    %v2008 = vunpack.c.h.s8.bf16 %v1296
    %v2009 = vunpack.c.h.s8.bf16 %v1297
    %v2010 = vunpack.c.h.s8.bf16 %v1298
    %v2011 = vunpack.c.h.s8.bf16 %v1299
    %v2012 = vunpack.c.h.s8.bf16 %v1300
    %v2013 = vunpack.c.l.s8.bf16 %v1301
    %v2014 = vunpack.c.l.s8.bf16 %v1302
    %v2015 = vunpack.c.l.s8.bf16 %v1303
    %v2016 = vunpack.c.l.s8.bf16 %v1304
    %v2017 = vunpack.c.l.s8.bf16 %v1305
    %v2018 = vunpack.c.l.s8.bf16 %v1306
    %v2019 = vunpack.c.l.s8.bf16 %v1307
    %v2020 = vunpack.c.l.s8.bf16 %v1308
    %v2021 = vunpack.c.h.s8.bf16 %v1301
    %v2022 = vunpack.c.h.s8.bf16 %v1302
    %v2023 = vunpack.c.h.s8.bf16 %v1303
    %v2024 = vunpack.c.h.s8.bf16 %v1304
    %v2025 = vunpack.c.h.s8.bf16 %v1305
    %v2026 = vunpack.c.h.s8.bf16 %v1306
    %v2027 = vunpack.c.h.s8.bf16 %v1307
    %v2028 = vunpack.c.h.s8.bf16 %v1308
    %v2029 = vunpack.c.l.s8.bf16 %v1309
    %v2030 = vunpack.c.l.s8.bf16 %v1310
    %v2031 = vunpack.c.l.s8.bf16 %v1311
    %v2032 = vunpack.c.l.s8.bf16 %v1312
    %v2033 = vunpack.c.l.s8.bf16 %v1313
    %v2034 = vunpack.c.l.s8.bf16 %v1314
    %v2035 = vunpack.c.l.s8.bf16 %v1315
    %v2036 = vunpack.c.l.s8.bf16 %v1316
    %v2037 = vunpack.c.h.s8.bf16 %v1309
    %v2038 = vunpack.c.h.s8.bf16 %v1310
    %v2039 = vunpack.c.h.s8.bf16 %v1311
    %v2040 = vunpack.c.h.s8.bf16 %v1312
    %v2041 = vunpack.c.h.s8.bf16 %v1313
    %v2042 = vunpack.c.h.s8.bf16 %v1314
    %v2043 = vunpack.c.h.s8.bf16 %v1315
    %v2044 = vunpack.c.h.s8.bf16 %v1316
    %v2045 = vunpack.c.l.s8.bf16 %v1317
    %v2046 = vunpack.c.l.s8.bf16 %v1318
    %v2047 = vunpack.c.l.s8.bf16 %v1319
    %v2048 = vunpack.c.l.s8.bf16 %v1320
    %v2049 = vunpack.c.l.s8.bf16 %v1321
    %v2050 = vunpack.c.l.s8.bf16 %v1322
    %v2051 = vunpack.c.l.s8.bf16 %v1323
    %v2052 = vunpack.c.l.s8.bf16 %v1324
    %v2053 = vunpack.c.h.s8.bf16 %v1317
    %v2054 = vunpack.c.h.s8.bf16 %v1318
    %v2055 = vunpack.c.h.s8.bf16 %v1319
    %v2056 = vunpack.c.h.s8.bf16 %v1320
    %v2057 = vunpack.c.h.s8.bf16 %v1321
    %v2058 = vunpack.c.h.s8.bf16 %v1322
    %v2059 = vunpack.c.h.s8.bf16 %v1323
    %v2060 = vunpack.c.h.s8.bf16 %v1324
    %v2061 = vunpack.c.l.s8.bf16 %v1325
    %v2062 = vunpack.c.l.s8.bf16 %v1326
    %v2063 = vunpack.c.l.s8.bf16 %v1327
    %v2064 = vunpack.c.l.s8.bf16 %v1328
    %v2065 = vunpack.c.l.s8.bf16 %v1329
    %v2066 = vunpack.c.l.s8.bf16 %v1330
    %v2067 = vunpack.c.l.s8.bf16 %v1331
    %v2068 = vunpack.c.l.s8.bf16 %v1332
    %v2069 = vunpack.c.h.s8.bf16 %v1325
    %v2070 = vunpack.c.h.s8.bf16 %v1326
    %v2071 = vunpack.c.h.s8.bf16 %v1327
    %v2072 = vunpack.c.h.s8.bf16 %v1328
    %v2073 = vunpack.c.h.s8.bf16 %v1329
    %v2074 = vunpack.c.h.s8.bf16 %v1330
    %v2075 = vunpack.c.h.s8.bf16 %v1331
    %v2076 = vunpack.c.h.s8.bf16 %v1332
    %v2077 = vunpack.c.l.s8.bf16 %v1333
    %v2078 = vunpack.c.l.s8.bf16 %v1334
    %v2079 = vunpack.c.l.s8.bf16 %v1335
    %v2080 = vunpack.c.l.s8.bf16 %v1336
    %v2081 = vunpack.c.l.s8.bf16 %v1337
    %v2082 = vunpack.c.l.s8.bf16 %v1338
    %v2083 = vunpack.c.l.s8.bf16 %v1339
    %v2084 = vunpack.c.l.s8.bf16 %v1340
    %v2085 = vunpack.c.h.s8.bf16 %v1333
    %v2086 = vunpack.c.h.s8.bf16 %v1334
    %v2087 = vunpack.c.h.s8.bf16 %v1335
    %v2088 = vunpack.c.h.s8.bf16 %v1336
    %v2089 = vunpack.c.h.s8.bf16 %v1337
    %v2090 = vunpack.c.h.s8.bf16 %v1338
    %v2091 = vunpack.c.h.s8.bf16 %v1339
    %v2092 = vunpack.c.h.s8.bf16 %v1340
    %v2093 = vunpack.c.l.s8.bf16 %v1341
    %v2094 = vunpack.c.l.s8.bf16 %v1342
    %v2095 = vunpack.c.l.s8.bf16 %v1343
    %v2096 = vunpack.c.l.s8.bf16 %v1344
    %v2097 = vunpack.c.l.s8.bf16 %v1345
    %v2098 = vunpack.c.l.s8.bf16 %v1346
    %v2099 = vunpack.c.l.s8.bf16 %v1347
    %v2100 = vunpack.c.l.s8.bf16 %v1348
    %v2101 = vunpack.c.h.s8.bf16 %v1341
    %v2102 = vunpack.c.h.s8.bf16 %v1342
    %v2103 = vunpack.c.h.s8.bf16 %v1343
    %v2104 = vunpack.c.h.s8.bf16 %v1344
    %v2105 = vunpack.c.h.s8.bf16 %v1345
    %v2106 = vunpack.c.h.s8.bf16 %v1346
    %v2107 = vunpack.c.h.s8.bf16 %v1347
    %v2108 = vunpack.c.h.s8.bf16 %v1348
    %v2109 = vunpack.c.l.s8.bf16 %v1349
    %v2110 = vunpack.c.l.s8.bf16 %v1350
    %v2111 = vunpack.c.l.s8.bf16 %v1351
    %v2112 = vunpack.c.l.s8.bf16 %v1352
    %v2113 = vunpack.c.l.s8.bf16 %v1353
    %v2114 = vunpack.c.l.s8.bf16 %v1354
    %v2115 = vunpack.c.l.s8.bf16 %v1355
    %v2116 = vunpack.c.l.s8.bf16 %v1356
    %v2117 = vunpack.c.h.s8.bf16 %v1349
    %v2118 = vunpack.c.h.s8.bf16 %v1350
    %v2119 = vunpack.c.h.s8.bf16 %v1351
    %v2120 = vunpack.c.h.s8.bf16 %v1352
    %v2121 = vunpack.c.h.s8.bf16 %v1353
    %v2122 = vunpack.c.h.s8.bf16 %v1354
    %v2123 = vunpack.c.h.s8.bf16 %v1355
    %v2124 = vunpack.c.h.s8.bf16 %v1356
    %v2125 = vunpack.c.l.s8.bf16 %v1357
    %v2126 = vunpack.c.l.s8.bf16 %v1358
    %v2127 = vunpack.c.l.s8.bf16 %v1359
    %v2128 = vunpack.c.l.s8.bf16 %v1360
    %v2129 = vunpack.c.l.s8.bf16 %v1361
    %v2130 = vunpack.c.l.s8.bf16 %v1362
    %v2131 = vunpack.c.l.s8.bf16 %v1363
    %v2132 = vunpack.c.l.s8.bf16 %v1364
    %v2133 = vunpack.c.h.s8.bf16 %v1357
    %v2134 = vunpack.c.h.s8.bf16 %v1358
    %v2135 = vunpack.c.h.s8.bf16 %v1359
    %v2136 = vunpack.c.h.s8.bf16 %v1360
    %v2137 = vunpack.c.h.s8.bf16 %v1361
    %v2138 = vunpack.c.h.s8.bf16 %v1362
    %v2139 = vunpack.c.h.s8.bf16 %v1363
    %v2140 = vunpack.c.h.s8.bf16 %v1364
    %v2141 = vunpack.c.l.s8.bf16 %v1365
    %v2142 = vunpack.c.l.s8.bf16 %v1366
    %v2143 = vunpack.c.l.s8.bf16 %v1367
    %v2144 = vunpack.c.l.s8.bf16 %v1368
    %v2145 = vunpack.c.l.s8.bf16 %v1369
    %v2146 = vunpack.c.l.s8.bf16 %v1370
    %v2147 = vunpack.c.l.s8.bf16 %v1371
    %v2148 = vunpack.c.l.s8.bf16 %v1372
    %v2149 = vunpack.c.h.s8.bf16 %v1365
    %v2150 = vunpack.c.h.s8.bf16 %v1366
    %v2151 = vunpack.c.h.s8.bf16 %v1367
    %v2152 = vunpack.c.h.s8.bf16 %v1368
    %v2153 = vunpack.c.h.s8.bf16 %v1369
    %v2154 = vunpack.c.h.s8.bf16 %v1370
    %v2155 = vunpack.c.h.s8.bf16 %v1371
    %v2156 = vunpack.c.h.s8.bf16 %v1372
    %v2157 = vunpack.c.l.s8.bf16 %v1373
    %v2158 = vunpack.c.l.s8.bf16 %v1374
    %v2159 = vunpack.c.l.s8.bf16 %v1375
    %v2160 = vunpack.c.l.s8.bf16 %v1376
    %v2161 = vunpack.c.l.s8.bf16 %v1377
    %v2162 = vunpack.c.l.s8.bf16 %v1378
    %v2163 = vunpack.c.l.s8.bf16 %v1379
    %v2164 = vunpack.c.l.s8.bf16 %v1380
    %v2165 = vunpack.c.h.s8.bf16 %v1373
    %v2166 = vunpack.c.h.s8.bf16 %v1374
    %v2167 = vunpack.c.h.s8.bf16 %v1375
    %v2168 = vunpack.c.h.s8.bf16 %v1376
    %v2169 = vunpack.c.h.s8.bf16 %v1377
    %v2170 = vunpack.c.h.s8.bf16 %v1378
    %v2171 = vunpack.c.h.s8.bf16 %v1379
    %v2172 = vunpack.c.h.s8.bf16 %v1380
    %v2173 = vunpack.c.l.s8.bf16 %v1381
    %v2174 = vunpack.c.l.s8.bf16 %v1382
    %v2175 = vunpack.c.l.s8.bf16 %v1383
    %v2176 = vunpack.c.l.s8.bf16 %v1384
    %v2177 = vunpack.c.l.s8.bf16 %v1385
    %v2178 = vunpack.c.l.s8.bf16 %v1386
    %v2179 = vunpack.c.l.s8.bf16 %v1387
    %v2180 = vunpack.c.l.s8.bf16 %v1388
    %v2181 = vunpack.c.h.s8.bf16 %v1381
    %v2182 = vunpack.c.h.s8.bf16 %v1382
    %v2183 = vunpack.c.h.s8.bf16 %v1383
    %v2184 = vunpack.c.h.s8.bf16 %v1384
    %v2185 = vunpack.c.h.s8.bf16 %v1385
    %v2186 = vunpack.c.h.s8.bf16 %v1386
    %v2187 = vunpack.c.h.s8.bf16 %v1387
    %v2188 = vunpack.c.h.s8.bf16 %v1388
    %v2189 = vunpack.c.l.s8.bf16 %v1389
    %v2190 = vunpack.c.l.s8.bf16 %v1390
    %v2191 = vunpack.c.l.s8.bf16 %v1391
    %v2192 = vunpack.c.l.s8.bf16 %v1392
    %v2193 = vunpack.c.l.s8.bf16 %v1393
    %v2194 = vunpack.c.l.s8.bf16 %v1394
    %v2195 = vunpack.c.l.s8.bf16 %v1395
    %v2196 = vunpack.c.l.s8.bf16 %v1396
    %v2197 = vunpack.c.h.s8.bf16 %v1389
    %v2198 = vunpack.c.h.s8.bf16 %v1390
    %v2199 = vunpack.c.h.s8.bf16 %v1391
    %v2200 = vunpack.c.h.s8.bf16 %v1392
    %v2201 = vunpack.c.h.s8.bf16 %v1393
    %v2202 = vunpack.c.h.s8.bf16 %v1394
    %v2203 = vunpack.c.h.s8.bf16 %v1395
    %v2204 = vunpack.c.h.s8.bf16 %v1396
    %v2205 = vunpack.c.l.s8.bf16 %v1397
    %v2206 = vunpack.c.l.s8.bf16 %v1398
    %v2207 = vunpack.c.l.s8.bf16 %v1399
    %v2208 = vunpack.c.l.s8.bf16 %v1400
    %v2209 = vunpack.c.l.s8.bf16 %v1401
    %v2210 = vunpack.c.l.s8.bf16 %v1402
    %v2211 = vunpack.c.l.s8.bf16 %v1403
    %v2212 = vunpack.c.l.s8.bf16 %v1404
    %v2213 = vunpack.c.h.s8.bf16 %v1397
    %v2214 = vunpack.c.h.s8.bf16 %v1398
    %v2215 = vunpack.c.h.s8.bf16 %v1399
    %v2216 = vunpack.c.h.s8.bf16 %v1400
    %v2217 = vunpack.c.h.s8.bf16 %v1401
    %v2218 = vunpack.c.h.s8.bf16 %v1402
    %v2219 = vunpack.c.h.s8.bf16 %v1403
    %v2220 = vunpack.c.h.s8.bf16 %v1404
    %v2221 = vunpack.c.l.s8.bf16 %v1405
    %v2222 = vunpack.c.l.s8.bf16 %v1406
    %v2223 = vunpack.c.l.s8.bf16 %v1407
    %v2224 = vunpack.c.l.s8.bf16 %v1408
    %v2225 = vunpack.c.l.s8.bf16 %v1409
    %v2226 = vunpack.c.l.s8.bf16 %v1410
    %v2227 = vunpack.c.l.s8.bf16 %v1411
    %v2228 = vunpack.c.l.s8.bf16 %v1412
    %v2229 = vunpack.c.h.s8.bf16 %v1405
    %v2230 = vunpack.c.h.s8.bf16 %v1406
    %v2231 = vunpack.c.h.s8.bf16 %v1407
    %v2232 = vunpack.c.h.s8.bf16 %v1408
    %v2233 = vunpack.c.h.s8.bf16 %v1409
    %v2234 = vunpack.c.h.s8.bf16 %v1410
    %v2235 = vunpack.c.h.s8.bf16 %v1411
    %v2236 = vunpack.c.h.s8.bf16 %v1412
    %v2237 = vunpack.c.l.s8.bf16 %v1413
    %v2238 = vunpack.c.l.s8.bf16 %v1414
    %v2239 = vunpack.c.l.s8.bf16 %v1415
    %v2240 = vunpack.c.l.s8.bf16 %v1416
    %v2241 = vunpack.c.l.s8.bf16 %v1417
    %v2242 = vunpack.c.l.s8.bf16 %v1418
    %v2243 = vunpack.c.l.s8.bf16 %v1419
    %v2244 = vunpack.c.l.s8.bf16 %v1420
    %v2245 = vunpack.c.h.s8.bf16 %v1413
    %v2246 = vunpack.c.h.s8.bf16 %v1414
    %v2247 = vunpack.c.h.s8.bf16 %v1415
    %v2248 = vunpack.c.h.s8.bf16 %v1416
    %v2249 = vunpack.c.h.s8.bf16 %v1417
    %v2250 = vunpack.c.h.s8.bf16 %v1418
    %v2251 = vunpack.c.h.s8.bf16 %v1419
    %v2252 = vunpack.c.h.s8.bf16 %v1420
    %v2253 = vunpack.c.l.s8.bf16 %v1421
    %v2254 = vunpack.c.l.s8.bf16 %v1422
    %v2255 = vunpack.c.l.s8.bf16 %v1423
    %v2256 = vunpack.c.l.s8.bf16 %v1424
    %v2257 = vunpack.c.l.s8.bf16 %v1425
    %v2258 = vunpack.c.l.s8.bf16 %v1426
    %v2259 = vunpack.c.l.s8.bf16 %v1427
    %v2260 = vunpack.c.l.s8.bf16 %v1428
    %v2261 = vunpack.c.h.s8.bf16 %v1421
    %v2262 = vunpack.c.h.s8.bf16 %v1422
    %v2263 = vunpack.c.h.s8.bf16 %v1423
    %v2264 = vunpack.c.h.s8.bf16 %v1424
    %v2265 = vunpack.c.h.s8.bf16 %v1425
    %v2266 = vunpack.c.h.s8.bf16 %v1426
    %v2267 = vunpack.c.h.s8.bf16 %v1427
    %v2268 = vunpack.c.h.s8.bf16 %v1428
    %v2269 = vunpack.c.l.s8.bf16 %v1429
    %v2270 = vunpack.c.l.s8.bf16 %v1430
    %v2271 = vunpack.c.l.s8.bf16 %v1431
    %v2272 = vunpack.c.l.s8.bf16 %v1432
    %v2273 = vunpack.c.l.s8.bf16 %v1433
    %v2274 = vunpack.c.l.s8.bf16 %v1434
    %v2275 = vunpack.c.l.s8.bf16 %v1435
    %v2276 = vunpack.c.l.s8.bf16 %v1436
    %v2277 = vunpack.c.h.s8.bf16 %v1429
    %v2278 = vunpack.c.h.s8.bf16 %v1430
    %v2279 = vunpack.c.h.s8.bf16 %v1431
    %v2280 = vunpack.c.h.s8.bf16 %v1432
    %v2281 = vunpack.c.h.s8.bf16 %v1433
    %v2282 = vunpack.c.h.s8.bf16 %v1434
    %v2283 = vunpack.c.h.s8.bf16 %v1435
    %v2284 = vunpack.c.h.s8.bf16 %v1436
    %v2285 = vunpack.c.l.s8.bf16 %v1437
    %v2286 = vunpack.c.l.s8.bf16 %v1438
    %v2287 = vunpack.c.l.s8.bf16 %v1439
    %v2288 = vunpack.c.l.s8.bf16 %v1440
    %v2289 = vunpack.c.l.s8.bf16 %v1441
    %v2290 = vunpack.c.l.s8.bf16 %v1442
    %v2291 = vunpack.c.l.s8.bf16 %v1443
    %v2292 = vunpack.c.l.s8.bf16 %v1444
    %v2293 = vunpack.c.h.s8.bf16 %v1437
    %v2294 = vunpack.c.h.s8.bf16 %v1438
    %v2295 = vunpack.c.h.s8.bf16 %v1439
    %v2296 = vunpack.c.h.s8.bf16 %v1440
    %v2297 = vunpack.c.h.s8.bf16 %v1441
    %v2298 = vunpack.c.h.s8.bf16 %v1442
    %v2299 = vunpack.c.h.s8.bf16 %v1443
    %v2300 = vunpack.c.h.s8.bf16 %v1444
    %v2301 = vunpack.c.l.s8.bf16 %v1445
    %v2302 = vunpack.c.l.s8.bf16 %v1446
    %v2303 = vunpack.c.l.s8.bf16 %v1447
    %v2304 = vunpack.c.l.s8.bf16 %v1448
    %v2305 = vunpack.c.l.s8.bf16 %v1449
    %v2306 = vunpack.c.l.s8.bf16 %v1450
    %v2307 = vunpack.c.l.s8.bf16 %v1451
    %v2308 = vunpack.c.l.s8.bf16 %v1452
    %v2309 = vunpack.c.h.s8.bf16 %v1445
    %v2310 = vunpack.c.h.s8.bf16 %v1446
    %v2311 = vunpack.c.h.s8.bf16 %v1447
    %v2312 = vunpack.c.h.s8.bf16 %v1448
    %v2313 = vunpack.c.h.s8.bf16 %v1449
    %v2314 = vunpack.c.h.s8.bf16 %v1450
    %v2315 = vunpack.c.h.s8.bf16 %v1451
    %v2316 = vunpack.c.h.s8.bf16 %v1452
    %v2317 = vunpack.c.l.s8.bf16 %v1453
    %v2318 = vunpack.c.l.s8.bf16 %v1454
    %v2319 = vunpack.c.l.s8.bf16 %v1455
    %v2320 = vunpack.c.l.s8.bf16 %v1456
    %v2321 = vunpack.c.l.s8.bf16 %v1457
    %v2322 = vunpack.c.l.s8.bf16 %v1458
    %v2323 = vunpack.c.l.s8.bf16 %v1459
    %v2324 = vunpack.c.l.s8.bf16 %v1460
    %v2325 = vunpack.c.h.s8.bf16 %v1453
    %v2326 = vunpack.c.h.s8.bf16 %v1454
    %v2327 = vunpack.c.h.s8.bf16 %v1455
    %v2328 = vunpack.c.h.s8.bf16 %v1456
    %v2329 = vunpack.c.h.s8.bf16 %v1457
    %v2330 = vunpack.c.h.s8.bf16 %v1458
    %v2331 = vunpack.c.h.s8.bf16 %v1459
    %v2332 = vunpack.c.h.s8.bf16 %v1460
    %v2333 = vunpack.c.l.s8.bf16 %v1461
    %v2334 = vunpack.c.l.s8.bf16 %v1462
    %v2335 = vunpack.c.l.s8.bf16 %v1463
    %v2336 = vunpack.c.l.s8.bf16 %v1464
    %v2337 = vunpack.c.l.s8.bf16 %v1465
    %v2338 = vunpack.c.l.s8.bf16 %v1466
    %v2339 = vunpack.c.l.s8.bf16 %v1467
    %v2340 = vunpack.c.l.s8.bf16 %v1468
    %v2341 = vunpack.c.h.s8.bf16 %v1461
    %v2342 = vunpack.c.h.s8.bf16 %v1462
    %v2343 = vunpack.c.h.s8.bf16 %v1463
    %v2344 = vunpack.c.h.s8.bf16 %v1464
    %v2345 = vunpack.c.h.s8.bf16 %v1465
    %v2346 = vunpack.c.h.s8.bf16 %v1466
    %v2347 = vunpack.c.h.s8.bf16 %v1467
    %v2348 = vunpack.c.h.s8.bf16 %v1468
    %v2349 = vunpack.c.l.s8.bf16 %v1469
    %v2350 = vunpack.c.l.s8.bf16 %v1470
    %v2351 = vunpack.c.l.s8.bf16 %v1471
    %v2352 = vunpack.c.l.s8.bf16 %v1472
    %v2353 = vunpack.c.l.s8.bf16 %v1473
    %v2354 = vunpack.c.l.s8.bf16 %v1474
    %v2355 = vunpack.c.l.s8.bf16 %v1475
    %v2356 = vunpack.c.l.s8.bf16 %v1476
    %v2357 = vunpack.c.h.s8.bf16 %v1469
    %v2358 = vunpack.c.h.s8.bf16 %v1470
    %v2359 = vunpack.c.h.s8.bf16 %v1471
    %v2360 = vunpack.c.h.s8.bf16 %v1472
    %v2361 = vunpack.c.h.s8.bf16 %v1473
    %v2362 = vunpack.c.h.s8.bf16 %v1474
    %v2363 = vunpack.c.h.s8.bf16 %v1475
    %v2364 = vunpack.c.h.s8.bf16 %v1476
    %v2365 = vunpack.c.l.s8.bf16 %v1477
    %v2366 = vunpack.c.l.s8.bf16 %v1478
    %v2367 = vunpack.c.l.s8.bf16 %v1479
    %v2368 = vunpack.c.l.s8.bf16 %v1480
    %v2369 = vunpack.c.l.s8.bf16 %v1481
    %v2370 = vunpack.c.l.s8.bf16 %v1482
    %v2371 = vunpack.c.l.s8.bf16 %v1483
    %v2372 = vunpack.c.l.s8.bf16 %v1484
    %v2373 = vunpack.c.h.s8.bf16 %v1477
    %v2374 = vunpack.c.h.s8.bf16 %v1478
    %v2375 = vunpack.c.h.s8.bf16 %v1479
    %v2376 = vunpack.c.h.s8.bf16 %v1480
    %v2377 = vunpack.c.h.s8.bf16 %v1481
    %v2378 = vunpack.c.h.s8.bf16 %v1482
    %v2379 = vunpack.c.h.s8.bf16 %v1483
    %v2380 = vunpack.c.h.s8.bf16 %v1484
    %v2381 = vunpack.c.l.s8.bf16 %v1485
    %v2382 = vunpack.c.l.s8.bf16 %v1486
    %v2383 = vunpack.c.l.s8.bf16 %v1487
    %v2384 = vunpack.c.l.s8.bf16 %v1488
    %v2385 = vunpack.c.l.s8.bf16 %v1489
    %v2386 = vunpack.c.l.s8.bf16 %v1490
    %v2387 = vunpack.c.l.s8.bf16 %v1491
    %v2388 = vunpack.c.l.s8.bf16 %v1492
    %v2389 = vunpack.c.h.s8.bf16 %v1485
    %v2390 = vunpack.c.h.s8.bf16 %v1486
    %v2391 = vunpack.c.h.s8.bf16 %v1487
    %v2392 = vunpack.c.h.s8.bf16 %v1488
    %v2393 = vunpack.c.h.s8.bf16 %v1489
    %v2394 = vunpack.c.h.s8.bf16 %v1490
    %v2395 = vunpack.c.h.s8.bf16 %v1491
    %v2396 = vunpack.c.h.s8.bf16 %v1492
    %v2397 = vunpack.c.l.s8.bf16 %v1493
    %v2398 = vunpack.c.l.s8.bf16 %v1494
    %v2399 = vunpack.c.l.s8.bf16 %v1495
    %v2400 = vunpack.c.l.s8.bf16 %v1496
    %v2401 = vunpack.c.l.s8.bf16 %v1497
    %v2402 = vunpack.c.l.s8.bf16 %v1498
    %v2403 = vunpack.c.l.s8.bf16 %v1499
    %v2404 = vunpack.c.l.s8.bf16 %v1500
    %v2405 = vunpack.c.h.s8.bf16 %v1493
    %v2406 = vunpack.c.h.s8.bf16 %v1494
    %v2407 = vunpack.c.h.s8.bf16 %v1495
    %v2408 = vunpack.c.h.s8.bf16 %v1496
    %v2409 = vunpack.c.h.s8.bf16 %v1497
    %v2410 = vunpack.c.h.s8.bf16 %v1498
    %v2411 = vunpack.c.h.s8.bf16 %v1499
    %v2412 = vunpack.c.h.s8.bf16 %v1500
    %v2413 = vunpack.c.l.s8.bf16 %v1501
    %v2414 = vunpack.c.l.s8.bf16 %v1502
    %v2415 = vunpack.c.l.s8.bf16 %v1503
    %v2416 = vunpack.c.l.s8.bf16 %v1504
    %v2417 = vunpack.c.l.s8.bf16 %v1505
    %v2418 = vunpack.c.l.s8.bf16 %v1506
    %v2419 = vunpack.c.l.s8.bf16 %v1507
    %v2420 = vunpack.c.l.s8.bf16 %v1508
    %v2421 = vunpack.c.h.s8.bf16 %v1501
    %v2422 = vunpack.c.h.s8.bf16 %v1502
    %v2423 = vunpack.c.h.s8.bf16 %v1503
    %v2424 = vunpack.c.h.s8.bf16 %v1504
    %v2425 = vunpack.c.h.s8.bf16 %v1505
    %v2426 = vunpack.c.h.s8.bf16 %v1506
    %v2427 = vunpack.c.h.s8.bf16 %v1507
    %v2428 = vunpack.c.h.s8.bf16 %v1508
    %v2429 = vunpack.c.l.s8.bf16 %v1509
    %v2430 = vunpack.c.l.s8.bf16 %v1510
    %v2431 = vunpack.c.l.s8.bf16 %v1511
    %v2432 = vunpack.c.l.s8.bf16 %v1512
    %v2433 = vunpack.c.l.s8.bf16 %v1513
    %v2434 = vunpack.c.l.s8.bf16 %v1514
    %v2435 = vunpack.c.l.s8.bf16 %v1515
    %v2436 = vunpack.c.l.s8.bf16 %v1516
    %v2437 = vunpack.c.h.s8.bf16 %v1509
    %v2438 = vunpack.c.h.s8.bf16 %v1510
    %v2439 = vunpack.c.h.s8.bf16 %v1511
    %v2440 = vunpack.c.h.s8.bf16 %v1512
    %v2441 = vunpack.c.h.s8.bf16 %v1513
    %v2442 = vunpack.c.h.s8.bf16 %v1514
    %v2443 = vunpack.c.h.s8.bf16 %v1515
    %v2444 = vunpack.c.h.s8.bf16 %v1516
    %v2445 = vunpack.c.l.s8.bf16 %v1517
    %v2446 = vunpack.c.l.s8.bf16 %v1518
    %v2447 = vunpack.c.l.s8.bf16 %v1519
    %v2448 = vunpack.c.l.s8.bf16 %v1520
    %v2449 = vunpack.c.l.s8.bf16 %v1521
    %v2450 = vunpack.c.l.s8.bf16 %v1522
    %v2451 = vunpack.c.l.s8.bf16 %v1523
    %v2452 = vunpack.c.l.s8.bf16 %v1524
    %v2453 = vunpack.c.h.s8.bf16 %v1517
    %v2454 = vunpack.c.h.s8.bf16 %v1518
    %v2455 = vunpack.c.h.s8.bf16 %v1519
    %v2456 = vunpack.c.h.s8.bf16 %v1520
    %v2457 = vunpack.c.h.s8.bf16 %v1521
    %v2458 = vunpack.c.h.s8.bf16 %v1522
    %v2459 = vunpack.c.h.s8.bf16 %v1523
    %v2460 = vunpack.c.h.s8.bf16 %v1524
    %v2461 = vunpack.c.l.s8.bf16 %v1525
    %v2462 = vunpack.c.l.s8.bf16 %v1526
    %v2463 = vunpack.c.l.s8.bf16 %v1527
    %v2464 = vunpack.c.l.s8.bf16 %v1528
    %v2465 = vunpack.c.l.s8.bf16 %v1529
    %v2466 = vunpack.c.l.s8.bf16 %v1530
    %v2467 = vunpack.c.l.s8.bf16 %v1531
    %v2468 = vunpack.c.l.s8.bf16 %v1532
    %v2469 = vunpack.c.h.s8.bf16 %v1525
    %v2470 = vunpack.c.h.s8.bf16 %v1526
    %v2471 = vunpack.c.h.s8.bf16 %v1527
    %v2472 = vunpack.c.h.s8.bf16 %v1528
    %v2473 = vunpack.c.h.s8.bf16 %v1529
    %v2474 = vunpack.c.h.s8.bf16 %v1530
    %v2475 = vunpack.c.h.s8.bf16 %v1531
    %v2476 = vunpack.c.h.s8.bf16 %v1532
    %v2477 = vunpack.c.l.s8.bf16 %v1533
    %v2478 = vunpack.c.l.s8.bf16 %v1534
    %v2479 = vunpack.c.l.s8.bf16 %v1535
    %v2480 = vunpack.c.l.s8.bf16 %v1536
    %v2481 = vunpack.c.l.s8.bf16 %v1537
    %v2482 = vunpack.c.l.s8.bf16 %v1538
    %v2483 = vunpack.c.l.s8.bf16 %v1539
    %v2484 = vunpack.c.l.s8.bf16 %v1540
    %v2485 = vunpack.c.h.s8.bf16 %v1533
    %v2486 = vunpack.c.h.s8.bf16 %v1534
    %v2487 = vunpack.c.h.s8.bf16 %v1535
    %v2488 = vunpack.c.h.s8.bf16 %v1536
    %v2489 = vunpack.c.h.s8.bf16 %v1537
    %v2490 = vunpack.c.h.s8.bf16 %v1538
    %v2491 = vunpack.c.h.s8.bf16 %v1539
    %v2492 = vunpack.c.h.s8.bf16 %v1540
    %v2493 = vunpack.c.l.s8.bf16 %v1541
    %v2494 = vunpack.c.l.s8.bf16 %v1542
    %v2495 = vunpack.c.l.s8.bf16 %v1543
    %v2496 = vunpack.c.l.s8.bf16 %v1544
    %v2497 = vunpack.c.l.s8.bf16 %v1545
    %v2498 = vunpack.c.l.s8.bf16 %v1546
    %v2499 = vunpack.c.l.s8.bf16 %v1547
    %v2500 = vunpack.c.l.s8.bf16 %v1548
    %v2501 = vunpack.c.h.s8.bf16 %v1541
    %v2502 = vunpack.c.h.s8.bf16 %v1542
    %v2503 = vunpack.c.h.s8.bf16 %v1543
    %v2504 = vunpack.c.h.s8.bf16 %v1544
    %v2505 = vunpack.c.h.s8.bf16 %v1545
    %v2506 = vunpack.c.h.s8.bf16 %v1546
    %v2507 = vunpack.c.h.s8.bf16 %v1547
    %v2508 = vunpack.c.h.s8.bf16 %v1548
    %v2509 = vunpack.c.l.s8.bf16 %v1549
    %v2510 = vunpack.c.l.s8.bf16 %v1550
    %v2511 = vunpack.c.l.s8.bf16 %v1551
    %v2512 = vunpack.c.l.s8.bf16 %v1552
    %v2513 = vunpack.c.l.s8.bf16 %v1553
    %v2514 = vunpack.c.l.s8.bf16 %v1554
    %v2515 = vunpack.c.l.s8.bf16 %v1555
    %v2516 = vunpack.c.l.s8.bf16 %v1556
    %v2517 = vunpack.c.h.s8.bf16 %v1549
    %v2518 = vunpack.c.h.s8.bf16 %v1550
    %v2519 = vunpack.c.h.s8.bf16 %v1551
    %v2520 = vunpack.c.h.s8.bf16 %v1552
    %v2521 = vunpack.c.h.s8.bf16 %v1553
    %v2522 = vunpack.c.h.s8.bf16 %v1554
    %v2523 = vunpack.c.h.s8.bf16 %v1555
    %v2524 = vunpack.c.h.s8.bf16 %v1556
    %v2525 = vunpack.c.l.s8.bf16 %v1557
    %v2526 = vunpack.c.l.s8.bf16 %v1558
    %v2527 = vunpack.c.l.s8.bf16 %v1559
    %v2528 = vunpack.c.l.s8.bf16 %v1560
    %v2529 = vunpack.c.l.s8.bf16 %v1561
    %v2530 = vunpack.c.l.s8.bf16 %v1562
    %v2531 = vunpack.c.l.s8.bf16 %v1563
    %v2532 = vunpack.c.l.s8.bf16 %v1564
    %v2533 = vunpack.c.h.s8.bf16 %v1557
    %v2534 = vunpack.c.h.s8.bf16 %v1558
    %v2535 = vunpack.c.h.s8.bf16 %v1559
    %v2536 = vunpack.c.h.s8.bf16 %v1560
    %v2537 = vunpack.c.h.s8.bf16 %v1561
    %v2538 = vunpack.c.h.s8.bf16 %v1562
    %v2539 = vunpack.c.h.s8.bf16 %v1563
    %v2540 = vunpack.c.h.s8.bf16 %v1564
    %v2541 = vunpack.c.l.s8.bf16 %v1565
    %v2542 = vunpack.c.l.s8.bf16 %v1566
    %v2543 = vunpack.c.l.s8.bf16 %v1567
    %v2544 = vunpack.c.l.s8.bf16 %v1568
    %v2545 = vunpack.c.l.s8.bf16 %v1569
    %v2546 = vunpack.c.l.s8.bf16 %v1570
    %v2547 = vunpack.c.l.s8.bf16 %v1571
    %v2548 = vunpack.c.l.s8.bf16 %v1572
    %v2549 = vunpack.c.h.s8.bf16 %v1565
    %v2550 = vunpack.c.h.s8.bf16 %v1566
    %v2551 = vunpack.c.h.s8.bf16 %v1567
    %v2552 = vunpack.c.h.s8.bf16 %v1568
    %v2553 = vunpack.c.h.s8.bf16 %v1569
    %v2554 = vunpack.c.h.s8.bf16 %v1570
    %v2555 = vunpack.c.h.s8.bf16 %v1571
    %v2556 = vunpack.c.h.s8.bf16 %v1572
    %v2557 = vunpack.c.l.s8.bf16 %v1573
    %v2558 = vunpack.c.l.s8.bf16 %v1574
    %v2559 = vunpack.c.l.s8.bf16 %v1575
    %v2560 = vunpack.c.l.s8.bf16 %v1576
    %v2561 = vunpack.c.l.s8.bf16 %v1577
    %v2562 = vunpack.c.l.s8.bf16 %v1578
    %v2563 = vunpack.c.l.s8.bf16 %v1579
    %v2564 = vunpack.c.l.s8.bf16 %v1580
    %v2565 = vunpack.c.h.s8.bf16 %v1573
    %v2566 = vunpack.c.h.s8.bf16 %v1574
    %v2567 = vunpack.c.h.s8.bf16 %v1575
    %v2568 = vunpack.c.h.s8.bf16 %v1576
    %v2569 = vunpack.c.h.s8.bf16 %v1577
    %v2570 = vunpack.c.h.s8.bf16 %v1578
    %v2571 = vunpack.c.h.s8.bf16 %v1579
    %v2572 = vunpack.c.h.s8.bf16 %v1580
    %v2573 = vunpack.c.l.s8.bf16 %v1581
    %v2574 = vunpack.c.l.s8.bf16 %v1582
    %v2575 = vunpack.c.l.s8.bf16 %v1583
    %v2576 = vunpack.c.l.s8.bf16 %v1584
    %v2577 = vunpack.c.l.s8.bf16 %v1585
    %v2578 = vunpack.c.l.s8.bf16 %v1586
    %v2579 = vunpack.c.l.s8.bf16 %v1587
    %v2580 = vunpack.c.l.s8.bf16 %v1588
    %v2581 = vunpack.c.h.s8.bf16 %v1581
    %v2582 = vunpack.c.h.s8.bf16 %v1582
    %v2583 = vunpack.c.h.s8.bf16 %v1583
    %v2584 = vunpack.c.h.s8.bf16 %v1584
    %v2585 = vunpack.c.h.s8.bf16 %v1585
    %v2586 = vunpack.c.h.s8.bf16 %v1586
    %v2587 = vunpack.c.h.s8.bf16 %v1587
    %v2588 = vunpack.c.h.s8.bf16 %v1588
    %v2589 = vunpack.c.l.s8.bf16 %v1589
    %v2590 = vunpack.c.l.s8.bf16 %v1590
    %v2591 = vunpack.c.l.s8.bf16 %v1591
    %v2592 = vunpack.c.l.s8.bf16 %v1592
    %v2593 = vunpack.c.l.s8.bf16 %v1593
    %v2594 = vunpack.c.l.s8.bf16 %v1594
    %v2595 = vunpack.c.l.s8.bf16 %v1595
    %v2596 = vunpack.c.l.s8.bf16 %v1596
    %v2597 = vunpack.c.h.s8.bf16 %v1589
    %v2598 = vunpack.c.h.s8.bf16 %v1590
    %v2599 = vunpack.c.h.s8.bf16 %v1591
    %v2600 = vunpack.c.h.s8.bf16 %v1592
    %v2601 = vunpack.c.h.s8.bf16 %v1593
    %v2602 = vunpack.c.h.s8.bf16 %v1594
    %v2603 = vunpack.c.h.s8.bf16 %v1595
    %v2604 = vunpack.c.h.s8.bf16 %v1596
    %v2605 = vunpack.c.l.s8.bf16 %v1597
    %v2606 = vunpack.c.l.s8.bf16 %v1598
    %v2607 = vunpack.c.l.s8.bf16 %v1599
    %v2608 = vunpack.c.l.s8.bf16 %v1600
    %v2609 = vunpack.c.l.s8.bf16 %v1601
    %v2610 = vunpack.c.l.s8.bf16 %v1602
    %v2611 = vunpack.c.l.s8.bf16 %v1603
    %v2612 = vunpack.c.l.s8.bf16 %v1604
    %v2613 = vunpack.c.h.s8.bf16 %v1597
    %v2614 = vunpack.c.h.s8.bf16 %v1598
    %v2615 = vunpack.c.h.s8.bf16 %v1599
    %v2616 = vunpack.c.h.s8.bf16 %v1600
    %v2617 = vunpack.c.h.s8.bf16 %v1601
    %v2618 = vunpack.c.h.s8.bf16 %v1602
    %v2619 = vunpack.c.h.s8.bf16 %v1603
    %v2620 = vunpack.c.h.s8.bf16 %v1604
    %v2621 = vunpack.c.l.s8.bf16 %v1605
    %v2622 = vunpack.c.l.s8.bf16 %v1606
    %v2623 = vunpack.c.l.s8.bf16 %v1607
    %v2624 = vunpack.c.l.s8.bf16 %v1608
    %v2625 = vunpack.c.l.s8.bf16 %v1609
    %v2626 = vunpack.c.l.s8.bf16 %v1610
    %v2627 = vunpack.c.l.s8.bf16 %v1611
    %v2628 = vunpack.c.l.s8.bf16 %v1612
    %v2629 = vunpack.c.h.s8.bf16 %v1605
    %v2630 = vunpack.c.h.s8.bf16 %v1606
    %v2631 = vunpack.c.h.s8.bf16 %v1607
    %v2632 = vunpack.c.h.s8.bf16 %v1608
    %v2633 = vunpack.c.h.s8.bf16 %v1609
    %v2634 = vunpack.c.h.s8.bf16 %v1610
    %v2635 = vunpack.c.h.s8.bf16 %v1611
    %v2636 = vunpack.c.h.s8.bf16 %v1612
    %v2637 = vunpack.c.l.s8.bf16 %v1613
    %v2638 = vunpack.c.l.s8.bf16 %v1614
    %v2639 = vunpack.c.l.s8.bf16 %v1615
    %v2640 = vunpack.c.l.s8.bf16 %v1616
    %v2641 = vunpack.c.l.s8.bf16 %v1617
    %v2642 = vunpack.c.l.s8.bf16 %v1618
    %v2643 = vunpack.c.l.s8.bf16 %v1619
    %v2644 = vunpack.c.l.s8.bf16 %v1620
    %v2645 = vunpack.c.h.s8.bf16 %v1613
    %v2646 = vunpack.c.h.s8.bf16 %v1614
    %v2647 = vunpack.c.h.s8.bf16 %v1615
    %v2648 = vunpack.c.h.s8.bf16 %v1616
    %v2649 = vunpack.c.h.s8.bf16 %v1617
    %v2650 = vunpack.c.h.s8.bf16 %v1618
    %v2651 = vunpack.c.h.s8.bf16 %v1619
    %v2652 = vunpack.c.h.s8.bf16 %v1620
    %v2653 = vunpack.c.l.s8.bf16 %v1621
    %v2654 = vunpack.c.l.s8.bf16 %v1622
    %v2655 = vunpack.c.l.s8.bf16 %v1623
    %v2656 = vunpack.c.l.s8.bf16 %v1624
    %v2657 = vunpack.c.l.s8.bf16 %v1625
    %v2658 = vunpack.c.l.s8.bf16 %v1626
    %v2659 = vunpack.c.l.s8.bf16 %v1627
    %v2660 = vunpack.c.l.s8.bf16 %v1628
    %v2661 = vunpack.c.h.s8.bf16 %v1621
    %v2662 = vunpack.c.h.s8.bf16 %v1622
    %v2663 = vunpack.c.h.s8.bf16 %v1623
    %v2664 = vunpack.c.h.s8.bf16 %v1624
    %v2665 = vunpack.c.h.s8.bf16 %v1625
    %v2666 = vunpack.c.h.s8.bf16 %v1626
    %v2667 = vunpack.c.h.s8.bf16 %v1627
    %v2668 = vunpack.c.h.s8.bf16 %v1628
    %2669 = vmatprep.subr.bf16.mxu0 %v1646
    %2670 = vmatpush1.bf16.msra.mxu0 %v1645
    %2671 = vmatprep.subr.bf16.mxu0 %v1654
    %2672 = vmatpush1.bf16.msra.mxu0 %v1653
    %2673 = vmatprep.subr.bf16.mxu0 %v1662
    %2674 = vmatpush1.bf16.msra.mxu0 %v1661
    %2675 = vmatprep.subr.bf16.mxu0 %v1670
    %2676 = vmatpush1.bf16.msra.mxu0 %v1669
    %2677 = vmatprep.subr.bf16.mxu0 %v1678
    %2678 = vmatpush1.bf16.msra.mxu0 %v1677
    %2679 = vmatprep.subr.bf16.mxu0 %v1686
    %2680 = vmatpush1.bf16.msra.mxu0 %v1685
    %2681 = vmatprep.subr.bf16.mxu0 %v1694
    %2682 = vmatpush1.bf16.msra.mxu0 %v1693
    %2683 = vmatprep.subr.bf16.mxu0 %v1702
    %2684 = vmatpush1.bf16.msra.mxu0 %v1701
    %2685 = vmatprep.subr.bf16.mxu0 %v1710
    %2686 = vmatpush1.bf16.msra.mxu0 %v1709
    %2687 = vmatprep.subr.bf16.mxu0 %v1718
    %2688 = vmatpush1.bf16.msra.mxu0 %v1717
    %2689 = vmatprep.subr.bf16.mxu0 %v1726
    %2690 = vmatpush1.bf16.msra.mxu0 %v1725
    %2691 = vmatprep.subr.bf16.mxu0 %v1734
    %2692 = vmatpush1.bf16.msra.mxu0 %v1733
    %2693 = vmatprep.subr.bf16.mxu0 %v1742
    %2694 = vmatpush1.bf16.msra.mxu0 %v1741
    %2695 = vmatprep.subr.bf16.mxu0 %v1750
    %2696 = vmatpush1.bf16.msra.mxu0 %v1749
    %2697 = vmatprep.subr.bf16.mxu0 %v1758
    %2698 = vmatpush1.bf16.msra.mxu0 %v1757
    %2699 = vmatprep.subr.bf16.mxu0 %v1766
    %2700 = vmatpush1.bf16.msra.mxu0 %v1765
    %2701 = vmatprep.mubr.bf16.mxu0 %v1630
    %2702 = vmatmul.mubr.bf16.gmra.mrb[0].mxu0 %v1629
    %v2703 = vpop.f32.mrb[0].mxu0
    %v2704 = vadd.f32 0.0, %v2703
    %v2705 = vpop.f32.mrb[0].mxu0
    %v2706 = vadd.f32 0.0, %v2705
    %v2707 = vpop.f32.mrb[0].mxu0
    %v2708 = vpop.f32.mrb[0].mxu0
    %2709 = vdwg.mxu0
    %2710 = vmatprep.subr.bf16.mxu0 %v1774
    %2711 = vmatpush1.bf16.msra.mxu0 %v1773
    %2712 = vmatprep.subr.bf16.mxu0 %v1782
    %2713 = vmatpush1.bf16.msra.mxu0 %v1781
    %2714 = vmatprep.subr.bf16.mxu0 %v1790
    %2715 = vmatpush1.bf16.msra.mxu0 %v1789
    %2716 = vmatprep.subr.bf16.mxu0 %v1798
    %2717 = vmatpush1.bf16.msra.mxu0 %v1797
    %2718 = vmatprep.subr.bf16.mxu0 %v1806
    %2719 = vmatpush1.bf16.msra.mxu0 %v1805
    %2720 = vmatprep.subr.bf16.mxu0 %v1814
    %2721 = vmatpush1.bf16.msra.mxu0 %v1813
    %2722 = vmatprep.subr.bf16.mxu0 %v1822
    %2723 = vmatpush1.bf16.msra.mxu0 %v1821
    %2724 = vmatprep.subr.bf16.mxu0 %v1830
    %2725 = vmatpush1.bf16.msra.mxu0 %v1829
    %2726 = vmatprep.subr.bf16.mxu0 %v1838
    %2727 = vmatpush1.bf16.msra.mxu0 %v1837
    %2728 = vmatprep.subr.bf16.mxu0 %v1846
    %2729 = vmatpush1.bf16.msra.mxu0 %v1845
    %2730 = vmatprep.subr.bf16.mxu0 %v1854
    %2731 = vmatpush1.bf16.msra.mxu0 %v1853
    %2732 = vmatprep.subr.bf16.mxu0 %v1862
    %2733 = vmatpush1.bf16.msra.mxu0 %v1861
    %2734 = vmatprep.subr.bf16.mxu0 %v1870
    %2735 = vmatpush1.bf16.msra.mxu0 %v1869
    %2736 = vmatprep.subr.bf16.mxu0 %v1878
    %2737 = vmatpush1.bf16.msra.mxu0 %v1877
    %2738 = vmatprep.subr.bf16.mxu0 %v1886
    %2739 = vmatpush1.bf16.msra.mxu0 %v1885
    %2740 = vmatprep.subr.bf16.mxu0 %v1894
    %2741 = vmatpush1.bf16.msra.mxu0 %v1893
    %2742 = vmatprep.mubr.bf16.mxu0 %v1632
    %2743 = vmatmul.mubr.bf16.gmra.mrb[0].mxu0 %v1631
    %v2744 = vpop.f32.mrb[0].mxu0
    %v2745 = vadd.f32 %v2704, %v2744
    %v2746 = vpop.f32.mrb[0].mxu0
    %v2747 = vadd.f32 %v2706, %v2746
    %v2748 = vpop.f32.mrb[0].mxu0
    %v2749 = vpop.f32.mrb[0].mxu0
    %2750 = vdwg.mxu0
    %2751 = vmatprep.subr.bf16.mxu0 %v1902
    %2752 = vmatpush1.bf16.msra.mxu0 %v1901
    %2753 = vmatprep.subr.bf16.mxu0 %v1910
    %2754 = vmatpush1.bf16.msra.mxu0 %v1909
    %2755 = vmatprep.subr.bf16.mxu0 %v1918
    %2756 = vmatpush1.bf16.msra.mxu0 %v1917
    %2757 = vmatprep.subr.bf16.mxu0 %v1926
    %2758 = vmatpush1.bf16.msra.mxu0 %v1925
    %2759 = vmatprep.subr.bf16.mxu0 %v1934
    %2760 = vmatpush1.bf16.msra.mxu0 %v1933
    %2761 = vmatprep.subr.bf16.mxu0 %v1942
    %2762 = vmatpush1.bf16.msra.mxu0 %v1941
    %2763 = vmatprep.subr.bf16.mxu0 %v1950
    %2764 = vmatpush1.bf16.msra.mxu0 %v1949
    %2765 = vmatprep.subr.bf16.mxu0 %v1958
    %2766 = vmatpush1.bf16.msra.mxu0 %v1957
    %2767 = vmatprep.subr.bf16.mxu0 %v1966
    %2768 = vmatpush1.bf16.msra.mxu0 %v1965
    %2769 = vmatprep.subr.bf16.mxu0 %v1974
    %2770 = vmatpush1.bf16.msra.mxu0 %v1973
    %2771 = vmatprep.subr.bf16.mxu0 %v1982
    %2772 = vmatpush1.bf16.msra.mxu0 %v1981
    %2773 = vmatprep.subr.bf16.mxu0 %v1990
    %2774 = vmatpush1.bf16.msra.mxu0 %v1989
    %2775 = vmatprep.subr.bf16.mxu0 %v1998
    %2776 = vmatpush1.bf16.msra.mxu0 %v1997
    %2777 = vmatprep.subr.bf16.mxu0 %v2006
    %2778 = vmatpush1.bf16.msra.mxu0 %v2005
    %2779 = vmatprep.subr.bf16.mxu0 %v2014
    %2780 = vmatpush1.bf16.msra.mxu0 %v2013
    %2781 = vmatprep.subr.bf16.mxu0 %v2022
    %2782 = vmatpush1.bf16.msra.mxu0 %v2021
    %2783 = vmatprep.mubr.bf16.mxu0 %v1634
    %2784 = vmatmul.mubr.bf16.gmra.mrb[0].mxu0 %v1633
    %v2785 = vpop.f32.mrb[0].mxu0
    %v2786 = vadd.f32 %v2745, %v2785
    %v2787 = vpop.f32.mrb[0].mxu0
    %v2788 = vadd.f32 %v2747, %v2787
    %v2789 = vpop.f32.mrb[0].mxu0
    %v2790 = vpop.f32.mrb[0].mxu0
    %2791 = vdwg.mxu0
    %2792 = vmatprep.subr.bf16.mxu0 %v2030
    %2793 = vmatpush1.bf16.msra.mxu0 %v2029
    %2794 = vmatprep.subr.bf16.mxu0 %v2038
    %2795 = vmatpush1.bf16.msra.mxu0 %v2037
    %2796 = vmatprep.subr.bf16.mxu0 %v2046
    %2797 = vmatpush1.bf16.msra.mxu0 %v2045
    %2798 = vmatprep.subr.bf16.mxu0 %v2054
    %2799 = vmatpush1.bf16.msra.mxu0 %v2053
    %2800 = vmatprep.subr.bf16.mxu0 %v2062
    %2801 = vmatpush1.bf16.msra.mxu0 %v2061
    %2802 = vmatprep.subr.bf16.mxu0 %v2070
    %2803 = vmatpush1.bf16.msra.mxu0 %v2069
    %2804 = vmatprep.subr.bf16.mxu0 %v2078
    %2805 = vmatpush1.bf16.msra.mxu0 %v2077
    %2806 = vmatprep.subr.bf16.mxu0 %v2086
    %2807 = vmatpush1.bf16.msra.mxu0 %v2085
    %2808 = vmatprep.subr.bf16.mxu0 %v2094
    %2809 = vmatpush1.bf16.msra.mxu0 %v2093
    %2810 = vmatprep.subr.bf16.mxu0 %v2102
    %2811 = vmatpush1.bf16.msra.mxu0 %v2101
    %2812 = vmatprep.subr.bf16.mxu0 %v2110
    %2813 = vmatpush1.bf16.msra.mxu0 %v2109
    %2814 = vmatprep.subr.bf16.mxu0 %v2118
    %2815 = vmatpush1.bf16.msra.mxu0 %v2117
    %2816 = vmatprep.subr.bf16.mxu0 %v2126
    %2817 = vmatpush1.bf16.msra.mxu0 %v2125
    %2818 = vmatprep.subr.bf16.mxu0 %v2134
    %2819 = vmatpush1.bf16.msra.mxu0 %v2133
    %2820 = vmatprep.subr.bf16.mxu0 %v2142
    %2821 = vmatpush1.bf16.msra.mxu0 %v2141
    %2822 = vmatprep.subr.bf16.mxu0 %v2150
    %2823 = vmatpush1.bf16.msra.mxu0 %v2149
    %2824 = vmatprep.mubr.bf16.mxu0 %v1636
    %2825 = vmatmul.mubr.bf16.gmra.mrb[0].mxu0 %v1635
    %v2826 = vpop.f32.mrb[0].mxu0
    %v2827 = vadd.f32 %v2786, %v2826
    %v2828 = vpop.f32.mrb[0].mxu0
    %v2829 = vadd.f32 %v2788, %v2828
    %v2830 = vpop.f32.mrb[0].mxu0
    %v2831 = vpop.f32.mrb[0].mxu0
    %2832 = vdwg.mxu0
    %2833 = vmatprep.subr.bf16.mxu0 %v2158
    %2834 = vmatpush1.bf16.msra.mxu0 %v2157
    %2835 = vmatprep.subr.bf16.mxu0 %v2166
    %2836 = vmatpush1.bf16.msra.mxu0 %v2165
    %2837 = vmatprep.subr.bf16.mxu0 %v2174
    %2838 = vmatpush1.bf16.msra.mxu0 %v2173
    %2839 = vmatprep.subr.bf16.mxu0 %v2182
    %2840 = vmatpush1.bf16.msra.mxu0 %v2181
    %2841 = vmatprep.subr.bf16.mxu0 %v2190
    %2842 = vmatpush1.bf16.msra.mxu0 %v2189
    %2843 = vmatprep.subr.bf16.mxu0 %v2198
    %2844 = vmatpush1.bf16.msra.mxu0 %v2197
    %2845 = vmatprep.subr.bf16.mxu0 %v2206
    %2846 = vmatpush1.bf16.msra.mxu0 %v2205
    %2847 = vmatprep.subr.bf16.mxu0 %v2214
    %2848 = vmatpush1.bf16.msra.mxu0 %v2213
    %2849 = vmatprep.subr.bf16.mxu0 %v2222
    %2850 = vmatpush1.bf16.msra.mxu0 %v2221
    %2851 = vmatprep.subr.bf16.mxu0 %v2230
    %2852 = vmatpush1.bf16.msra.mxu0 %v2229
    %2853 = vmatprep.subr.bf16.mxu0 %v2238
    %2854 = vmatpush1.bf16.msra.mxu0 %v2237
    %2855 = vmatprep.subr.bf16.mxu0 %v2246
    %2856 = vmatpush1.bf16.msra.mxu0 %v2245
    %2857 = vmatprep.subr.bf16.mxu0 %v2254
    %2858 = vmatpush1.bf16.msra.mxu0 %v2253
    %2859 = vmatprep.subr.bf16.mxu0 %v2262
    %2860 = vmatpush1.bf16.msra.mxu0 %v2261
    %2861 = vmatprep.subr.bf16.mxu0 %v2270
    %2862 = vmatpush1.bf16.msra.mxu0 %v2269
    %2863 = vmatprep.subr.bf16.mxu0 %v2278
    %2864 = vmatpush1.bf16.msra.mxu0 %v2277
    %2865 = vmatprep.mubr.bf16.mxu0 %v1638
    %2866 = vmatmul.mubr.bf16.gmra.mrb[0].mxu0 %v1637
    %v2867 = vpop.f32.mrb[0].mxu0
    %v2868 = vadd.f32 %v2827, %v2867
    %v2869 = vpop.f32.mrb[0].mxu0
    %v2870 = vadd.f32 %v2829, %v2869
    %v2871 = vpop.f32.mrb[0].mxu0
    %v2872 = vpop.f32.mrb[0].mxu0
    %2873 = vdwg.mxu0
    %2874 = vmatprep.subr.bf16.mxu0 %v2286
    %2875 = vmatpush1.bf16.msra.mxu0 %v2285
    %2876 = vmatprep.subr.bf16.mxu0 %v2294
    %2877 = vmatpush1.bf16.msra.mxu0 %v2293
    %2878 = vmatprep.subr.bf16.mxu0 %v2302
    %2879 = vmatpush1.bf16.msra.mxu0 %v2301
    %2880 = vmatprep.subr.bf16.mxu0 %v2310
    %2881 = vmatpush1.bf16.msra.mxu0 %v2309
    %2882 = vmatprep.subr.bf16.mxu0 %v2318
    %2883 = vmatpush1.bf16.msra.mxu0 %v2317
    %2884 = vmatprep.subr.bf16.mxu0 %v2326
    %2885 = vmatpush1.bf16.msra.mxu0 %v2325
    %2886 = vmatprep.subr.bf16.mxu0 %v2334
    %2887 = vmatpush1.bf16.msra.mxu0 %v2333
    %2888 = vmatprep.subr.bf16.mxu0 %v2342
    %2889 = vmatpush1.bf16.msra.mxu0 %v2341
    %2890 = vmatprep.subr.bf16.mxu0 %v2350
    %2891 = vmatpush1.bf16.msra.mxu0 %v2349
    %2892 = vmatprep.subr.bf16.mxu0 %v2358
    %2893 = vmatpush1.bf16.msra.mxu0 %v2357
    %2894 = vmatprep.subr.bf16.mxu0 %v2366
    %2895 = vmatpush1.bf16.msra.mxu0 %v2365
    %2896 = vmatprep.subr.bf16.mxu0 %v2374
    %2897 = vmatpush1.bf16.msra.mxu0 %v2373
    %2898 = vmatprep.subr.bf16.mxu0 %v2382
    %2899 = vmatpush1.bf16.msra.mxu0 %v2381
    %2900 = vmatprep.subr.bf16.mxu0 %v2390
    %2901 = vmatpush1.bf16.msra.mxu0 %v2389
    %2902 = vmatprep.subr.bf16.mxu0 %v2398
    %2903 = vmatpush1.bf16.msra.mxu0 %v2397
    %2904 = vmatprep.subr.bf16.mxu0 %v2406
    %2905 = vmatpush1.bf16.msra.mxu0 %v2405
    %2906 = vmatprep.mubr.bf16.mxu0 %v1640
    %2907 = vmatmul.mubr.bf16.gmra.mrb[0].mxu0 %v1639
    %v2908 = vpop.f32.mrb[0].mxu0
    %v2909 = vadd.f32 %v2868, %v2908
    %v2910 = vpop.f32.mrb[0].mxu0
    %v2911 = vadd.f32 %v2870, %v2910
    %v2912 = vpop.f32.mrb[0].mxu0
    %v2913 = vpop.f32.mrb[0].mxu0
    %2914 = vdwg.mxu0
    %2915 = vmatprep.subr.bf16.mxu0 %v2414
    %2916 = vmatpush1.bf16.msra.mxu0 %v2413
    %2917 = vmatprep.subr.bf16.mxu0 %v2422
    %2918 = vmatpush1.bf16.msra.mxu0 %v2421
    %2919 = vmatprep.subr.bf16.mxu0 %v2430
    %2920 = vmatpush1.bf16.msra.mxu0 %v2429
    %2921 = vmatprep.subr.bf16.mxu0 %v2438
    %2922 = vmatpush1.bf16.msra.mxu0 %v2437
    %2923 = vmatprep.subr.bf16.mxu0 %v2446
    %2924 = vmatpush1.bf16.msra.mxu0 %v2445
    %2925 = vmatprep.subr.bf16.mxu0 %v2454
    %2926 = vmatpush1.bf16.msra.mxu0 %v2453
    %2927 = vmatprep.subr.bf16.mxu0 %v2462
    %2928 = vmatpush1.bf16.msra.mxu0 %v2461
    %2929 = vmatprep.subr.bf16.mxu0 %v2470
    %2930 = vmatpush1.bf16.msra.mxu0 %v2469
    %2931 = vmatprep.subr.bf16.mxu0 %v2478
    %2932 = vmatpush1.bf16.msra.mxu0 %v2477
    %2933 = vmatprep.subr.bf16.mxu0 %v2486
    %2934 = vmatpush1.bf16.msra.mxu0 %v2485
    %2935 = vmatprep.subr.bf16.mxu0 %v2494
    %2936 = vmatpush1.bf16.msra.mxu0 %v2493
    %2937 = vmatprep.subr.bf16.mxu0 %v2502
    %2938 = vmatpush1.bf16.msra.mxu0 %v2501
    %2939 = vmatprep.subr.bf16.mxu0 %v2510
    %2940 = vmatpush1.bf16.msra.mxu0 %v2509
    %2941 = vmatprep.subr.bf16.mxu0 %v2518
    %2942 = vmatpush1.bf16.msra.mxu0 %v2517
    %2943 = vmatprep.subr.bf16.mxu0 %v2526
    %2944 = vmatpush1.bf16.msra.mxu0 %v2525
    %2945 = vmatprep.subr.bf16.mxu0 %v2534
    %2946 = vmatpush1.bf16.msra.mxu0 %v2533
    %2947 = vmatprep.mubr.bf16.mxu0 %v1642
    %2948 = vmatmul.mubr.bf16.gmra.mrb[0].mxu0 %v1641
    %v2949 = vpop.f32.mrb[0].mxu0
    %v2950 = vadd.f32 %v2909, %v2949
    %v2951 = vpop.f32.mrb[0].mxu0
    %v2952 = vadd.f32 %v2911, %v2951
    %v2953 = vpop.f32.mrb[0].mxu0
    %v2954 = vpop.f32.mrb[0].mxu0
    %2955 = vdwg.mxu0
    %2956 = vmatprep.subr.bf16.mxu0 %v2542
    %2957 = vmatpush1.bf16.msra.mxu0 %v2541
    %2958 = vmatprep.subr.bf16.mxu0 %v2550
    %2959 = vmatpush1.bf16.msra.mxu0 %v2549
    %2960 = vmatprep.subr.bf16.mxu0 %v2558
    %2961 = vmatpush1.bf16.msra.mxu0 %v2557
    %2962 = vmatprep.subr.bf16.mxu0 %v2566
    %2963 = vmatpush1.bf16.msra.mxu0 %v2565
    %2964 = vmatprep.subr.bf16.mxu0 %v2574
    %2965 = vmatpush1.bf16.msra.mxu0 %v2573
    %2966 = vmatprep.subr.bf16.mxu0 %v2582
    %2967 = vmatpush1.bf16.msra.mxu0 %v2581
    %2968 = vmatprep.subr.bf16.mxu0 %v2590
    %2969 = vmatpush1.bf16.msra.mxu0 %v2589
    %2970 = vmatprep.subr.bf16.mxu0 %v2598
    %2971 = vmatpush1.bf16.msra.mxu0 %v2597
    %2972 = vmatprep.subr.bf16.mxu0 %v2606
    %2973 = vmatpush1.bf16.msra.mxu0 %v2605
    %2974 = vmatprep.subr.bf16.mxu0 %v2614
    %2975 = vmatpush1.bf16.msra.mxu0 %v2613
    %2976 = vmatprep.subr.bf16.mxu0 %v2622
    %2977 = vmatpush1.bf16.msra.mxu0 %v2621
    %2978 = vmatprep.subr.bf16.mxu0 %v2630
    %2979 = vmatpush1.bf16.msra.mxu0 %v2629
    %2980 = vmatprep.subr.bf16.mxu0 %v2638
    %2981 = vmatpush1.bf16.msra.mxu0 %v2637
    %2982 = vmatprep.subr.bf16.mxu0 %v2646
    %2983 = vmatpush1.bf16.msra.mxu0 %v2645
    %2984 = vmatprep.subr.bf16.mxu0 %v2654
    %2985 = vmatpush1.bf16.msra.mxu0 %v2653
    %2986 = vmatprep.subr.bf16.mxu0 %v2662
    %2987 = vmatpush1.bf16.msra.mxu0 %v2661
    %2988 = vmatprep.mubr.bf16.mxu0 %v1644
    %2989 = vmatmul.mubr.bf16.gmra.mrb[0].mxu0 %v1643
    %v2990 = vpop.f32.mrb[0].mxu0
    %v2991 = vadd.f32 %v2950, %v2990
    %v2992 = vpop.f32.mrb[0].mxu0
    %v2993 = vadd.f32 %v2952, %v2992
    %v2994 = vpop.f32.mrb[0].mxu0
    %v2995 = vpop.f32.mrb[0].mxu0
    %2996 = vdwg.mxu0
    %2997 = vmatprep.subr.bf16.mxu0 %v1648
    %2998 = vmatpush1.bf16.msra.mxu0 %v1647
    %2999 = vmatprep.subr.bf16.mxu0 %v1656
    %3000 = vmatpush1.bf16.msra.mxu0 %v1655
    %3001 = vmatprep.subr.bf16.mxu0 %v1664
    %3002 = vmatpush1.bf16.msra.mxu0 %v1663
    %3003 = vmatprep.subr.bf16.mxu0 %v1672
    %3004 = vmatpush1.bf16.msra.mxu0 %v1671
    %3005 = vmatprep.subr.bf16.mxu0 %v1680
    %3006 = vmatpush1.bf16.msra.mxu0 %v1679
    %3007 = vmatprep.subr.bf16.mxu0 %v1688
    %3008 = vmatpush1.bf16.msra.mxu0 %v1687
    %3009 = vmatprep.subr.bf16.mxu0 %v1696
    %3010 = vmatpush1.bf16.msra.mxu0 %v1695
    %3011 = vmatprep.subr.bf16.mxu0 %v1704
    %3012 = vmatpush1.bf16.msra.mxu0 %v1703
    %3013 = vmatprep.subr.bf16.mxu0 %v1712
    %3014 = vmatpush1.bf16.msra.mxu0 %v1711
    %3015 = vmatprep.subr.bf16.mxu0 %v1720
    %3016 = vmatpush1.bf16.msra.mxu0 %v1719
    %3017 = vmatprep.subr.bf16.mxu0 %v1728
    %3018 = vmatpush1.bf16.msra.mxu0 %v1727
    %3019 = vmatprep.subr.bf16.mxu0 %v1736
    %3020 = vmatpush1.bf16.msra.mxu0 %v1735
    %3021 = vmatprep.subr.bf16.mxu0 %v1744
    %3022 = vmatpush1.bf16.msra.mxu0 %v1743
    %3023 = vmatprep.subr.bf16.mxu0 %v1752
    %3024 = vmatpush1.bf16.msra.mxu0 %v1751
    %3025 = vmatprep.subr.bf16.mxu0 %v1760
    %3026 = vmatpush1.bf16.msra.mxu0 %v1759
    %3027 = vmatprep.subr.bf16.mxu0 %v1768
    %3028 = vmatpush1.bf16.msra.mxu0 %v1767
    %3029 = vmatprep.mubr.bf16.mxu0 %v1630
    %3030 = vmatmul.mubr.bf16.gmra.mrb[0].mxu0 %v1629
    %v3031 = vpop.f32.mrb[0].mxu0
    %v3032 = vadd.f32 0.0, %v3031
    %v3033 = vpop.f32.mrb[0].mxu0
    %v3034 = vadd.f32 0.0, %v3033
    %v3035 = vpop.f32.mrb[0].mxu0
    %v3036 = vpop.f32.mrb[0].mxu0
    %3037 = vdwg.mxu0
    %3038 = vmatprep.subr.bf16.mxu0 %v1776
    %3039 = vmatpush1.bf16.msra.mxu0 %v1775
    %3040 = vmatprep.subr.bf16.mxu0 %v1784
    %3041 = vmatpush1.bf16.msra.mxu0 %v1783
    %3042 = vmatprep.subr.bf16.mxu0 %v1792
    %3043 = vmatpush1.bf16.msra.mxu0 %v1791
    %3044 = vmatprep.subr.bf16.mxu0 %v1800
    %3045 = vmatpush1.bf16.msra.mxu0 %v1799
    %3046 = vmatprep.subr.bf16.mxu0 %v1808
    %3047 = vmatpush1.bf16.msra.mxu0 %v1807
    %3048 = vmatprep.subr.bf16.mxu0 %v1816
    %3049 = vmatpush1.bf16.msra.mxu0 %v1815
    %3050 = vmatprep.subr.bf16.mxu0 %v1824
    %3051 = vmatpush1.bf16.msra.mxu0 %v1823
    %3052 = vmatprep.subr.bf16.mxu0 %v1832
    %3053 = vmatpush1.bf16.msra.mxu0 %v1831
    %3054 = vmatprep.subr.bf16.mxu0 %v1840
    %3055 = vmatpush1.bf16.msra.mxu0 %v1839
    %3056 = vmatprep.subr.bf16.mxu0 %v1848
    %3057 = vmatpush1.bf16.msra.mxu0 %v1847
    %3058 = vmatprep.subr.bf16.mxu0 %v1856
    %3059 = vmatpush1.bf16.msra.mxu0 %v1855
    %3060 = vmatprep.subr.bf16.mxu0 %v1864
    %3061 = vmatpush1.bf16.msra.mxu0 %v1863
    %3062 = vmatprep.subr.bf16.mxu0 %v1872
    %3063 = vmatpush1.bf16.msra.mxu0 %v1871
    %3064 = vmatprep.subr.bf16.mxu0 %v1880
    %3065 = vmatpush1.bf16.msra.mxu0 %v1879
    %3066 = vmatprep.subr.bf16.mxu0 %v1888
    %3067 = vmatpush1.bf16.msra.mxu0 %v1887
    %3068 = vmatprep.subr.bf16.mxu0 %v1896
    %3069 = vmatpush1.bf16.msra.mxu0 %v1895
    %3070 = vmatprep.mubr.bf16.mxu0 %v1632
    %3071 = vmatmul.mubr.bf16.gmra.mrb[0].mxu0 %v1631
    %v3072 = vpop.f32.mrb[0].mxu0
    %v3073 = vadd.f32 %v3032, %v3072
    %v3074 = vpop.f32.mrb[0].mxu0
    %v3075 = vadd.f32 %v3034, %v3074
    %v3076 = vpop.f32.mrb[0].mxu0
    %v3077 = vpop.f32.mrb[0].mxu0
    %3078 = vdwg.mxu0
    %3079 = vmatprep.subr.bf16.mxu0 %v1904
    %3080 = vmatpush1.bf16.msra.mxu0 %v1903
    %3081 = vmatprep.subr.bf16.mxu0 %v1912
    %3082 = vmatpush1.bf16.msra.mxu0 %v1911
    %3083 = vmatprep.subr.bf16.mxu0 %v1920
    %3084 = vmatpush1.bf16.msra.mxu0 %v1919
    %3085 = vmatprep.subr.bf16.mxu0 %v1928
    %3086 = vmatpush1.bf16.msra.mxu0 %v1927
    %3087 = vmatprep.subr.bf16.mxu0 %v1936
    %3088 = vmatpush1.bf16.msra.mxu0 %v1935
    %3089 = vmatprep.subr.bf16.mxu0 %v1944
    %3090 = vmatpush1.bf16.msra.mxu0 %v1943
    %3091 = vmatprep.subr.bf16.mxu0 %v1952
    %3092 = vmatpush1.bf16.msra.mxu0 %v1951
    %3093 = vmatprep.subr.bf16.mxu0 %v1960
    %3094 = vmatpush1.bf16.msra.mxu0 %v1959
    %3095 = vmatprep.subr.bf16.mxu0 %v1968
    %3096 = vmatpush1.bf16.msra.mxu0 %v1967
    %3097 = vmatprep.subr.bf16.mxu0 %v1976
    %3098 = vmatpush1.bf16.msra.mxu0 %v1975
    %3099 = vmatprep.subr.bf16.mxu0 %v1984
    %3100 = vmatpush1.bf16.msra.mxu0 %v1983
    %3101 = vmatprep.subr.bf16.mxu0 %v1992
    %3102 = vmatpush1.bf16.msra.mxu0 %v1991
    %3103 = vmatprep.subr.bf16.mxu0 %v2000
    %3104 = vmatpush1.bf16.msra.mxu0 %v1999
    %3105 = vmatprep.subr.bf16.mxu0 %v2008
    %3106 = vmatpush1.bf16.msra.mxu0 %v2007
    %3107 = vmatprep.subr.bf16.mxu0 %v2016
    %3108 = vmatpush1.bf16.msra.mxu0 %v2015
    %3109 = vmatprep.subr.bf16.mxu0 %v2024
    %3110 = vmatpush1.bf16.msra.mxu0 %v2023
    %3111 = vmatprep.mubr.bf16.mxu0 %v1634
    %3112 = vmatmul.mubr.bf16.gmra.mrb[0].mxu0 %v1633
    %v3113 = vpop.f32.mrb[0].mxu0
    %v3114 = vadd.f32 %v3073, %v3113
    %v3115 = vpop.f32.mrb[0].mxu0
    %v3116 = vadd.f32 %v3075, %v3115
    %v3117 = vpop.f32.mrb[0].mxu0
    %v3118 = vpop.f32.mrb[0].mxu0
    %3119 = vdwg.mxu0
    %3120 = vmatprep.subr.bf16.mxu0 %v2032
    %3121 = vmatpush1.bf16.msra.mxu0 %v2031
    %3122 = vmatprep.subr.bf16.mxu0 %v2040
    %3123 = vmatpush1.bf16.msra.mxu0 %v2039
    %3124 = vmatprep.subr.bf16.mxu0 %v2048
    %3125 = vmatpush1.bf16.msra.mxu0 %v2047
    %3126 = vmatprep.subr.bf16.mxu0 %v2056
    %3127 = vmatpush1.bf16.msra.mxu0 %v2055
    %3128 = vmatprep.subr.bf16.mxu0 %v2064
    %3129 = vmatpush1.bf16.msra.mxu0 %v2063
    %3130 = vmatprep.subr.bf16.mxu0 %v2072
    %3131 = vmatpush1.bf16.msra.mxu0 %v2071
    %3132 = vmatprep.subr.bf16.mxu0 %v2080
    %3133 = vmatpush1.bf16.msra.mxu0 %v2079
    %3134 = vmatprep.subr.bf16.mxu0 %v2088
    %3135 = vmatpush1.bf16.msra.mxu0 %v2087
    %3136 = vmatprep.subr.bf16.mxu0 %v2096
    %3137 = vmatpush1.bf16.msra.mxu0 %v2095
    %3138 = vmatprep.subr.bf16.mxu0 %v2104
    %3139 = vmatpush1.bf16.msra.mxu0 %v2103
    %3140 = vmatprep.subr.bf16.mxu0 %v2112
    %3141 = vmatpush1.bf16.msra.mxu0 %v2111
    %3142 = vmatprep.subr.bf16.mxu0 %v2120
    %3143 = vmatpush1.bf16.msra.mxu0 %v2119
    %3144 = vmatprep.subr.bf16.mxu0 %v2128
    %3145 = vmatpush1.bf16.msra.mxu0 %v2127
    %3146 = vmatprep.subr.bf16.mxu0 %v2136
    %3147 = vmatpush1.bf16.msra.mxu0 %v2135
    %3148 = vmatprep.subr.bf16.mxu0 %v2144
    %3149 = vmatpush1.bf16.msra.mxu0 %v2143
    %3150 = vmatprep.subr.bf16.mxu0 %v2152
    %3151 = vmatpush1.bf16.msra.mxu0 %v2151
    %3152 = vmatprep.mubr.bf16.mxu0 %v1636
    %3153 = vmatmul.mubr.bf16.gmra.mrb[0].mxu0 %v1635
    %v3154 = vpop.f32.mrb[0].mxu0
    %v3155 = vadd.f32 %v3114, %v3154
    %v3156 = vpop.f32.mrb[0].mxu0
    %v3157 = vadd.f32 %v3116, %v3156
    %v3158 = vpop.f32.mrb[0].mxu0
    %v3159 = vpop.f32.mrb[0].mxu0
    %3160 = vdwg.mxu0
    %3161 = vmatprep.subr.bf16.mxu0 %v2160
    %3162 = vmatpush1.bf16.msra.mxu0 %v2159
    %3163 = vmatprep.subr.bf16.mxu0 %v2168
    %3164 = vmatpush1.bf16.msra.mxu0 %v2167
    %3165 = vmatprep.subr.bf16.mxu0 %v2176
    %3166 = vmatpush1.bf16.msra.mxu0 %v2175
    %3167 = vmatprep.subr.bf16.mxu0 %v2184
    %3168 = vmatpush1.bf16.msra.mxu0 %v2183
    %3169 = vmatprep.subr.bf16.mxu0 %v2192
    %3170 = vmatpush1.bf16.msra.mxu0 %v2191
    %3171 = vmatprep.subr.bf16.mxu0 %v2200
    %3172 = vmatpush1.bf16.msra.mxu0 %v2199
    %3173 = vmatprep.subr.bf16.mxu0 %v2208
    %3174 = vmatpush1.bf16.msra.mxu0 %v2207
    %3175 = vmatprep.subr.bf16.mxu0 %v2216
    %3176 = vmatpush1.bf16.msra.mxu0 %v2215
    %3177 = vmatprep.subr.bf16.mxu0 %v2224
    %3178 = vmatpush1.bf16.msra.mxu0 %v2223
    %3179 = vmatprep.subr.bf16.mxu0 %v2232
    %3180 = vmatpush1.bf16.msra.mxu0 %v2231
    %3181 = vmatprep.subr.bf16.mxu0 %v2240
    %3182 = vmatpush1.bf16.msra.mxu0 %v2239
    %3183 = vmatprep.subr.bf16.mxu0 %v2248
    %3184 = vmatpush1.bf16.msra.mxu0 %v2247
    %3185 = vmatprep.subr.bf16.mxu0 %v2256
    %3186 = vmatpush1.bf16.msra.mxu0 %v2255
    %3187 = vmatprep.subr.bf16.mxu0 %v2264
    %3188 = vmatpush1.bf16.msra.mxu0 %v2263
    %3189 = vmatprep.subr.bf16.mxu0 %v2272
    %3190 = vmatpush1.bf16.msra.mxu0 %v2271
    %3191 = vmatprep.subr.bf16.mxu0 %v2280
    %3192 = vmatpush1.bf16.msra.mxu0 %v2279
    %3193 = vmatprep.mubr.bf16.mxu0 %v1638
    %3194 = vmatmul.mubr.bf16.gmra.mrb[0].mxu0 %v1637
    %v3195 = vpop.f32.mrb[0].mxu0
    %v3196 = vadd.f32 %v3155, %v3195
    %v3197 = vpop.f32.mrb[0].mxu0
    %v3198 = vadd.f32 %v3157, %v3197
    %v3199 = vpop.f32.mrb[0].mxu0
    %v3200 = vpop.f32.mrb[0].mxu0
    %3201 = vdwg.mxu0
    %3202 = vmatprep.subr.bf16.mxu0 %v2288
    %3203 = vmatpush1.bf16.msra.mxu0 %v2287
    %3204 = vmatprep.subr.bf16.mxu0 %v2296
    %3205 = vmatpush1.bf16.msra.mxu0 %v2295
    %3206 = vmatprep.subr.bf16.mxu0 %v2304
    %3207 = vmatpush1.bf16.msra.mxu0 %v2303
    %3208 = vmatprep.subr.bf16.mxu0 %v2312
    %3209 = vmatpush1.bf16.msra.mxu0 %v2311
    %3210 = vmatprep.subr.bf16.mxu0 %v2320
    %3211 = vmatpush1.bf16.msra.mxu0 %v2319
    %3212 = vmatprep.subr.bf16.mxu0 %v2328
    %3213 = vmatpush1.bf16.msra.mxu0 %v2327
    %3214 = vmatprep.subr.bf16.mxu0 %v2336
    %3215 = vmatpush1.bf16.msra.mxu0 %v2335
    %3216 = vmatprep.subr.bf16.mxu0 %v2344
    %3217 = vmatpush1.bf16.msra.mxu0 %v2343
    %3218 = vmatprep.subr.bf16.mxu0 %v2352
    %3219 = vmatpush1.bf16.msra.mxu0 %v2351
    %3220 = vmatprep.subr.bf16.mxu0 %v2360
    %3221 = vmatpush1.bf16.msra.mxu0 %v2359
    %3222 = vmatprep.subr.bf16.mxu0 %v2368
    %3223 = vmatpush1.bf16.msra.mxu0 %v2367
    %3224 = vmatprep.subr.bf16.mxu0 %v2376
    %3225 = vmatpush1.bf16.msra.mxu0 %v2375
    %3226 = vmatprep.subr.bf16.mxu0 %v2384
    %3227 = vmatpush1.bf16.msra.mxu0 %v2383
    %3228 = vmatprep.subr.bf16.mxu0 %v2392
    %3229 = vmatpush1.bf16.msra.mxu0 %v2391
    %3230 = vmatprep.subr.bf16.mxu0 %v2400
    %3231 = vmatpush1.bf16.msra.mxu0 %v2399
    %3232 = vmatprep.subr.bf16.mxu0 %v2408
    %3233 = vmatpush1.bf16.msra.mxu0 %v2407
    %3234 = vmatprep.mubr.bf16.mxu0 %v1640
    %3235 = vmatmul.mubr.bf16.gmra.mrb[0].mxu0 %v1639
    %v3236 = vpop.f32.mrb[0].mxu0
    %v3237 = vadd.f32 %v3196, %v3236
    %v3238 = vpop.f32.mrb[0].mxu0
    %v3239 = vadd.f32 %v3198, %v3238
    %v3240 = vpop.f32.mrb[0].mxu0
    %v3241 = vpop.f32.mrb[0].mxu0
    %3242 = vdwg.mxu0
    %3243 = vmatprep.subr.bf16.mxu0 %v2416
    %3244 = vmatpush1.bf16.msra.mxu0 %v2415
    %3245 = vmatprep.subr.bf16.mxu0 %v2424
    %3246 = vmatpush1.bf16.msra.mxu0 %v2423
    %3247 = vmatprep.subr.bf16.mxu0 %v2432
    %3248 = vmatpush1.bf16.msra.mxu0 %v2431
    %3249 = vmatprep.subr.bf16.mxu0 %v2440
    %3250 = vmatpush1.bf16.msra.mxu0 %v2439
    %3251 = vmatprep.subr.bf16.mxu0 %v2448
    %3252 = vmatpush1.bf16.msra.mxu0 %v2447
    %3253 = vmatprep.subr.bf16.mxu0 %v2456
    %3254 = vmatpush1.bf16.msra.mxu0 %v2455
    %3255 = vmatprep.subr.bf16.mxu0 %v2464
    %3256 = vmatpush1.bf16.msra.mxu0 %v2463
    %3257 = vmatprep.subr.bf16.mxu0 %v2472
    %3258 = vmatpush1.bf16.msra.mxu0 %v2471
    %3259 = vmatprep.subr.bf16.mxu0 %v2480
    %3260 = vmatpush1.bf16.msra.mxu0 %v2479
    %3261 = vmatprep.subr.bf16.mxu0 %v2488
    %3262 = vmatpush1.bf16.msra.mxu0 %v2487
    %3263 = vmatprep.subr.bf16.mxu0 %v2496
    %3264 = vmatpush1.bf16.msra.mxu0 %v2495
    %3265 = vmatprep.subr.bf16.mxu0 %v2504
    %3266 = vmatpush1.bf16.msra.mxu0 %v2503
    %3267 = vmatprep.subr.bf16.mxu0 %v2512
    %3268 = vmatpush1.bf16.msra.mxu0 %v2511
    %3269 = vmatprep.subr.bf16.mxu0 %v2520
    %3270 = vmatpush1.bf16.msra.mxu0 %v2519
    %3271 = vmatprep.subr.bf16.mxu0 %v2528
    %3272 = vmatpush1.bf16.msra.mxu0 %v2527
    %3273 = vmatprep.subr.bf16.mxu0 %v2536
    %3274 = vmatpush1.bf16.msra.mxu0 %v2535
    %3275 = vmatprep.mubr.bf16.mxu0 %v1642
    %3276 = vmatmul.mubr.bf16.gmra.mrb[0].mxu0 %v1641
    %v3277 = vpop.f32.mrb[0].mxu0
    %v3278 = vadd.f32 %v3237, %v3277
    %v3279 = vpop.f32.mrb[0].mxu0
    %v3280 = vadd.f32 %v3239, %v3279
    %v3281 = vpop.f32.mrb[0].mxu0
    %v3282 = vpop.f32.mrb[0].mxu0
    %3283 = vdwg.mxu0
    %3284 = vmatprep.subr.bf16.mxu0 %v2544
    %3285 = vmatpush1.bf16.msra.mxu0 %v2543
    %3286 = vmatprep.subr.bf16.mxu0 %v2552
    %3287 = vmatpush1.bf16.msra.mxu0 %v2551
    %3288 = vmatprep.subr.bf16.mxu0 %v2560
    %3289 = vmatpush1.bf16.msra.mxu0 %v2559
    %3290 = vmatprep.subr.bf16.mxu0 %v2568
    %3291 = vmatpush1.bf16.msra.mxu0 %v2567
    %3292 = vmatprep.subr.bf16.mxu0 %v2576
    %3293 = vmatpush1.bf16.msra.mxu0 %v2575
    %3294 = vmatprep.subr.bf16.mxu0 %v2584
    %3295 = vmatpush1.bf16.msra.mxu0 %v2583
    %3296 = vmatprep.subr.bf16.mxu0 %v2592
    %3297 = vmatpush1.bf16.msra.mxu0 %v2591
    %3298 = vmatprep.subr.bf16.mxu0 %v2600
    %3299 = vmatpush1.bf16.msra.mxu0 %v2599
    %3300 = vmatprep.subr.bf16.mxu0 %v2608
    %3301 = vmatpush1.bf16.msra.mxu0 %v2607
    %3302 = vmatprep.subr.bf16.mxu0 %v2616
    %3303 = vmatpush1.bf16.msra.mxu0 %v2615
    %3304 = vmatprep.subr.bf16.mxu0 %v2624
    %3305 = vmatpush1.bf16.msra.mxu0 %v2623
    %3306 = vmatprep.subr.bf16.mxu0 %v2632
    %3307 = vmatpush1.bf16.msra.mxu0 %v2631
    %3308 = vmatprep.subr.bf16.mxu0 %v2640
    %3309 = vmatpush1.bf16.msra.mxu0 %v2639
    %3310 = vmatprep.subr.bf16.mxu0 %v2648
    %3311 = vmatpush1.bf16.msra.mxu0 %v2647
    %3312 = vmatprep.subr.bf16.mxu0 %v2656
    %3313 = vmatpush1.bf16.msra.mxu0 %v2655
    %3314 = vmatprep.subr.bf16.mxu0 %v2664
    %3315 = vmatpush1.bf16.msra.mxu0 %v2663
    %3316 = vmatprep.mubr.bf16.mxu0 %v1644
    %3317 = vmatmul.mubr.bf16.gmra.mrb[0].mxu0 %v1643
    %v3318 = vpop.f32.mrb[0].mxu0
    %v3319 = vadd.f32 %v3278, %v3318
    %v3320 = vpop.f32.mrb[0].mxu0
    %v3321 = vadd.f32 %v3280, %v3320
    %v3322 = vpop.f32.mrb[0].mxu0
    %v3323 = vpop.f32.mrb[0].mxu0
    %3324 = vdwg.mxu0
    %3325 = vmatprep.subr.bf16.mxu0 %v1650
    %3326 = vmatpush1.bf16.msra.mxu0 %v1649
    %3327 = vmatprep.subr.bf16.mxu0 %v1658
    %3328 = vmatpush1.bf16.msra.mxu0 %v1657
    %3329 = vmatprep.subr.bf16.mxu0 %v1666
    %3330 = vmatpush1.bf16.msra.mxu0 %v1665
    %3331 = vmatprep.subr.bf16.mxu0 %v1674
    %3332 = vmatpush1.bf16.msra.mxu0 %v1673
    %3333 = vmatprep.subr.bf16.mxu0 %v1682
    %3334 = vmatpush1.bf16.msra.mxu0 %v1681
    %3335 = vmatprep.subr.bf16.mxu0 %v1690
    %3336 = vmatpush1.bf16.msra.mxu0 %v1689
    %3337 = vmatprep.subr.bf16.mxu0 %v1698
    %3338 = vmatpush1.bf16.msra.mxu0 %v1697
    %3339 = vmatprep.subr.bf16.mxu0 %v1706
    %3340 = vmatpush1.bf16.msra.mxu0 %v1705
    %3341 = vmatprep.subr.bf16.mxu0 %v1714
    %3342 = vmatpush1.bf16.msra.mxu0 %v1713
    %3343 = vmatprep.subr.bf16.mxu0 %v1722
    %3344 = vmatpush1.bf16.msra.mxu0 %v1721
    %3345 = vmatprep.subr.bf16.mxu0 %v1730
    %3346 = vmatpush1.bf16.msra.mxu0 %v1729
    %3347 = vmatprep.subr.bf16.mxu0 %v1738
    %3348 = vmatpush1.bf16.msra.mxu0 %v1737
    %3349 = vmatprep.subr.bf16.mxu0 %v1746
    %3350 = vmatpush1.bf16.msra.mxu0 %v1745
    %3351 = vmatprep.subr.bf16.mxu0 %v1754
    %3352 = vmatpush1.bf16.msra.mxu0 %v1753
    %3353 = vmatprep.subr.bf16.mxu0 %v1762
    %3354 = vmatpush1.bf16.msra.mxu0 %v1761
    %3355 = vmatprep.subr.bf16.mxu0 %v1770
    %3356 = vmatpush1.bf16.msra.mxu0 %v1769
    %3357 = vmatprep.mubr.bf16.mxu0 %v1630
    %3358 = vmatmul.mubr.bf16.gmra.mrb[0].mxu0 %v1629
    %v3359 = vpop.f32.mrb[0].mxu0
    %v3360 = vadd.f32 0.0, %v3359
    %v3361 = vpop.f32.mrb[0].mxu0
    %v3362 = vadd.f32 0.0, %v3361
    %v3363 = vpop.f32.mrb[0].mxu0
    %v3364 = vpop.f32.mrb[0].mxu0
    %3365 = vdwg.mxu0
    %3366 = vmatprep.subr.bf16.mxu0 %v1778
    %3367 = vmatpush1.bf16.msra.mxu0 %v1777
    %3368 = vmatprep.subr.bf16.mxu0 %v1786
    %3369 = vmatpush1.bf16.msra.mxu0 %v1785
    %3370 = vmatprep.subr.bf16.mxu0 %v1794
    %3371 = vmatpush1.bf16.msra.mxu0 %v1793
    %3372 = vmatprep.subr.bf16.mxu0 %v1802
    %3373 = vmatpush1.bf16.msra.mxu0 %v1801
    %3374 = vmatprep.subr.bf16.mxu0 %v1810
    %3375 = vmatpush1.bf16.msra.mxu0 %v1809
    %3376 = vmatprep.subr.bf16.mxu0 %v1818
    %3377 = vmatpush1.bf16.msra.mxu0 %v1817
    %3378 = vmatprep.subr.bf16.mxu0 %v1826
    %3379 = vmatpush1.bf16.msra.mxu0 %v1825
    %3380 = vmatprep.subr.bf16.mxu0 %v1834
    %3381 = vmatpush1.bf16.msra.mxu0 %v1833
    %3382 = vmatprep.subr.bf16.mxu0 %v1842
    %3383 = vmatpush1.bf16.msra.mxu0 %v1841
    %3384 = vmatprep.subr.bf16.mxu0 %v1850
    %3385 = vmatpush1.bf16.msra.mxu0 %v1849
    %3386 = vmatprep.subr.bf16.mxu0 %v1858
    %3387 = vmatpush1.bf16.msra.mxu0 %v1857
    %3388 = vmatprep.subr.bf16.mxu0 %v1866
    %3389 = vmatpush1.bf16.msra.mxu0 %v1865
    %3390 = vmatprep.subr.bf16.mxu0 %v1874
    %3391 = vmatpush1.bf16.msra.mxu0 %v1873
    %3392 = vmatprep.subr.bf16.mxu0 %v1882
    %3393 = vmatpush1.bf16.msra.mxu0 %v1881
    %3394 = vmatprep.subr.bf16.mxu0 %v1890
    %3395 = vmatpush1.bf16.msra.mxu0 %v1889
    %3396 = vmatprep.subr.bf16.mxu0 %v1898
    %3397 = vmatpush1.bf16.msra.mxu0 %v1897
    %3398 = vmatprep.mubr.bf16.mxu0 %v1632
    %3399 = vmatmul.mubr.bf16.gmra.mrb[0].mxu0 %v1631
    %v3400 = vpop.f32.mrb[0].mxu0
    %v3401 = vadd.f32 %v3360, %v3400
    %v3402 = vpop.f32.mrb[0].mxu0
    %v3403 = vadd.f32 %v3362, %v3402
    %v3404 = vpop.f32.mrb[0].mxu0
    %v3405 = vpop.f32.mrb[0].mxu0
    %3406 = vdwg.mxu0
    %3407 = vmatprep.subr.bf16.mxu0 %v1906
    %3408 = vmatpush1.bf16.msra.mxu0 %v1905
    %3409 = vmatprep.subr.bf16.mxu0 %v1914
    %3410 = vmatpush1.bf16.msra.mxu0 %v1913
    %3411 = vmatprep.subr.bf16.mxu0 %v1922
    %3412 = vmatpush1.bf16.msra.mxu0 %v1921
    %3413 = vmatprep.subr.bf16.mxu0 %v1930
    %3414 = vmatpush1.bf16.msra.mxu0 %v1929
    %3415 = vmatprep.subr.bf16.mxu0 %v1938
    %3416 = vmatpush1.bf16.msra.mxu0 %v1937
    %3417 = vmatprep.subr.bf16.mxu0 %v1946
    %3418 = vmatpush1.bf16.msra.mxu0 %v1945
    %3419 = vmatprep.subr.bf16.mxu0 %v1954
    %3420 = vmatpush1.bf16.msra.mxu0 %v1953
    %3421 = vmatprep.subr.bf16.mxu0 %v1962
    %3422 = vmatpush1.bf16.msra.mxu0 %v1961
    %3423 = vmatprep.subr.bf16.mxu0 %v1970
    %3424 = vmatpush1.bf16.msra.mxu0 %v1969
    %3425 = vmatprep.subr.bf16.mxu0 %v1978
    %3426 = vmatpush1.bf16.msra.mxu0 %v1977
    %3427 = vmatprep.subr.bf16.mxu0 %v1986
    %3428 = vmatpush1.bf16.msra.mxu0 %v1985
    %3429 = vmatprep.subr.bf16.mxu0 %v1994
    %3430 = vmatpush1.bf16.msra.mxu0 %v1993
    %3431 = vmatprep.subr.bf16.mxu0 %v2002
    %3432 = vmatpush1.bf16.msra.mxu0 %v2001
    %3433 = vmatprep.subr.bf16.mxu0 %v2010
    %3434 = vmatpush1.bf16.msra.mxu0 %v2009
    %3435 = vmatprep.subr.bf16.mxu0 %v2018
    %3436 = vmatpush1.bf16.msra.mxu0 %v2017
    %3437 = vmatprep.subr.bf16.mxu0 %v2026
    %3438 = vmatpush1.bf16.msra.mxu0 %v2025
    %3439 = vmatprep.mubr.bf16.mxu0 %v1634
    %3440 = vmatmul.mubr.bf16.gmra.mrb[0].mxu0 %v1633
    %v3441 = vpop.f32.mrb[0].mxu0
    %v3442 = vadd.f32 %v3401, %v3441
    %v3443 = vpop.f32.mrb[0].mxu0
    %v3444 = vadd.f32 %v3403, %v3443
    %v3445 = vpop.f32.mrb[0].mxu0
    %v3446 = vpop.f32.mrb[0].mxu0
    %3447 = vdwg.mxu0
    %3448 = vmatprep.subr.bf16.mxu0 %v2034
    %3449 = vmatpush1.bf16.msra.mxu0 %v2033
    %3450 = vmatprep.subr.bf16.mxu0 %v2042
    %3451 = vmatpush1.bf16.msra.mxu0 %v2041
    %3452 = vmatprep.subr.bf16.mxu0 %v2050
    %3453 = vmatpush1.bf16.msra.mxu0 %v2049
    %3454 = vmatprep.subr.bf16.mxu0 %v2058
    %3455 = vmatpush1.bf16.msra.mxu0 %v2057
    %3456 = vmatprep.subr.bf16.mxu0 %v2066
    %3457 = vmatpush1.bf16.msra.mxu0 %v2065
    %3458 = vmatprep.subr.bf16.mxu0 %v2074
    %3459 = vmatpush1.bf16.msra.mxu0 %v2073
    %3460 = vmatprep.subr.bf16.mxu0 %v2082
    %3461 = vmatpush1.bf16.msra.mxu0 %v2081
    %3462 = vmatprep.subr.bf16.mxu0 %v2090
    %3463 = vmatpush1.bf16.msra.mxu0 %v2089
    %3464 = vmatprep.subr.bf16.mxu0 %v2098
    %3465 = vmatpush1.bf16.msra.mxu0 %v2097
    %3466 = vmatprep.subr.bf16.mxu0 %v2106
    %3467 = vmatpush1.bf16.msra.mxu0 %v2105
    %3468 = vmatprep.subr.bf16.mxu0 %v2114
    %3469 = vmatpush1.bf16.msra.mxu0 %v2113
    %3470 = vmatprep.subr.bf16.mxu0 %v2122
    %3471 = vmatpush1.bf16.msra.mxu0 %v2121
    %3472 = vmatprep.subr.bf16.mxu0 %v2130
    %3473 = vmatpush1.bf16.msra.mxu0 %v2129
    %3474 = vmatprep.subr.bf16.mxu0 %v2138
    %3475 = vmatpush1.bf16.msra.mxu0 %v2137
    %3476 = vmatprep.subr.bf16.mxu0 %v2146
    %3477 = vmatpush1.bf16.msra.mxu0 %v2145
    %3478 = vmatprep.subr.bf16.mxu0 %v2154
    %3479 = vmatpush1.bf16.msra.mxu0 %v2153
    %3480 = vmatprep.mubr.bf16.mxu0 %v1636
    %3481 = vmatmul.mubr.bf16.gmra.mrb[0].mxu0 %v1635
    %v3482 = vpop.f32.mrb[0].mxu0
    %v3483 = vadd.f32 %v3442, %v3482
    %v3484 = vpop.f32.mrb[0].mxu0
    %v3485 = vadd.f32 %v3444, %v3484
    %v3486 = vpop.f32.mrb[0].mxu0
    %v3487 = vpop.f32.mrb[0].mxu0
    %3488 = vdwg.mxu0
    %3489 = vmatprep.subr.bf16.mxu0 %v2162
    %3490 = vmatpush1.bf16.msra.mxu0 %v2161
    %3491 = vmatprep.subr.bf16.mxu0 %v2170
    %3492 = vmatpush1.bf16.msra.mxu0 %v2169
    %3493 = vmatprep.subr.bf16.mxu0 %v2178
    %3494 = vmatpush1.bf16.msra.mxu0 %v2177
    %3495 = vmatprep.subr.bf16.mxu0 %v2186
    %3496 = vmatpush1.bf16.msra.mxu0 %v2185
    %3497 = vmatprep.subr.bf16.mxu0 %v2194
    %3498 = vmatpush1.bf16.msra.mxu0 %v2193
    %3499 = vmatprep.subr.bf16.mxu0 %v2202
    %3500 = vmatpush1.bf16.msra.mxu0 %v2201
    %3501 = vmatprep.subr.bf16.mxu0 %v2210
    %3502 = vmatpush1.bf16.msra.mxu0 %v2209
    %3503 = vmatprep.subr.bf16.mxu0 %v2218
    %3504 = vmatpush1.bf16.msra.mxu0 %v2217
    %3505 = vmatprep.subr.bf16.mxu0 %v2226
    %3506 = vmatpush1.bf16.msra.mxu0 %v2225
    %3507 = vmatprep.subr.bf16.mxu0 %v2234
    %3508 = vmatpush1.bf16.msra.mxu0 %v2233
    %3509 = vmatprep.subr.bf16.mxu0 %v2242
    %3510 = vmatpush1.bf16.msra.mxu0 %v2241
    %3511 = vmatprep.subr.bf16.mxu0 %v2250
    %3512 = vmatpush1.bf16.msra.mxu0 %v2249
    %3513 = vmatprep.subr.bf16.mxu0 %v2258
    %3514 = vmatpush1.bf16.msra.mxu0 %v2257
    %3515 = vmatprep.subr.bf16.mxu0 %v2266
    %3516 = vmatpush1.bf16.msra.mxu0 %v2265
    %3517 = vmatprep.subr.bf16.mxu0 %v2274
    %3518 = vmatpush1.bf16.msra.mxu0 %v2273
    %3519 = vmatprep.subr.bf16.mxu0 %v2282
    %3520 = vmatpush1.bf16.msra.mxu0 %v2281
    %3521 = vmatprep.mubr.bf16.mxu0 %v1638
    %3522 = vmatmul.mubr.bf16.gmra.mrb[0].mxu0 %v1637
    %v3523 = vpop.f32.mrb[0].mxu0
    %v3524 = vadd.f32 %v3483, %v3523
    %v3525 = vpop.f32.mrb[0].mxu0
    %v3526 = vadd.f32 %v3485, %v3525
    %v3527 = vpop.f32.mrb[0].mxu0
    %v3528 = vpop.f32.mrb[0].mxu0
    %3529 = vdwg.mxu0
    %3530 = vmatprep.subr.bf16.mxu0 %v2290
    %3531 = vmatpush1.bf16.msra.mxu0 %v2289
    %3532 = vmatprep.subr.bf16.mxu0 %v2298
    %3533 = vmatpush1.bf16.msra.mxu0 %v2297
    %3534 = vmatprep.subr.bf16.mxu0 %v2306
    %3535 = vmatpush1.bf16.msra.mxu0 %v2305
    %3536 = vmatprep.subr.bf16.mxu0 %v2314
    %3537 = vmatpush1.bf16.msra.mxu0 %v2313
    %3538 = vmatprep.subr.bf16.mxu0 %v2322
    %3539 = vmatpush1.bf16.msra.mxu0 %v2321
    %3540 = vmatprep.subr.bf16.mxu0 %v2330
    %3541 = vmatpush1.bf16.msra.mxu0 %v2329
    %3542 = vmatprep.subr.bf16.mxu0 %v2338
    %3543 = vmatpush1.bf16.msra.mxu0 %v2337
    %3544 = vmatprep.subr.bf16.mxu0 %v2346
    %3545 = vmatpush1.bf16.msra.mxu0 %v2345
    %3546 = vmatprep.subr.bf16.mxu0 %v2354
    %3547 = vmatpush1.bf16.msra.mxu0 %v2353
    %3548 = vmatprep.subr.bf16.mxu0 %v2362
    %3549 = vmatpush1.bf16.msra.mxu0 %v2361
    %3550 = vmatprep.subr.bf16.mxu0 %v2370
    %3551 = vmatpush1.bf16.msra.mxu0 %v2369
    %3552 = vmatprep.subr.bf16.mxu0 %v2378
    %3553 = vmatpush1.bf16.msra.mxu0 %v2377
    %3554 = vmatprep.subr.bf16.mxu0 %v2386
    %3555 = vmatpush1.bf16.msra.mxu0 %v2385
    %3556 = vmatprep.subr.bf16.mxu0 %v2394
    %3557 = vmatpush1.bf16.msra.mxu0 %v2393
    %3558 = vmatprep.subr.bf16.mxu0 %v2402
    %3559 = vmatpush1.bf16.msra.mxu0 %v2401
    %3560 = vmatprep.subr.bf16.mxu0 %v2410
    %3561 = vmatpush1.bf16.msra.mxu0 %v2409
    %3562 = vmatprep.mubr.bf16.mxu0 %v1640
    %3563 = vmatmul.mubr.bf16.gmra.mrb[0].mxu0 %v1639
    %v3564 = vpop.f32.mrb[0].mxu0
    %v3565 = vadd.f32 %v3524, %v3564
    %v3566 = vpop.f32.mrb[0].mxu0
    %v3567 = vadd.f32 %v3526, %v3566
    %v3568 = vpop.f32.mrb[0].mxu0
    %v3569 = vpop.f32.mrb[0].mxu0
    %3570 = vdwg.mxu0
    %3571 = vmatprep.subr.bf16.mxu0 %v2418
    %3572 = vmatpush1.bf16.msra.mxu0 %v2417
    %3573 = vmatprep.subr.bf16.mxu0 %v2426
    %3574 = vmatpush1.bf16.msra.mxu0 %v2425
    %3575 = vmatprep.subr.bf16.mxu0 %v2434
    %3576 = vmatpush1.bf16.msra.mxu0 %v2433
    %3577 = vmatprep.subr.bf16.mxu0 %v2442
    %3578 = vmatpush1.bf16.msra.mxu0 %v2441
    %3579 = vmatprep.subr.bf16.mxu0 %v2450
    %3580 = vmatpush1.bf16.msra.mxu0 %v2449
    %3581 = vmatprep.subr.bf16.mxu0 %v2458
    %3582 = vmatpush1.bf16.msra.mxu0 %v2457
    %3583 = vmatprep.subr.bf16.mxu0 %v2466
    %3584 = vmatpush1.bf16.msra.mxu0 %v2465
    %3585 = vmatprep.subr.bf16.mxu0 %v2474
    %3586 = vmatpush1.bf16.msra.mxu0 %v2473
    %3587 = vmatprep.subr.bf16.mxu0 %v2482
    %3588 = vmatpush1.bf16.msra.mxu0 %v2481
    %3589 = vmatprep.subr.bf16.mxu0 %v2490
    %3590 = vmatpush1.bf16.msra.mxu0 %v2489
    %3591 = vmatprep.subr.bf16.mxu0 %v2498
    %3592 = vmatpush1.bf16.msra.mxu0 %v2497
    %3593 = vmatprep.subr.bf16.mxu0 %v2506
    %3594 = vmatpush1.bf16.msra.mxu0 %v2505
    %3595 = vmatprep.subr.bf16.mxu0 %v2514
    %3596 = vmatpush1.bf16.msra.mxu0 %v2513
    %3597 = vmatprep.subr.bf16.mxu0 %v2522
    %3598 = vmatpush1.bf16.msra.mxu0 %v2521
    %3599 = vmatprep.subr.bf16.mxu0 %v2530
    %3600 = vmatpush1.bf16.msra.mxu0 %v2529
    %3601 = vmatprep.subr.bf16.mxu0 %v2538
    %3602 = vmatpush1.bf16.msra.mxu0 %v2537
    %3603 = vmatprep.mubr.bf16.mxu0 %v1642
    %3604 = vmatmul.mubr.bf16.gmra.mrb[0].mxu0 %v1641
    %v3605 = vpop.f32.mrb[0].mxu0
    %v3606 = vadd.f32 %v3565, %v3605
    %v3607 = vpop.f32.mrb[0].mxu0
    %v3608 = vadd.f32 %v3567, %v3607
    %v3609 = vpop.f32.mrb[0].mxu0
    %v3610 = vpop.f32.mrb[0].mxu0
    %3611 = vdwg.mxu0
    %3612 = vmatprep.subr.bf16.mxu0 %v2546
    %3613 = vmatpush1.bf16.msra.mxu0 %v2545
    %3614 = vmatprep.subr.bf16.mxu0 %v2554
    %3615 = vmatpush1.bf16.msra.mxu0 %v2553
    %3616 = vmatprep.subr.bf16.mxu0 %v2562
    %3617 = vmatpush1.bf16.msra.mxu0 %v2561
    %3618 = vmatprep.subr.bf16.mxu0 %v2570
    %3619 = vmatpush1.bf16.msra.mxu0 %v2569
    %3620 = vmatprep.subr.bf16.mxu0 %v2578
    %3621 = vmatpush1.bf16.msra.mxu0 %v2577
    %3622 = vmatprep.subr.bf16.mxu0 %v2586
    %3623 = vmatpush1.bf16.msra.mxu0 %v2585
    %3624 = vmatprep.subr.bf16.mxu0 %v2594
    %3625 = vmatpush1.bf16.msra.mxu0 %v2593
    %3626 = vmatprep.subr.bf16.mxu0 %v2602
    %3627 = vmatpush1.bf16.msra.mxu0 %v2601
    %3628 = vmatprep.subr.bf16.mxu0 %v2610
    %3629 = vmatpush1.bf16.msra.mxu0 %v2609
    %3630 = vmatprep.subr.bf16.mxu0 %v2618
    %3631 = vmatpush1.bf16.msra.mxu0 %v2617
    %3632 = vmatprep.subr.bf16.mxu0 %v2626
    %3633 = vmatpush1.bf16.msra.mxu0 %v2625
    %3634 = vmatprep.subr.bf16.mxu0 %v2634
    %3635 = vmatpush1.bf16.msra.mxu0 %v2633
    %3636 = vmatprep.subr.bf16.mxu0 %v2642
    %3637 = vmatpush1.bf16.msra.mxu0 %v2641
    %3638 = vmatprep.subr.bf16.mxu0 %v2650
    %3639 = vmatpush1.bf16.msra.mxu0 %v2649
    %3640 = vmatprep.subr.bf16.mxu0 %v2658
    %3641 = vmatpush1.bf16.msra.mxu0 %v2657
    %3642 = vmatprep.subr.bf16.mxu0 %v2666
    %3643 = vmatpush1.bf16.msra.mxu0 %v2665
    %3644 = vmatprep.mubr.bf16.mxu0 %v1644
    %3645 = vmatmul.mubr.bf16.gmra.mrb[0].mxu0 %v1643
    %v3646 = vpop.f32.mrb[0].mxu0
    %v3647 = vadd.f32 %v3606, %v3646
    %v3648 = vpop.f32.mrb[0].mxu0
    %v3649 = vadd.f32 %v3608, %v3648
    %v3650 = vpop.f32.mrb[0].mxu0
    %v3651 = vpop.f32.mrb[0].mxu0
    %3652 = vdwg.mxu0
    %3653 = vmatprep.subr.bf16.mxu0 %v1652
    %3654 = vmatpush1.bf16.msra.mxu0 %v1651
    %3655 = vmatprep.subr.bf16.mxu0 %v1660
    %3656 = vmatpush1.bf16.msra.mxu0 %v1659
    %3657 = vmatprep.subr.bf16.mxu0 %v1668
    %3658 = vmatpush1.bf16.msra.mxu0 %v1667
    %3659 = vmatprep.subr.bf16.mxu0 %v1676
    %3660 = vmatpush1.bf16.msra.mxu0 %v1675
    %3661 = vmatprep.subr.bf16.mxu0 %v1684
    %3662 = vmatpush1.bf16.msra.mxu0 %v1683
    %3663 = vmatprep.subr.bf16.mxu0 %v1692
    %3664 = vmatpush1.bf16.msra.mxu0 %v1691
    %3665 = vmatprep.subr.bf16.mxu0 %v1700
    %3666 = vmatpush1.bf16.msra.mxu0 %v1699
    %3667 = vmatprep.subr.bf16.mxu0 %v1708
    %3668 = vmatpush1.bf16.msra.mxu0 %v1707
    %3669 = vmatprep.subr.bf16.mxu0 %v1716
    %3670 = vmatpush1.bf16.msra.mxu0 %v1715
    %3671 = vmatprep.subr.bf16.mxu0 %v1724
    %3672 = vmatpush1.bf16.msra.mxu0 %v1723
    %3673 = vmatprep.subr.bf16.mxu0 %v1732
    %3674 = vmatpush1.bf16.msra.mxu0 %v1731
    %3675 = vmatprep.subr.bf16.mxu0 %v1740
    %3676 = vmatpush1.bf16.msra.mxu0 %v1739
    %3677 = vmatprep.subr.bf16.mxu0 %v1748
    %3678 = vmatpush1.bf16.msra.mxu0 %v1747
    %3679 = vmatprep.subr.bf16.mxu0 %v1756
    %3680 = vmatpush1.bf16.msra.mxu0 %v1755
    %3681 = vmatprep.subr.bf16.mxu0 %v1764
    %3682 = vmatpush1.bf16.msra.mxu0 %v1763
    %3683 = vmatprep.subr.bf16.mxu0 %v1772
    %3684 = vmatpush1.bf16.msra.mxu0 %v1771
    %3685 = vmatprep.mubr.bf16.mxu0 %v1630
    %3686 = vmatmul.mubr.bf16.gmra.mrb[0].mxu0 %v1629
    %v3687 = vpop.f32.mrb[0].mxu0
    %v3688 = vadd.f32 0.0, %v3687
    %v3689 = vpop.f32.mrb[0].mxu0
    %v3690 = vadd.f32 0.0, %v3689
    %v3691 = vpop.f32.mrb[0].mxu0
    %v3692 = vpop.f32.mrb[0].mxu0
    %3693 = vdwg.mxu0
    %3694 = vmatprep.subr.bf16.mxu0 %v1780
    %3695 = vmatpush1.bf16.msra.mxu0 %v1779
    %3696 = vmatprep.subr.bf16.mxu0 %v1788
    %3697 = vmatpush1.bf16.msra.mxu0 %v1787
    %3698 = vmatprep.subr.bf16.mxu0 %v1796
    %3699 = vmatpush1.bf16.msra.mxu0 %v1795
    %3700 = vmatprep.subr.bf16.mxu0 %v1804
    %3701 = vmatpush1.bf16.msra.mxu0 %v1803
    %3702 = vmatprep.subr.bf16.mxu0 %v1812
    %3703 = vmatpush1.bf16.msra.mxu0 %v1811
    %3704 = vmatprep.subr.bf16.mxu0 %v1820
    %3705 = vmatpush1.bf16.msra.mxu0 %v1819
    %3706 = vmatprep.subr.bf16.mxu0 %v1828
    %3707 = vmatpush1.bf16.msra.mxu0 %v1827
    %3708 = vmatprep.subr.bf16.mxu0 %v1836
    %3709 = vmatpush1.bf16.msra.mxu0 %v1835
    %3710 = vmatprep.subr.bf16.mxu0 %v1844
    %3711 = vmatpush1.bf16.msra.mxu0 %v1843
    %3712 = vmatprep.subr.bf16.mxu0 %v1852
    %3713 = vmatpush1.bf16.msra.mxu0 %v1851
    %3714 = vmatprep.subr.bf16.mxu0 %v1860
    %3715 = vmatpush1.bf16.msra.mxu0 %v1859
    %3716 = vmatprep.subr.bf16.mxu0 %v1868
    %3717 = vmatpush1.bf16.msra.mxu0 %v1867
    %3718 = vmatprep.subr.bf16.mxu0 %v1876
    %3719 = vmatpush1.bf16.msra.mxu0 %v1875
    %3720 = vmatprep.subr.bf16.mxu0 %v1884
    %3721 = vmatpush1.bf16.msra.mxu0 %v1883
    %3722 = vmatprep.subr.bf16.mxu0 %v1892
    %3723 = vmatpush1.bf16.msra.mxu0 %v1891
    %3724 = vmatprep.subr.bf16.mxu0 %v1900
    %3725 = vmatpush1.bf16.msra.mxu0 %v1899
    %3726 = vmatprep.mubr.bf16.mxu0 %v1632
    %3727 = vmatmul.mubr.bf16.gmra.mrb[0].mxu0 %v1631
    %v3728 = vpop.f32.mrb[0].mxu0
    %v3729 = vadd.f32 %v3688, %v3728
    %v3730 = vpop.f32.mrb[0].mxu0
    %v3731 = vadd.f32 %v3690, %v3730
    %v3732 = vpop.f32.mrb[0].mxu0
    %v3733 = vpop.f32.mrb[0].mxu0
    %3734 = vdwg.mxu0
    %3735 = vmatprep.subr.bf16.mxu0 %v1908
    %3736 = vmatpush1.bf16.msra.mxu0 %v1907
    %3737 = vmatprep.subr.bf16.mxu0 %v1916
    %3738 = vmatpush1.bf16.msra.mxu0 %v1915
    %3739 = vmatprep.subr.bf16.mxu0 %v1924
    %3740 = vmatpush1.bf16.msra.mxu0 %v1923
    %3741 = vmatprep.subr.bf16.mxu0 %v1932
    %3742 = vmatpush1.bf16.msra.mxu0 %v1931
    %3743 = vmatprep.subr.bf16.mxu0 %v1940
    %3744 = vmatpush1.bf16.msra.mxu0 %v1939
    %3745 = vmatprep.subr.bf16.mxu0 %v1948
    %3746 = vmatpush1.bf16.msra.mxu0 %v1947
    %3747 = vmatprep.subr.bf16.mxu0 %v1956
    %3748 = vmatpush1.bf16.msra.mxu0 %v1955
    %3749 = vmatprep.subr.bf16.mxu0 %v1964
    %3750 = vmatpush1.bf16.msra.mxu0 %v1963
    %3751 = vmatprep.subr.bf16.mxu0 %v1972
    %3752 = vmatpush1.bf16.msra.mxu0 %v1971
    %3753 = vmatprep.subr.bf16.mxu0 %v1980
    %3754 = vmatpush1.bf16.msra.mxu0 %v1979
    %3755 = vmatprep.subr.bf16.mxu0 %v1988
    %3756 = vmatpush1.bf16.msra.mxu0 %v1987
    %3757 = vmatprep.subr.bf16.mxu0 %v1996
    %3758 = vmatpush1.bf16.msra.mxu0 %v1995
    %3759 = vmatprep.subr.bf16.mxu0 %v2004
    %3760 = vmatpush1.bf16.msra.mxu0 %v2003
    %3761 = vmatprep.subr.bf16.mxu0 %v2012
    %3762 = vmatpush1.bf16.msra.mxu0 %v2011
    %3763 = vmatprep.subr.bf16.mxu0 %v2020
    %3764 = vmatpush1.bf16.msra.mxu0 %v2019
    %3765 = vmatprep.subr.bf16.mxu0 %v2028
    %3766 = vmatpush1.bf16.msra.mxu0 %v2027
    %3767 = vmatprep.mubr.bf16.mxu0 %v1634
    %3768 = vmatmul.mubr.bf16.gmra.mrb[0].mxu0 %v1633
    %v3769 = vpop.f32.mrb[0].mxu0
    %v3770 = vadd.f32 %v3729, %v3769
    %v3771 = vpop.f32.mrb[0].mxu0
    %v3772 = vadd.f32 %v3731, %v3771
    %v3773 = vpop.f32.mrb[0].mxu0
    %v3774 = vpop.f32.mrb[0].mxu0
    %3775 = vdwg.mxu0
    %3776 = vmatprep.subr.bf16.mxu0 %v2036
    %3777 = vmatpush1.bf16.msra.mxu0 %v2035
    %3778 = vmatprep.subr.bf16.mxu0 %v2044
    %3779 = vmatpush1.bf16.msra.mxu0 %v2043
    %3780 = vmatprep.subr.bf16.mxu0 %v2052
    %3781 = vmatpush1.bf16.msra.mxu0 %v2051
    %3782 = vmatprep.subr.bf16.mxu0 %v2060
    %3783 = vmatpush1.bf16.msra.mxu0 %v2059
    %3784 = vmatprep.subr.bf16.mxu0 %v2068
    %3785 = vmatpush1.bf16.msra.mxu0 %v2067
    %3786 = vmatprep.subr.bf16.mxu0 %v2076
    %3787 = vmatpush1.bf16.msra.mxu0 %v2075
    %3788 = vmatprep.subr.bf16.mxu0 %v2084
    %3789 = vmatpush1.bf16.msra.mxu0 %v2083
    %3790 = vmatprep.subr.bf16.mxu0 %v2092
    %3791 = vmatpush1.bf16.msra.mxu0 %v2091
    %3792 = vmatprep.subr.bf16.mxu0 %v2100
    %3793 = vmatpush1.bf16.msra.mxu0 %v2099
    %3794 = vmatprep.subr.bf16.mxu0 %v2108
    %3795 = vmatpush1.bf16.msra.mxu0 %v2107
    %3796 = vmatprep.subr.bf16.mxu0 %v2116
    %3797 = vmatpush1.bf16.msra.mxu0 %v2115
    %3798 = vmatprep.subr.bf16.mxu0 %v2124
    %3799 = vmatpush1.bf16.msra.mxu0 %v2123
    %3800 = vmatprep.subr.bf16.mxu0 %v2132
    %3801 = vmatpush1.bf16.msra.mxu0 %v2131
    %3802 = vmatprep.subr.bf16.mxu0 %v2140
    %3803 = vmatpush1.bf16.msra.mxu0 %v2139
    %3804 = vmatprep.subr.bf16.mxu0 %v2148
    %3805 = vmatpush1.bf16.msra.mxu0 %v2147
    %3806 = vmatprep.subr.bf16.mxu0 %v2156
    %3807 = vmatpush1.bf16.msra.mxu0 %v2155
    %3808 = vmatprep.mubr.bf16.mxu0 %v1636
    %3809 = vmatmul.mubr.bf16.gmra.mrb[0].mxu0 %v1635
    %v3810 = vpop.f32.mrb[0].mxu0
    %v3811 = vadd.f32 %v3770, %v3810
    %v3812 = vpop.f32.mrb[0].mxu0
    %v3813 = vadd.f32 %v3772, %v3812
    %v3814 = vpop.f32.mrb[0].mxu0
    %v3815 = vpop.f32.mrb[0].mxu0
    %3816 = vdwg.mxu0
    %3817 = vmatprep.subr.bf16.mxu0 %v2164
    %3818 = vmatpush1.bf16.msra.mxu0 %v2163
    %3819 = vmatprep.subr.bf16.mxu0 %v2172
    %3820 = vmatpush1.bf16.msra.mxu0 %v2171
    %3821 = vmatprep.subr.bf16.mxu0 %v2180
    %3822 = vmatpush1.bf16.msra.mxu0 %v2179
    %3823 = vmatprep.subr.bf16.mxu0 %v2188
    %3824 = vmatpush1.bf16.msra.mxu0 %v2187
    %3825 = vmatprep.subr.bf16.mxu0 %v2196
    %3826 = vmatpush1.bf16.msra.mxu0 %v2195
    %3827 = vmatprep.subr.bf16.mxu0 %v2204
    %3828 = vmatpush1.bf16.msra.mxu0 %v2203
    %3829 = vmatprep.subr.bf16.mxu0 %v2212
    %3830 = vmatpush1.bf16.msra.mxu0 %v2211
    %3831 = vmatprep.subr.bf16.mxu0 %v2220
    %3832 = vmatpush1.bf16.msra.mxu0 %v2219
    %3833 = vmatprep.subr.bf16.mxu0 %v2228
    %3834 = vmatpush1.bf16.msra.mxu0 %v2227
    %3835 = vmatprep.subr.bf16.mxu0 %v2236
    %3836 = vmatpush1.bf16.msra.mxu0 %v2235
    %3837 = vmatprep.subr.bf16.mxu0 %v2244
    %3838 = vmatpush1.bf16.msra.mxu0 %v2243
    %3839 = vmatprep.subr.bf16.mxu0 %v2252
    %3840 = vmatpush1.bf16.msra.mxu0 %v2251
    %3841 = vmatprep.subr.bf16.mxu0 %v2260
    %3842 = vmatpush1.bf16.msra.mxu0 %v2259
    %3843 = vmatprep.subr.bf16.mxu0 %v2268
    %3844 = vmatpush1.bf16.msra.mxu0 %v2267
    %3845 = vmatprep.subr.bf16.mxu0 %v2276
    %3846 = vmatpush1.bf16.msra.mxu0 %v2275
    %3847 = vmatprep.subr.bf16.mxu0 %v2284
    %3848 = vmatpush1.bf16.msra.mxu0 %v2283
    %3849 = vmatprep.mubr.bf16.mxu0 %v1638
    %3850 = vmatmul.mubr.bf16.gmra.mrb[0].mxu0 %v1637
    %v3851 = vpop.f32.mrb[0].mxu0
    %v3852 = vadd.f32 %v3811, %v3851
    %v3853 = vpop.f32.mrb[0].mxu0
    %v3854 = vadd.f32 %v3813, %v3853
    %v3855 = vpop.f32.mrb[0].mxu0
    %v3856 = vpop.f32.mrb[0].mxu0
    %3857 = vdwg.mxu0
    %3858 = vmatprep.subr.bf16.mxu0 %v2292
    %3859 = vmatpush1.bf16.msra.mxu0 %v2291
    %3860 = vmatprep.subr.bf16.mxu0 %v2300
    %3861 = vmatpush1.bf16.msra.mxu0 %v2299
    %3862 = vmatprep.subr.bf16.mxu0 %v2308
    %3863 = vmatpush1.bf16.msra.mxu0 %v2307
    %3864 = vmatprep.subr.bf16.mxu0 %v2316
    %3865 = vmatpush1.bf16.msra.mxu0 %v2315
    %3866 = vmatprep.subr.bf16.mxu0 %v2324
    %3867 = vmatpush1.bf16.msra.mxu0 %v2323
    %3868 = vmatprep.subr.bf16.mxu0 %v2332
    %3869 = vmatpush1.bf16.msra.mxu0 %v2331
    %3870 = vmatprep.subr.bf16.mxu0 %v2340
    %3871 = vmatpush1.bf16.msra.mxu0 %v2339
    %3872 = vmatprep.subr.bf16.mxu0 %v2348
    %3873 = vmatpush1.bf16.msra.mxu0 %v2347
    %3874 = vmatprep.subr.bf16.mxu0 %v2356
    %3875 = vmatpush1.bf16.msra.mxu0 %v2355
    %3876 = vmatprep.subr.bf16.mxu0 %v2364
    %3877 = vmatpush1.bf16.msra.mxu0 %v2363
    %3878 = vmatprep.subr.bf16.mxu0 %v2372
    %3879 = vmatpush1.bf16.msra.mxu0 %v2371
    %3880 = vmatprep.subr.bf16.mxu0 %v2380
    %3881 = vmatpush1.bf16.msra.mxu0 %v2379
    %3882 = vmatprep.subr.bf16.mxu0 %v2388
    %3883 = vmatpush1.bf16.msra.mxu0 %v2387
    %3884 = vmatprep.subr.bf16.mxu0 %v2396
    %3885 = vmatpush1.bf16.msra.mxu0 %v2395
    %3886 = vmatprep.subr.bf16.mxu0 %v2404
    %3887 = vmatpush1.bf16.msra.mxu0 %v2403
    %3888 = vmatprep.subr.bf16.mxu0 %v2412
    %3889 = vmatpush1.bf16.msra.mxu0 %v2411
    %3890 = vmatprep.mubr.bf16.mxu0 %v1640
    %3891 = vmatmul.mubr.bf16.gmra.mrb[0].mxu0 %v1639
    %v3892 = vpop.f32.mrb[0].mxu0
    %v3893 = vadd.f32 %v3852, %v3892
    %v3894 = vpop.f32.mrb[0].mxu0
    %v3895 = vadd.f32 %v3854, %v3894
    %v3896 = vpop.f32.mrb[0].mxu0
    %v3897 = vpop.f32.mrb[0].mxu0
    %3898 = vdwg.mxu0
    %3899 = vmatprep.subr.bf16.mxu0 %v2420
    %3900 = vmatpush1.bf16.msra.mxu0 %v2419
    %3901 = vmatprep.subr.bf16.mxu0 %v2428
    %3902 = vmatpush1.bf16.msra.mxu0 %v2427
    %3903 = vmatprep.subr.bf16.mxu0 %v2436
    %3904 = vmatpush1.bf16.msra.mxu0 %v2435
    %3905 = vmatprep.subr.bf16.mxu0 %v2444
    %3906 = vmatpush1.bf16.msra.mxu0 %v2443
    %3907 = vmatprep.subr.bf16.mxu0 %v2452
    %3908 = vmatpush1.bf16.msra.mxu0 %v2451
    %3909 = vmatprep.subr.bf16.mxu0 %v2460
    %3910 = vmatpush1.bf16.msra.mxu0 %v2459
    %3911 = vmatprep.subr.bf16.mxu0 %v2468
    %3912 = vmatpush1.bf16.msra.mxu0 %v2467
    %3913 = vmatprep.subr.bf16.mxu0 %v2476
    %3914 = vmatpush1.bf16.msra.mxu0 %v2475
    %3915 = vmatprep.subr.bf16.mxu0 %v2484
    %3916 = vmatpush1.bf16.msra.mxu0 %v2483
    %3917 = vmatprep.subr.bf16.mxu0 %v2492
    %3918 = vmatpush1.bf16.msra.mxu0 %v2491
    %3919 = vmatprep.subr.bf16.mxu0 %v2500
    %3920 = vmatpush1.bf16.msra.mxu0 %v2499
    %3921 = vmatprep.subr.bf16.mxu0 %v2508
    %3922 = vmatpush1.bf16.msra.mxu0 %v2507
    %3923 = vmatprep.subr.bf16.mxu0 %v2516
    %3924 = vmatpush1.bf16.msra.mxu0 %v2515
    %3925 = vmatprep.subr.bf16.mxu0 %v2524
    %3926 = vmatpush1.bf16.msra.mxu0 %v2523
    %3927 = vmatprep.subr.bf16.mxu0 %v2532
    %3928 = vmatpush1.bf16.msra.mxu0 %v2531
    %3929 = vmatprep.subr.bf16.mxu0 %v2540
    %3930 = vmatpush1.bf16.msra.mxu0 %v2539
    %3931 = vmatprep.mubr.bf16.mxu0 %v1642
    %3932 = vmatmul.mubr.bf16.gmra.mrb[0].mxu0 %v1641
    %v3933 = vpop.f32.mrb[0].mxu0
    %v3934 = vadd.f32 %v3893, %v3933
    %v3935 = vpop.f32.mrb[0].mxu0
    %v3936 = vadd.f32 %v3895, %v3935
    %v3937 = vpop.f32.mrb[0].mxu0
    %v3938 = vpop.f32.mrb[0].mxu0
    %3939 = vdwg.mxu0
    %3940 = vmatprep.subr.bf16.mxu0 %v2548
    %3941 = vmatpush1.bf16.msra.mxu0 %v2547
    %3942 = vmatprep.subr.bf16.mxu0 %v2556
    %3943 = vmatpush1.bf16.msra.mxu0 %v2555
    %3944 = vmatprep.subr.bf16.mxu0 %v2564
    %3945 = vmatpush1.bf16.msra.mxu0 %v2563
    %3946 = vmatprep.subr.bf16.mxu0 %v2572
    %3947 = vmatpush1.bf16.msra.mxu0 %v2571
    %3948 = vmatprep.subr.bf16.mxu0 %v2580
    %3949 = vmatpush1.bf16.msra.mxu0 %v2579
    %3950 = vmatprep.subr.bf16.mxu0 %v2588
    %3951 = vmatpush1.bf16.msra.mxu0 %v2587
    %3952 = vmatprep.subr.bf16.mxu0 %v2596
    %3953 = vmatpush1.bf16.msra.mxu0 %v2595
    %3954 = vmatprep.subr.bf16.mxu0 %v2604
    %3955 = vmatpush1.bf16.msra.mxu0 %v2603
    %3956 = vmatprep.subr.bf16.mxu0 %v2612
    %3957 = vmatpush1.bf16.msra.mxu0 %v2611
    %3958 = vmatprep.subr.bf16.mxu0 %v2620
    %3959 = vmatpush1.bf16.msra.mxu0 %v2619
    %3960 = vmatprep.subr.bf16.mxu0 %v2628
    %3961 = vmatpush1.bf16.msra.mxu0 %v2627
    %3962 = vmatprep.subr.bf16.mxu0 %v2636
    %3963 = vmatpush1.bf16.msra.mxu0 %v2635
    %3964 = vmatprep.subr.bf16.mxu0 %v2644
    %3965 = vmatpush1.bf16.msra.mxu0 %v2643
    %3966 = vmatprep.subr.bf16.mxu0 %v2652
    %3967 = vmatpush1.bf16.msra.mxu0 %v2651
    %3968 = vmatprep.subr.bf16.mxu0 %v2660
    %3969 = vmatpush1.bf16.msra.mxu0 %v2659
    %3970 = vmatprep.subr.bf16.mxu0 %v2668
    %3971 = vmatpush1.bf16.msra.mxu0 %v2667
    %3972 = vmatprep.mubr.bf16.mxu0 %v1644
    %3973 = vmatmul.mubr.bf16.gmra.mrb[0].mxu0 %v1643
    %v3974 = vpop.f32.mrb[0].mxu0
    %v3975 = vadd.f32 %v3934, %v3974
    %v3976 = vpop.f32.mrb[0].mxu0
    %v3977 = vadd.f32 %v3936, %v3976
    %v3978 = vpop.f32.mrb[0].mxu0
    %v3979 = vpop.f32.mrb[0].mxu0
    %3980 = vdwg.mxu0
    %s3981 = scalar_lea.vmem [#allocation13], 32
    %v3982 = vld [vmem:[%s3981] ss:$2 sm:$0xff]
    %v3984 = vlaneseq
    %v3985 = vshrl.u32 %v3984, 7
    %v3986 = vsub.s32 0, %v3985
    %v3987 = vrot.slane %v3982, %v3986
    %v3988 = vlaneseq
    %v3989 = vshrl.u32 %v3988, 7
    %v3990 = vsub.s32 1, %v3989
    %v3991 = vrot.slane %v3982, %v3990
    %v3992 = vlaneseq
    %v3993 = vshrl.u32 %v3992, 7
    %v3994 = vsub.s32 2, %v3993
    %v3995 = vrot.slane %v3982, %v3994
    %v3996 = vlaneseq
    %v3997 = vshrl.u32 %v3996, 7
    %v3998 = vsub.s32 3, %v3997
    %v3999 = vrot.slane %v3982, %v3998
    %v4000 = vlaneseq
    %v4001 = vshrl.u32 %v4000, 7
    %v4002 = vsub.s32 4, %v4001
    %v4003 = vrot.slane %v3982, %v4002
    %v4004 = vlaneseq
    %v4005 = vshrl.u32 %v4004, 7
    %v4006 = vsub.s32 5, %v4005
    %v4007 = vrot.slane %v3982, %v4006
    %v4008 = vlaneseq
    %v4009 = vshrl.u32 %v4008, 7
    %v4010 = vsub.s32 6, %v4009
    %v4011 = vrot.slane %v3982, %v4010
    %v4012 = vlaneseq
    %v4013 = vshrl.u32 %v4012, 7
    %v4014 = vsub.s32 7, %v4013
    %v4015 = vrot.slane %v3982, %v4014
    %v4024 = vmul.f32 %v2991, %v3987
    %v4025 = vmul.f32 %v2993, %v3991
    %v4026 = vmul.f32 %v3319, %v3995
    %v4027 = vmul.f32 %v3321, %v3999
    %v4028 = vmul.f32 %v3647, %v4003
    %v4029 = vmul.f32 %v3649, %v4007
    %v4030 = vmul.f32 %v3975, %v4011
    %v4031 = vmul.f32 %v3977, %v4015
    %s4032 = scalar_lea.vmem [#allocation13], 33
    %v4033 = vld [vmem:[%s4032] ss:$2 sm:$0xff]
    %v4035 = vlaneseq
    %v4036 = vshrl.u32 %v4035, 7
    %v4037 = vsub.s32 0, %v4036
    %v4038 = vrot.slane %v4033, %v4037
    %v4039 = vlaneseq
    %v4040 = vshrl.u32 %v4039, 7
    %v4041 = vsub.s32 1, %v4040
    %v4042 = vrot.slane %v4033, %v4041
    %v4043 = vlaneseq
    %v4044 = vshrl.u32 %v4043, 7
    %v4045 = vsub.s32 2, %v4044
    %v4046 = vrot.slane %v4033, %v4045
    %v4047 = vlaneseq
    %v4048 = vshrl.u32 %v4047, 7
    %v4049 = vsub.s32 3, %v4048
    %v4050 = vrot.slane %v4033, %v4049
    %v4051 = vlaneseq
    %v4052 = vshrl.u32 %v4051, 7
    %v4053 = vsub.s32 4, %v4052
    %v4054 = vrot.slane %v4033, %v4053
    %v4055 = vlaneseq
    %v4056 = vshrl.u32 %v4055, 7
    %v4057 = vsub.s32 5, %v4056
    %v4058 = vrot.slane %v4033, %v4057
    %v4059 = vlaneseq
    %v4060 = vshrl.u32 %v4059, 7
    %v4061 = vsub.s32 6, %v4060
    %v4062 = vrot.slane %v4033, %v4061
    %v4063 = vlaneseq
    %v4064 = vshrl.u32 %v4063, 7
    %v4065 = vsub.s32 7, %v4064
    %v4066 = vrot.slane %v4033, %v4065
    %v4075 = vadd.f32 %v4024, %v4038
    %v4076 = vadd.f32 %v4025, %v4042
    %v4077 = vadd.f32 %v4026, %v4046
    %v4078 = vadd.f32 %v4027, %v4050
    %v4079 = vadd.f32 %v4028, %v4054
    %v4080 = vadd.f32 %v4029, %v4058
    %v4081 = vadd.f32 %v4030, %v4062
    %v4082 = vadd.f32 %v4031, %v4066
    %v4083 = vmax.f32 %v4075, 0.0
    %v4084 = vmax.f32 %v4076, 0.0
    %v4085 = vmax.f32 %v4077, 0.0
    %v4086 = vmax.f32 %v4078, 0.0
    %v4087 = vmax.f32 %v4079, 0.0
    %v4088 = vmax.f32 %v4080, 0.0
    %v4089 = vmax.f32 %v4081, 0.0
    %v4090 = vmax.f32 %v4082, 0.0
    %s4091 = smul.u32 2, 128
    %s4092 = smul.u32 %s4091, 4
    %s4093 = sshll.u32 %s4092, 4
    %4094 = dma.done %s120, %s4093
    %v4095 = vld [vmem:[#allocation3] sm:$0xff]
    %v4096 = vld [vmem:[#allocation3 + $0x8] sm:$0xff]
    %v4097 = vld [vmem:[#allocation3 + $0x10] sm:$0xff]
    %v4098 = vld [vmem:[#allocation3 + $0x18] sm:$0xff]
    %v4099 = vld [vmem:[#allocation3 + $0x20] sm:$0xff]
    %v4100 = vld [vmem:[#allocation3 + $0x28] sm:$0xff]
    %v4101 = vld [vmem:[#allocation3 + $0x30] sm:$0xff]
    %v4102 = vld [vmem:[#allocation3 + $0x38] sm:$0xff]
    %v4103 = vld [vmem:[#allocation3 + $0x40] sm:$0xff]
    %v4104 = vld [vmem:[#allocation3 + $0x48] sm:$0xff]
    %v4105 = vld [vmem:[#allocation3 + $0x50] sm:$0xff]
    %v4106 = vld [vmem:[#allocation3 + $0x58] sm:$0xff]
    %v4107 = vld [vmem:[#allocation3 + $0x60] sm:$0xff]
    %v4108 = vld [vmem:[#allocation3 + $0x68] sm:$0xff]
    %v4109 = vld [vmem:[#allocation3 + $0x70] sm:$0xff]
    %v4110 = vld [vmem:[#allocation3 + $0x78] sm:$0xff]
    %v4111 = vld [vmem:[#allocation3 + $0x80] sm:$0xff]
    %v4112 = vld [vmem:[#allocation3 + $0x88] sm:$0xff]
    %v4113 = vld [vmem:[#allocation3 + $0x90] sm:$0xff]
    %v4114 = vld [vmem:[#allocation3 + $0x98] sm:$0xff]
    %v4115 = vld [vmem:[#allocation3 + $0xa0] sm:$0xff]
    %v4116 = vld [vmem:[#allocation3 + $0xa8] sm:$0xff]
    %v4117 = vld [vmem:[#allocation3 + $0xb0] sm:$0xff]
    %v4118 = vld [vmem:[#allocation3 + $0xb8] sm:$0xff]
    %v4119 = vld [vmem:[#allocation3 + $0xc0] sm:$0xff]
    %v4120 = vld [vmem:[#allocation3 + $0xc8] sm:$0xff]
    %v4121 = vld [vmem:[#allocation3 + $0xd0] sm:$0xff]
    %v4122 = vld [vmem:[#allocation3 + $0xd8] sm:$0xff]
    %v4123 = vld [vmem:[#allocation3 + $0xe0] sm:$0xff]
    %v4124 = vld [vmem:[#allocation3 + $0xe8] sm:$0xff]
    %v4125 = vld [vmem:[#allocation3 + $0xf0] sm:$0xff]
    %v4126 = vld [vmem:[#allocation3 + $0xf8] sm:$0xff]
    %v4127 = vld [vmem:[#allocation3 + $0x100] sm:$0xff]
    %v4128 = vld [vmem:[#allocation3 + $0x108] sm:$0xff]
    %v4129 = vld [vmem:[#allocation3 + $0x110] sm:$0xff]
    %v4130 = vld [vmem:[#allocation3 + $0x118] sm:$0xff]
    %v4131 = vld [vmem:[#allocation3 + $0x120] sm:$0xff]
    %v4132 = vld [vmem:[#allocation3 + $0x128] sm:$0xff]
    %v4133 = vld [vmem:[#allocation3 + $0x130] sm:$0xff]
    %v4134 = vld [vmem:[#allocation3 + $0x138] sm:$0xff]
    %v4135 = vld [vmem:[#allocation3 + $0x140] sm:$0xff]
    %v4136 = vld [vmem:[#allocation3 + $0x148] sm:$0xff]
    %v4137 = vld [vmem:[#allocation3 + $0x150] sm:$0xff]
    %v4138 = vld [vmem:[#allocation3 + $0x158] sm:$0xff]
    %v4139 = vld [vmem:[#allocation3 + $0x160] sm:$0xff]
    %v4140 = vld [vmem:[#allocation3 + $0x168] sm:$0xff]
    %v4141 = vld [vmem:[#allocation3 + $0x170] sm:$0xff]
    %v4142 = vld [vmem:[#allocation3 + $0x178] sm:$0xff]
    %v4143 = vld [vmem:[#allocation3 + $0x180] sm:$0xff]
    %v4144 = vld [vmem:[#allocation3 + $0x188] sm:$0xff]
    %v4145 = vld [vmem:[#allocation3 + $0x190] sm:$0xff]
    %v4146 = vld [vmem:[#allocation3 + $0x198] sm:$0xff]
    %v4147 = vld [vmem:[#allocation3 + $0x1a0] sm:$0xff]
    %v4148 = vld [vmem:[#allocation3 + $0x1a8] sm:$0xff]
    %v4149 = vld [vmem:[#allocation3 + $0x1b0] sm:$0xff]
    %v4150 = vld [vmem:[#allocation3 + $0x1b8] sm:$0xff]
    %v4151 = vld [vmem:[#allocation3 + $0x1c0] sm:$0xff]
    %v4152 = vld [vmem:[#allocation3 + $0x1c8] sm:$0xff]
    %v4153 = vld [vmem:[#allocation3 + $0x1d0] sm:$0xff]
    %v4154 = vld [vmem:[#allocation3 + $0x1d8] sm:$0xff]
    %v4155 = vld [vmem:[#allocation3 + $0x1e0] sm:$0xff]
    %v4156 = vld [vmem:[#allocation3 + $0x1e8] sm:$0xff]
    %v4157 = vld [vmem:[#allocation3 + $0x1f0] sm:$0xff]
    %v4158 = vld [vmem:[#allocation3 + $0x1f8] sm:$0xff]
    %v4159 = vld [vmem:[#allocation3 + $0x200] sm:$0xff]
    %v4160 = vld [vmem:[#allocation3 + $0x208] sm:$0xff]
    %v4161 = vld [vmem:[#allocation3 + $0x210] sm:$0xff]
    %v4162 = vld [vmem:[#allocation3 + $0x218] sm:$0xff]
    %v4163 = vld [vmem:[#allocation3 + $0x220] sm:$0xff]
    %v4164 = vld [vmem:[#allocation3 + $0x228] sm:$0xff]
    %v4165 = vld [vmem:[#allocation3 + $0x230] sm:$0xff]
    %v4166 = vld [vmem:[#allocation3 + $0x238] sm:$0xff]
    %v4167 = vld [vmem:[#allocation3 + $0x240] sm:$0xff]
    %v4168 = vld [vmem:[#allocation3 + $0x248] sm:$0xff]
    %v4169 = vld [vmem:[#allocation3 + $0x250] sm:$0xff]
    %v4170 = vld [vmem:[#allocation3 + $0x258] sm:$0xff]
    %v4171 = vld [vmem:[#allocation3 + $0x260] sm:$0xff]
    %v4172 = vld [vmem:[#allocation3 + $0x268] sm:$0xff]
    %v4173 = vld [vmem:[#allocation3 + $0x270] sm:$0xff]
    %v4174 = vld [vmem:[#allocation3 + $0x278] sm:$0xff]
    %v4175 = vld [vmem:[#allocation3 + $0x280] sm:$0xff]
    %v4176 = vld [vmem:[#allocation3 + $0x288] sm:$0xff]
    %v4177 = vld [vmem:[#allocation3 + $0x290] sm:$0xff]
    %v4178 = vld [vmem:[#allocation3 + $0x298] sm:$0xff]
    %v4179 = vld [vmem:[#allocation3 + $0x2a0] sm:$0xff]
    %v4180 = vld [vmem:[#allocation3 + $0x2a8] sm:$0xff]
    %v4181 = vld [vmem:[#allocation3 + $0x2b0] sm:$0xff]
    %v4182 = vld [vmem:[#allocation3 + $0x2b8] sm:$0xff]
    %v4183 = vld [vmem:[#allocation3 + $0x2c0] sm:$0xff]
    %v4184 = vld [vmem:[#allocation3 + $0x2c8] sm:$0xff]
    %v4185 = vld [vmem:[#allocation3 + $0x2d0] sm:$0xff]
    %v4186 = vld [vmem:[#allocation3 + $0x2d8] sm:$0xff]
    %v4187 = vld [vmem:[#allocation3 + $0x2e0] sm:$0xff]
    %v4188 = vld [vmem:[#allocation3 + $0x2e8] sm:$0xff]
    %v4189 = vld [vmem:[#allocation3 + $0x2f0] sm:$0xff]
    %v4190 = vld [vmem:[#allocation3 + $0x2f8] sm:$0xff]
    %v4191 = vld [vmem:[#allocation3 + $0x300] sm:$0xff]
    %v4192 = vld [vmem:[#allocation3 + $0x308] sm:$0xff]
    %v4193 = vld [vmem:[#allocation3 + $0x310] sm:$0xff]
    %v4194 = vld [vmem:[#allocation3 + $0x318] sm:$0xff]
    %v4195 = vld [vmem:[#allocation3 + $0x320] sm:$0xff]
    %v4196 = vld [vmem:[#allocation3 + $0x328] sm:$0xff]
    %v4197 = vld [vmem:[#allocation3 + $0x330] sm:$0xff]
    %v4198 = vld [vmem:[#allocation3 + $0x338] sm:$0xff]
    %v4199 = vld [vmem:[#allocation3 + $0x340] sm:$0xff]
    %v4200 = vld [vmem:[#allocation3 + $0x348] sm:$0xff]
    %v4201 = vld [vmem:[#allocation3 + $0x350] sm:$0xff]
    %v4202 = vld [vmem:[#allocation3 + $0x358] sm:$0xff]
    %v4203 = vld [vmem:[#allocation3 + $0x360] sm:$0xff]
    %v4204 = vld [vmem:[#allocation3 + $0x368] sm:$0xff]
    %v4205 = vld [vmem:[#allocation3 + $0x370] sm:$0xff]
    %v4206 = vld [vmem:[#allocation3 + $0x378] sm:$0xff]
    %v4207 = vld [vmem:[#allocation3 + $0x380] sm:$0xff]
    %v4208 = vld [vmem:[#allocation3 + $0x388] sm:$0xff]
    %v4209 = vld [vmem:[#allocation3 + $0x390] sm:$0xff]
    %v4210 = vld [vmem:[#allocation3 + $0x398] sm:$0xff]
    %v4211 = vld [vmem:[#allocation3 + $0x3a0] sm:$0xff]
    %v4212 = vld [vmem:[#allocation3 + $0x3a8] sm:$0xff]
    %v4213 = vld [vmem:[#allocation3 + $0x3b0] sm:$0xff]
    %v4214 = vld [vmem:[#allocation3 + $0x3b8] sm:$0xff]
    %v4215 = vld [vmem:[#allocation3 + $0x3c0] sm:$0xff]
    %v4216 = vld [vmem:[#allocation3 + $0x3c8] sm:$0xff]
    %v4217 = vld [vmem:[#allocation3 + $0x3d0] sm:$0xff]
    %v4218 = vld [vmem:[#allocation3 + $0x3d8] sm:$0xff]
    %v4219 = vld [vmem:[#allocation3 + $0x3e0] sm:$0xff]
    %v4220 = vld [vmem:[#allocation3 + $0x3e8] sm:$0xff]
    %v4221 = vld [vmem:[#allocation3 + $0x3f0] sm:$0xff]
    %v4222 = vld [vmem:[#allocation3 + $0x3f8] sm:$0xff]
    %v4223 = vpack.c.bf16 %v4083, %v4083
    %v4224 = vpack.c.bf16 %v4084, %v4084
    %v4225 = vpack.c.bf16 %v4085, %v4085
    %v4226 = vpack.c.bf16 %v4086, %v4086
    %v4227 = vpack.c.bf16 %v4087, %v4087
    %v4228 = vpack.c.bf16 %v4088, %v4088
    %v4229 = vpack.c.bf16 %v4089, %v4089
    %v4230 = vpack.c.bf16 %v4090, %v4090
    %v4231 = vunpack.c.l.s8.bf16 %v4095
    %v4232 = vunpack.c.l.s8.bf16 %v4096
    %v4233 = vunpack.c.l.s8.bf16 %v4097
    %v4234 = vunpack.c.l.s8.bf16 %v4098
    %v4235 = vunpack.c.h.s8.bf16 %v4095
    %v4236 = vunpack.c.h.s8.bf16 %v4096
    %v4237 = vunpack.c.h.s8.bf16 %v4097
    %v4238 = vunpack.c.h.s8.bf16 %v4098
    %v4239 = vunpack.c.l.s8.bf16 %v4099
    %v4240 = vunpack.c.l.s8.bf16 %v4100
    %v4241 = vunpack.c.l.s8.bf16 %v4101
    %v4242 = vunpack.c.l.s8.bf16 %v4102
    %v4243 = vunpack.c.h.s8.bf16 %v4099
    %v4244 = vunpack.c.h.s8.bf16 %v4100
    %v4245 = vunpack.c.h.s8.bf16 %v4101
    %v4246 = vunpack.c.h.s8.bf16 %v4102
    %v4247 = vunpack.c.l.s8.bf16 %v4103
    %v4248 = vunpack.c.l.s8.bf16 %v4104
    %v4249 = vunpack.c.l.s8.bf16 %v4105
    %v4250 = vunpack.c.l.s8.bf16 %v4106
    %v4251 = vunpack.c.h.s8.bf16 %v4103
    %v4252 = vunpack.c.h.s8.bf16 %v4104
    %v4253 = vunpack.c.h.s8.bf16 %v4105
    %v4254 = vunpack.c.h.s8.bf16 %v4106
    %v4255 = vunpack.c.l.s8.bf16 %v4107
    %v4256 = vunpack.c.l.s8.bf16 %v4108
    %v4257 = vunpack.c.l.s8.bf16 %v4109
    %v4258 = vunpack.c.l.s8.bf16 %v4110
    %v4259 = vunpack.c.h.s8.bf16 %v4107
    %v4260 = vunpack.c.h.s8.bf16 %v4108
    %v4261 = vunpack.c.h.s8.bf16 %v4109
    %v4262 = vunpack.c.h.s8.bf16 %v4110
    %v4263 = vunpack.c.l.s8.bf16 %v4111
    %v4264 = vunpack.c.l.s8.bf16 %v4112
    %v4265 = vunpack.c.l.s8.bf16 %v4113
    %v4266 = vunpack.c.l.s8.bf16 %v4114
    %v4267 = vunpack.c.h.s8.bf16 %v4111
    %v4268 = vunpack.c.h.s8.bf16 %v4112
    %v4269 = vunpack.c.h.s8.bf16 %v4113
    %v4270 = vunpack.c.h.s8.bf16 %v4114
    %v4271 = vunpack.c.l.s8.bf16 %v4115
    %v4272 = vunpack.c.l.s8.bf16 %v4116
    %v4273 = vunpack.c.l.s8.bf16 %v4117
    %v4274 = vunpack.c.l.s8.bf16 %v4118
    %v4275 = vunpack.c.h.s8.bf16 %v4115
    %v4276 = vunpack.c.h.s8.bf16 %v4116
    %v4277 = vunpack.c.h.s8.bf16 %v4117
    %v4278 = vunpack.c.h.s8.bf16 %v4118
    %v4279 = vunpack.c.l.s8.bf16 %v4119
    %v4280 = vunpack.c.l.s8.bf16 %v4120
    %v4281 = vunpack.c.l.s8.bf16 %v4121
    %v4282 = vunpack.c.l.s8.bf16 %v4122
    %v4283 = vunpack.c.h.s8.bf16 %v4119
    %v4284 = vunpack.c.h.s8.bf16 %v4120
    %v4285 = vunpack.c.h.s8.bf16 %v4121
    %v4286 = vunpack.c.h.s8.bf16 %v4122
    %v4287 = vunpack.c.l.s8.bf16 %v4123
    %v4288 = vunpack.c.l.s8.bf16 %v4124
    %v4289 = vunpack.c.l.s8.bf16 %v4125
    %v4290 = vunpack.c.l.s8.bf16 %v4126
    %v4291 = vunpack.c.h.s8.bf16 %v4123
    %v4292 = vunpack.c.h.s8.bf16 %v4124
    %v4293 = vunpack.c.h.s8.bf16 %v4125
    %v4294 = vunpack.c.h.s8.bf16 %v4126
    %v4295 = vunpack.c.l.s8.bf16 %v4127
    %v4296 = vunpack.c.l.s8.bf16 %v4128
    %v4297 = vunpack.c.l.s8.bf16 %v4129
    %v4298 = vunpack.c.l.s8.bf16 %v4130
    %v4299 = vunpack.c.h.s8.bf16 %v4127
    %v4300 = vunpack.c.h.s8.bf16 %v4128
    %v4301 = vunpack.c.h.s8.bf16 %v4129
    %v4302 = vunpack.c.h.s8.bf16 %v4130
    %v4303 = vunpack.c.l.s8.bf16 %v4131
    %v4304 = vunpack.c.l.s8.bf16 %v4132
    %v4305 = vunpack.c.l.s8.bf16 %v4133
    %v4306 = vunpack.c.l.s8.bf16 %v4134
    %v4307 = vunpack.c.h.s8.bf16 %v4131
    %v4308 = vunpack.c.h.s8.bf16 %v4132
    %v4309 = vunpack.c.h.s8.bf16 %v4133
    %v4310 = vunpack.c.h.s8.bf16 %v4134
    %v4311 = vunpack.c.l.s8.bf16 %v4135
    %v4312 = vunpack.c.l.s8.bf16 %v4136
    %v4313 = vunpack.c.l.s8.bf16 %v4137
    %v4314 = vunpack.c.l.s8.bf16 %v4138
    %v4315 = vunpack.c.h.s8.bf16 %v4135
    %v4316 = vunpack.c.h.s8.bf16 %v4136
    %v4317 = vunpack.c.h.s8.bf16 %v4137
    %v4318 = vunpack.c.h.s8.bf16 %v4138
    %v4319 = vunpack.c.l.s8.bf16 %v4139
    %v4320 = vunpack.c.l.s8.bf16 %v4140
    %v4321 = vunpack.c.l.s8.bf16 %v4141
    %v4322 = vunpack.c.l.s8.bf16 %v4142
    %v4323 = vunpack.c.h.s8.bf16 %v4139
    %v4324 = vunpack.c.h.s8.bf16 %v4140
    %v4325 = vunpack.c.h.s8.bf16 %v4141
    %v4326 = vunpack.c.h.s8.bf16 %v4142
    %v4327 = vunpack.c.l.s8.bf16 %v4143
    %v4328 = vunpack.c.l.s8.bf16 %v4144
    %v4329 = vunpack.c.l.s8.bf16 %v4145
    %v4330 = vunpack.c.l.s8.bf16 %v4146
    %v4331 = vunpack.c.h.s8.bf16 %v4143
    %v4332 = vunpack.c.h.s8.bf16 %v4144
    %v4333 = vunpack.c.h.s8.bf16 %v4145
    %v4334 = vunpack.c.h.s8.bf16 %v4146
    %v4335 = vunpack.c.l.s8.bf16 %v4147
    %v4336 = vunpack.c.l.s8.bf16 %v4148
    %v4337 = vunpack.c.l.s8.bf16 %v4149
    %v4338 = vunpack.c.l.s8.bf16 %v4150
    %v4339 = vunpack.c.h.s8.bf16 %v4147
    %v4340 = vunpack.c.h.s8.bf16 %v4148
    %v4341 = vunpack.c.h.s8.bf16 %v4149
    %v4342 = vunpack.c.h.s8.bf16 %v4150
    %v4343 = vunpack.c.l.s8.bf16 %v4151
    %v4344 = vunpack.c.l.s8.bf16 %v4152
    %v4345 = vunpack.c.l.s8.bf16 %v4153
    %v4346 = vunpack.c.l.s8.bf16 %v4154
    %v4347 = vunpack.c.h.s8.bf16 %v4151
    %v4348 = vunpack.c.h.s8.bf16 %v4152
    %v4349 = vunpack.c.h.s8.bf16 %v4153
    %v4350 = vunpack.c.h.s8.bf16 %v4154
    %v4351 = vunpack.c.l.s8.bf16 %v4155
    %v4352 = vunpack.c.l.s8.bf16 %v4156
    %v4353 = vunpack.c.l.s8.bf16 %v4157
    %v4354 = vunpack.c.l.s8.bf16 %v4158
    %v4355 = vunpack.c.h.s8.bf16 %v4155
    %v4356 = vunpack.c.h.s8.bf16 %v4156
    %v4357 = vunpack.c.h.s8.bf16 %v4157
    %v4358 = vunpack.c.h.s8.bf16 %v4158
    %v4359 = vunpack.c.l.s8.bf16 %v4159
    %v4360 = vunpack.c.l.s8.bf16 %v4160
    %v4361 = vunpack.c.l.s8.bf16 %v4161
    %v4362 = vunpack.c.l.s8.bf16 %v4162
    %v4363 = vunpack.c.h.s8.bf16 %v4159
    %v4364 = vunpack.c.h.s8.bf16 %v4160
    %v4365 = vunpack.c.h.s8.bf16 %v4161
    %v4366 = vunpack.c.h.s8.bf16 %v4162
    %v4367 = vunpack.c.l.s8.bf16 %v4163
    %v4368 = vunpack.c.l.s8.bf16 %v4164
    %v4369 = vunpack.c.l.s8.bf16 %v4165
    %v4370 = vunpack.c.l.s8.bf16 %v4166
    %v4371 = vunpack.c.h.s8.bf16 %v4163
    %v4372 = vunpack.c.h.s8.bf16 %v4164
    %v4373 = vunpack.c.h.s8.bf16 %v4165
    %v4374 = vunpack.c.h.s8.bf16 %v4166
    %v4375 = vunpack.c.l.s8.bf16 %v4167
    %v4376 = vunpack.c.l.s8.bf16 %v4168
    %v4377 = vunpack.c.l.s8.bf16 %v4169
    %v4378 = vunpack.c.l.s8.bf16 %v4170
    %v4379 = vunpack.c.h.s8.bf16 %v4167
    %v4380 = vunpack.c.h.s8.bf16 %v4168
    %v4381 = vunpack.c.h.s8.bf16 %v4169
    %v4382 = vunpack.c.h.s8.bf16 %v4170
    %v4383 = vunpack.c.l.s8.bf16 %v4171
    %v4384 = vunpack.c.l.s8.bf16 %v4172
    %v4385 = vunpack.c.l.s8.bf16 %v4173
    %v4386 = vunpack.c.l.s8.bf16 %v4174
    %v4387 = vunpack.c.h.s8.bf16 %v4171
    %v4388 = vunpack.c.h.s8.bf16 %v4172
    %v4389 = vunpack.c.h.s8.bf16 %v4173
    %v4390 = vunpack.c.h.s8.bf16 %v4174
    %v4391 = vunpack.c.l.s8.bf16 %v4175
    %v4392 = vunpack.c.l.s8.bf16 %v4176
    %v4393 = vunpack.c.l.s8.bf16 %v4177
    %v4394 = vunpack.c.l.s8.bf16 %v4178
    %v4395 = vunpack.c.h.s8.bf16 %v4175
    %v4396 = vunpack.c.h.s8.bf16 %v4176
    %v4397 = vunpack.c.h.s8.bf16 %v4177
    %v4398 = vunpack.c.h.s8.bf16 %v4178
    %v4399 = vunpack.c.l.s8.bf16 %v4179
    %v4400 = vunpack.c.l.s8.bf16 %v4180
    %v4401 = vunpack.c.l.s8.bf16 %v4181
    %v4402 = vunpack.c.l.s8.bf16 %v4182
    %v4403 = vunpack.c.h.s8.bf16 %v4179
    %v4404 = vunpack.c.h.s8.bf16 %v4180
    %v4405 = vunpack.c.h.s8.bf16 %v4181
    %v4406 = vunpack.c.h.s8.bf16 %v4182
    %v4407 = vunpack.c.l.s8.bf16 %v4183
    %v4408 = vunpack.c.l.s8.bf16 %v4184
    %v4409 = vunpack.c.l.s8.bf16 %v4185
    %v4410 = vunpack.c.l.s8.bf16 %v4186
    %v4411 = vunpack.c.h.s8.bf16 %v4183
    %v4412 = vunpack.c.h.s8.bf16 %v4184
    %v4413 = vunpack.c.h.s8.bf16 %v4185
    %v4414 = vunpack.c.h.s8.bf16 %v4186
    %v4415 = vunpack.c.l.s8.bf16 %v4187
    %v4416 = vunpack.c.l.s8.bf16 %v4188
    %v4417 = vunpack.c.l.s8.bf16 %v4189
    %v4418 = vunpack.c.l.s8.bf16 %v4190
    %v4419 = vunpack.c.h.s8.bf16 %v4187
    %v4420 = vunpack.c.h.s8.bf16 %v4188
    %v4421 = vunpack.c.h.s8.bf16 %v4189
    %v4422 = vunpack.c.h.s8.bf16 %v4190
    %v4423 = vunpack.c.l.s8.bf16 %v4191
    %v4424 = vunpack.c.l.s8.bf16 %v4192
    %v4425 = vunpack.c.l.s8.bf16 %v4193
    %v4426 = vunpack.c.l.s8.bf16 %v4194
    %v4427 = vunpack.c.h.s8.bf16 %v4191
    %v4428 = vunpack.c.h.s8.bf16 %v4192
    %v4429 = vunpack.c.h.s8.bf16 %v4193
    %v4430 = vunpack.c.h.s8.bf16 %v4194
    %v4431 = vunpack.c.l.s8.bf16 %v4195
    %v4432 = vunpack.c.l.s8.bf16 %v4196
    %v4433 = vunpack.c.l.s8.bf16 %v4197
    %v4434 = vunpack.c.l.s8.bf16 %v4198
    %v4435 = vunpack.c.h.s8.bf16 %v4195
    %v4436 = vunpack.c.h.s8.bf16 %v4196
    %v4437 = vunpack.c.h.s8.bf16 %v4197
    %v4438 = vunpack.c.h.s8.bf16 %v4198
    %v4439 = vunpack.c.l.s8.bf16 %v4199
    %v4440 = vunpack.c.l.s8.bf16 %v4200
    %v4441 = vunpack.c.l.s8.bf16 %v4201
    %v4442 = vunpack.c.l.s8.bf16 %v4202
    %v4443 = vunpack.c.h.s8.bf16 %v4199
    %v4444 = vunpack.c.h.s8.bf16 %v4200
    %v4445 = vunpack.c.h.s8.bf16 %v4201
    %v4446 = vunpack.c.h.s8.bf16 %v4202
    %v4447 = vunpack.c.l.s8.bf16 %v4203
    %v4448 = vunpack.c.l.s8.bf16 %v4204
    %v4449 = vunpack.c.l.s8.bf16 %v4205
    %v4450 = vunpack.c.l.s8.bf16 %v4206
    %v4451 = vunpack.c.h.s8.bf16 %v4203
    %v4452 = vunpack.c.h.s8.bf16 %v4204
    %v4453 = vunpack.c.h.s8.bf16 %v4205
    %v4454 = vunpack.c.h.s8.bf16 %v4206
    %v4455 = vunpack.c.l.s8.bf16 %v4207
    %v4456 = vunpack.c.l.s8.bf16 %v4208
    %v4457 = vunpack.c.l.s8.bf16 %v4209
    %v4458 = vunpack.c.l.s8.bf16 %v4210
    %v4459 = vunpack.c.h.s8.bf16 %v4207
    %v4460 = vunpack.c.h.s8.bf16 %v4208
    %v4461 = vunpack.c.h.s8.bf16 %v4209
    %v4462 = vunpack.c.h.s8.bf16 %v4210
    %v4463 = vunpack.c.l.s8.bf16 %v4211
    %v4464 = vunpack.c.l.s8.bf16 %v4212
    %v4465 = vunpack.c.l.s8.bf16 %v4213
    %v4466 = vunpack.c.l.s8.bf16 %v4214
    %v4467 = vunpack.c.h.s8.bf16 %v4211
    %v4468 = vunpack.c.h.s8.bf16 %v4212
    %v4469 = vunpack.c.h.s8.bf16 %v4213
    %v4470 = vunpack.c.h.s8.bf16 %v4214
    %v4471 = vunpack.c.l.s8.bf16 %v4215
    %v4472 = vunpack.c.l.s8.bf16 %v4216
    %v4473 = vunpack.c.l.s8.bf16 %v4217
    %v4474 = vunpack.c.l.s8.bf16 %v4218
    %v4475 = vunpack.c.h.s8.bf16 %v4215
    %v4476 = vunpack.c.h.s8.bf16 %v4216
    %v4477 = vunpack.c.h.s8.bf16 %v4217
    %v4478 = vunpack.c.h.s8.bf16 %v4218
    %v4479 = vunpack.c.l.s8.bf16 %v4219
    %v4480 = vunpack.c.l.s8.bf16 %v4220
    %v4481 = vunpack.c.l.s8.bf16 %v4221
    %v4482 = vunpack.c.l.s8.bf16 %v4222
    %v4483 = vunpack.c.h.s8.bf16 %v4219
    %v4484 = vunpack.c.h.s8.bf16 %v4220
    %v4485 = vunpack.c.h.s8.bf16 %v4221
    %v4486 = vunpack.c.h.s8.bf16 %v4222
    %4487 = vmatprep.subr.bf16.mxu0 %v4232
    %4488 = vmatpush1.bf16.msra.mxu0 %v4231
    %4489 = vmatprep.subr.bf16.mxu0 %v4236
    %4490 = vmatpush1.bf16.msra.mxu0 %v4235
    %4491 = vmatprep.subr.bf16.mxu0 %v4240
    %4492 = vmatpush1.bf16.msra.mxu0 %v4239
    %4493 = vmatprep.subr.bf16.mxu0 %v4244
    %4494 = vmatpush1.bf16.msra.mxu0 %v4243
    %4495 = vmatprep.subr.bf16.mxu0 %v4248
    %4496 = vmatpush1.bf16.msra.mxu0 %v4247
    %4497 = vmatprep.subr.bf16.mxu0 %v4252
    %4498 = vmatpush1.bf16.msra.mxu0 %v4251
    %4499 = vmatprep.subr.bf16.mxu0 %v4256
    %4500 = vmatpush1.bf16.msra.mxu0 %v4255
    %4501 = vmatprep.subr.bf16.mxu0 %v4260
    %4502 = vmatpush1.bf16.msra.mxu0 %v4259
    %4503 = vmatprep.subr.bf16.mxu0 %v4264
    %4504 = vmatpush1.bf16.msra.mxu0 %v4263
    %4505 = vmatprep.subr.bf16.mxu0 %v4268
    %4506 = vmatpush1.bf16.msra.mxu0 %v4267
    %4507 = vmatprep.subr.bf16.mxu0 %v4272
    %4508 = vmatpush1.bf16.msra.mxu0 %v4271
    %4509 = vmatprep.subr.bf16.mxu0 %v4276
    %4510 = vmatpush1.bf16.msra.mxu0 %v4275
    %4511 = vmatprep.subr.bf16.mxu0 %v4280
    %4512 = vmatpush1.bf16.msra.mxu0 %v4279
    %4513 = vmatprep.subr.bf16.mxu0 %v4284
    %4514 = vmatpush1.bf16.msra.mxu0 %v4283
    %4515 = vmatprep.subr.bf16.mxu0 %v4288
    %4516 = vmatpush1.bf16.msra.mxu0 %v4287
    %4517 = vmatprep.subr.bf16.mxu0 %v4292
    %4518 = vmatpush1.bf16.msra.mxu0 %v4291
    %4519 = vmatprep.mubr.bf16.mxu0 %v4224
    %4520 = vmatmul.mubr.bf16.gmra.mrb[0].mxu0 %v4223
    %v4521 = vpop.f32.mrb[0].mxu0
    %v4522 = vadd.f32 0.0, %v4521
    %v4523 = vpop.f32.mrb[0].mxu0
    %v4524 = vadd.f32 0.0, %v4523
    %v4525 = vpop.f32.mrb[0].mxu0
    %v4526 = vpop.f32.mrb[0].mxu0
    %4527 = vdwg.mxu0
    %4528 = vmatprep.subr.bf16.mxu0 %v4296
    %4529 = vmatpush1.bf16.msra.mxu0 %v4295
    %4530 = vmatprep.subr.bf16.mxu0 %v4300
    %4531 = vmatpush1.bf16.msra.mxu0 %v4299
    %4532 = vmatprep.subr.bf16.mxu0 %v4304
    %4533 = vmatpush1.bf16.msra.mxu0 %v4303
    %4534 = vmatprep.subr.bf16.mxu0 %v4308
    %4535 = vmatpush1.bf16.msra.mxu0 %v4307
    %4536 = vmatprep.subr.bf16.mxu0 %v4312
    %4537 = vmatpush1.bf16.msra.mxu0 %v4311
    %4538 = vmatprep.subr.bf16.mxu0 %v4316
    %4539 = vmatpush1.bf16.msra.mxu0 %v4315
    %4540 = vmatprep.subr.bf16.mxu0 %v4320
    %4541 = vmatpush1.bf16.msra.mxu0 %v4319
    %4542 = vmatprep.subr.bf16.mxu0 %v4324
    %4543 = vmatpush1.bf16.msra.mxu0 %v4323
    %4544 = vmatprep.subr.bf16.mxu0 %v4328
    %4545 = vmatpush1.bf16.msra.mxu0 %v4327
    %4546 = vmatprep.subr.bf16.mxu0 %v4332
    %4547 = vmatpush1.bf16.msra.mxu0 %v4331
    %4548 = vmatprep.subr.bf16.mxu0 %v4336
    %4549 = vmatpush1.bf16.msra.mxu0 %v4335
    %4550 = vmatprep.subr.bf16.mxu0 %v4340
    %4551 = vmatpush1.bf16.msra.mxu0 %v4339
    %4552 = vmatprep.subr.bf16.mxu0 %v4344
    %4553 = vmatpush1.bf16.msra.mxu0 %v4343
    %4554 = vmatprep.subr.bf16.mxu0 %v4348
    %4555 = vmatpush1.bf16.msra.mxu0 %v4347
    %4556 = vmatprep.subr.bf16.mxu0 %v4352
    %4557 = vmatpush1.bf16.msra.mxu0 %v4351
    %4558 = vmatprep.subr.bf16.mxu0 %v4356
    %4559 = vmatpush1.bf16.msra.mxu0 %v4355
    %4560 = vmatprep.mubr.bf16.mxu0 %v4226
    %4561 = vmatmul.mubr.bf16.gmra.mrb[0].mxu0 %v4225
    %v4562 = vpop.f32.mrb[0].mxu0
    %v4563 = vadd.f32 %v4522, %v4562
    %v4564 = vpop.f32.mrb[0].mxu0
    %v4565 = vadd.f32 %v4524, %v4564
    %v4566 = vpop.f32.mrb[0].mxu0
    %v4567 = vpop.f32.mrb[0].mxu0
    %4568 = vdwg.mxu0
    %4569 = vmatprep.subr.bf16.mxu0 %v4360
    %4570 = vmatpush1.bf16.msra.mxu0 %v4359
    %4571 = vmatprep.subr.bf16.mxu0 %v4364
    %4572 = vmatpush1.bf16.msra.mxu0 %v4363
    %4573 = vmatprep.subr.bf16.mxu0 %v4368
    %4574 = vmatpush1.bf16.msra.mxu0 %v4367
    %4575 = vmatprep.subr.bf16.mxu0 %v4372
    %4576 = vmatpush1.bf16.msra.mxu0 %v4371
    %4577 = vmatprep.subr.bf16.mxu0 %v4376
    %4578 = vmatpush1.bf16.msra.mxu0 %v4375
    %4579 = vmatprep.subr.bf16.mxu0 %v4380
    %4580 = vmatpush1.bf16.msra.mxu0 %v4379
    %4581 = vmatprep.subr.bf16.mxu0 %v4384
    %4582 = vmatpush1.bf16.msra.mxu0 %v4383
    %4583 = vmatprep.subr.bf16.mxu0 %v4388
    %4584 = vmatpush1.bf16.msra.mxu0 %v4387
    %4585 = vmatprep.subr.bf16.mxu0 %v4392
    %4586 = vmatpush1.bf16.msra.mxu0 %v4391
    %4587 = vmatprep.subr.bf16.mxu0 %v4396
    %4588 = vmatpush1.bf16.msra.mxu0 %v4395
    %4589 = vmatprep.subr.bf16.mxu0 %v4400
    %4590 = vmatpush1.bf16.msra.mxu0 %v4399
    %4591 = vmatprep.subr.bf16.mxu0 %v4404
    %4592 = vmatpush1.bf16.msra.mxu0 %v4403
    %4593 = vmatprep.subr.bf16.mxu0 %v4408
    %4594 = vmatpush1.bf16.msra.mxu0 %v4407
    %4595 = vmatprep.subr.bf16.mxu0 %v4412
    %4596 = vmatpush1.bf16.msra.mxu0 %v4411
    %4597 = vmatprep.subr.bf16.mxu0 %v4416
    %4598 = vmatpush1.bf16.msra.mxu0 %v4415
    %4599 = vmatprep.subr.bf16.mxu0 %v4420
    %4600 = vmatpush1.bf16.msra.mxu0 %v4419
    %4601 = vmatprep.mubr.bf16.mxu0 %v4228
    %4602 = vmatmul.mubr.bf16.gmra.mrb[0].mxu0 %v4227
    %v4603 = vpop.f32.mrb[0].mxu0
    %v4604 = vadd.f32 %v4563, %v4603
    %v4605 = vpop.f32.mrb[0].mxu0
    %v4606 = vadd.f32 %v4565, %v4605
    %v4607 = vpop.f32.mrb[0].mxu0
    %v4608 = vpop.f32.mrb[0].mxu0
    %4609 = vdwg.mxu0
    %4610 = vmatprep.subr.bf16.mxu0 %v4424
    %4611 = vmatpush1.bf16.msra.mxu0 %v4423
    %4612 = vmatprep.subr.bf16.mxu0 %v4428
    %4613 = vmatpush1.bf16.msra.mxu0 %v4427
    %4614 = vmatprep.subr.bf16.mxu0 %v4432
    %4615 = vmatpush1.bf16.msra.mxu0 %v4431
    %4616 = vmatprep.subr.bf16.mxu0 %v4436
    %4617 = vmatpush1.bf16.msra.mxu0 %v4435
    %4618 = vmatprep.subr.bf16.mxu0 %v4440
    %4619 = vmatpush1.bf16.msra.mxu0 %v4439
    %4620 = vmatprep.subr.bf16.mxu0 %v4444
    %4621 = vmatpush1.bf16.msra.mxu0 %v4443
    %4622 = vmatprep.subr.bf16.mxu0 %v4448
    %4623 = vmatpush1.bf16.msra.mxu0 %v4447
    %4624 = vmatprep.subr.bf16.mxu0 %v4452
    %4625 = vmatpush1.bf16.msra.mxu0 %v4451
    %4626 = vmatprep.subr.bf16.mxu0 %v4456
    %4627 = vmatpush1.bf16.msra.mxu0 %v4455
    %4628 = vmatprep.subr.bf16.mxu0 %v4460
    %4629 = vmatpush1.bf16.msra.mxu0 %v4459
    %4630 = vmatprep.subr.bf16.mxu0 %v4464
    %4631 = vmatpush1.bf16.msra.mxu0 %v4463
    %4632 = vmatprep.subr.bf16.mxu0 %v4468
    %4633 = vmatpush1.bf16.msra.mxu0 %v4467
    %4634 = vmatprep.subr.bf16.mxu0 %v4472
    %4635 = vmatpush1.bf16.msra.mxu0 %v4471
    %4636 = vmatprep.subr.bf16.mxu0 %v4476
    %4637 = vmatpush1.bf16.msra.mxu0 %v4475
    %4638 = vmatprep.subr.bf16.mxu0 %v4480
    %4639 = vmatpush1.bf16.msra.mxu0 %v4479
    %4640 = vmatprep.subr.bf16.mxu0 %v4484
    %4641 = vmatpush1.bf16.msra.mxu0 %v4483
    %4642 = vmatprep.mubr.bf16.mxu0 %v4230
    %4643 = vmatmul.mubr.bf16.gmra.mrb[0].mxu0 %v4229
    %v4644 = vpop.f32.mrb[0].mxu0
    %v4645 = vadd.f32 %v4604, %v4644
    %v4646 = vpop.f32.mrb[0].mxu0
    %v4647 = vadd.f32 %v4606, %v4646
    %v4648 = vpop.f32.mrb[0].mxu0
    %v4649 = vpop.f32.mrb[0].mxu0
    %4650 = vdwg.mxu0
    %4651 = vmatprep.subr.bf16.mxu0 %v4234
    %4652 = vmatpush1.bf16.msra.mxu0 %v4233
    %4653 = vmatprep.subr.bf16.mxu0 %v4238
    %4654 = vmatpush1.bf16.msra.mxu0 %v4237
    %4655 = vmatprep.subr.bf16.mxu0 %v4242
    %4656 = vmatpush1.bf16.msra.mxu0 %v4241
    %4657 = vmatprep.subr.bf16.mxu0 %v4246
    %4658 = vmatpush1.bf16.msra.mxu0 %v4245
    %4659 = vmatprep.subr.bf16.mxu0 %v4250
    %4660 = vmatpush1.bf16.msra.mxu0 %v4249
    %4661 = vmatprep.subr.bf16.mxu0 %v4254
    %4662 = vmatpush1.bf16.msra.mxu0 %v4253
    %4663 = vmatprep.subr.bf16.mxu0 %v4258
    %4664 = vmatpush1.bf16.msra.mxu0 %v4257
    %4665 = vmatprep.subr.bf16.mxu0 %v4262
    %4666 = vmatpush1.bf16.msra.mxu0 %v4261
    %4667 = vmatprep.subr.bf16.mxu0 %v4266
    %4668 = vmatpush1.bf16.msra.mxu0 %v4265
    %4669 = vmatprep.subr.bf16.mxu0 %v4270
    %4670 = vmatpush1.bf16.msra.mxu0 %v4269
    %4671 = vmatprep.subr.bf16.mxu0 %v4274
    %4672 = vmatpush1.bf16.msra.mxu0 %v4273
    %4673 = vmatprep.subr.bf16.mxu0 %v4278
    %4674 = vmatpush1.bf16.msra.mxu0 %v4277
    %4675 = vmatprep.subr.bf16.mxu0 %v4282
    %4676 = vmatpush1.bf16.msra.mxu0 %v4281
    %4677 = vmatprep.subr.bf16.mxu0 %v4286
    %4678 = vmatpush1.bf16.msra.mxu0 %v4285
    %4679 = vmatprep.subr.bf16.mxu0 %v4290
    %4680 = vmatpush1.bf16.msra.mxu0 %v4289
    %4681 = vmatprep.subr.bf16.mxu0 %v4294
    %4682 = vmatpush1.bf16.msra.mxu0 %v4293
    %4683 = vmatprep.mubr.bf16.mxu0 %v4224
    %4684 = vmatmul.mubr.bf16.gmra.mrb[0].mxu0 %v4223
    %v4685 = vpop.f32.mrb[0].mxu0
    %v4686 = vadd.f32 0.0, %v4685
    %v4687 = vpop.f32.mrb[0].mxu0
    %v4688 = vadd.f32 0.0, %v4687
    %v4689 = vpop.f32.mrb[0].mxu0
    %v4690 = vpop.f32.mrb[0].mxu0
    %4691 = vdwg.mxu0
    %4692 = vmatprep.subr.bf16.mxu0 %v4298
    %4693 = vmatpush1.bf16.msra.mxu0 %v4297
    %4694 = vmatprep.subr.bf16.mxu0 %v4302
    %4695 = vmatpush1.bf16.msra.mxu0 %v4301
    %4696 = vmatprep.subr.bf16.mxu0 %v4306
    %4697 = vmatpush1.bf16.msra.mxu0 %v4305
    %4698 = vmatprep.subr.bf16.mxu0 %v4310
    %4699 = vmatpush1.bf16.msra.mxu0 %v4309
    %4700 = vmatprep.subr.bf16.mxu0 %v4314
    %4701 = vmatpush1.bf16.msra.mxu0 %v4313
    %4702 = vmatprep.subr.bf16.mxu0 %v4318
    %4703 = vmatpush1.bf16.msra.mxu0 %v4317
    %4704 = vmatprep.subr.bf16.mxu0 %v4322
    %4705 = vmatpush1.bf16.msra.mxu0 %v4321
    %4706 = vmatprep.subr.bf16.mxu0 %v4326
    %4707 = vmatpush1.bf16.msra.mxu0 %v4325
    %4708 = vmatprep.subr.bf16.mxu0 %v4330
    %4709 = vmatpush1.bf16.msra.mxu0 %v4329
    %4710 = vmatprep.subr.bf16.mxu0 %v4334
    %4711 = vmatpush1.bf16.msra.mxu0 %v4333
    %4712 = vmatprep.subr.bf16.mxu0 %v4338
    %4713 = vmatpush1.bf16.msra.mxu0 %v4337
    %4714 = vmatprep.subr.bf16.mxu0 %v4342
    %4715 = vmatpush1.bf16.msra.mxu0 %v4341
    %4716 = vmatprep.subr.bf16.mxu0 %v4346
    %4717 = vmatpush1.bf16.msra.mxu0 %v4345
    %4718 = vmatprep.subr.bf16.mxu0 %v4350
    %4719 = vmatpush1.bf16.msra.mxu0 %v4349
    %4720 = vmatprep.subr.bf16.mxu0 %v4354
    %4721 = vmatpush1.bf16.msra.mxu0 %v4353
    %4722 = vmatprep.subr.bf16.mxu0 %v4358
    %4723 = vmatpush1.bf16.msra.mxu0 %v4357
    %4724 = vmatprep.mubr.bf16.mxu0 %v4226
    %4725 = vmatmul.mubr.bf16.gmra.mrb[0].mxu0 %v4225
    %v4726 = vpop.f32.mrb[0].mxu0
    %v4727 = vadd.f32 %v4686, %v4726
    %v4728 = vpop.f32.mrb[0].mxu0
    %v4729 = vadd.f32 %v4688, %v4728
    %v4730 = vpop.f32.mrb[0].mxu0
    %v4731 = vpop.f32.mrb[0].mxu0
    %4732 = vdwg.mxu0
    %4733 = vmatprep.subr.bf16.mxu0 %v4362
    %4734 = vmatpush1.bf16.msra.mxu0 %v4361
    %4735 = vmatprep.subr.bf16.mxu0 %v4366
    %4736 = vmatpush1.bf16.msra.mxu0 %v4365
    %4737 = vmatprep.subr.bf16.mxu0 %v4370
    %4738 = vmatpush1.bf16.msra.mxu0 %v4369
    %4739 = vmatprep.subr.bf16.mxu0 %v4374
    %4740 = vmatpush1.bf16.msra.mxu0 %v4373
    %4741 = vmatprep.subr.bf16.mxu0 %v4378
    %4742 = vmatpush1.bf16.msra.mxu0 %v4377
    %4743 = vmatprep.subr.bf16.mxu0 %v4382
    %4744 = vmatpush1.bf16.msra.mxu0 %v4381
    %4745 = vmatprep.subr.bf16.mxu0 %v4386
    %4746 = vmatpush1.bf16.msra.mxu0 %v4385
    %4747 = vmatprep.subr.bf16.mxu0 %v4390
    %4748 = vmatpush1.bf16.msra.mxu0 %v4389
    %4749 = vmatprep.subr.bf16.mxu0 %v4394
    %4750 = vmatpush1.bf16.msra.mxu0 %v4393
    %4751 = vmatprep.subr.bf16.mxu0 %v4398
    %4752 = vmatpush1.bf16.msra.mxu0 %v4397
    %4753 = vmatprep.subr.bf16.mxu0 %v4402
    %4754 = vmatpush1.bf16.msra.mxu0 %v4401
    %4755 = vmatprep.subr.bf16.mxu0 %v4406
    %4756 = vmatpush1.bf16.msra.mxu0 %v4405
    %4757 = vmatprep.subr.bf16.mxu0 %v4410
    %4758 = vmatpush1.bf16.msra.mxu0 %v4409
    %4759 = vmatprep.subr.bf16.mxu0 %v4414
    %4760 = vmatpush1.bf16.msra.mxu0 %v4413
    %4761 = vmatprep.subr.bf16.mxu0 %v4418
    %4762 = vmatpush1.bf16.msra.mxu0 %v4417
    %4763 = vmatprep.subr.bf16.mxu0 %v4422
    %4764 = vmatpush1.bf16.msra.mxu0 %v4421
    %4765 = vmatprep.mubr.bf16.mxu0 %v4228
    %4766 = vmatmul.mubr.bf16.gmra.mrb[0].mxu0 %v4227
    %v4767 = vpop.f32.mrb[0].mxu0
    %v4768 = vadd.f32 %v4727, %v4767
    %v4769 = vpop.f32.mrb[0].mxu0
    %v4770 = vadd.f32 %v4729, %v4769
    %v4771 = vpop.f32.mrb[0].mxu0
    %v4772 = vpop.f32.mrb[0].mxu0
    %4773 = vdwg.mxu0
    %4774 = vmatprep.subr.bf16.mxu0 %v4426
    %4775 = vmatpush1.bf16.msra.mxu0 %v4425
    %4776 = vmatprep.subr.bf16.mxu0 %v4430
    %4777 = vmatpush1.bf16.msra.mxu0 %v4429
    %4778 = vmatprep.subr.bf16.mxu0 %v4434
    %4779 = vmatpush1.bf16.msra.mxu0 %v4433
    %4780 = vmatprep.subr.bf16.mxu0 %v4438
    %4781 = vmatpush1.bf16.msra.mxu0 %v4437
    %4782 = vmatprep.subr.bf16.mxu0 %v4442
    %4783 = vmatpush1.bf16.msra.mxu0 %v4441
    %4784 = vmatprep.subr.bf16.mxu0 %v4446
    %4785 = vmatpush1.bf16.msra.mxu0 %v4445
    %4786 = vmatprep.subr.bf16.mxu0 %v4450
    %4787 = vmatpush1.bf16.msra.mxu0 %v4449
    %4788 = vmatprep.subr.bf16.mxu0 %v4454
    %4789 = vmatpush1.bf16.msra.mxu0 %v4453
    %4790 = vmatprep.subr.bf16.mxu0 %v4458
    %4791 = vmatpush1.bf16.msra.mxu0 %v4457
    %4792 = vmatprep.subr.bf16.mxu0 %v4462
    %4793 = vmatpush1.bf16.msra.mxu0 %v4461
    %4794 = vmatprep.subr.bf16.mxu0 %v4466
    %4795 = vmatpush1.bf16.msra.mxu0 %v4465
    %4796 = vmatprep.subr.bf16.mxu0 %v4470
    %4797 = vmatpush1.bf16.msra.mxu0 %v4469
    %4798 = vmatprep.subr.bf16.mxu0 %v4474
    %4799 = vmatpush1.bf16.msra.mxu0 %v4473
    %4800 = vmatprep.subr.bf16.mxu0 %v4478
    %4801 = vmatpush1.bf16.msra.mxu0 %v4477
    %4802 = vmatprep.subr.bf16.mxu0 %v4482
    %4803 = vmatpush1.bf16.msra.mxu0 %v4481
    %4804 = vmatprep.subr.bf16.mxu0 %v4486
    %4805 = vmatpush1.bf16.msra.mxu0 %v4485
    %4806 = vmatprep.mubr.bf16.mxu0 %v4230
    %4807 = vmatmul.mubr.bf16.gmra.mrb[0].mxu0 %v4229
    %v4808 = vpop.f32.mrb[0].mxu0
    %v4809 = vadd.f32 %v4768, %v4808
    %v4810 = vpop.f32.mrb[0].mxu0
    %v4811 = vadd.f32 %v4770, %v4810
    %v4812 = vpop.f32.mrb[0].mxu0
    %v4813 = vpop.f32.mrb[0].mxu0
    %4814 = vdwg.mxu0
    %s4815 = scalar_lea.vmem [#allocation13], 48
    %v4816 = vld [vmem:[%s4815] ss:$2 sm:$0xf]
    %v4818 = vlaneseq
    %v4819 = vshrl.u32 %v4818, 7
    %v4820 = vsub.s32 0, %v4819
    %v4821 = vrot.slane %v4816, %v4820
    %v4822 = vlaneseq
    %v4823 = vshrl.u32 %v4822, 7
    %v4824 = vsub.s32 1, %v4823
    %v4825 = vrot.slane %v4816, %v4824
    %v4826 = vlaneseq
    %v4827 = vshrl.u32 %v4826, 7
    %v4828 = vsub.s32 2, %v4827
    %v4829 = vrot.slane %v4816, %v4828
    %v4830 = vlaneseq
    %v4831 = vshrl.u32 %v4830, 7
    %v4832 = vsub.s32 3, %v4831
    %v4833 = vrot.slane %v4816, %v4832
    %v4838 = vmul.f32 %v4645, %v4821
    %v4839 = vmul.f32 %v4647, %v4825
    %v4840 = vmul.f32 %v4809, %v4829
    %v4841 = vmul.f32 %v4811, %v4833
    %s4842 = scalar_lea.vmem [#allocation13], 49
    %v4843 = vld [vmem:[%s4842] ss:$2 sm:$0xf]
    %v4845 = vlaneseq
    %v4846 = vshrl.u32 %v4845, 7
    %v4847 = vsub.s32 0, %v4846
    %v4848 = vrot.slane %v4843, %v4847
    %v4849 = vlaneseq
    %v4850 = vshrl.u32 %v4849, 7
    %v4851 = vsub.s32 1, %v4850
    %v4852 = vrot.slane %v4843, %v4851
    %v4853 = vlaneseq
    %v4854 = vshrl.u32 %v4853, 7
    %v4855 = vsub.s32 2, %v4854
    %v4856 = vrot.slane %v4843, %v4855
    %v4857 = vlaneseq
    %v4858 = vshrl.u32 %v4857, 7
    %v4859 = vsub.s32 3, %v4858
    %v4860 = vrot.slane %v4843, %v4859
    %v4865 = vadd.f32 %v4838, %v4848
    %v4866 = vadd.f32 %v4839, %v4852
    %v4867 = vadd.f32 %v4840, %v4856
    %v4868 = vadd.f32 %v4841, %v4860
    %v4869 = vmax.f32 %v4865, 0.0
    %v4870 = vmax.f32 %v4866, 0.0
    %v4871 = vmax.f32 %v4867, 0.0
    %v4872 = vmax.f32 %v4868, 0.0
    %v4873 = vld [vmem:[#allocation16] sm:$0xff]
    %v4874 = vld [vmem:[#allocation16 + $0x8] sm:$0xff]
    %v4875 = vld [vmem:[#allocation16 + $0x10] sm:$0xff]
    %v4876 = vld [vmem:[#allocation16 + $0x18] sm:$0xff]
    %v4877 = vld [vmem:[#allocation16 + $0x20] sm:$0xff]
    %v4878 = vld [vmem:[#allocation16 + $0x28] sm:$0xff]
    %v4879 = vld [vmem:[#allocation16 + $0x30] sm:$0xff]
    %v4880 = vld [vmem:[#allocation16 + $0x38] sm:$0xff]
    %v4881 = vld [vmem:[#allocation16 + $0x40] sm:$0xff]
    %v4882 = vld [vmem:[#allocation16 + $0x48] sm:$0xff]
    %v4883 = vld [vmem:[#allocation16 + $0x50] sm:$0xff]
    %v4884 = vld [vmem:[#allocation16 + $0x58] sm:$0xff]
    %v4885 = vld [vmem:[#allocation16 + $0x60] sm:$0xff]
    %v4886 = vld [vmem:[#allocation16 + $0x68] sm:$0xff]
    %v4887 = vld [vmem:[#allocation16 + $0x70] sm:$0xff]
    %v4888 = vld [vmem:[#allocation16 + $0x78] sm:$0xff]
    %v4889 = vpack.c.bf16 %v4869, %v4869
    %v4890 = vpack.c.bf16 %v4870, %v4870
    %v4891 = vpack.c.bf16 %v4871, %v4871
    %v4892 = vpack.c.bf16 %v4872, %v4872
    %v4893 = vunpack.c.l.s8.bf16 %v4873
    %v4894 = vunpack.c.h.s8.bf16 %v4873
    %v4895 = vunpack.c.l.s8.bf16 %v4874
    %v4896 = vunpack.c.h.s8.bf16 %v4874
    %v4897 = vunpack.c.l.s8.bf16 %v4875
    %v4898 = vunpack.c.h.s8.bf16 %v4875
    %v4899 = vunpack.c.l.s8.bf16 %v4876
    %v4900 = vunpack.c.h.s8.bf16 %v4876
    %v4901 = vunpack.c.l.s8.bf16 %v4877
    %v4902 = vunpack.c.h.s8.bf16 %v4877
    %v4903 = vunpack.c.l.s8.bf16 %v4878
    %v4904 = vunpack.c.h.s8.bf16 %v4878
    %v4905 = vunpack.c.l.s8.bf16 %v4879
    %v4906 = vunpack.c.h.s8.bf16 %v4879
    %v4907 = vunpack.c.l.s8.bf16 %v4880
    %v4908 = vunpack.c.h.s8.bf16 %v4880
    %v4909 = vunpack.c.l.s8.bf16 %v4881
    %v4910 = vunpack.c.h.s8.bf16 %v4881
    %v4911 = vunpack.c.l.s8.bf16 %v4882
    %v4912 = vunpack.c.h.s8.bf16 %v4882
    %v4913 = vunpack.c.l.s8.bf16 %v4883
    %v4914 = vunpack.c.h.s8.bf16 %v4883
    %v4915 = vunpack.c.l.s8.bf16 %v4884
    %v4916 = vunpack.c.h.s8.bf16 %v4884
    %v4917 = vunpack.c.l.s8.bf16 %v4885
    %v4918 = vunpack.c.h.s8.bf16 %v4885
    %v4919 = vunpack.c.l.s8.bf16 %v4886
    %v4920 = vunpack.c.h.s8.bf16 %v4886
    %v4921 = vunpack.c.l.s8.bf16 %v4887
    %v4922 = vunpack.c.h.s8.bf16 %v4887
    %v4923 = vunpack.c.l.s8.bf16 %v4888
    %v4924 = vunpack.c.h.s8.bf16 %v4888
    %4925 = vmatprep.subr.bf16.mxu0 0
    %4926 = vmatpush1.bf16.msra.mxu0 %v4893
    %4927 = vmatprep.subr.bf16.mxu0 0
    %4928 = vmatpush1.bf16.msra.mxu0 %v4894
    %4929 = vmatprep.subr.bf16.mxu0 0
    %4930 = vmatpush1.bf16.msra.mxu0 %v4895
    %4931 = vmatprep.subr.bf16.mxu0 0
    %4932 = vmatpush1.bf16.msra.mxu0 %v4896
    %4933 = vmatprep.subr.bf16.mxu0 0
    %4934 = vmatpush1.bf16.msra.mxu0 %v4897
    %4935 = vmatprep.subr.bf16.mxu0 0
    %4936 = vmatpush1.bf16.msra.mxu0 %v4898
    %4937 = vmatprep.subr.bf16.mxu0 0
    %4938 = vmatpush1.bf16.msra.mxu0 %v4899
    %4939 = vmatprep.subr.bf16.mxu0 0
    %4940 = vmatpush1.bf16.msra.mxu0 %v4900
    %4941 = vmatprep.subr.bf16.mxu0 0
    %4942 = vmatpush1.bf16.msra.mxu0 %v4901
    %4943 = vmatprep.subr.bf16.mxu0 0
    %4944 = vmatpush1.bf16.msra.mxu0 %v4902
    %4945 = vmatprep.subr.bf16.mxu0 0
    %4946 = vmatpush1.bf16.msra.mxu0 %v4903
    %4947 = vmatprep.subr.bf16.mxu0 0
    %4948 = vmatpush1.bf16.msra.mxu0 %v4904
    %4949 = vmatprep.subr.bf16.mxu0 0
    %4950 = vmatpush1.bf16.msra.mxu0 %v4905
    %4951 = vmatprep.subr.bf16.mxu0 0
    %4952 = vmatpush1.bf16.msra.mxu0 %v4906
    %4953 = vmatprep.subr.bf16.mxu0 0
    %4954 = vmatpush1.bf16.msra.mxu0 %v4907
    %4955 = vmatprep.subr.bf16.mxu0 0
    %4956 = vmatpush1.bf16.msra.mxu0 %v4908
    %4957 = vmatprep.mubr.bf16.mxu0 %v4890
    %4958 = vmatmul.mubr.bf16.gmra.mrb[0].mxu0 %v4889
    %v4959 = vpop.f32.mrb[0].mxu0
    %v4960 = vadd.f32 0.0, %v4959
    %v4961 = vpop.f32.mrb[0].mxu0
    %v4962 = vpop.f32.mrb[0].mxu0
    %v4963 = vpop.f32.mrb[0].mxu0
    %4964 = vdwg.mxu0
    %4965 = vmatprep.subr.bf16.mxu0 0
    %4966 = vmatpush1.bf16.msra.mxu0 %v4909
    %4967 = vmatprep.subr.bf16.mxu0 0
    %4968 = vmatpush1.bf16.msra.mxu0 %v4910
    %4969 = vmatprep.subr.bf16.mxu0 0
    %4970 = vmatpush1.bf16.msra.mxu0 %v4911
    %4971 = vmatprep.subr.bf16.mxu0 0
    %4972 = vmatpush1.bf16.msra.mxu0 %v4912
    %4973 = vmatprep.subr.bf16.mxu0 0
    %4974 = vmatpush1.bf16.msra.mxu0 %v4913
    %4975 = vmatprep.subr.bf16.mxu0 0
    %4976 = vmatpush1.bf16.msra.mxu0 %v4914
    %4977 = vmatprep.subr.bf16.mxu0 0
    %4978 = vmatpush1.bf16.msra.mxu0 %v4915
    %4979 = vmatprep.subr.bf16.mxu0 0
    %4980 = vmatpush1.bf16.msra.mxu0 %v4916
    %4981 = vmatprep.subr.bf16.mxu0 0
    %4982 = vmatpush1.bf16.msra.mxu0 %v4917
    %4983 = vmatprep.subr.bf16.mxu0 0
    %4984 = vmatpush1.bf16.msra.mxu0 %v4918
    %4985 = vmatprep.subr.bf16.mxu0 0
    %4986 = vmatpush1.bf16.msra.mxu0 %v4919
    %4987 = vmatprep.subr.bf16.mxu0 0
    %4988 = vmatpush1.bf16.msra.mxu0 %v4920
    %4989 = vmatprep.subr.bf16.mxu0 0
    %4990 = vmatpush1.bf16.msra.mxu0 %v4921
    %4991 = vmatprep.subr.bf16.mxu0 0
    %4992 = vmatpush1.bf16.msra.mxu0 %v4922
    %4993 = vmatprep.subr.bf16.mxu0 0
    %4994 = vmatpush1.bf16.msra.mxu0 %v4923
    %4995 = vmatprep.subr.bf16.mxu0 0
    %4996 = vmatpush1.bf16.msra.mxu0 %v4924
    %4997 = vmatprep.mubr.bf16.mxu0 %v4892
    %4998 = vmatmul.mubr.bf16.gmra.mrb[0].mxu0 %v4891
    %v4999 = vpop.f32.mrb[0].mxu0
    %v5000 = vadd.f32 %v4960, %v4999
    %v5001 = vpop.f32.mrb[0].mxu0
    %v5002 = vpop.f32.mrb[0].mxu0
    %v5003 = vpop.f32.mrb[0].mxu0
    %5004 = vdwg.mxu0
    %v5005 = vld [vmem:[#allocation13 + $0x38] sm:$0x1]
    %v5006 = vlaneseq
    %v5007 = vshrl.u32 %v5006, 7
    %v5008 = vsub.s32 0, %v5007
    %v5009 = vrot.slane %v5005, %v5008
    %v5010 = vmul.f32 %v5000, %v5009
    %v5011 = vld [vmem:[#allocation13 + $0x39] sm:$0x1]
    %v5012 = vlaneseq
    %v5013 = vshrl.u32 %v5012, 7
    %v5014 = vsub.s32 0, %v5013
    %v5015 = vrot.slane %v5011, %v5014
    %v5016 = vadd.f32 %v5010, %v5015
    %v5017 = vmul.f32 %v5016, 1.442695
    %v5018 = vpow.pop %v5017
    %v5019 = vld [vmem:[#allocation11] sm:$0x3]
    %5021 = vrot.lane.b32.xlu0 %v5019, 16
    %v5022 = vpop.permute.xlu0 %5021
    %v5024 = vmul.f32 %v5018, %v5022
    %5026 = vrot.lane.b32.xlu0 %v5024, 112
    %v5027 = vpop.permute.xlu0 %5026
    %v5029 = vadd.f32 %v5016, %v5027
    %v5030 = vmul.f32 %v5018, %v5018
    %v5031 = vmul.f32 %v5016, %v5016
    %5033 = vrot.lane.b32.xlu0 %v5031, 16
    %v5034 = vpop.permute.xlu0 %5033
    %v5036 = vadd.f32 %v5030, %v5034
    %v5037 = vsub.f32 %v5036, %v5016
    %v5038 = vsub.f32 %v5037, 0.5
    %5040 = vrot.lane.b32.xlu0 %v5038, 112
    %v5041 = vpop.permute.xlu0 %5040
    %vm5043 = vcmask 123904
    %v5044 = vsel %vm5043, %v5041, 0.0
    %5045 = vadd.xlane.f32.xlu0 %v5044
    %v5046 = vpop.xlane.xlu0 %5045
    %v5047 = vrot.slane %v5046, 4
    %v5048 = vadd.f32 %v5046, %v5047
    %v5049 = vrot.slane %v5048, 2
    %v5050 = vadd.f32 %v5048, %v5049
    %v5051 = vrot.slane %v5050, 1
    %v5052 = vadd.f32 %v5050, %v5051
    %s5053 = vtos %v5052
    %v5054 = vstv %s5053
    %vm5055 = vcmask 0
    %5056 = vst.msk [vmem:[#allocation20] sm:$0x1] %vm5055, %v5054
    %v5057 = vld [vmem:[#allocation17] sm:$0xff]
    %v5058 = vld [vmem:[#allocation17 + $0x8] sm:$0xff]
    %v5059 = vpack.c.bf16 %v5029, %v5029
    %v5060 = vunpack.c.l.s8.bf16 %v5057
    %v5061 = vunpack.c.h.s8.bf16 %v5057
    %v5062 = vunpack.c.l.s8.bf16 %v5058
    %v5063 = vunpack.c.h.s8.bf16 %v5058
    %v5068 = vunpack.c.l.b16 %v5060
    %v5069 = vunpack.c.h.b16 %v5060
    %v5070 = vunpack.c.l.b16 %v5061
    %v5071 = vunpack.c.h.b16 %v5061
    %v5072 = vunpack.c.l.b16 %v5062
    %v5073 = vunpack.c.h.b16 %v5062
    %v5074 = vunpack.c.l.b16 %v5063
    %v5075 = vunpack.c.h.b16 %v5063
    %v5076 = vpack.c.b16 %v5072, %v5068
    %v5077 = vpack.c.b16 %v5073, %v5069
    %v5078 = vpack.c.b16 %v5074, %v5070
    %v5079 = vpack.c.b16 %v5075, %v5071
    %vm5084 = vcmask 130048
    %v5086 = vsel %vm5084, %v5059, 0
    %5088 = vmatprep.subr.bf16.mxu0 %v5077
    %5089 = vmatpush1.bf16.msra.mxu0 %v5076
    %5090 = vmatprep.subr.bf16.mxu0 0
    %5091 = vmatpush1.bf16.msra.mxu0 0
    %5092 = vmatprep.subr.bf16.mxu0 0
    %5093 = vmatpush1.bf16.msra.mxu0 0
    %5094 = vmatprep.subr.bf16.mxu0 0
    %5095 = vmatpush1.bf16.msra.mxu0 0
    %5096 = vmatprep.subr.bf16.mxu0 0
    %5097 = vmatpush1.bf16.msra.mxu0 0
    %5098 = vmatprep.subr.bf16.mxu0 0
    %5099 = vmatpush1.bf16.msra.mxu0 0
    %5100 = vmatprep.subr.bf16.mxu0 0
    %5101 = vmatpush1.bf16.msra.mxu0 0
    %5102 = vmatprep.subr.bf16.mxu0 0
    %5103 = vmatpush1.bf16.msra.mxu0 0
    %5104 = vmatprep.subr.bf16.mxu0 0
    %5105 = vmatpush1.bf16.msra.mxu0 0
    %5106 = vmatprep.subr.bf16.mxu0 0
    %5107 = vmatpush1.bf16.msra.mxu0 0
    %5108 = vmatprep.subr.bf16.mxu0 0
    %5109 = vmatpush1.bf16.msra.mxu0 0
    %5110 = vmatprep.subr.bf16.mxu0 0
    %5111 = vmatpush1.bf16.msra.mxu0 0
    %5112 = vmatprep.subr.bf16.mxu0 0
    %5113 = vmatpush1.bf16.msra.mxu0 0
    %5114 = vmatprep.subr.bf16.mxu0 0
    %5115 = vmatpush1.bf16.msra.mxu0 0
    %5116 = vmatprep.subr.bf16.mxu0 0
    %5117 = vmatpush1.bf16.msra.mxu0 0
    %5118 = vmatprep.subr.bf16.mxu0 0
    %5119 = vmatpush1.bf16.msra.mxu0 0
    %5120 = vmatprep.mubr.bf16.mxu0 0
    %5121 = vmatmul.mubr.bf16.gmra.mrb[0].mxu0 %v5086
    %v5122 = vpop.f32.mrb[0].mxu0
    %v5123 = vadd.f32 0.0, %v5122
    %v5124 = vpop.f32.mrb[0].mxu0
    %v5125 = vadd.f32 0.0, %v5124
    %v5126 = vpop.f32.mrb[0].mxu0
    %v5127 = vpop.f32.mrb[0].mxu0
    %5128 = vdwg.mxu0
    %5129 = vmatprep.subr.bf16.mxu0 %v5079
    %5130 = vmatpush1.bf16.msra.mxu0 %v5078
    %5131 = vmatprep.subr.bf16.mxu0 0
    %5132 = vmatpush1.bf16.msra.mxu0 0
    %5133 = vmatprep.subr.bf16.mxu0 0
    %5134 = vmatpush1.bf16.msra.mxu0 0
    %5135 = vmatprep.subr.bf16.mxu0 0
    %5136 = vmatpush1.bf16.msra.mxu0 0
    %5137 = vmatprep.subr.bf16.mxu0 0
    %5138 = vmatpush1.bf16.msra.mxu0 0
    %5139 = vmatprep.subr.bf16.mxu0 0
    %5140 = vmatpush1.bf16.msra.mxu0 0
    %5141 = vmatprep.subr.bf16.mxu0 0
    %5142 = vmatpush1.bf16.msra.mxu0 0
    %5143 = vmatprep.subr.bf16.mxu0 0
    %5144 = vmatpush1.bf16.msra.mxu0 0
    %5145 = vmatprep.subr.bf16.mxu0 0
    %5146 = vmatpush1.bf16.msra.mxu0 0
    %5147 = vmatprep.subr.bf16.mxu0 0
    %5148 = vmatpush1.bf16.msra.mxu0 0
    %5149 = vmatprep.subr.bf16.mxu0 0
    %5150 = vmatpush1.bf16.msra.mxu0 0
    %5151 = vmatprep.subr.bf16.mxu0 0
    %5152 = vmatpush1.bf16.msra.mxu0 0
    %5153 = vmatprep.subr.bf16.mxu0 0
    %5154 = vmatpush1.bf16.msra.mxu0 0
    %5155 = vmatprep.subr.bf16.mxu0 0
    %5156 = vmatpush1.bf16.msra.mxu0 0
    %5157 = vmatprep.subr.bf16.mxu0 0
    %5158 = vmatpush1.bf16.msra.mxu0 0
    %5159 = vmatprep.subr.bf16.mxu0 0
    %5160 = vmatpush1.bf16.msra.mxu0 0
    %5161 = vmatprep.mubr.bf16.mxu0 0
    %5162 = vmatmul.mubr.bf16.gmra.mrb[0].mxu0 %v5086
    %v5163 = vpop.f32.mrb[0].mxu0
    %v5164 = vadd.f32 0.0, %v5163
    %v5165 = vpop.f32.mrb[0].mxu0
    %v5166 = vadd.f32 0.0, %v5165
    %v5167 = vpop.f32.mrb[0].mxu0
    %v5168 = vpop.f32.mrb[0].mxu0
    %5169 = vdwg.mxu0
    %s5170 = scalar_lea.vmem [#allocation13], 58
    %v5171 = vld [vmem:[%s5170] ss:$2 sm:$0xf]
    %v5173 = vlaneseq
    %v5174 = vshrl.u32 %v5173, 7
    %v5175 = vsub.s32 0, %v5174
    %v5176 = vrot.slane %v5171, %v5175
    %v5177 = vlaneseq
    %v5178 = vshrl.u32 %v5177, 7
    %v5179 = vsub.s32 1, %v5178
    %v5180 = vrot.slane %v5171, %v5179
    %v5181 = vlaneseq
    %v5182 = vshrl.u32 %v5181, 7
    %v5183 = vsub.s32 2, %v5182
    %v5184 = vrot.slane %v5171, %v5183
    %v5185 = vlaneseq
    %v5186 = vshrl.u32 %v5185, 7
    %v5187 = vsub.s32 3, %v5186
    %v5188 = vrot.slane %v5171, %v5187
    %v5193 = vmul.f32 %v5123, %v5176
    %v5194 = vmul.f32 %v5125, %v5180
    %v5195 = vmul.f32 %v5164, %v5184
    %v5196 = vmul.f32 %v5166, %v5188
    %s5197 = scalar_lea.vmem [#allocation13], 59
    %v5198 = vld [vmem:[%s5197] ss:$2 sm:$0xf]
    %v5200 = vlaneseq
    %v5201 = vshrl.u32 %v5200, 7
    %v5202 = vsub.s32 0, %v5201
    %v5203 = vrot.slane %v5198, %v5202
    %v5204 = vlaneseq
    %v5205 = vshrl.u32 %v5204, 7
    %v5206 = vsub.s32 1, %v5205
    %v5207 = vrot.slane %v5198, %v5206
    %v5208 = vlaneseq
    %v5209 = vshrl.u32 %v5208, 7
    %v5210 = vsub.s32 2, %v5209
    %v5211 = vrot.slane %v5198, %v5210
    %v5212 = vlaneseq
    %v5213 = vshrl.u32 %v5212, 7
    %v5214 = vsub.s32 3, %v5213
    %v5215 = vrot.slane %v5198, %v5214
    %v5220 = vadd.f32 %v5193, %v5203
    %v5221 = vadd.f32 %v5194, %v5207
    %v5222 = vadd.f32 %v5195, %v5211
    %v5223 = vadd.f32 %v5196, %v5215
    %v5224 = vmax.f32 %v5220, 0.0
    %v5225 = vmax.f32 %v5221, 0.0
    %v5226 = vmax.f32 %v5222, 0.0
    %v5227 = vmax.f32 %v5223, 0.0
    %s5228 = smul.u32 2, 64
    %s5229 = smul.u32 %s5228, 8
    %s5230 = sshll.u32 %s5229, 4
    %5231 = dma.done %s132, %s5230
    %v5232 = vld [vmem:[#allocation4] sm:$0xff]
    %v5233 = vld [vmem:[#allocation4 + $0x8] sm:$0xff]
    %v5234 = vld [vmem:[#allocation4 + $0x10] sm:$0xff]
    %v5235 = vld [vmem:[#allocation4 + $0x18] sm:$0xff]
    %v5236 = vld [vmem:[#allocation4 + $0x20] sm:$0xff]
    %v5237 = vld [vmem:[#allocation4 + $0x28] sm:$0xff]
    %v5238 = vld [vmem:[#allocation4 + $0x30] sm:$0xff]
    %v5239 = vld [vmem:[#allocation4 + $0x38] sm:$0xff]
    %v5240 = vld [vmem:[#allocation4 + $0x40] sm:$0xff]
    %v5241 = vld [vmem:[#allocation4 + $0x48] sm:$0xff]
    %v5242 = vld [vmem:[#allocation4 + $0x50] sm:$0xff]
    %v5243 = vld [vmem:[#allocation4 + $0x58] sm:$0xff]
    %v5244 = vld [vmem:[#allocation4 + $0x60] sm:$0xff]
    %v5245 = vld [vmem:[#allocation4 + $0x68] sm:$0xff]
    %v5246 = vld [vmem:[#allocation4 + $0x70] sm:$0xff]
    %v5247 = vld [vmem:[#allocation4 + $0x78] sm:$0xff]
    %v5248 = vld [vmem:[#allocation4 + $0x80] sm:$0xff]
    %v5249 = vld [vmem:[#allocation4 + $0x88] sm:$0xff]
    %v5250 = vld [vmem:[#allocation4 + $0x90] sm:$0xff]
    %v5251 = vld [vmem:[#allocation4 + $0x98] sm:$0xff]
    %v5252 = vld [vmem:[#allocation4 + $0xa0] sm:$0xff]
    %v5253 = vld [vmem:[#allocation4 + $0xa8] sm:$0xff]
    %v5254 = vld [vmem:[#allocation4 + $0xb0] sm:$0xff]
    %v5255 = vld [vmem:[#allocation4 + $0xb8] sm:$0xff]
    %v5256 = vld [vmem:[#allocation4 + $0xc0] sm:$0xff]
    %v5257 = vld [vmem:[#allocation4 + $0xc8] sm:$0xff]
    %v5258 = vld [vmem:[#allocation4 + $0xd0] sm:$0xff]
    %v5259 = vld [vmem:[#allocation4 + $0xd8] sm:$0xff]
    %v5260 = vld [vmem:[#allocation4 + $0xe0] sm:$0xff]
    %v5261 = vld [vmem:[#allocation4 + $0xe8] sm:$0xff]
    %v5262 = vld [vmem:[#allocation4 + $0xf0] sm:$0xff]
    %v5263 = vld [vmem:[#allocation4 + $0xf8] sm:$0xff]
    %v5264 = vld [vmem:[#allocation4 + $0x100] sm:$0xff]
    %v5265 = vld [vmem:[#allocation4 + $0x108] sm:$0xff]
    %v5266 = vld [vmem:[#allocation4 + $0x110] sm:$0xff]
    %v5267 = vld [vmem:[#allocation4 + $0x118] sm:$0xff]
    %v5268 = vld [vmem:[#allocation4 + $0x120] sm:$0xff]
    %v5269 = vld [vmem:[#allocation4 + $0x128] sm:$0xff]
    %v5270 = vld [vmem:[#allocation4 + $0x130] sm:$0xff]
    %v5271 = vld [vmem:[#allocation4 + $0x138] sm:$0xff]
    %v5272 = vld [vmem:[#allocation4 + $0x140] sm:$0xff]
    %v5273 = vld [vmem:[#allocation4 + $0x148] sm:$0xff]
    %v5274 = vld [vmem:[#allocation4 + $0x150] sm:$0xff]
    %v5275 = vld [vmem:[#allocation4 + $0x158] sm:$0xff]
    %v5276 = vld [vmem:[#allocation4 + $0x160] sm:$0xff]
    %v5277 = vld [vmem:[#allocation4 + $0x168] sm:$0xff]
    %v5278 = vld [vmem:[#allocation4 + $0x170] sm:$0xff]
    %v5279 = vld [vmem:[#allocation4 + $0x178] sm:$0xff]
    %v5280 = vld [vmem:[#allocation4 + $0x180] sm:$0xff]
    %v5281 = vld [vmem:[#allocation4 + $0x188] sm:$0xff]
    %v5282 = vld [vmem:[#allocation4 + $0x190] sm:$0xff]
    %v5283 = vld [vmem:[#allocation4 + $0x198] sm:$0xff]
    %v5284 = vld [vmem:[#allocation4 + $0x1a0] sm:$0xff]
    %v5285 = vld [vmem:[#allocation4 + $0x1a8] sm:$0xff]
    %v5286 = vld [vmem:[#allocation4 + $0x1b0] sm:$0xff]
    %v5287 = vld [vmem:[#allocation4 + $0x1b8] sm:$0xff]
    %v5288 = vld [vmem:[#allocation4 + $0x1c0] sm:$0xff]
    %v5289 = vld [vmem:[#allocation4 + $0x1c8] sm:$0xff]
    %v5290 = vld [vmem:[#allocation4 + $0x1d0] sm:$0xff]
    %v5291 = vld [vmem:[#allocation4 + $0x1d8] sm:$0xff]
    %v5292 = vld [vmem:[#allocation4 + $0x1e0] sm:$0xff]
    %v5293 = vld [vmem:[#allocation4 + $0x1e8] sm:$0xff]
    %v5294 = vld [vmem:[#allocation4 + $0x1f0] sm:$0xff]
    %v5295 = vld [vmem:[#allocation4 + $0x1f8] sm:$0xff]
    %v5296 = vld [vmem:[#allocation4 + $0x200] sm:$0xff]
    %v5297 = vld [vmem:[#allocation4 + $0x208] sm:$0xff]
    %v5298 = vld [vmem:[#allocation4 + $0x210] sm:$0xff]
    %v5299 = vld [vmem:[#allocation4 + $0x218] sm:$0xff]
    %v5300 = vld [vmem:[#allocation4 + $0x220] sm:$0xff]
    %v5301 = vld [vmem:[#allocation4 + $0x228] sm:$0xff]
    %v5302 = vld [vmem:[#allocation4 + $0x230] sm:$0xff]
    %v5303 = vld [vmem:[#allocation4 + $0x238] sm:$0xff]
    %v5304 = vld [vmem:[#allocation4 + $0x240] sm:$0xff]
    %v5305 = vld [vmem:[#allocation4 + $0x248] sm:$0xff]
    %v5306 = vld [vmem:[#allocation4 + $0x250] sm:$0xff]
    %v5307 = vld [vmem:[#allocation4 + $0x258] sm:$0xff]
    %v5308 = vld [vmem:[#allocation4 + $0x260] sm:$0xff]
    %v5309 = vld [vmem:[#allocation4 + $0x268] sm:$0xff]
    %v5310 = vld [vmem:[#allocation4 + $0x270] sm:$0xff]
    %v5311 = vld [vmem:[#allocation4 + $0x278] sm:$0xff]
    %v5312 = vld [vmem:[#allocation4 + $0x280] sm:$0xff]
    %v5313 = vld [vmem:[#allocation4 + $0x288] sm:$0xff]
    %v5314 = vld [vmem:[#allocation4 + $0x290] sm:$0xff]
    %v5315 = vld [vmem:[#allocation4 + $0x298] sm:$0xff]
    %v5316 = vld [vmem:[#allocation4 + $0x2a0] sm:$0xff]
    %v5317 = vld [vmem:[#allocation4 + $0x2a8] sm:$0xff]
    %v5318 = vld [vmem:[#allocation4 + $0x2b0] sm:$0xff]
    %v5319 = vld [vmem:[#allocation4 + $0x2b8] sm:$0xff]
    %v5320 = vld [vmem:[#allocation4 + $0x2c0] sm:$0xff]
    %v5321 = vld [vmem:[#allocation4 + $0x2c8] sm:$0xff]
    %v5322 = vld [vmem:[#allocation4 + $0x2d0] sm:$0xff]
    %v5323 = vld [vmem:[#allocation4 + $0x2d8] sm:$0xff]
    %v5324 = vld [vmem:[#allocation4 + $0x2e0] sm:$0xff]
    %v5325 = vld [vmem:[#allocation4 + $0x2e8] sm:$0xff]
    %v5326 = vld [vmem:[#allocation4 + $0x2f0] sm:$0xff]
    %v5327 = vld [vmem:[#allocation4 + $0x2f8] sm:$0xff]
    %v5328 = vld [vmem:[#allocation4 + $0x300] sm:$0xff]
    %v5329 = vld [vmem:[#allocation4 + $0x308] sm:$0xff]
    %v5330 = vld [vmem:[#allocation4 + $0x310] sm:$0xff]
    %v5331 = vld [vmem:[#allocation4 + $0x318] sm:$0xff]
    %v5332 = vld [vmem:[#allocation4 + $0x320] sm:$0xff]
    %v5333 = vld [vmem:[#allocation4 + $0x328] sm:$0xff]
    %v5334 = vld [vmem:[#allocation4 + $0x330] sm:$0xff]
    %v5335 = vld [vmem:[#allocation4 + $0x338] sm:$0xff]
    %v5336 = vld [vmem:[#allocation4 + $0x340] sm:$0xff]
    %v5337 = vld [vmem:[#allocation4 + $0x348] sm:$0xff]
    %v5338 = vld [vmem:[#allocation4 + $0x350] sm:$0xff]
    %v5339 = vld [vmem:[#allocation4 + $0x358] sm:$0xff]
    %v5340 = vld [vmem:[#allocation4 + $0x360] sm:$0xff]
    %v5341 = vld [vmem:[#allocation4 + $0x368] sm:$0xff]
    %v5342 = vld [vmem:[#allocation4 + $0x370] sm:$0xff]
    %v5343 = vld [vmem:[#allocation4 + $0x378] sm:$0xff]
    %v5344 = vld [vmem:[#allocation4 + $0x380] sm:$0xff]
    %v5345 = vld [vmem:[#allocation4 + $0x388] sm:$0xff]
    %v5346 = vld [vmem:[#allocation4 + $0x390] sm:$0xff]
    %v5347 = vld [vmem:[#allocation4 + $0x398] sm:$0xff]
    %v5348 = vld [vmem:[#allocation4 + $0x3a0] sm:$0xff]
    %v5349 = vld [vmem:[#allocation4 + $0x3a8] sm:$0xff]
    %v5350 = vld [vmem:[#allocation4 + $0x3b0] sm:$0xff]
    %v5351 = vld [vmem:[#allocation4 + $0x3b8] sm:$0xff]
    %v5352 = vld [vmem:[#allocation4 + $0x3c0] sm:$0xff]
    %v5353 = vld [vmem:[#allocation4 + $0x3c8] sm:$0xff]
    %v5354 = vld [vmem:[#allocation4 + $0x3d0] sm:$0xff]
    %v5355 = vld [vmem:[#allocation4 + $0x3d8] sm:$0xff]
    %v5356 = vld [vmem:[#allocation4 + $0x3e0] sm:$0xff]
    %v5357 = vld [vmem:[#allocation4 + $0x3e8] sm:$0xff]
    %v5358 = vld [vmem:[#allocation4 + $0x3f0] sm:$0xff]
    %v5359 = vld [vmem:[#allocation4 + $0x3f8] sm:$0xff]
    %v5360 = vpack.c.bf16 %v5224, %v5224
    %v5361 = vpack.c.bf16 %v5225, %v5225
    %v5362 = vpack.c.bf16 %v5226, %v5226
    %v5363 = vpack.c.bf16 %v5227, %v5227
    %v5364 = vunpack.c.l.s8.bf16 %v5232
    %v5365 = vunpack.c.l.s8.bf16 %v5233
    %v5366 = vunpack.c.l.s8.bf16 %v5234
    %v5367 = vunpack.c.l.s8.bf16 %v5235
    %v5368 = vunpack.c.l.s8.bf16 %v5236
    %v5369 = vunpack.c.l.s8.bf16 %v5237
    %v5370 = vunpack.c.l.s8.bf16 %v5238
    %v5371 = vunpack.c.l.s8.bf16 %v5239
    %v5372 = vunpack.c.h.s8.bf16 %v5232
    %v5373 = vunpack.c.h.s8.bf16 %v5233
    %v5374 = vunpack.c.h.s8.bf16 %v5234
    %v5375 = vunpack.c.h.s8.bf16 %v5235
    %v5376 = vunpack.c.h.s8.bf16 %v5236
    %v5377 = vunpack.c.h.s8.bf16 %v5237
    %v5378 = vunpack.c.h.s8.bf16 %v5238
    %v5379 = vunpack.c.h.s8.bf16 %v5239
    %v5380 = vunpack.c.l.s8.bf16 %v5240
    %v5381 = vunpack.c.l.s8.bf16 %v5241
    %v5382 = vunpack.c.l.s8.bf16 %v5242
    %v5383 = vunpack.c.l.s8.bf16 %v5243
    %v5384 = vunpack.c.l.s8.bf16 %v5244
    %v5385 = vunpack.c.l.s8.bf16 %v5245
    %v5386 = vunpack.c.l.s8.bf16 %v5246
    %v5387 = vunpack.c.l.s8.bf16 %v5247
    %v5388 = vunpack.c.h.s8.bf16 %v5240
    %v5389 = vunpack.c.h.s8.bf16 %v5241
    %v5390 = vunpack.c.h.s8.bf16 %v5242
    %v5391 = vunpack.c.h.s8.bf16 %v5243
    %v5392 = vunpack.c.h.s8.bf16 %v5244
    %v5393 = vunpack.c.h.s8.bf16 %v5245
    %v5394 = vunpack.c.h.s8.bf16 %v5246
    %v5395 = vunpack.c.h.s8.bf16 %v5247
    %v5396 = vunpack.c.l.s8.bf16 %v5248
    %v5397 = vunpack.c.l.s8.bf16 %v5249
    %v5398 = vunpack.c.l.s8.bf16 %v5250
    %v5399 = vunpack.c.l.s8.bf16 %v5251
    %v5400 = vunpack.c.l.s8.bf16 %v5252
    %v5401 = vunpack.c.l.s8.bf16 %v5253
    %v5402 = vunpack.c.l.s8.bf16 %v5254
    %v5403 = vunpack.c.l.s8.bf16 %v5255
    %v5404 = vunpack.c.h.s8.bf16 %v5248
    %v5405 = vunpack.c.h.s8.bf16 %v5249
    %v5406 = vunpack.c.h.s8.bf16 %v5250
    %v5407 = vunpack.c.h.s8.bf16 %v5251
    %v5408 = vunpack.c.h.s8.bf16 %v5252
    %v5409 = vunpack.c.h.s8.bf16 %v5253
    %v5410 = vunpack.c.h.s8.bf16 %v5254
    %v5411 = vunpack.c.h.s8.bf16 %v5255
    %v5412 = vunpack.c.l.s8.bf16 %v5256
    %v5413 = vunpack.c.l.s8.bf16 %v5257
    %v5414 = vunpack.c.l.s8.bf16 %v5258
    %v5415 = vunpack.c.l.s8.bf16 %v5259
    %v5416 = vunpack.c.l.s8.bf16 %v5260
    %v5417 = vunpack.c.l.s8.bf16 %v5261
    %v5418 = vunpack.c.l.s8.bf16 %v5262
    %v5419 = vunpack.c.l.s8.bf16 %v5263
    %v5420 = vunpack.c.h.s8.bf16 %v5256
    %v5421 = vunpack.c.h.s8.bf16 %v5257
    %v5422 = vunpack.c.h.s8.bf16 %v5258
    %v5423 = vunpack.c.h.s8.bf16 %v5259
    %v5424 = vunpack.c.h.s8.bf16 %v5260
    %v5425 = vunpack.c.h.s8.bf16 %v5261
    %v5426 = vunpack.c.h.s8.bf16 %v5262
    %v5427 = vunpack.c.h.s8.bf16 %v5263
    %v5428 = vunpack.c.l.s8.bf16 %v5264
    %v5429 = vunpack.c.l.s8.bf16 %v5265
    %v5430 = vunpack.c.l.s8.bf16 %v5266
    %v5431 = vunpack.c.l.s8.bf16 %v5267
    %v5432 = vunpack.c.l.s8.bf16 %v5268
    %v5433 = vunpack.c.l.s8.bf16 %v5269
    %v5434 = vunpack.c.l.s8.bf16 %v5270
    %v5435 = vunpack.c.l.s8.bf16 %v5271
    %v5436 = vunpack.c.h.s8.bf16 %v5264
    %v5437 = vunpack.c.h.s8.bf16 %v5265
    %v5438 = vunpack.c.h.s8.bf16 %v5266
    %v5439 = vunpack.c.h.s8.bf16 %v5267
    %v5440 = vunpack.c.h.s8.bf16 %v5268
    %v5441 = vunpack.c.h.s8.bf16 %v5269
    %v5442 = vunpack.c.h.s8.bf16 %v5270
    %v5443 = vunpack.c.h.s8.bf16 %v5271
    %v5444 = vunpack.c.l.s8.bf16 %v5272
    %v5445 = vunpack.c.l.s8.bf16 %v5273
    %v5446 = vunpack.c.l.s8.bf16 %v5274
    %v5447 = vunpack.c.l.s8.bf16 %v5275
    %v5448 = vunpack.c.l.s8.bf16 %v5276
    %v5449 = vunpack.c.l.s8.bf16 %v5277
    %v5450 = vunpack.c.l.s8.bf16 %v5278
    %v5451 = vunpack.c.l.s8.bf16 %v5279
    %v5452 = vunpack.c.h.s8.bf16 %v5272
    %v5453 = vunpack.c.h.s8.bf16 %v5273
    %v5454 = vunpack.c.h.s8.bf16 %v5274
    %v5455 = vunpack.c.h.s8.bf16 %v5275
    %v5456 = vunpack.c.h.s8.bf16 %v5276
    %v5457 = vunpack.c.h.s8.bf16 %v5277
    %v5458 = vunpack.c.h.s8.bf16 %v5278
    %v5459 = vunpack.c.h.s8.bf16 %v5279
    %v5460 = vunpack.c.l.s8.bf16 %v5280
    %v5461 = vunpack.c.l.s8.bf16 %v5281
    %v5462 = vunpack.c.l.s8.bf16 %v5282
    %v5463 = vunpack.c.l.s8.bf16 %v5283
    %v5464 = vunpack.c.l.s8.bf16 %v5284
    %v5465 = vunpack.c.l.s8.bf16 %v5285
    %v5466 = vunpack.c.l.s8.bf16 %v5286
    %v5467 = vunpack.c.l.s8.bf16 %v5287
    %v5468 = vunpack.c.h.s8.bf16 %v5280
    %v5469 = vunpack.c.h.s8.bf16 %v5281
    %v5470 = vunpack.c.h.s8.bf16 %v5282
    %v5471 = vunpack.c.h.s8.bf16 %v5283
    %v5472 = vunpack.c.h.s8.bf16 %v5284
    %v5473 = vunpack.c.h.s8.bf16 %v5285
    %v5474 = vunpack.c.h.s8.bf16 %v5286
    %v5475 = vunpack.c.h.s8.bf16 %v5287
    %v5476 = vunpack.c.l.s8.bf16 %v5288
    %v5477 = vunpack.c.l.s8.bf16 %v5289
    %v5478 = vunpack.c.l.s8.bf16 %v5290
    %v5479 = vunpack.c.l.s8.bf16 %v5291
    %v5480 = vunpack.c.l.s8.bf16 %v5292
    %v5481 = vunpack.c.l.s8.bf16 %v5293
    %v5482 = vunpack.c.l.s8.bf16 %v5294
    %v5483 = vunpack.c.l.s8.bf16 %v5295
    %v5484 = vunpack.c.h.s8.bf16 %v5288
    %v5485 = vunpack.c.h.s8.bf16 %v5289
    %v5486 = vunpack.c.h.s8.bf16 %v5290
    %v5487 = vunpack.c.h.s8.bf16 %v5291
    %v5488 = vunpack.c.h.s8.bf16 %v5292
    %v5489 = vunpack.c.h.s8.bf16 %v5293
    %v5490 = vunpack.c.h.s8.bf16 %v5294
    %v5491 = vunpack.c.h.s8.bf16 %v5295
    %v5492 = vunpack.c.l.s8.bf16 %v5296
    %v5493 = vunpack.c.l.s8.bf16 %v5297
    %v5494 = vunpack.c.l.s8.bf16 %v5298
    %v5495 = vunpack.c.l.s8.bf16 %v5299
    %v5496 = vunpack.c.l.s8.bf16 %v5300
    %v5497 = vunpack.c.l.s8.bf16 %v5301
    %v5498 = vunpack.c.l.s8.bf16 %v5302
    %v5499 = vunpack.c.l.s8.bf16 %v5303
    %v5500 = vunpack.c.h.s8.bf16 %v5296
    %v5501 = vunpack.c.h.s8.bf16 %v5297
    %v5502 = vunpack.c.h.s8.bf16 %v5298
    %v5503 = vunpack.c.h.s8.bf16 %v5299
    %v5504 = vunpack.c.h.s8.bf16 %v5300
    %v5505 = vunpack.c.h.s8.bf16 %v5301
    %v5506 = vunpack.c.h.s8.bf16 %v5302
    %v5507 = vunpack.c.h.s8.bf16 %v5303
    %v5508 = vunpack.c.l.s8.bf16 %v5304
    %v5509 = vunpack.c.l.s8.bf16 %v5305
    %v5510 = vunpack.c.l.s8.bf16 %v5306
    %v5511 = vunpack.c.l.s8.bf16 %v5307
    %v5512 = vunpack.c.l.s8.bf16 %v5308
    %v5513 = vunpack.c.l.s8.bf16 %v5309
    %v5514 = vunpack.c.l.s8.bf16 %v5310
    %v5515 = vunpack.c.l.s8.bf16 %v5311
    %v5516 = vunpack.c.h.s8.bf16 %v5304
    %v5517 = vunpack.c.h.s8.bf16 %v5305
    %v5518 = vunpack.c.h.s8.bf16 %v5306
    %v5519 = vunpack.c.h.s8.bf16 %v5307
    %v5520 = vunpack.c.h.s8.bf16 %v5308
    %v5521 = vunpack.c.h.s8.bf16 %v5309
    %v5522 = vunpack.c.h.s8.bf16 %v5310
    %v5523 = vunpack.c.h.s8.bf16 %v5311
    %v5524 = vunpack.c.l.s8.bf16 %v5312
    %v5525 = vunpack.c.l.s8.bf16 %v5313
    %v5526 = vunpack.c.l.s8.bf16 %v5314
    %v5527 = vunpack.c.l.s8.bf16 %v5315
    %v5528 = vunpack.c.l.s8.bf16 %v5316
    %v5529 = vunpack.c.l.s8.bf16 %v5317
    %v5530 = vunpack.c.l.s8.bf16 %v5318
    %v5531 = vunpack.c.l.s8.bf16 %v5319
    %v5532 = vunpack.c.h.s8.bf16 %v5312
    %v5533 = vunpack.c.h.s8.bf16 %v5313
    %v5534 = vunpack.c.h.s8.bf16 %v5314
    %v5535 = vunpack.c.h.s8.bf16 %v5315
    %v5536 = vunpack.c.h.s8.bf16 %v5316
    %v5537 = vunpack.c.h.s8.bf16 %v5317
    %v5538 = vunpack.c.h.s8.bf16 %v5318
    %v5539 = vunpack.c.h.s8.bf16 %v5319
    %v5540 = vunpack.c.l.s8.bf16 %v5320
    %v5541 = vunpack.c.l.s8.bf16 %v5321
    %v5542 = vunpack.c.l.s8.bf16 %v5322
    %v5543 = vunpack.c.l.s8.bf16 %v5323
    %v5544 = vunpack.c.l.s8.bf16 %v5324
    %v5545 = vunpack.c.l.s8.bf16 %v5325
    %v5546 = vunpack.c.l.s8.bf16 %v5326
    %v5547 = vunpack.c.l.s8.bf16 %v5327
    %v5548 = vunpack.c.h.s8.bf16 %v5320
    %v5549 = vunpack.c.h.s8.bf16 %v5321
    %v5550 = vunpack.c.h.s8.bf16 %v5322
    %v5551 = vunpack.c.h.s8.bf16 %v5323
    %v5552 = vunpack.c.h.s8.bf16 %v5324
    %v5553 = vunpack.c.h.s8.bf16 %v5325
    %v5554 = vunpack.c.h.s8.bf16 %v5326
    %v5555 = vunpack.c.h.s8.bf16 %v5327
    %v5556 = vunpack.c.l.s8.bf16 %v5328
    %v5557 = vunpack.c.l.s8.bf16 %v5329
    %v5558 = vunpack.c.l.s8.bf16 %v5330
    %v5559 = vunpack.c.l.s8.bf16 %v5331
    %v5560 = vunpack.c.l.s8.bf16 %v5332
    %v5561 = vunpack.c.l.s8.bf16 %v5333
    %v5562 = vunpack.c.l.s8.bf16 %v5334
    %v5563 = vunpack.c.l.s8.bf16 %v5335
    %v5564 = vunpack.c.h.s8.bf16 %v5328
    %v5565 = vunpack.c.h.s8.bf16 %v5329
    %v5566 = vunpack.c.h.s8.bf16 %v5330
    %v5567 = vunpack.c.h.s8.bf16 %v5331
    %v5568 = vunpack.c.h.s8.bf16 %v5332
    %v5569 = vunpack.c.h.s8.bf16 %v5333
    %v5570 = vunpack.c.h.s8.bf16 %v5334
    %v5571 = vunpack.c.h.s8.bf16 %v5335
    %v5572 = vunpack.c.l.s8.bf16 %v5336
    %v5573 = vunpack.c.l.s8.bf16 %v5337
    %v5574 = vunpack.c.l.s8.bf16 %v5338
    %v5575 = vunpack.c.l.s8.bf16 %v5339
    %v5576 = vunpack.c.l.s8.bf16 %v5340
    %v5577 = vunpack.c.l.s8.bf16 %v5341
    %v5578 = vunpack.c.l.s8.bf16 %v5342
    %v5579 = vunpack.c.l.s8.bf16 %v5343
    %v5580 = vunpack.c.h.s8.bf16 %v5336
    %v5581 = vunpack.c.h.s8.bf16 %v5337
    %v5582 = vunpack.c.h.s8.bf16 %v5338
    %v5583 = vunpack.c.h.s8.bf16 %v5339
    %v5584 = vunpack.c.h.s8.bf16 %v5340
    %v5585 = vunpack.c.h.s8.bf16 %v5341
    %v5586 = vunpack.c.h.s8.bf16 %v5342
    %v5587 = vunpack.c.h.s8.bf16 %v5343
    %v5588 = vunpack.c.l.s8.bf16 %v5344
    %v5589 = vunpack.c.l.s8.bf16 %v5345
    %v5590 = vunpack.c.l.s8.bf16 %v5346
    %v5591 = vunpack.c.l.s8.bf16 %v5347
    %v5592 = vunpack.c.l.s8.bf16 %v5348
    %v5593 = vunpack.c.l.s8.bf16 %v5349
    %v5594 = vunpack.c.l.s8.bf16 %v5350
    %v5595 = vunpack.c.l.s8.bf16 %v5351
    %v5596 = vunpack.c.h.s8.bf16 %v5344
    %v5597 = vunpack.c.h.s8.bf16 %v5345
    %v5598 = vunpack.c.h.s8.bf16 %v5346
    %v5599 = vunpack.c.h.s8.bf16 %v5347
    %v5600 = vunpack.c.h.s8.bf16 %v5348
    %v5601 = vunpack.c.h.s8.bf16 %v5349
    %v5602 = vunpack.c.h.s8.bf16 %v5350
    %v5603 = vunpack.c.h.s8.bf16 %v5351
    %v5604 = vunpack.c.l.s8.bf16 %v5352
    %v5605 = vunpack.c.l.s8.bf16 %v5353
    %v5606 = vunpack.c.l.s8.bf16 %v5354
    %v5607 = vunpack.c.l.s8.bf16 %v5355
    %v5608 = vunpack.c.l.s8.bf16 %v5356
    %v5609 = vunpack.c.l.s8.bf16 %v5357
    %v5610 = vunpack.c.l.s8.bf16 %v5358
    %v5611 = vunpack.c.l.s8.bf16 %v5359
    %v5612 = vunpack.c.h.s8.bf16 %v5352
    %v5613 = vunpack.c.h.s8.bf16 %v5353
    %v5614 = vunpack.c.h.s8.bf16 %v5354
    %v5615 = vunpack.c.h.s8.bf16 %v5355
    %v5616 = vunpack.c.h.s8.bf16 %v5356
    %v5617 = vunpack.c.h.s8.bf16 %v5357
    %v5618 = vunpack.c.h.s8.bf16 %v5358
    %v5619 = vunpack.c.h.s8.bf16 %v5359
    %5620 = vmatprep.subr.bf16.mxu0 %v5365
    %5621 = vmatpush1.bf16.msra.mxu0 %v5364
    %5622 = vmatprep.subr.bf16.mxu0 %v5373
    %5623 = vmatpush1.bf16.msra.mxu0 %v5372
    %5624 = vmatprep.subr.bf16.mxu0 %v5381
    %5625 = vmatpush1.bf16.msra.mxu0 %v5380
    %5626 = vmatprep.subr.bf16.mxu0 %v5389
    %5627 = vmatpush1.bf16.msra.mxu0 %v5388
    %5628 = vmatprep.subr.bf16.mxu0 %v5397
    %5629 = vmatpush1.bf16.msra.mxu0 %v5396
    %5630 = vmatprep.subr.bf16.mxu0 %v5405
    %5631 = vmatpush1.bf16.msra.mxu0 %v5404
    %5632 = vmatprep.subr.bf16.mxu0 %v5413
    %5633 = vmatpush1.bf16.msra.mxu0 %v5412
    %5634 = vmatprep.subr.bf16.mxu0 %v5421
    %5635 = vmatpush1.bf16.msra.mxu0 %v5420
    %5636 = vmatprep.subr.bf16.mxu0 %v5429
    %5637 = vmatpush1.bf16.msra.mxu0 %v5428
    %5638 = vmatprep.subr.bf16.mxu0 %v5437
    %5639 = vmatpush1.bf16.msra.mxu0 %v5436
    %5640 = vmatprep.subr.bf16.mxu0 %v5445
    %5641 = vmatpush1.bf16.msra.mxu0 %v5444
    %5642 = vmatprep.subr.bf16.mxu0 %v5453
    %5643 = vmatpush1.bf16.msra.mxu0 %v5452
    %5644 = vmatprep.subr.bf16.mxu0 %v5461
    %5645 = vmatpush1.bf16.msra.mxu0 %v5460
    %5646 = vmatprep.subr.bf16.mxu0 %v5469
    %5647 = vmatpush1.bf16.msra.mxu0 %v5468
    %5648 = vmatprep.subr.bf16.mxu0 %v5477
    %5649 = vmatpush1.bf16.msra.mxu0 %v5476
    %5650 = vmatprep.subr.bf16.mxu0 %v5485
    %5651 = vmatpush1.bf16.msra.mxu0 %v5484
    %5652 = vmatprep.mubr.bf16.mxu0 %v5361
    %5653 = vmatmul.mubr.bf16.gmra.mrb[0].mxu0 %v5360
    %v5654 = vpop.f32.mrb[0].mxu0
    %v5655 = vadd.f32 0.0, %v5654
    %v5656 = vpop.f32.mrb[0].mxu0
    %v5657 = vadd.f32 0.0, %v5656
    %v5658 = vpop.f32.mrb[0].mxu0
    %v5659 = vpop.f32.mrb[0].mxu0
    %5660 = vdwg.mxu0
    %5661 = vmatprep.subr.bf16.mxu0 %v5493
    %5662 = vmatpush1.bf16.msra.mxu0 %v5492
    %5663 = vmatprep.subr.bf16.mxu0 %v5501
    %5664 = vmatpush1.bf16.msra.mxu0 %v5500
    %5665 = vmatprep.subr.bf16.mxu0 %v5509
    %5666 = vmatpush1.bf16.msra.mxu0 %v5508
    %5667 = vmatprep.subr.bf16.mxu0 %v5517
    %5668 = vmatpush1.bf16.msra.mxu0 %v5516
    %5669 = vmatprep.subr.bf16.mxu0 %v5525
    %5670 = vmatpush1.bf16.msra.mxu0 %v5524
    %5671 = vmatprep.subr.bf16.mxu0 %v5533
    %5672 = vmatpush1.bf16.msra.mxu0 %v5532
    %5673 = vmatprep.subr.bf16.mxu0 %v5541
    %5674 = vmatpush1.bf16.msra.mxu0 %v5540
    %5675 = vmatprep.subr.bf16.mxu0 %v5549
    %5676 = vmatpush1.bf16.msra.mxu0 %v5548
    %5677 = vmatprep.subr.bf16.mxu0 %v5557
    %5678 = vmatpush1.bf16.msra.mxu0 %v5556
    %5679 = vmatprep.subr.bf16.mxu0 %v5565
    %5680 = vmatpush1.bf16.msra.mxu0 %v5564
    %5681 = vmatprep.subr.bf16.mxu0 %v5573
    %5682 = vmatpush1.bf16.msra.mxu0 %v5572
    %5683 = vmatprep.subr.bf16.mxu0 %v5581
    %5684 = vmatpush1.bf16.msra.mxu0 %v5580
    %5685 = vmatprep.subr.bf16.mxu0 %v5589
    %5686 = vmatpush1.bf16.msra.mxu0 %v5588
    %5687 = vmatprep.subr.bf16.mxu0 %v5597
    %5688 = vmatpush1.bf16.msra.mxu0 %v5596
    %5689 = vmatprep.subr.bf16.mxu0 %v5605
    %5690 = vmatpush1.bf16.msra.mxu0 %v5604
    %5691 = vmatprep.subr.bf16.mxu0 %v5613
    %5692 = vmatpush1.bf16.msra.mxu0 %v5612
    %5693 = vmatprep.mubr.bf16.mxu0 %v5363
    %5694 = vmatmul.mubr.bf16.gmra.mrb[0].mxu0 %v5362
    %v5695 = vpop.f32.mrb[0].mxu0
    %v5696 = vadd.f32 %v5655, %v5695
    %v5697 = vpop.f32.mrb[0].mxu0
    %v5698 = vadd.f32 %v5657, %v5697
    %v5699 = vpop.f32.mrb[0].mxu0
    %v5700 = vpop.f32.mrb[0].mxu0
    %5701 = vdwg.mxu0
    %5702 = vmatprep.subr.bf16.mxu0 %v5367
    %5703 = vmatpush1.bf16.msra.mxu0 %v5366
    %5704 = vmatprep.subr.bf16.mxu0 %v5375
    %5705 = vmatpush1.bf16.msra.mxu0 %v5374
    %5706 = vmatprep.subr.bf16.mxu0 %v5383
    %5707 = vmatpush1.bf16.msra.mxu0 %v5382
    %5708 = vmatprep.subr.bf16.mxu0 %v5391
    %5709 = vmatpush1.bf16.msra.mxu0 %v5390
    %5710 = vmatprep.subr.bf16.mxu0 %v5399
    %5711 = vmatpush1.bf16.msra.mxu0 %v5398
    %5712 = vmatprep.subr.bf16.mxu0 %v5407
    %5713 = vmatpush1.bf16.msra.mxu0 %v5406
    %5714 = vmatprep.subr.bf16.mxu0 %v5415
    %5715 = vmatpush1.bf16.msra.mxu0 %v5414
    %5716 = vmatprep.subr.bf16.mxu0 %v5423
    %5717 = vmatpush1.bf16.msra.mxu0 %v5422
    %5718 = vmatprep.subr.bf16.mxu0 %v5431
    %5719 = vmatpush1.bf16.msra.mxu0 %v5430
    %5720 = vmatprep.subr.bf16.mxu0 %v5439
    %5721 = vmatpush1.bf16.msra.mxu0 %v5438
    %5722 = vmatprep.subr.bf16.mxu0 %v5447
    %5723 = vmatpush1.bf16.msra.mxu0 %v5446
    %5724 = vmatprep.subr.bf16.mxu0 %v5455
    %5725 = vmatpush1.bf16.msra.mxu0 %v5454
    %5726 = vmatprep.subr.bf16.mxu0 %v5463
    %5727 = vmatpush1.bf16.msra.mxu0 %v5462
    %5728 = vmatprep.subr.bf16.mxu0 %v5471
    %5729 = vmatpush1.bf16.msra.mxu0 %v5470
    %5730 = vmatprep.subr.bf16.mxu0 %v5479
    %5731 = vmatpush1.bf16.msra.mxu0 %v5478
    %5732 = vmatprep.subr.bf16.mxu0 %v5487
    %5733 = vmatpush1.bf16.msra.mxu0 %v5486
    %5734 = vmatprep.mubr.bf16.mxu0 %v5361
    %5735 = vmatmul.mubr.bf16.gmra.mrb[0].mxu0 %v5360
    %v5736 = vpop.f32.mrb[0].mxu0
    %v5737 = vadd.f32 0.0, %v5736
    %v5738 = vpop.f32.mrb[0].mxu0
    %v5739 = vadd.f32 0.0, %v5738
    %v5740 = vpop.f32.mrb[0].mxu0
    %v5741 = vpop.f32.mrb[0].mxu0
    %5742 = vdwg.mxu0
    %5743 = vmatprep.subr.bf16.mxu0 %v5495
    %5744 = vmatpush1.bf16.msra.mxu0 %v5494
    %5745 = vmatprep.subr.bf16.mxu0 %v5503
    %5746 = vmatpush1.bf16.msra.mxu0 %v5502
    %5747 = vmatprep.subr.bf16.mxu0 %v5511
    %5748 = vmatpush1.bf16.msra.mxu0 %v5510
    %5749 = vmatprep.subr.bf16.mxu0 %v5519
    %5750 = vmatpush1.bf16.msra.mxu0 %v5518
    %5751 = vmatprep.subr.bf16.mxu0 %v5527
    %5752 = vmatpush1.bf16.msra.mxu0 %v5526
    %5753 = vmatprep.subr.bf16.mxu0 %v5535
    %5754 = vmatpush1.bf16.msra.mxu0 %v5534
    %5755 = vmatprep.subr.bf16.mxu0 %v5543
    %5756 = vmatpush1.bf16.msra.mxu0 %v5542
    %5757 = vmatprep.subr.bf16.mxu0 %v5551
    %5758 = vmatpush1.bf16.msra.mxu0 %v5550
    %5759 = vmatprep.subr.bf16.mxu0 %v5559
    %5760 = vmatpush1.bf16.msra.mxu0 %v5558
    %5761 = vmatprep.subr.bf16.mxu0 %v5567
    %5762 = vmatpush1.bf16.msra.mxu0 %v5566
    %5763 = vmatprep.subr.bf16.mxu0 %v5575
    %5764 = vmatpush1.bf16.msra.mxu0 %v5574
    %5765 = vmatprep.subr.bf16.mxu0 %v5583
    %5766 = vmatpush1.bf16.msra.mxu0 %v5582
    %5767 = vmatprep.subr.bf16.mxu0 %v5591
    %5768 = vmatpush1.bf16.msra.mxu0 %v5590
    %5769 = vmatprep.subr.bf16.mxu0 %v5599
    %5770 = vmatpush1.bf16.msra.mxu0 %v5598
    %5771 = vmatprep.subr.bf16.mxu0 %v5607
    %5772 = vmatpush1.bf16.msra.mxu0 %v5606
    %5773 = vmatprep.subr.bf16.mxu0 %v5615
    %5774 = vmatpush1.bf16.msra.mxu0 %v5614
    %5775 = vmatprep.mubr.bf16.mxu0 %v5363
    %5776 = vmatmul.mubr.bf16.gmra.mrb[0].mxu0 %v5362
    %v5777 = vpop.f32.mrb[0].mxu0
    %v5778 = vadd.f32 %v5737, %v5777
    %v5779 = vpop.f32.mrb[0].mxu0
    %v5780 = vadd.f32 %v5739, %v5779
    %v5781 = vpop.f32.mrb[0].mxu0
    %v5782 = vpop.f32.mrb[0].mxu0
    %5783 = vdwg.mxu0
    %5784 = vmatprep.subr.bf16.mxu0 %v5369
    %5785 = vmatpush1.bf16.msra.mxu0 %v5368
    %5786 = vmatprep.subr.bf16.mxu0 %v5377
    %5787 = vmatpush1.bf16.msra.mxu0 %v5376
    %5788 = vmatprep.subr.bf16.mxu0 %v5385
    %5789 = vmatpush1.bf16.msra.mxu0 %v5384
    %5790 = vmatprep.subr.bf16.mxu0 %v5393
    %5791 = vmatpush1.bf16.msra.mxu0 %v5392
    %5792 = vmatprep.subr.bf16.mxu0 %v5401
    %5793 = vmatpush1.bf16.msra.mxu0 %v5400
    %5794 = vmatprep.subr.bf16.mxu0 %v5409
    %5795 = vmatpush1.bf16.msra.mxu0 %v5408
    %5796 = vmatprep.subr.bf16.mxu0 %v5417
    %5797 = vmatpush1.bf16.msra.mxu0 %v5416
    %5798 = vmatprep.subr.bf16.mxu0 %v5425
    %5799 = vmatpush1.bf16.msra.mxu0 %v5424
    %5800 = vmatprep.subr.bf16.mxu0 %v5433
    %5801 = vmatpush1.bf16.msra.mxu0 %v5432
    %5802 = vmatprep.subr.bf16.mxu0 %v5441
    %5803 = vmatpush1.bf16.msra.mxu0 %v5440
    %5804 = vmatprep.subr.bf16.mxu0 %v5449
    %5805 = vmatpush1.bf16.msra.mxu0 %v5448
    %5806 = vmatprep.subr.bf16.mxu0 %v5457
    %5807 = vmatpush1.bf16.msra.mxu0 %v5456
    %5808 = vmatprep.subr.bf16.mxu0 %v5465
    %5809 = vmatpush1.bf16.msra.mxu0 %v5464
    %5810 = vmatprep.subr.bf16.mxu0 %v5473
    %5811 = vmatpush1.bf16.msra.mxu0 %v5472
    %5812 = vmatprep.subr.bf16.mxu0 %v5481
    %5813 = vmatpush1.bf16.msra.mxu0 %v5480
    %5814 = vmatprep.subr.bf16.mxu0 %v5489
    %5815 = vmatpush1.bf16.msra.mxu0 %v5488
    %5816 = vmatprep.mubr.bf16.mxu0 %v5361
    %5817 = vmatmul.mubr.bf16.gmra.mrb[0].mxu0 %v5360
    %v5818 = vpop.f32.mrb[0].mxu0
    %v5819 = vadd.f32 0.0, %v5818
    %v5820 = vpop.f32.mrb[0].mxu0
    %v5821 = vadd.f32 0.0, %v5820
    %v5822 = vpop.f32.mrb[0].mxu0
    %v5823 = vpop.f32.mrb[0].mxu0
    %5824 = vdwg.mxu0
    %5825 = vmatprep.subr.bf16.mxu0 %v5497
    %5826 = vmatpush1.bf16.msra.mxu0 %v5496
    %5827 = vmatprep.subr.bf16.mxu0 %v5505
    %5828 = vmatpush1.bf16.msra.mxu0 %v5504
    %5829 = vmatprep.subr.bf16.mxu0 %v5513
    %5830 = vmatpush1.bf16.msra.mxu0 %v5512
    %5831 = vmatprep.subr.bf16.mxu0 %v5521
    %5832 = vmatpush1.bf16.msra.mxu0 %v5520
    %5833 = vmatprep.subr.bf16.mxu0 %v5529
    %5834 = vmatpush1.bf16.msra.mxu0 %v5528
    %5835 = vmatprep.subr.bf16.mxu0 %v5537
    %5836 = vmatpush1.bf16.msra.mxu0 %v5536
    %5837 = vmatprep.subr.bf16.mxu0 %v5545
    %5838 = vmatpush1.bf16.msra.mxu0 %v5544
    %5839 = vmatprep.subr.bf16.mxu0 %v5553
    %5840 = vmatpush1.bf16.msra.mxu0 %v5552
    %5841 = vmatprep.subr.bf16.mxu0 %v5561
    %5842 = vmatpush1.bf16.msra.mxu0 %v5560
    %5843 = vmatprep.subr.bf16.mxu0 %v5569
    %5844 = vmatpush1.bf16.msra.mxu0 %v5568
    %5845 = vmatprep.subr.bf16.mxu0 %v5577
    %5846 = vmatpush1.bf16.msra.mxu0 %v5576
    %5847 = vmatprep.subr.bf16.mxu0 %v5585
    %5848 = vmatpush1.bf16.msra.mxu0 %v5584
    %5849 = vmatprep.subr.bf16.mxu0 %v5593
    %5850 = vmatpush1.bf16.msra.mxu0 %v5592
    %5851 = vmatprep.subr.bf16.mxu0 %v5601
    %5852 = vmatpush1.bf16.msra.mxu0 %v5600
    %5853 = vmatprep.subr.bf16.mxu0 %v5609
    %5854 = vmatpush1.bf16.msra.mxu0 %v5608
    %5855 = vmatprep.subr.bf16.mxu0 %v5617
    %5856 = vmatpush1.bf16.msra.mxu0 %v5616
    %5857 = vmatprep.mubr.bf16.mxu0 %v5363
    %5858 = vmatmul.mubr.bf16.gmra.mrb[0].mxu0 %v5362
    %v5859 = vpop.f32.mrb[0].mxu0
    %v5860 = vadd.f32 %v5819, %v5859
    %v5861 = vpop.f32.mrb[0].mxu0
    %v5862 = vadd.f32 %v5821, %v5861
    %v5863 = vpop.f32.mrb[0].mxu0
    %v5864 = vpop.f32.mrb[0].mxu0
    %5865 = vdwg.mxu0
    %5866 = vmatprep.subr.bf16.mxu0 %v5371
    %5867 = vmatpush1.bf16.msra.mxu0 %v5370
    %5868 = vmatprep.subr.bf16.mxu0 %v5379
    %5869 = vmatpush1.bf16.msra.mxu0 %v5378
    %5870 = vmatprep.subr.bf16.mxu0 %v5387
    %5871 = vmatpush1.bf16.msra.mxu0 %v5386
    %5872 = vmatprep.subr.bf16.mxu0 %v5395
    %5873 = vmatpush1.bf16.msra.mxu0 %v5394
    %5874 = vmatprep.subr.bf16.mxu0 %v5403
    %5875 = vmatpush1.bf16.msra.mxu0 %v5402
    %5876 = vmatprep.subr.bf16.mxu0 %v5411
    %5877 = vmatpush1.bf16.msra.mxu0 %v5410
    %5878 = vmatprep.subr.bf16.mxu0 %v5419
    %5879 = vmatpush1.bf16.msra.mxu0 %v5418
    %5880 = vmatprep.subr.bf16.mxu0 %v5427
    %5881 = vmatpush1.bf16.msra.mxu0 %v5426
    %5882 = vmatprep.subr.bf16.mxu0 %v5435
    %5883 = vmatpush1.bf16.msra.mxu0 %v5434
    %5884 = vmatprep.subr.bf16.mxu0 %v5443
    %5885 = vmatpush1.bf16.msra.mxu0 %v5442
    %5886 = vmatprep.subr.bf16.mxu0 %v5451
    %5887 = vmatpush1.bf16.msra.mxu0 %v5450
    %5888 = vmatprep.subr.bf16.mxu0 %v5459
    %5889 = vmatpush1.bf16.msra.mxu0 %v5458
    %5890 = vmatprep.subr.bf16.mxu0 %v5467
    %5891 = vmatpush1.bf16.msra.mxu0 %v5466
    %5892 = vmatprep.subr.bf16.mxu0 %v5475
    %5893 = vmatpush1.bf16.msra.mxu0 %v5474
    %5894 = vmatprep.subr.bf16.mxu0 %v5483
    %5895 = vmatpush1.bf16.msra.mxu0 %v5482
    %5896 = vmatprep.subr.bf16.mxu0 %v5491
    %5897 = vmatpush1.bf16.msra.mxu0 %v5490
    %5898 = vmatprep.mubr.bf16.mxu0 %v5361
    %5899 = vmatmul.mubr.bf16.gmra.mrb[0].mxu0 %v5360
    %v5900 = vpop.f32.mrb[0].mxu0
    %v5901 = vadd.f32 0.0, %v5900
    %v5902 = vpop.f32.mrb[0].mxu0
    %v5903 = vadd.f32 0.0, %v5902
    %v5904 = vpop.f32.mrb[0].mxu0
    %v5905 = vpop.f32.mrb[0].mxu0
    %5906 = vdwg.mxu0
    %5907 = vmatprep.subr.bf16.mxu0 %v5499
    %5908 = vmatpush1.bf16.msra.mxu0 %v5498
    %5909 = vmatprep.subr.bf16.mxu0 %v5507
    %5910 = vmatpush1.bf16.msra.mxu0 %v5506
    %5911 = vmatprep.subr.bf16.mxu0 %v5515
    %5912 = vmatpush1.bf16.msra.mxu0 %v5514
    %5913 = vmatprep.subr.bf16.mxu0 %v5523
    %5914 = vmatpush1.bf16.msra.mxu0 %v5522
    %5915 = vmatprep.subr.bf16.mxu0 %v5531
    %5916 = vmatpush1.bf16.msra.mxu0 %v5530
    %5917 = vmatprep.subr.bf16.mxu0 %v5539
    %5918 = vmatpush1.bf16.msra.mxu0 %v5538
    %5919 = vmatprep.subr.bf16.mxu0 %v5547
    %5920 = vmatpush1.bf16.msra.mxu0 %v5546
    %5921 = vmatprep.subr.bf16.mxu0 %v5555
    %5922 = vmatpush1.bf16.msra.mxu0 %v5554
    %5923 = vmatprep.subr.bf16.mxu0 %v5563
    %5924 = vmatpush1.bf16.msra.mxu0 %v5562
    %5925 = vmatprep.subr.bf16.mxu0 %v5571
    %5926 = vmatpush1.bf16.msra.mxu0 %v5570
    %5927 = vmatprep.subr.bf16.mxu0 %v5579
    %5928 = vmatpush1.bf16.msra.mxu0 %v5578
    %5929 = vmatprep.subr.bf16.mxu0 %v5587
    %5930 = vmatpush1.bf16.msra.mxu0 %v5586
    %5931 = vmatprep.subr.bf16.mxu0 %v5595
    %5932 = vmatpush1.bf16.msra.mxu0 %v5594
    %5933 = vmatprep.subr.bf16.mxu0 %v5603
    %5934 = vmatpush1.bf16.msra.mxu0 %v5602
    %5935 = vmatprep.subr.bf16.mxu0 %v5611
    %5936 = vmatpush1.bf16.msra.mxu0 %v5610
    %5937 = vmatprep.subr.bf16.mxu0 %v5619
    %5938 = vmatpush1.bf16.msra.mxu0 %v5618
    %5939 = vmatprep.mubr.bf16.mxu0 %v5363
    %5940 = vmatmul.mubr.bf16.gmra.mrb[0].mxu0 %v5362
    %v5941 = vpop.f32.mrb[0].mxu0
    %v5942 = vadd.f32 %v5901, %v5941
    %v5943 = vpop.f32.mrb[0].mxu0
    %v5944 = vadd.f32 %v5903, %v5943
    %v5945 = vpop.f32.mrb[0].mxu0
    %v5946 = vpop.f32.mrb[0].mxu0
    %5947 = vdwg.mxu0
    %s5948 = scalar_lea.vmem [#allocation13], 66
    %v5949 = vld [vmem:[%s5948] ss:$2 sm:$0xff]
    %v5951 = vlaneseq
    %v5952 = vshrl.u32 %v5951, 7
    %v5953 = vsub.s32 0, %v5952
    %v5954 = vrot.slane %v5949, %v5953
    %v5955 = vlaneseq
    %v5956 = vshrl.u32 %v5955, 7
    %v5957 = vsub.s32 1, %v5956
    %v5958 = vrot.slane %v5949, %v5957
    %v5959 = vlaneseq
    %v5960 = vshrl.u32 %v5959, 7
    %v5961 = vsub.s32 2, %v5960
    %v5962 = vrot.slane %v5949, %v5961
    %v5963 = vlaneseq
    %v5964 = vshrl.u32 %v5963, 7
    %v5965 = vsub.s32 3, %v5964
    %v5966 = vrot.slane %v5949, %v5965
    %v5967 = vlaneseq
    %v5968 = vshrl.u32 %v5967, 7
    %v5969 = vsub.s32 4, %v5968
    %v5970 = vrot.slane %v5949, %v5969
    %v5971 = vlaneseq
    %v5972 = vshrl.u32 %v5971, 7
    %v5973 = vsub.s32 5, %v5972
    %v5974 = vrot.slane %v5949, %v5973
    %v5975 = vlaneseq
    %v5976 = vshrl.u32 %v5975, 7
    %v5977 = vsub.s32 6, %v5976
    %v5978 = vrot.slane %v5949, %v5977
    %v5979 = vlaneseq
    %v5980 = vshrl.u32 %v5979, 7
    %v5981 = vsub.s32 7, %v5980
    %v5982 = vrot.slane %v5949, %v5981
    %v5991 = vmul.f32 %v5696, %v5954
    %v5992 = vmul.f32 %v5698, %v5958
    %v5993 = vmul.f32 %v5778, %v5962
    %v5994 = vmul.f32 %v5780, %v5966
    %v5995 = vmul.f32 %v5860, %v5970
    %v5996 = vmul.f32 %v5862, %v5974
    %v5997 = vmul.f32 %v5942, %v5978
    %v5998 = vmul.f32 %v5944, %v5982
    %s5999 = scalar_lea.vmem [#allocation13], 67
    %v6000 = vld [vmem:[%s5999] ss:$2 sm:$0xff]
    %v6002 = vlaneseq
    %v6003 = vshrl.u32 %v6002, 7
    %v6004 = vsub.s32 0, %v6003
    %v6005 = vrot.slane %v6000, %v6004
    %v6006 = vlaneseq
    %v6007 = vshrl.u32 %v6006, 7
    %v6008 = vsub.s32 1, %v6007
    %v6009 = vrot.slane %v6000, %v6008
    %v6010 = vlaneseq
    %v6011 = vshrl.u32 %v6010, 7
    %v6012 = vsub.s32 2, %v6011
    %v6013 = vrot.slane %v6000, %v6012
    %v6014 = vlaneseq
    %v6015 = vshrl.u32 %v6014, 7
    %v6016 = vsub.s32 3, %v6015
    %v6017 = vrot.slane %v6000, %v6016
    %v6018 = vlaneseq
    %v6019 = vshrl.u32 %v6018, 7
    %v6020 = vsub.s32 4, %v6019
    %v6021 = vrot.slane %v6000, %v6020
    %v6022 = vlaneseq
    %v6023 = vshrl.u32 %v6022, 7
    %v6024 = vsub.s32 5, %v6023
    %v6025 = vrot.slane %v6000, %v6024
    %v6026 = vlaneseq
    %v6027 = vshrl.u32 %v6026, 7
    %v6028 = vsub.s32 6, %v6027
    %v6029 = vrot.slane %v6000, %v6028
    %v6030 = vlaneseq
    %v6031 = vshrl.u32 %v6030, 7
    %v6032 = vsub.s32 7, %v6031
    %v6033 = vrot.slane %v6000, %v6032
    %v6042 = vadd.f32 %v5991, %v6005
    %v6043 = vadd.f32 %v5992, %v6009
    %v6044 = vadd.f32 %v5993, %v6013
    %v6045 = vadd.f32 %v5994, %v6017
    %v6046 = vadd.f32 %v5995, %v6021
    %v6047 = vadd.f32 %v5996, %v6025
    %v6048 = vadd.f32 %v5997, %v6029
    %v6049 = vadd.f32 %v5998, %v6033
    %v6050 = vmax.f32 %v6042, 0.0
    %v6051 = vmax.f32 %v6043, 0.0
    %v6052 = vmax.f32 %v6044, 0.0
    %v6053 = vmax.f32 %v6045, 0.0
    %v6054 = vmax.f32 %v6046, 0.0
    %v6055 = vmax.f32 %v6047, 0.0
    %v6056 = vmax.f32 %v6048, 0.0
    %v6057 = vmax.f32 %v6049, 0.0
    %s6058 = smul.u32 %s4091, 16
    %s6059 = sshll.u32 %s6058, 4
    %6060 = dma.done %s144, %s6059
    %v6061 = vld [vmem:[#allocation5] sm:$0xff]
    %v6062 = vld [vmem:[#allocation5 + $0x8] sm:$0xff]
    %v6063 = vld [vmem:[#allocation5 + $0x10] sm:$0xff]
    %v6064 = vld [vmem:[#allocation5 + $0x18] sm:$0xff]
    %v6065 = vld [vmem:[#allocation5 + $0x20] sm:$0xff]
    %v6066 = vld [vmem:[#allocation5 + $0x28] sm:$0xff]
    %v6067 = vld [vmem:[#allocation5 + $0x30] sm:$0xff]
    %v6068 = vld [vmem:[#allocation5 + $0x38] sm:$0xff]
    %v6069 = vld [vmem:[#allocation5 + $0x40] sm:$0xff]
    %v6070 = vld [vmem:[#allocation5 + $0x48] sm:$0xff]
    %v6071 = vld [vmem:[#allocation5 + $0x50] sm:$0xff]
    %v6072 = vld [vmem:[#allocation5 + $0x58] sm:$0xff]
    %v6073 = vld [vmem:[#allocation5 + $0x60] sm:$0xff]
    %v6074 = vld [vmem:[#allocation5 + $0x68] sm:$0xff]
    %v6075 = vld [vmem:[#allocation5 + $0x70] sm:$0xff]
    %v6076 = vld [vmem:[#allocation5 + $0x78] sm:$0xff]
    %v6077 = vld [vmem:[#allocation5 + $0x80] sm:$0xff]
    %v6078 = vld [vmem:[#allocation5 + $0x88] sm:$0xff]
    %v6079 = vld [vmem:[#allocation5 + $0x90] sm:$0xff]
    %v6080 = vld [vmem:[#allocation5 + $0x98] sm:$0xff]
    %v6081 = vld [vmem:[#allocation5 + $0xa0] sm:$0xff]
    %v6082 = vld [vmem:[#allocation5 + $0xa8] sm:$0xff]
    %v6083 = vld [vmem:[#allocation5 + $0xb0] sm:$0xff]
    %v6084 = vld [vmem:[#allocation5 + $0xb8] sm:$0xff]
    %v6085 = vld [vmem:[#allocation5 + $0xc0] sm:$0xff]
    %v6086 = vld [vmem:[#allocation5 + $0xc8] sm:$0xff]
    %v6087 = vld [vmem:[#allocation5 + $0xd0] sm:$0xff]
    %v6088 = vld [vmem:[#allocation5 + $0xd8] sm:$0xff]
    %v6089 = vld [vmem:[#allocation5 + $0xe0] sm:$0xff]
    %v6090 = vld [vmem:[#allocation5 + $0xe8] sm:$0xff]
    %v6091 = vld [vmem:[#allocation5 + $0xf0] sm:$0xff]
    %v6092 = vld [vmem:[#allocation5 + $0xf8] sm:$0xff]
    %v6093 = vld [vmem:[#allocation5 + $0x100] sm:$0xff]
    %v6094 = vld [vmem:[#allocation5 + $0x108] sm:$0xff]
    %v6095 = vld [vmem:[#allocation5 + $0x110] sm:$0xff]
    %v6096 = vld [vmem:[#allocation5 + $0x118] sm:$0xff]
    %v6097 = vld [vmem:[#allocation5 + $0x120] sm:$0xff]
    %v6098 = vld [vmem:[#allocation5 + $0x128] sm:$0xff]
    %v6099 = vld [vmem:[#allocation5 + $0x130] sm:$0xff]
    %v6100 = vld [vmem:[#allocation5 + $0x138] sm:$0xff]
    %v6101 = vld [vmem:[#allocation5 + $0x140] sm:$0xff]
    %v6102 = vld [vmem:[#allocation5 + $0x148] sm:$0xff]
    %v6103 = vld [vmem:[#allocation5 + $0x150] sm:$0xff]
    %v6104 = vld [vmem:[#allocation5 + $0x158] sm:$0xff]
    %v6105 = vld [vmem:[#allocation5 + $0x160] sm:$0xff]
    %v6106 = vld [vmem:[#allocation5 + $0x168] sm:$0xff]
    %v6107 = vld [vmem:[#allocation5 + $0x170] sm:$0xff]
    %v6108 = vld [vmem:[#allocation5 + $0x178] sm:$0xff]
    %v6109 = vld [vmem:[#allocation5 + $0x180] sm:$0xff]
    %v6110 = vld [vmem:[#allocation5 + $0x188] sm:$0xff]
    %v6111 = vld [vmem:[#allocation5 + $0x190] sm:$0xff]
    %v6112 = vld [vmem:[#allocation5 + $0x198] sm:$0xff]
    %v6113 = vld [vmem:[#allocation5 + $0x1a0] sm:$0xff]
    %v6114 = vld [vmem:[#allocation5 + $0x1a8] sm:$0xff]
    %v6115 = vld [vmem:[#allocation5 + $0x1b0] sm:$0xff]
    %v6116 = vld [vmem:[#allocation5 + $0x1b8] sm:$0xff]
    %v6117 = vld [vmem:[#allocation5 + $0x1c0] sm:$0xff]
    %v6118 = vld [vmem:[#allocation5 + $0x1c8] sm:$0xff]
    %v6119 = vld [vmem:[#allocation5 + $0x1d0] sm:$0xff]
    %v6120 = vld [vmem:[#allocation5 + $0x1d8] sm:$0xff]
    %v6121 = vld [vmem:[#allocation5 + $0x1e0] sm:$0xff]
    %v6122 = vld [vmem:[#allocation5 + $0x1e8] sm:$0xff]
    %v6123 = vld [vmem:[#allocation5 + $0x1f0] sm:$0xff]
    %v6124 = vld [vmem:[#allocation5 + $0x1f8] sm:$0xff]
    %v6125 = vld [vmem:[#allocation5 + $0x200] sm:$0xff]
    %v6126 = vld [vmem:[#allocation5 + $0x208] sm:$0xff]
    %v6127 = vld [vmem:[#allocation5 + $0x210] sm:$0xff]
    %v6128 = vld [vmem:[#allocation5 + $0x218] sm:$0xff]
    %v6129 = vld [vmem:[#allocation5 + $0x220] sm:$0xff]
    %v6130 = vld [vmem:[#allocation5 + $0x228] sm:$0xff]
    %v6131 = vld [vmem:[#allocation5 + $0x230] sm:$0xff]
    %v6132 = vld [vmem:[#allocation5 + $0x238] sm:$0xff]
    %v6133 = vld [vmem:[#allocation5 + $0x240] sm:$0xff]
    %v6134 = vld [vmem:[#allocation5 + $0x248] sm:$0xff]
    %v6135 = vld [vmem:[#allocation5 + $0x250] sm:$0xff]
    %v6136 = vld [vmem:[#allocation5 + $0x258] sm:$0xff]
    %v6137 = vld [vmem:[#allocation5 + $0x260] sm:$0xff]
    %v6138 = vld [vmem:[#allocation5 + $0x268] sm:$0xff]
    %v6139 = vld [vmem:[#allocation5 + $0x270] sm:$0xff]
    %v6140 = vld [vmem:[#allocation5 + $0x278] sm:$0xff]
    %v6141 = vld [vmem:[#allocation5 + $0x280] sm:$0xff]
    %v6142 = vld [vmem:[#allocation5 + $0x288] sm:$0xff]
    %v6143 = vld [vmem:[#allocation5 + $0x290] sm:$0xff]
    %v6144 = vld [vmem:[#allocation5 + $0x298] sm:$0xff]
    %v6145 = vld [vmem:[#allocation5 + $0x2a0] sm:$0xff]
    %v6146 = vld [vmem:[#allocation5 + $0x2a8] sm:$0xff]
    %v6147 = vld [vmem:[#allocation5 + $0x2b0] sm:$0xff]
    %v6148 = vld [vmem:[#allocation5 + $0x2b8] sm:$0xff]
    %v6149 = vld [vmem:[#allocation5 + $0x2c0] sm:$0xff]
    %v6150 = vld [vmem:[#allocation5 + $0x2c8] sm:$0xff]
    %v6151 = vld [vmem:[#allocation5 + $0x2d0] sm:$0xff]
    %v6152 = vld [vmem:[#allocation5 + $0x2d8] sm:$0xff]
    %v6153 = vld [vmem:[#allocation5 + $0x2e0] sm:$0xff]
    %v6154 = vld [vmem:[#allocation5 + $0x2e8] sm:$0xff]
    %v6155 = vld [vmem:[#allocation5 + $0x2f0] sm:$0xff]
    %v6156 = vld [vmem:[#allocation5 + $0x2f8] sm:$0xff]
    %v6157 = vld [vmem:[#allocation5 + $0x300] sm:$0xff]
    %v6158 = vld [vmem:[#allocation5 + $0x308] sm:$0xff]
    %v6159 = vld [vmem:[#allocation5 + $0x310] sm:$0xff]
    %v6160 = vld [vmem:[#allocation5 + $0x318] sm:$0xff]
    %v6161 = vld [vmem:[#allocation5 + $0x320] sm:$0xff]
    %v6162 = vld [vmem:[#allocation5 + $0x328] sm:$0xff]
    %v6163 = vld [vmem:[#allocation5 + $0x330] sm:$0xff]
    %v6164 = vld [vmem:[#allocation5 + $0x338] sm:$0xff]
    %v6165 = vld [vmem:[#allocation5 + $0x340] sm:$0xff]
    %v6166 = vld [vmem:[#allocation5 + $0x348] sm:$0xff]
    %v6167 = vld [vmem:[#allocation5 + $0x350] sm:$0xff]
    %v6168 = vld [vmem:[#allocation5 + $0x358] sm:$0xff]
    %v6169 = vld [vmem:[#allocation5 + $0x360] sm:$0xff]
    %v6170 = vld [vmem:[#allocation5 + $0x368] sm:$0xff]
    %v6171 = vld [vmem:[#allocation5 + $0x370] sm:$0xff]
    %v6172 = vld [vmem:[#allocation5 + $0x378] sm:$0xff]
    %v6173 = vld [vmem:[#allocation5 + $0x380] sm:$0xff]
    %v6174 = vld [vmem:[#allocation5 + $0x388] sm:$0xff]
    %v6175 = vld [vmem:[#allocation5 + $0x390] sm:$0xff]
    %v6176 = vld [vmem:[#allocation5 + $0x398] sm:$0xff]
    %v6177 = vld [vmem:[#allocation5 + $0x3a0] sm:$0xff]
    %v6178 = vld [vmem:[#allocation5 + $0x3a8] sm:$0xff]
    %v6179 = vld [vmem:[#allocation5 + $0x3b0] sm:$0xff]
    %v6180 = vld [vmem:[#allocation5 + $0x3b8] sm:$0xff]
    %v6181 = vld [vmem:[#allocation5 + $0x3c0] sm:$0xff]
    %v6182 = vld [vmem:[#allocation5 + $0x3c8] sm:$0xff]
    %v6183 = vld [vmem:[#allocation5 + $0x3d0] sm:$0xff]
    %v6184 = vld [vmem:[#allocation5 + $0x3d8] sm:$0xff]
    %v6185 = vld [vmem:[#allocation5 + $0x3e0] sm:$0xff]
    %v6186 = vld [vmem:[#allocation5 + $0x3e8] sm:$0xff]
    %v6187 = vld [vmem:[#allocation5 + $0x3f0] sm:$0xff]
    %v6188 = vld [vmem:[#allocation5 + $0x3f8] sm:$0xff]
    %v6189 = vld [vmem:[#allocation5 + $0x400] sm:$0xff]
    %v6190 = vld [vmem:[#allocation5 + $0x408] sm:$0xff]
    %v6191 = vld [vmem:[#allocation5 + $0x410] sm:$0xff]
    %v6192 = vld [vmem:[#allocation5 + $0x418] sm:$0xff]
    %v6193 = vld [vmem:[#allocation5 + $0x420] sm:$0xff]
    %v6194 = vld [vmem:[#allocation5 + $0x428] sm:$0xff]
    %v6195 = vld [vmem:[#allocation5 + $0x430] sm:$0xff]
    %v6196 = vld [vmem:[#allocation5 + $0x438] sm:$0xff]
    %v6197 = vld [vmem:[#allocation5 + $0x440] sm:$0xff]
    %v6198 = vld [vmem:[#allocation5 + $0x448] sm:$0xff]
    %v6199 = vld [vmem:[#allocation5 + $0x450] sm:$0xff]
    %v6200 = vld [vmem:[#allocation5 + $0x458] sm:$0xff]
    %v6201 = vld [vmem:[#allocation5 + $0x460] sm:$0xff]
    %v6202 = vld [vmem:[#allocation5 + $0x468] sm:$0xff]
    %v6203 = vld [vmem:[#allocation5 + $0x470] sm:$0xff]
    %v6204 = vld [vmem:[#allocation5 + $0x478] sm:$0xff]
    %v6205 = vld [vmem:[#allocation5 + $0x480] sm:$0xff]
    %v6206 = vld [vmem:[#allocation5 + $0x488] sm:$0xff]
    %v6207 = vld [vmem:[#allocation5 + $0x490] sm:$0xff]
    %v6208 = vld [vmem:[#allocation5 + $0x498] sm:$0xff]
    %v6209 = vld [vmem:[#allocation5 + $0x4a0] sm:$0xff]
    %v6210 = vld [vmem:[#allocation5 + $0x4a8] sm:$0xff]
    %v6211 = vld [vmem:[#allocation5 + $0x4b0] sm:$0xff]
    %v6212 = vld [vmem:[#allocation5 + $0x4b8] sm:$0xff]
    %v6213 = vld [vmem:[#allocation5 + $0x4c0] sm:$0xff]
    %v6214 = vld [vmem:[#allocation5 + $0x4c8] sm:$0xff]
    %v6215 = vld [vmem:[#allocation5 + $0x4d0] sm:$0xff]
    %v6216 = vld [vmem:[#allocation5 + $0x4d8] sm:$0xff]
    %v6217 = vld [vmem:[#allocation5 + $0x4e0] sm:$0xff]
    %v6218 = vld [vmem:[#allocation5 + $0x4e8] sm:$0xff]
    %v6219 = vld [vmem:[#allocation5 + $0x4f0] sm:$0xff]
    %v6220 = vld [vmem:[#allocation5 + $0x4f8] sm:$0xff]
    %v6221 = vld [vmem:[#allocation5 + $0x500] sm:$0xff]
    %v6222 = vld [vmem:[#allocation5 + $0x508] sm:$0xff]
    %v6223 = vld [vmem:[#allocation5 + $0x510] sm:$0xff]
    %v6224 = vld [vmem:[#allocation5 + $0x518] sm:$0xff]
    %v6225 = vld [vmem:[#allocation5 + $0x520] sm:$0xff]
    %v6226 = vld [vmem:[#allocation5 + $0x528] sm:$0xff]
    %v6227 = vld [vmem:[#allocation5 + $0x530] sm:$0xff]
    %v6228 = vld [vmem:[#allocation5 + $0x538] sm:$0xff]
    %v6229 = vld [vmem:[#allocation5 + $0x540] sm:$0xff]
    %v6230 = vld [vmem:[#allocation5 + $0x548] sm:$0xff]
    %v6231 = vld [vmem:[#allocation5 + $0x550] sm:$0xff]
    %v6232 = vld [vmem:[#allocation5 + $0x558] sm:$0xff]
    %v6233 = vld [vmem:[#allocation5 + $0x560] sm:$0xff]
    %v6234 = vld [vmem:[#allocation5 + $0x568] sm:$0xff]
    %v6235 = vld [vmem:[#allocation5 + $0x570] sm:$0xff]
    %v6236 = vld [vmem:[#allocation5 + $0x578] sm:$0xff]
    %v6237 = vld [vmem:[#allocation5 + $0x580] sm:$0xff]
    %v6238 = vld [vmem:[#allocation5 + $0x588] sm:$0xff]
    %v6239 = vld [vmem:[#allocation5 + $0x590] sm:$0xff]
    %v6240 = vld [vmem:[#allocation5 + $0x598] sm:$0xff]
    %v6241 = vld [vmem:[#allocation5 + $0x5a0] sm:$0xff]
    %v6242 = vld [vmem:[#allocation5 + $0x5a8] sm:$0xff]
    %v6243 = vld [vmem:[#allocation5 + $0x5b0] sm:$0xff]
    %v6244 = vld [vmem:[#allocation5 + $0x5b8] sm:$0xff]
    %v6245 = vld [vmem:[#allocation5 + $0x5c0] sm:$0xff]
    %v6246 = vld [vmem:[#allocation5 + $0x5c8] sm:$0xff]
    %v6247 = vld [vmem:[#allocation5 + $0x5d0] sm:$0xff]
    %v6248 = vld [vmem:[#allocation5 + $0x5d8] sm:$0xff]
    %v6249 = vld [vmem:[#allocation5 + $0x5e0] sm:$0xff]
    %v6250 = vld [vmem:[#allocation5 + $0x5e8] sm:$0xff]
    %v6251 = vld [vmem:[#allocation5 + $0x5f0] sm:$0xff]
    %v6252 = vld [vmem:[#allocation5 + $0x5f8] sm:$0xff]
    %v6253 = vld [vmem:[#allocation5 + $0x600] sm:$0xff]
    %v6254 = vld [vmem:[#allocation5 + $0x608] sm:$0xff]
    %v6255 = vld [vmem:[#allocation5 + $0x610] sm:$0xff]
    %v6256 = vld [vmem:[#allocation5 + $0x618] sm:$0xff]
    %v6257 = vld [vmem:[#allocation5 + $0x620] sm:$0xff]
    %v6258 = vld [vmem:[#allocation5 + $0x628] sm:$0xff]
    %v6259 = vld [vmem:[#allocation5 + $0x630] sm:$0xff]
    %v6260 = vld [vmem:[#allocation5 + $0x638] sm:$0xff]
    %v6261 = vld [vmem:[#allocation5 + $0x640] sm:$0xff]
    %v6262 = vld [vmem:[#allocation5 + $0x648] sm:$0xff]
    %v6263 = vld [vmem:[#allocation5 + $0x650] sm:$0xff]
    %v6264 = vld [vmem:[#allocation5 + $0x658] sm:$0xff]
    %v6265 = vld [vmem:[#allocation5 + $0x660] sm:$0xff]
    %v6266 = vld [vmem:[#allocation5 + $0x668] sm:$0xff]
    %v6267 = vld [vmem:[#allocation5 + $0x670] sm:$0xff]
    %v6268 = vld [vmem:[#allocation5 + $0x678] sm:$0xff]
    %v6269 = vld [vmem:[#allocation5 + $0x680] sm:$0xff]
    %v6270 = vld [vmem:[#allocation5 + $0x688] sm:$0xff]
    %v6271 = vld [vmem:[#allocation5 + $0x690] sm:$0xff]
    %v6272 = vld [vmem:[#allocation5 + $0x698] sm:$0xff]
    %v6273 = vld [vmem:[#allocation5 + $0x6a0] sm:$0xff]
    %v6274 = vld [vmem:[#allocation5 + $0x6a8] sm:$0xff]
    %v6275 = vld [vmem:[#allocation5 + $0x6b0] sm:$0xff]
    %v6276 = vld [vmem:[#allocation5 + $0x6b8] sm:$0xff]
    %v6277 = vld [vmem:[#allocation5 + $0x6c0] sm:$0xff]
    %v6278 = vld [vmem:[#allocation5 + $0x6c8] sm:$0xff]
    %v6279 = vld [vmem:[#allocation5 + $0x6d0] sm:$0xff]
    %v6280 = vld [vmem:[#allocation5 + $0x6d8] sm:$0xff]
    %v6281 = vld [vmem:[#allocation5 + $0x6e0] sm:$0xff]
    %v6282 = vld [vmem:[#allocation5 + $0x6e8] sm:$0xff]
    %v6283 = vld [vmem:[#allocation5 + $0x6f0] sm:$0xff]
    %v6284 = vld [vmem:[#allocation5 + $0x6f8] sm:$0xff]
    %v6285 = vld [vmem:[#allocation5 + $0x700] sm:$0xff]
    %v6286 = vld [vmem:[#allocation5 + $0x708] sm:$0xff]
    %v6287 = vld [vmem:[#allocation5 + $0x710] sm:$0xff]
    %v6288 = vld [vmem:[#allocation5 + $0x718] sm:$0xff]
    %v6289 = vld [vmem:[#allocation5 + $0x720] sm:$0xff]
    %v6290 = vld [vmem:[#allocation5 + $0x728] sm:$0xff]
    %v6291 = vld [vmem:[#allocation5 + $0x730] sm:$0xff]
    %v6292 = vld [vmem:[#allocation5 + $0x738] sm:$0xff]
    %v6293 = vld [vmem:[#allocation5 + $0x740] sm:$0xff]
    %v6294 = vld [vmem:[#allocation5 + $0x748] sm:$0xff]
    %v6295 = vld [vmem:[#allocation5 + $0x750] sm:$0xff]
    %v6296 = vld [vmem:[#allocation5 + $0x758] sm:$0xff]
    %v6297 = vld [vmem:[#allocation5 + $0x760] sm:$0xff]
    %v6298 = vld [vmem:[#allocation5 + $0x768] sm:$0xff]
    %v6299 = vld [vmem:[#allocation5 + $0x770] sm:$0xff]
    %v6300 = vld [vmem:[#allocation5 + $0x778] sm:$0xff]
    %v6301 = vld [vmem:[#allocation5 + $0x780] sm:$0xff]
    %v6302 = vld [vmem:[#allocation5 + $0x788] sm:$0xff]
    %v6303 = vld [vmem:[#allocation5 + $0x790] sm:$0xff]
    %v6304 = vld [vmem:[#allocation5 + $0x798] sm:$0xff]
    %v6305 = vld [vmem:[#allocation5 + $0x7a0] sm:$0xff]
    %v6306 = vld [vmem:[#allocation5 + $0x7a8] sm:$0xff]
    %v6307 = vld [vmem:[#allocation5 + $0x7b0] sm:$0xff]
    %v6308 = vld [vmem:[#allocation5 + $0x7b8] sm:$0xff]
    %v6309 = vld [vmem:[#allocation5 + $0x7c0] sm:$0xff]
    %v6310 = vld [vmem:[#allocation5 + $0x7c8] sm:$0xff]
    %v6311 = vld [vmem:[#allocation5 + $0x7d0] sm:$0xff]
    %v6312 = vld [vmem:[#allocation5 + $0x7d8] sm:$0xff]
    %v6313 = vld [vmem:[#allocation5 + $0x7e0] sm:$0xff]
    %v6314 = vld [vmem:[#allocation5 + $0x7e8] sm:$0xff]
    %v6315 = vld [vmem:[#allocation5 + $0x7f0] sm:$0xff]
    %v6316 = vld [vmem:[#allocation5 + $0x7f8] sm:$0xff]
    %v6317 = vld [vmem:[#allocation5 + $0x800] sm:$0xff]
    %v6318 = vld [vmem:[#allocation5 + $0x808] sm:$0xff]
    %v6319 = vld [vmem:[#allocation5 + $0x810] sm:$0xff]
    %v6320 = vld [vmem:[#allocation5 + $0x818] sm:$0xff]
    %v6321 = vld [vmem:[#allocation5 + $0x820] sm:$0xff]
    %v6322 = vld [vmem:[#allocation5 + $0x828] sm:$0xff]
    %v6323 = vld [vmem:[#allocation5 + $0x830] sm:$0xff]
    %v6324 = vld [vmem:[#allocation5 + $0x838] sm:$0xff]
    %v6325 = vld [vmem:[#allocation5 + $0x840] sm:$0xff]
    %v6326 = vld [vmem:[#allocation5 + $0x848] sm:$0xff]
    %v6327 = vld [vmem:[#allocation5 + $0x850] sm:$0xff]
    %v6328 = vld [vmem:[#allocation5 + $0x858] sm:$0xff]
    %v6329 = vld [vmem:[#allocation5 + $0x860] sm:$0xff]
    %v6330 = vld [vmem:[#allocation5 + $0x868] sm:$0xff]
    %v6331 = vld [vmem:[#allocation5 + $0x870] sm:$0xff]
    %v6332 = vld [vmem:[#allocation5 + $0x878] sm:$0xff]
    %v6333 = vld [vmem:[#allocation5 + $0x880] sm:$0xff]
    %v6334 = vld [vmem:[#allocation5 + $0x888] sm:$0xff]
    %v6335 = vld [vmem:[#allocation5 + $0x890] sm:$0xff]
    %v6336 = vld [vmem:[#allocation5 + $0x898] sm:$0xff]
    %v6337 = vld [vmem:[#allocation5 + $0x8a0] sm:$0xff]
    %v6338 = vld [vmem:[#allocation5 + $0x8a8] sm:$0xff]
    %v6339 = vld [vmem:[#allocation5 + $0x8b0] sm:$0xff]
    %v6340 = vld [vmem:[#allocation5 + $0x8b8] sm:$0xff]
    %v6341 = vld [vmem:[#allocation5 + $0x8c0] sm:$0xff]
    %v6342 = vld [vmem:[#allocation5 + $0x8c8] sm:$0xff]
    %v6343 = vld [vmem:[#allocation5 + $0x8d0] sm:$0xff]
    %v6344 = vld [vmem:[#allocation5 + $0x8d8] sm:$0xff]
    %v6345 = vld [vmem:[#allocation5 + $0x8e0] sm:$0xff]
    %v6346 = vld [vmem:[#allocation5 + $0x8e8] sm:$0xff]
    %v6347 = vld [vmem:[#allocation5 + $0x8f0] sm:$0xff]
    %v6348 = vld [vmem:[#allocation5 + $0x8f8] sm:$0xff]
    %v6349 = vld [vmem:[#allocation5 + $0x900] sm:$0xff]
    %v6350 = vld [vmem:[#allocation5 + $0x908] sm:$0xff]
    %v6351 = vld [vmem:[#allocation5 + $0x910] sm:$0xff]
    %v6352 = vld [vmem:[#allocation5 + $0x918] sm:$0xff]
    %v6353 = vld [vmem:[#allocation5 + $0x920] sm:$0xff]
    %v6354 = vld [vmem:[#allocation5 + $0x928] sm:$0xff]
    %v6355 = vld [vmem:[#allocation5 + $0x930] sm:$0xff]
    %v6356 = vld [vmem:[#allocation5 + $0x938] sm:$0xff]
    %v6357 = vld [vmem:[#allocation5 + $0x940] sm:$0xff]
    %v6358 = vld [vmem:[#allocation5 + $0x948] sm:$0xff]
    %v6359 = vld [vmem:[#allocation5 + $0x950] sm:$0xff]
    %v6360 = vld [vmem:[#allocation5 + $0x958] sm:$0xff]
    %v6361 = vld [vmem:[#allocation5 + $0x960] sm:$0xff]
    %v6362 = vld [vmem:[#allocation5 + $0x968] sm:$0xff]
    %v6363 = vld [vmem:[#allocation5 + $0x970] sm:$0xff]
    %v6364 = vld [vmem:[#allocation5 + $0x978] sm:$0xff]
    %v6365 = vld [vmem:[#allocation5 + $0x980] sm:$0xff]
    %v6366 = vld [vmem:[#allocation5 + $0x988] sm:$0xff]
    %v6367 = vld [vmem:[#allocation5 + $0x990] sm:$0xff]
    %v6368 = vld [vmem:[#allocation5 + $0x998] sm:$0xff]
    %v6369 = vld [vmem:[#allocation5 + $0x9a0] sm:$0xff]
    %v6370 = vld [vmem:[#allocation5 + $0x9a8] sm:$0xff]
    %v6371 = vld [vmem:[#allocation5 + $0x9b0] sm:$0xff]
    %v6372 = vld [vmem:[#allocation5 + $0x9b8] sm:$0xff]
    %v6373 = vld [vmem:[#allocation5 + $0x9c0] sm:$0xff]
    %v6374 = vld [vmem:[#allocation5 + $0x9c8] sm:$0xff]
    %v6375 = vld [vmem:[#allocation5 + $0x9d0] sm:$0xff]
    %v6376 = vld [vmem:[#allocation5 + $0x9d8] sm:$0xff]
    %v6377 = vld [vmem:[#allocation5 + $0x9e0] sm:$0xff]
    %v6378 = vld [vmem:[#allocation5 + $0x9e8] sm:$0xff]
    %v6379 = vld [vmem:[#allocation5 + $0x9f0] sm:$0xff]
    %v6380 = vld [vmem:[#allocation5 + $0x9f8] sm:$0xff]
    %v6381 = vld [vmem:[#allocation5 + $0xa00] sm:$0xff]
    %v6382 = vld [vmem:[#allocation5 + $0xa08] sm:$0xff]
    %v6383 = vld [vmem:[#allocation5 + $0xa10] sm:$0xff]
    %v6384 = vld [vmem:[#allocation5 + $0xa18] sm:$0xff]
    %v6385 = vld [vmem:[#allocation5 + $0xa20] sm:$0xff]
    %v6386 = vld [vmem:[#allocation5 + $0xa28] sm:$0xff]
    %v6387 = vld [vmem:[#allocation5 + $0xa30] sm:$0xff]
    %v6388 = vld [vmem:[#allocation5 + $0xa38] sm:$0xff]
    %v6389 = vld [vmem:[#allocation5 + $0xa40] sm:$0xff]
    %v6390 = vld [vmem:[#allocation5 + $0xa48] sm:$0xff]
    %v6391 = vld [vmem:[#allocation5 + $0xa50] sm:$0xff]
    %v6392 = vld [vmem:[#allocation5 + $0xa58] sm:$0xff]
    %v6393 = vld [vmem:[#allocation5 + $0xa60] sm:$0xff]
    %v6394 = vld [vmem:[#allocation5 + $0xa68] sm:$0xff]
    %v6395 = vld [vmem:[#allocation5 + $0xa70] sm:$0xff]
    %v6396 = vld [vmem:[#allocation5 + $0xa78] sm:$0xff]
    %v6397 = vld [vmem:[#allocation5 + $0xa80] sm:$0xff]
    %v6398 = vld [vmem:[#allocation5 + $0xa88] sm:$0xff]
    %v6399 = vld [vmem:[#allocation5 + $0xa90] sm:$0xff]
    %v6400 = vld [vmem:[#allocation5 + $0xa98] sm:$0xff]
    %v6401 = vld [vmem:[#allocation5 + $0xaa0] sm:$0xff]
    %v6402 = vld [vmem:[#allocation5 + $0xaa8] sm:$0xff]
    %v6403 = vld [vmem:[#allocation5 + $0xab0] sm:$0xff]
    %v6404 = vld [vmem:[#allocation5 + $0xab8] sm:$0xff]
    %v6405 = vld [vmem:[#allocation5 + $0xac0] sm:$0xff]
    %v6406 = vld [vmem:[#allocation5 + $0xac8] sm:$0xff]
    %v6407 = vld [vmem:[#allocation5 + $0xad0] sm:$0xff]
    %v6408 = vld [vmem:[#allocation5 + $0xad8] sm:$0xff]
    %v6409 = vld [vmem:[#allocation5 + $0xae0] sm:$0xff]
    %v6410 = vld [vmem:[#allocation5 + $0xae8] sm:$0xff]
    %v6411 = vld [vmem:[#allocation5 + $0xaf0] sm:$0xff]
    %v6412 = vld [vmem:[#allocation5 + $0xaf8] sm:$0xff]
    %v6413 = vld [vmem:[#allocation5 + $0xb00] sm:$0xff]
    %v6414 = vld [vmem:[#allocation5 + $0xb08] sm:$0xff]
    %v6415 = vld [vmem:[#allocation5 + $0xb10] sm:$0xff]
    %v6416 = vld [vmem:[#allocation5 + $0xb18] sm:$0xff]
    %v6417 = vld [vmem:[#allocation5 + $0xb20] sm:$0xff]
    %v6418 = vld [vmem:[#allocation5 + $0xb28] sm:$0xff]
    %v6419 = vld [vmem:[#allocation5 + $0xb30] sm:$0xff]
    %v6420 = vld [vmem:[#allocation5 + $0xb38] sm:$0xff]
    %v6421 = vld [vmem:[#allocation5 + $0xb40] sm:$0xff]
    %v6422 = vld [vmem:[#allocation5 + $0xb48] sm:$0xff]
    %v6423 = vld [vmem:[#allocation5 + $0xb50] sm:$0xff]
    %v6424 = vld [vmem:[#allocation5 + $0xb58] sm:$0xff]
    %v6425 = vld [vmem:[#allocation5 + $0xb60] sm:$0xff]
    %v6426 = vld [vmem:[#allocation5 + $0xb68] sm:$0xff]
    %v6427 = vld [vmem:[#allocation5 + $0xb70] sm:$0xff]
    %v6428 = vld [vmem:[#allocation5 + $0xb78] sm:$0xff]
    %v6429 = vld [vmem:[#allocation5 + $0xb80] sm:$0xff]
    %v6430 = vld [vmem:[#allocation5 + $0xb88] sm:$0xff]
    %v6431 = vld [vmem:[#allocation5 + $0xb90] sm:$0xff]
    %v6432 = vld [vmem:[#allocation5 + $0xb98] sm:$0xff]
    %v6433 = vld [vmem:[#allocation5 + $0xba0] sm:$0xff]
    %v6434 = vld [vmem:[#allocation5 + $0xba8] sm:$0xff]
    %v6435 = vld [vmem:[#allocation5 + $0xbb0] sm:$0xff]
    %v6436 = vld [vmem:[#allocation5 + $0xbb8] sm:$0xff]
    %v6437 = vld [vmem:[#allocation5 + $0xbc0] sm:$0xff]
    %v6438 = vld [vmem:[#allocation5 + $0xbc8] sm:$0xff]
    %v6439 = vld [vmem:[#allocation5 + $0xbd0] sm:$0xff]
    %v6440 = vld [vmem:[#allocation5 + $0xbd8] sm:$0xff]
    %v6441 = vld [vmem:[#allocation5 + $0xbe0] sm:$0xff]
    %v6442 = vld [vmem:[#allocation5 + $0xbe8] sm:$0xff]
    %v6443 = vld [vmem:[#allocation5 + $0xbf0] sm:$0xff]
    %v6444 = vld [vmem:[#allocation5 + $0xbf8] sm:$0xff]
    %v6445 = vld [vmem:[#allocation5 + $0xc00] sm:$0xff]
    %v6446 = vld [vmem:[#allocation5 + $0xc08] sm:$0xff]
    %v6447 = vld [vmem:[#allocation5 + $0xc10] sm:$0xff]
    %v6448 = vld [vmem:[#allocation5 + $0xc18] sm:$0xff]
    %v6449 = vld [vmem:[#allocation5 + $0xc20] sm:$0xff]
    %v6450 = vld [vmem:[#allocation5 + $0xc28] sm:$0xff]
    %v6451 = vld [vmem:[#allocation5 + $0xc30] sm:$0xff]
    %v6452 = vld [vmem:[#allocation5 + $0xc38] sm:$0xff]
    %v6453 = vld [vmem:[#allocation5 + $0xc40] sm:$0xff]
    %v6454 = vld [vmem:[#allocation5 + $0xc48] sm:$0xff]
    %v6455 = vld [vmem:[#allocation5 + $0xc50] sm:$0xff]
    %v6456 = vld [vmem:[#allocation5 + $0xc58] sm:$0xff]
    %v6457 = vld [vmem:[#allocation5 + $0xc60] sm:$0xff]
    %v6458 = vld [vmem:[#allocation5 + $0xc68] sm:$0xff]
    %v6459 = vld [vmem:[#allocation5 + $0xc70] sm:$0xff]
    %v6460 = vld [vmem:[#allocation5 + $0xc78] sm:$0xff]
    %v6461 = vld [vmem:[#allocation5 + $0xc80] sm:$0xff]
    %v6462 = vld [vmem:[#allocation5 + $0xc88] sm:$0xff]
    %v6463 = vld [vmem:[#allocation5 + $0xc90] sm:$0xff]
    %v6464 = vld [vmem:[#allocation5 + $0xc98] sm:$0xff]
    %v6465 = vld [vmem:[#allocation5 + $0xca0] sm:$0xff]
    %v6466 = vld [vmem:[#allocation5 + $0xca8] sm:$0xff]
    %v6467 = vld [vmem:[#allocation5 + $0xcb0] sm:$0xff]
    %v6468 = vld [vmem:[#allocation5 + $0xcb8] sm:$0xff]
    %v6469 = vld [vmem:[#allocation5 + $0xcc0] sm:$0xff]
    %v6470 = vld [vmem:[#allocation5 + $0xcc8] sm:$0xff]
    %v6471 = vld [vmem:[#allocation5 + $0xcd0] sm:$0xff]
    %v6472 = vld [vmem:[#allocation5 + $0xcd8] sm:$0xff]
    %v6473 = vld [vmem:[#allocation5 + $0xce0] sm:$0xff]
    %v6474 = vld [vmem:[#allocation5 + $0xce8] sm:$0xff]
    %v6475 = vld [vmem:[#allocation5 + $0xcf0] sm:$0xff]
    %v6476 = vld [vmem:[#allocation5 + $0xcf8] sm:$0xff]
    %v6477 = vld [vmem:[#allocation5 + $0xd00] sm:$0xff]
    %v6478 = vld [vmem:[#allocation5 + $0xd08] sm:$0xff]
    %v6479 = vld [vmem:[#allocation5 + $0xd10] sm:$0xff]
    %v6480 = vld [vmem:[#allocation5 + $0xd18] sm:$0xff]
    %v6481 = vld [vmem:[#allocation5 + $0xd20] sm:$0xff]
    %v6482 = vld [vmem:[#allocation5 + $0xd28] sm:$0xff]
    %v6483 = vld [vmem:[#allocation5 + $0xd30] sm:$0xff]
    %v6484 = vld [vmem:[#allocation5 + $0xd38] sm:$0xff]
    %v6485 = vld [vmem:[#allocation5 + $0xd40] sm:$0xff]
    %v6486 = vld [vmem:[#allocation5 + $0xd48] sm:$0xff]
    %v6487 = vld [vmem:[#allocation5 + $0xd50] sm:$0xff]
    %v6488 = vld [vmem:[#allocation5 + $0xd58] sm:$0xff]
    %v6489 = vld [vmem:[#allocation5 + $0xd60] sm:$0xff]
    %v6490 = vld [vmem:[#allocation5 + $0xd68] sm:$0xff]
    %v6491 = vld [vmem:[#allocation5 + $0xd70] sm:$0xff]
    %v6492 = vld [vmem:[#allocation5 + $0xd78] sm:$0xff]
    %v6493 = vld [vmem:[#allocation5 + $0xd80] sm:$0xff]
    %v6494 = vld [vmem:[#allocation5 + $0xd88] sm:$0xff]
    %v6495 = vld [vmem:[#allocation5 + $0xd90] sm:$0xff]
    %v6496 = vld [vmem:[#allocation5 + $0xd98] sm:$0xff]
    %v6497 = vld [vmem:[#allocation5 + $0xda0] sm:$0xff]
    %v6498 = vld [vmem:[#allocation5 + $0xda8] sm:$0xff]
    %v6499 = vld [vmem:[#allocation5 + $0xdb0] sm:$0xff]
    %v6500 = vld [vmem:[#allocation5 + $0xdb8] sm:$0xff]
    %v6501 = vld [vmem:[#allocation5 + $0xdc0] sm:$0xff]
    %v6502 = vld [vmem:[#allocation5 + $0xdc8] sm:$0xff]
    %v6503 = vld [vmem:[#allocation5 + $0xdd0] sm:$0xff]
    %v6504 = vld [vmem:[#allocation5 + $0xdd8] sm:$0xff]
    %v6505 = vld [vmem:[#allocation5 + $0xde0] sm:$0xff]
    %v6506 = vld [vmem:[#allocation5 + $0xde8] sm:$0xff]
    %v6507 = vld [vmem:[#allocation5 + $0xdf0] sm:$0xff]
    %v6508 = vld [vmem:[#allocation5 + $0xdf8] sm:$0xff]
    %v6509 = vld [vmem:[#allocation5 + $0xe00] sm:$0xff]
    %v6510 = vld [vmem:[#allocation5 + $0xe08] sm:$0xff]
    %v6511 = vld [vmem:[#allocation5 + $0xe10] sm:$0xff]
    %v6512 = vld [vmem:[#allocation5 + $0xe18] sm:$0xff]
    %v6513 = vld [vmem:[#allocation5 + $0xe20] sm:$0xff]
    %v6514 = vld [vmem:[#allocation5 + $0xe28] sm:$0xff]
    %v6515 = vld [vmem:[#allocation5 + $0xe30] sm:$0xff]
    %v6516 = vld [vmem:[#allocation5 + $0xe38] sm:$0xff]
    %v6517 = vld [vmem:[#allocation5 + $0xe40] sm:$0xff]
    %v6518 = vld [vmem:[#allocation5 + $0xe48] sm:$0xff]
    %v6519 = vld [vmem:[#allocation5 + $0xe50] sm:$0xff]
    %v6520 = vld [vmem:[#allocation5 + $0xe58] sm:$0xff]
    %v6521 = vld [vmem:[#allocation5 + $0xe60] sm:$0xff]
    %v6522 = vld [vmem:[#allocation5 + $0xe68] sm:$0xff]
    %v6523 = vld [vmem:[#allocation5 + $0xe70] sm:$0xff]
    %v6524 = vld [vmem:[#allocation5 + $0xe78] sm:$0xff]
    %v6525 = vld [vmem:[#allocation5 + $0xe80] sm:$0xff]
    %v6526 = vld [vmem:[#allocation5 + $0xe88] sm:$0xff]
    %v6527 = vld [vmem:[#allocation5 + $0xe90] sm:$0xff]
    %v6528 = vld [vmem:[#allocation5 + $0xe98] sm:$0xff]
    %v6529 = vld [vmem:[#allocation5 + $0xea0] sm:$0xff]
    %v6530 = vld [vmem:[#allocation5 + $0xea8] sm:$0xff]
    %v6531 = vld [vmem:[#allocation5 + $0xeb0] sm:$0xff]
    %v6532 = vld [vmem:[#allocation5 + $0xeb8] sm:$0xff]
    %v6533 = vld [vmem:[#allocation5 + $0xec0] sm:$0xff]
    %v6534 = vld [vmem:[#allocation5 + $0xec8] sm:$0xff]
    %v6535 = vld [vmem:[#allocation5 + $0xed0] sm:$0xff]
    %v6536 = vld [vmem:[#allocation5 + $0xed8] sm:$0xff]
    %v6537 = vld [vmem:[#allocation5 + $0xee0] sm:$0xff]
    %v6538 = vld [vmem:[#allocation5 + $0xee8] sm:$0xff]
    %v6539 = vld [vmem:[#allocation5 + $0xef0] sm:$0xff]
    %v6540 = vld [vmem:[#allocation5 + $0xef8] sm:$0xff]
    %v6541 = vld [vmem:[#allocation5 + $0xf00] sm:$0xff]
    %v6542 = vld [vmem:[#allocation5 + $0xf08] sm:$0xff]
    %v6543 = vld [vmem:[#allocation5 + $0xf10] sm:$0xff]
    %v6544 = vld [vmem:[#allocation5 + $0xf18] sm:$0xff]
    %v6545 = vld [vmem:[#allocation5 + $0xf20] sm:$0xff]
    %v6546 = vld [vmem:[#allocation5 + $0xf28] sm:$0xff]
    %v6547 = vld [vmem:[#allocation5 + $0xf30] sm:$0xff]
    %v6548 = vld [vmem:[#allocation5 + $0xf38] sm:$0xff]
    %v6549 = vld [vmem:[#allocation5 + $0xf40] sm:$0xff]
    %v6550 = vld [vmem:[#allocation5 + $0xf48] sm:$0xff]
    %v6551 = vld [vmem:[#allocation5 + $0xf50] sm:$0xff]
    %v6552 = vld [vmem:[#allocation5 + $0xf58] sm:$0xff]
    %v6553 = vld [vmem:[#allocation5 + $0xf60] sm:$0xff]
    %v6554 = vld [vmem:[#allocation5 + $0xf68] sm:$0xff]
    %v6555 = vld [vmem:[#allocation5 + $0xf70] sm:$0xff]
    %v6556 = vld [vmem:[#allocation5 + $0xf78] sm:$0xff]
    %v6557 = vld [vmem:[#allocation5 + $0xf80] sm:$0xff]
    %v6558 = vld [vmem:[#allocation5 + $0xf88] sm:$0xff]
    %v6559 = vld [vmem:[#allocation5 + $0xf90] sm:$0xff]
    %v6560 = vld [vmem:[#allocation5 + $0xf98] sm:$0xff]
    %v6561 = vld [vmem:[#allocation5 + $0xfa0] sm:$0xff]
    %v6562 = vld [vmem:[#allocation5 + $0xfa8] sm:$0xff]
    %v6563 = vld [vmem:[#allocation5 + $0xfb0] sm:$0xff]
    %v6564 = vld [vmem:[#allocation5 + $0xfb8] sm:$0xff]
    %v6565 = vld [vmem:[#allocation5 + $0xfc0] sm:$0xff]
    %v6566 = vld [vmem:[#allocation5 + $0xfc8] sm:$0xff]
    %v6567 = vld [vmem:[#allocation5 + $0xfd0] sm:$0xff]
    %v6568 = vld [vmem:[#allocation5 + $0xfd8] sm:$0xff]
    %v6569 = vld [vmem:[#allocation5 + $0xfe0] sm:$0xff]
    %v6570 = vld [vmem:[#allocation5 + $0xfe8] sm:$0xff]
    %v6571 = vld [vmem:[#allocation5 + $0xff0] sm:$0xff]
    %v6572 = vld [vmem:[#allocation5 + $0xff8] sm:$0xff]
    %v6573 = vpack.c.bf16 %v6050, %v6050
    %v6574 = vpack.c.bf16 %v6051, %v6051
    %v6575 = vpack.c.bf16 %v6052, %v6052
    %v6576 = vpack.c.bf16 %v6053, %v6053
    %v6577 = vpack.c.bf16 %v6054, %v6054
    %v6578 = vpack.c.bf16 %v6055, %v6055
    %v6579 = vpack.c.bf16 %v6056, %v6056
    %v6580 = vpack.c.bf16 %v6057, %v6057
    %v6581 = vunpack.c.l.s8.bf16 %v6061
    %v6582 = vunpack.c.l.s8.bf16 %v6062
    %v6583 = vunpack.c.l.s8.bf16 %v6063
    %v6584 = vunpack.c.l.s8.bf16 %v6064
    %v6585 = vunpack.c.l.s8.bf16 %v6065
    %v6586 = vunpack.c.l.s8.bf16 %v6066
    %v6587 = vunpack.c.l.s8.bf16 %v6067
    %v6588 = vunpack.c.l.s8.bf16 %v6068
    %v6589 = vunpack.c.l.s8.bf16 %v6069
    %v6590 = vunpack.c.l.s8.bf16 %v6070
    %v6591 = vunpack.c.l.s8.bf16 %v6071
    %v6592 = vunpack.c.l.s8.bf16 %v6072
    %v6593 = vunpack.c.l.s8.bf16 %v6073
    %v6594 = vunpack.c.l.s8.bf16 %v6074
    %v6595 = vunpack.c.l.s8.bf16 %v6075
    %v6596 = vunpack.c.l.s8.bf16 %v6076
    %v6597 = vunpack.c.h.s8.bf16 %v6061
    %v6598 = vunpack.c.h.s8.bf16 %v6062
    %v6599 = vunpack.c.h.s8.bf16 %v6063
    %v6600 = vunpack.c.h.s8.bf16 %v6064
    %v6601 = vunpack.c.h.s8.bf16 %v6065
    %v6602 = vunpack.c.h.s8.bf16 %v6066
    %v6603 = vunpack.c.h.s8.bf16 %v6067
    %v6604 = vunpack.c.h.s8.bf16 %v6068
    %v6605 = vunpack.c.h.s8.bf16 %v6069
    %v6606 = vunpack.c.h.s8.bf16 %v6070
    %v6607 = vunpack.c.h.s8.bf16 %v6071
    %v6608 = vunpack.c.h.s8.bf16 %v6072
    %v6609 = vunpack.c.h.s8.bf16 %v6073
    %v6610 = vunpack.c.h.s8.bf16 %v6074
    %v6611 = vunpack.c.h.s8.bf16 %v6075
    %v6612 = vunpack.c.h.s8.bf16 %v6076
    %v6613 = vunpack.c.l.s8.bf16 %v6077
    %v6614 = vunpack.c.l.s8.bf16 %v6078
    %v6615 = vunpack.c.l.s8.bf16 %v6079
    %v6616 = vunpack.c.l.s8.bf16 %v6080
    %v6617 = vunpack.c.l.s8.bf16 %v6081
    %v6618 = vunpack.c.l.s8.bf16 %v6082
    %v6619 = vunpack.c.l.s8.bf16 %v6083
    %v6620 = vunpack.c.l.s8.bf16 %v6084
    %v6621 = vunpack.c.l.s8.bf16 %v6085
    %v6622 = vunpack.c.l.s8.bf16 %v6086
    %v6623 = vunpack.c.l.s8.bf16 %v6087
    %v6624 = vunpack.c.l.s8.bf16 %v6088
    %v6625 = vunpack.c.l.s8.bf16 %v6089
    %v6626 = vunpack.c.l.s8.bf16 %v6090
    %v6627 = vunpack.c.l.s8.bf16 %v6091
    %v6628 = vunpack.c.l.s8.bf16 %v6092
    %v6629 = vunpack.c.h.s8.bf16 %v6077
    %v6630 = vunpack.c.h.s8.bf16 %v6078
    %v6631 = vunpack.c.h.s8.bf16 %v6079
    %v6632 = vunpack.c.h.s8.bf16 %v6080
    %v6633 = vunpack.c.h.s8.bf16 %v6081
    %v6634 = vunpack.c.h.s8.bf16 %v6082
    %v6635 = vunpack.c.h.s8.bf16 %v6083
    %v6636 = vunpack.c.h.s8.bf16 %v6084
    %v6637 = vunpack.c.h.s8.bf16 %v6085
    %v6638 = vunpack.c.h.s8.bf16 %v6086
    %v6639 = vunpack.c.h.s8.bf16 %v6087
    %v6640 = vunpack.c.h.s8.bf16 %v6088
    %v6641 = vunpack.c.h.s8.bf16 %v6089
    %v6642 = vunpack.c.h.s8.bf16 %v6090
    %v6643 = vunpack.c.h.s8.bf16 %v6091
    %v6644 = vunpack.c.h.s8.bf16 %v6092
    %v6645 = vunpack.c.l.s8.bf16 %v6093
    %v6646 = vunpack.c.l.s8.bf16 %v6094
    %v6647 = vunpack.c.l.s8.bf16 %v6095
    %v6648 = vunpack.c.l.s8.bf16 %v6096
    %v6649 = vunpack.c.l.s8.bf16 %v6097
    %v6650 = vunpack.c.l.s8.bf16 %v6098
    %v6651 = vunpack.c.l.s8.bf16 %v6099
    %v6652 = vunpack.c.l.s8.bf16 %v6100
    %v6653 = vunpack.c.l.s8.bf16 %v6101
    %v6654 = vunpack.c.l.s8.bf16 %v6102
    %v6655 = vunpack.c.l.s8.bf16 %v6103
    %v6656 = vunpack.c.l.s8.bf16 %v6104
    %v6657 = vunpack.c.l.s8.bf16 %v6105
    %v6658 = vunpack.c.l.s8.bf16 %v6106
    %v6659 = vunpack.c.l.s8.bf16 %v6107
    %v6660 = vunpack.c.l.s8.bf16 %v6108
    %v6661 = vunpack.c.h.s8.bf16 %v6093
    %v6662 = vunpack.c.h.s8.bf16 %v6094
    %v6663 = vunpack.c.h.s8.bf16 %v6095
    %v6664 = vunpack.c.h.s8.bf16 %v6096
    %v6665 = vunpack.c.h.s8.bf16 %v6097
    %v6666 = vunpack.c.h.s8.bf16 %v6098
    %v6667 = vunpack.c.h.s8.bf16 %v6099
    %v6668 = vunpack.c.h.s8.bf16 %v6100
    %v6669 = vunpack.c.h.s8.bf16 %v6101
    %v6670 = vunpack.c.h.s8.bf16 %v6102
    %v6671 = vunpack.c.h.s8.bf16 %v6103
    %v6672 = vunpack.c.h.s8.bf16 %v6104
    %v6673 = vunpack.c.h.s8.bf16 %v6105
    %v6674 = vunpack.c.h.s8.bf16 %v6106
    %v6675 = vunpack.c.h.s8.bf16 %v6107
    %v6676 = vunpack.c.h.s8.bf16 %v6108
    %v6677 = vunpack.c.l.s8.bf16 %v6109
    %v6678 = vunpack.c.l.s8.bf16 %v6110
    %v6679 = vunpack.c.l.s8.bf16 %v6111
    %v6680 = vunpack.c.l.s8.bf16 %v6112
    %v6681 = vunpack.c.l.s8.bf16 %v6113
    %v6682 = vunpack.c.l.s8.bf16 %v6114
    %v6683 = vunpack.c.l.s8.bf16 %v6115
    %v6684 = vunpack.c.l.s8.bf16 %v6116
    %v6685 = vunpack.c.l.s8.bf16 %v6117
    %v6686 = vunpack.c.l.s8.bf16 %v6118
    %v6687 = vunpack.c.l.s8.bf16 %v6119
    %v6688 = vunpack.c.l.s8.bf16 %v6120
    %v6689 = vunpack.c.l.s8.bf16 %v6121
    %v6690 = vunpack.c.l.s8.bf16 %v6122
    %v6691 = vunpack.c.l.s8.bf16 %v6123
    %v6692 = vunpack.c.l.s8.bf16 %v6124
    %v6693 = vunpack.c.h.s8.bf16 %v6109
    %v6694 = vunpack.c.h.s8.bf16 %v6110
    %v6695 = vunpack.c.h.s8.bf16 %v6111
    %v6696 = vunpack.c.h.s8.bf16 %v6112
    %v6697 = vunpack.c.h.s8.bf16 %v6113
    %v6698 = vunpack.c.h.s8.bf16 %v6114
    %v6699 = vunpack.c.h.s8.bf16 %v6115
    %v6700 = vunpack.c.h.s8.bf16 %v6116
    %v6701 = vunpack.c.h.s8.bf16 %v6117
    %v6702 = vunpack.c.h.s8.bf16 %v6118
    %v6703 = vunpack.c.h.s8.bf16 %v6119
    %v6704 = vunpack.c.h.s8.bf16 %v6120
    %v6705 = vunpack.c.h.s8.bf16 %v6121
    %v6706 = vunpack.c.h.s8.bf16 %v6122
    %v6707 = vunpack.c.h.s8.bf16 %v6123
    %v6708 = vunpack.c.h.s8.bf16 %v6124
    %v6709 = vunpack.c.l.s8.bf16 %v6125
    %v6710 = vunpack.c.l.s8.bf16 %v6126
    %v6711 = vunpack.c.l.s8.bf16 %v6127
    %v6712 = vunpack.c.l.s8.bf16 %v6128
    %v6713 = vunpack.c.l.s8.bf16 %v6129
    %v6714 = vunpack.c.l.s8.bf16 %v6130
    %v6715 = vunpack.c.l.s8.bf16 %v6131
    %v6716 = vunpack.c.l.s8.bf16 %v6132
    %v6717 = vunpack.c.l.s8.bf16 %v6133
    %v6718 = vunpack.c.l.s8.bf16 %v6134
    %v6719 = vunpack.c.l.s8.bf16 %v6135
    %v6720 = vunpack.c.l.s8.bf16 %v6136
    %v6721 = vunpack.c.l.s8.bf16 %v6137
    %v6722 = vunpack.c.l.s8.bf16 %v6138
    %v6723 = vunpack.c.l.s8.bf16 %v6139
    %v6724 = vunpack.c.l.s8.bf16 %v6140
    %v6725 = vunpack.c.h.s8.bf16 %v6125
    %v6726 = vunpack.c.h.s8.bf16 %v6126
    %v6727 = vunpack.c.h.s8.bf16 %v6127
    %v6728 = vunpack.c.h.s8.bf16 %v6128
    %v6729 = vunpack.c.h.s8.bf16 %v6129
    %v6730 = vunpack.c.h.s8.bf16 %v6130
    %v6731 = vunpack.c.h.s8.bf16 %v6131
    %v6732 = vunpack.c.h.s8.bf16 %v6132
    %v6733 = vunpack.c.h.s8.bf16 %v6133
    %v6734 = vunpack.c.h.s8.bf16 %v6134
    %v6735 = vunpack.c.h.s8.bf16 %v6135
    %v6736 = vunpack.c.h.s8.bf16 %v6136
    %v6737 = vunpack.c.h.s8.bf16 %v6137
    %v6738 = vunpack.c.h.s8.bf16 %v6138
    %v6739 = vunpack.c.h.s8.bf16 %v6139
    %v6740 = vunpack.c.h.s8.bf16 %v6140
    %v6741 = vunpack.c.l.s8.bf16 %v6141
    %v6742 = vunpack.c.l.s8.bf16 %v6142
    %v6743 = vunpack.c.l.s8.bf16 %v6143
    %v6744 = vunpack.c.l.s8.bf16 %v6144
    %v6745 = vunpack.c.l.s8.bf16 %v6145
    %v6746 = vunpack.c.l.s8.bf16 %v6146
    %v6747 = vunpack.c.l.s8.bf16 %v6147
    %v6748 = vunpack.c.l.s8.bf16 %v6148
    %v6749 = vunpack.c.l.s8.bf16 %v6149
    %v6750 = vunpack.c.l.s8.bf16 %v6150
    %v6751 = vunpack.c.l.s8.bf16 %v6151
    %v6752 = vunpack.c.l.s8.bf16 %v6152
    %v6753 = vunpack.c.l.s8.bf16 %v6153
    %v6754 = vunpack.c.l.s8.bf16 %v6154
    %v6755 = vunpack.c.l.s8.bf16 %v6155
    %v6756 = vunpack.c.l.s8.bf16 %v6156
    %v6757 = vunpack.c.h.s8.bf16 %v6141
    %v6758 = vunpack.c.h.s8.bf16 %v6142
    %v6759 = vunpack.c.h.s8.bf16 %v6143
    %v6760 = vunpack.c.h.s8.bf16 %v6144
    %v6761 = vunpack.c.h.s8.bf16 %v6145
    %v6762 = vunpack.c.h.s8.bf16 %v6146
    %v6763 = vunpack.c.h.s8.bf16 %v6147
    %v6764 = vunpack.c.h.s8.bf16 %v6148
    %v6765 = vunpack.c.h.s8.bf16 %v6149
    %v6766 = vunpack.c.h.s8.bf16 %v6150
    %v6767 = vunpack.c.h.s8.bf16 %v6151
    %v6768 = vunpack.c.h.s8.bf16 %v6152
    %v6769 = vunpack.c.h.s8.bf16 %v6153
    %v6770 = vunpack.c.h.s8.bf16 %v6154
    %v6771 = vunpack.c.h.s8.bf16 %v6155
    %v6772 = vunpack.c.h.s8.bf16 %v6156
    %v6773 = vunpack.c.l.s8.bf16 %v6157
    %v6774 = vunpack.c.l.s8.bf16 %v6158
    %v6775 = vunpack.c.l.s8.bf16 %v6159
    %v6776 = vunpack.c.l.s8.bf16 %v6160
    %v6777 = vunpack.c.l.s8.bf16 %v6161
    %v6778 = vunpack.c.l.s8.bf16 %v6162
    %v6779 = vunpack.c.l.s8.bf16 %v6163
    %v6780 = vunpack.c.l.s8.bf16 %v6164
    %v6781 = vunpack.c.l.s8.bf16 %v6165
    %v6782 = vunpack.c.l.s8.bf16 %v6166
    %v6783 = vunpack.c.l.s8.bf16 %v6167
    %v6784 = vunpack.c.l.s8.bf16 %v6168
    %v6785 = vunpack.c.l.s8.bf16 %v6169
    %v6786 = vunpack.c.l.s8.bf16 %v6170
    %v6787 = vunpack.c.l.s8.bf16 %v6171
    %v6788 = vunpack.c.l.s8.bf16 %v6172
    %v6789 = vunpack.c.h.s8.bf16 %v6157
    %v6790 = vunpack.c.h.s8.bf16 %v6158
    %v6791 = vunpack.c.h.s8.bf16 %v6159
    %v6792 = vunpack.c.h.s8.bf16 %v6160
    %v6793 = vunpack.c.h.s8.bf16 %v6161
    %v6794 = vunpack.c.h.s8.bf16 %v6162
    %v6795 = vunpack.c.h.s8.bf16 %v6163
    %v6796 = vunpack.c.h.s8.bf16 %v6164
    %v6797 = vunpack.c.h.s8.bf16 %v6165
    %v6798 = vunpack.c.h.s8.bf16 %v6166
    %v6799 = vunpack.c.h.s8.bf16 %v6167
    %v6800 = vunpack.c.h.s8.bf16 %v6168
    %v6801 = vunpack.c.h.s8.bf16 %v6169
    %v6802 = vunpack.c.h.s8.bf16 %v6170
    %v6803 = vunpack.c.h.s8.bf16 %v6171
    %v6804 = vunpack.c.h.s8.bf16 %v6172
    %v6805 = vunpack.c.l.s8.bf16 %v6173
    %v6806 = vunpack.c.l.s8.bf16 %v6174
    %v6807 = vunpack.c.l.s8.bf16 %v6175
    %v6808 = vunpack.c.l.s8.bf16 %v6176
    %v6809 = vunpack.c.l.s8.bf16 %v6177
    %v6810 = vunpack.c.l.s8.bf16 %v6178
    %v6811 = vunpack.c.l.s8.bf16 %v6179
    %v6812 = vunpack.c.l.s8.bf16 %v6180
    %v6813 = vunpack.c.l.s8.bf16 %v6181
    %v6814 = vunpack.c.l.s8.bf16 %v6182
    %v6815 = vunpack.c.l.s8.bf16 %v6183
    %v6816 = vunpack.c.l.s8.bf16 %v6184
    %v6817 = vunpack.c.l.s8.bf16 %v6185
    %v6818 = vunpack.c.l.s8.bf16 %v6186
    %v6819 = vunpack.c.l.s8.bf16 %v6187
    %v6820 = vunpack.c.l.s8.bf16 %v6188
    %v6821 = vunpack.c.h.s8.bf16 %v6173
    %v6822 = vunpack.c.h.s8.bf16 %v6174
    %v6823 = vunpack.c.h.s8.bf16 %v6175
    %v6824 = vunpack.c.h.s8.bf16 %v6176
    %v6825 = vunpack.c.h.s8.bf16 %v6177
    %v6826 = vunpack.c.h.s8.bf16 %v6178
    %v6827 = vunpack.c.h.s8.bf16 %v6179
    %v6828 = vunpack.c.h.s8.bf16 %v6180
    %v6829 = vunpack.c.h.s8.bf16 %v6181
    %v6830 = vunpack.c.h.s8.bf16 %v6182
    %v6831 = vunpack.c.h.s8.bf16 %v6183
    %v6832 = vunpack.c.h.s8.bf16 %v6184
    %v6833 = vunpack.c.h.s8.bf16 %v6185
    %v6834 = vunpack.c.h.s8.bf16 %v6186
    %v6835 = vunpack.c.h.s8.bf16 %v6187
    %v6836 = vunpack.c.h.s8.bf16 %v6188
    %v6837 = vunpack.c.l.s8.bf16 %v6189
    %v6838 = vunpack.c.l.s8.bf16 %v6190
    %v6839 = vunpack.c.l.s8.bf16 %v6191
    %v6840 = vunpack.c.l.s8.bf16 %v6192
    %v6841 = vunpack.c.l.s8.bf16 %v6193
    %v6842 = vunpack.c.l.s8.bf16 %v6194
    %v6843 = vunpack.c.l.s8.bf16 %v6195
    %v6844 = vunpack.c.l.s8.bf16 %v6196
    %v6845 = vunpack.c.l.s8.bf16 %v6197
    %v6846 = vunpack.c.l.s8.bf16 %v6198
    %v6847 = vunpack.c.l.s8.bf16 %v6199
    %v6848 = vunpack.c.l.s8.bf16 %v6200
    %v6849 = vunpack.c.l.s8.bf16 %v6201
    %v6850 = vunpack.c.l.s8.bf16 %v6202
    %v6851 = vunpack.c.l.s8.bf16 %v6203
    %v6852 = vunpack.c.l.s8.bf16 %v6204
    %v6853 = vunpack.c.h.s8.bf16 %v6189
    %v6854 = vunpack.c.h.s8.bf16 %v6190
    %v6855 = vunpack.c.h.s8.bf16 %v6191
    %v6856 = vunpack.c.h.s8.bf16 %v6192
    %v6857 = vunpack.c.h.s8.bf16 %v6193
    %v6858 = vunpack.c.h.s8.bf16 %v6194
    %v6859 = vunpack.c.h.s8.bf16 %v6195
    %v6860 = vunpack.c.h.s8.bf16 %v6196
    %v6861 = vunpack.c.h.s8.bf16 %v6197
    %v6862 = vunpack.c.h.s8.bf16 %v6198
    %v6863 = vunpack.c.h.s8.bf16 %v6199
    %v6864 = vunpack.c.h.s8.bf16 %v6200
    %v6865 = vunpack.c.h.s8.bf16 %v6201
    %v6866 = vunpack.c.h.s8.bf16 %v6202
    %v6867 = vunpack.c.h.s8.bf16 %v6203
    %v6868 = vunpack.c.h.s8.bf16 %v6204
    %v6869 = vunpack.c.l.s8.bf16 %v6205
    %v6870 = vunpack.c.l.s8.bf16 %v6206
    %v6871 = vunpack.c.l.s8.bf16 %v6207
    %v6872 = vunpack.c.l.s8.bf16 %v6208
    %v6873 = vunpack.c.l.s8.bf16 %v6209
    %v6874 = vunpack.c.l.s8.bf16 %v6210
    %v6875 = vunpack.c.l.s8.bf16 %v6211
    %v6876 = vunpack.c.l.s8.bf16 %v6212
    %v6877 = vunpack.c.l.s8.bf16 %v6213
    %v6878 = vunpack.c.l.s8.bf16 %v6214
    %v6879 = vunpack.c.l.s8.bf16 %v6215
    %v6880 = vunpack.c.l.s8.bf16 %v6216
    %v6881 = vunpack.c.l.s8.bf16 %v6217
    %v6882 = vunpack.c.l.s8.bf16 %v6218
    %v6883 = vunpack.c.l.s8.bf16 %v6219
    %v6884 = vunpack.c.l.s8.bf16 %v6220
    %v6885 = vunpack.c.h.s8.bf16 %v6205
    %v6886 = vunpack.c.h.s8.bf16 %v6206
    %v6887 = vunpack.c.h.s8.bf16 %v6207
    %v6888 = vunpack.c.h.s8.bf16 %v6208
    %v6889 = vunpack.c.h.s8.bf16 %v6209
    %v6890 = vunpack.c.h.s8.bf16 %v6210
    %v6891 = vunpack.c.h.s8.bf16 %v6211
    %v6892 = vunpack.c.h.s8.bf16 %v6212
    %v6893 = vunpack.c.h.s8.bf16 %v6213
    %v6894 = vunpack.c.h.s8.bf16 %v6214
    %v6895 = vunpack.c.h.s8.bf16 %v6215
    %v6896 = vunpack.c.h.s8.bf16 %v6216
    %v6897 = vunpack.c.h.s8.bf16 %v6217
    %v6898 = vunpack.c.h.s8.bf16 %v6218
    %v6899 = vunpack.c.h.s8.bf16 %v6219
    %v6900 = vunpack.c.h.s8.bf16 %v6220
    %v6901 = vunpack.c.l.s8.bf16 %v6221
    %v6902 = vunpack.c.l.s8.bf16 %v6222
    %v6903 = vunpack.c.l.s8.bf16 %v6223
    %v6904 = vunpack.c.l.s8.bf16 %v6224
    %v6905 = vunpack.c.l.s8.bf16 %v6225
    %v6906 = vunpack.c.l.s8.bf16 %v6226
    %v6907 = vunpack.c.l.s8.bf16 %v6227
    %v6908 = vunpack.c.l.s8.bf16 %v6228
    %v6909 = vunpack.c.l.s8.bf16 %v6229
    %v6910 = vunpack.c.l.s8.bf16 %v6230
    %v6911 = vunpack.c.l.s8.bf16 %v6231
    %v6912 = vunpack.c.l.s8.bf16 %v6232
    %v6913 = vunpack.c.l.s8.bf16 %v6233
    %v6914 = vunpack.c.l.s8.bf16 %v6234
    %v6915 = vunpack.c.l.s8.bf16 %v6235
    %v6916 = vunpack.c.l.s8.bf16 %v6236
    %v6917 = vunpack.c.h.s8.bf16 %v6221
    %v6918 = vunpack.c.h.s8.bf16 %v6222
    %v6919 = vunpack.c.h.s8.bf16 %v6223
    %v6920 = vunpack.c.h.s8.bf16 %v6224
    %v6921 = vunpack.c.h.s8.bf16 %v6225
    %v6922 = vunpack.c.h.s8.bf16 %v6226
    %v6923 = vunpack.c.h.s8.bf16 %v6227
    %v6924 = vunpack.c.h.s8.bf16 %v6228
    %v6925 = vunpack.c.h.s8.bf16 %v6229
    %v6926 = vunpack.c.h.s8.bf16 %v6230
    %v6927 = vunpack.c.h.s8.bf16 %v6231
    %v6928 = vunpack.c.h.s8.bf16 %v6232
    %v6929 = vunpack.c.h.s8.bf16 %v6233
    %v6930 = vunpack.c.h.s8.bf16 %v6234
    %v6931 = vunpack.c.h.s8.bf16 %v6235
    %v6932 = vunpack.c.h.s8.bf16 %v6236
    %v6933 = vunpack.c.l.s8.bf16 %v6237
    %v6934 = vunpack.c.l.s8.bf16 %v6238
    %v6935 = vunpack.c.l.s8.bf16 %v6239
    %v6936 = vunpack.c.l.s8.bf16 %v6240
    %v6937 = vunpack.c.l.s8.bf16 %v6241
    %v6938 = vunpack.c.l.s8.bf16 %v6242
    %v6939 = vunpack.c.l.s8.bf16 %v6243
    %v6940 = vunpack.c.l.s8.bf16 %v6244
    %v6941 = vunpack.c.l.s8.bf16 %v6245
    %v6942 = vunpack.c.l.s8.bf16 %v6246
    %v6943 = vunpack.c.l.s8.bf16 %v6247
    %v6944 = vunpack.c.l.s8.bf16 %v6248
    %v6945 = vunpack.c.l.s8.bf16 %v6249
    %v6946 = vunpack.c.l.s8.bf16 %v6250
    %v6947 = vunpack.c.l.s8.bf16 %v6251
    %v6948 = vunpack.c.l.s8.bf16 %v6252
    %v6949 = vunpack.c.h.s8.bf16 %v6237
    %v6950 = vunpack.c.h.s8.bf16 %v6238
    %v6951 = vunpack.c.h.s8.bf16 %v6239
    %v6952 = vunpack.c.h.s8.bf16 %v6240
    %v6953 = vunpack.c.h.s8.bf16 %v6241
    %v6954 = vunpack.c.h.s8.bf16 %v6242
    %v6955 = vunpack.c.h.s8.bf16 %v6243
    %v6956 = vunpack.c.h.s8.bf16 %v6244
    %v6957 = vunpack.c.h.s8.bf16 %v6245
    %v6958 = vunpack.c.h.s8.bf16 %v6246
    %v6959 = vunpack.c.h.s8.bf16 %v6247
    %v6960 = vunpack.c.h.s8.bf16 %v6248
    %v6961 = vunpack.c.h.s8.bf16 %v6249
    %v6962 = vunpack.c.h.s8.bf16 %v6250
    %v6963 = vunpack.c.h.s8.bf16 %v6251
    %v6964 = vunpack.c.h.s8.bf16 %v6252
    %v6965 = vunpack.c.l.s8.bf16 %v6253
    %v6966 = vunpack.c.l.s8.bf16 %v6254
    %v6967 = vunpack.c.l.s8.bf16 %v6255
    %v6968 = vunpack.c.l.s8.bf16 %v6256
    %v6969 = vunpack.c.l.s8.bf16 %v6257
    %v6970 = vunpack.c.l.s8.bf16 %v6258
    %v6971 = vunpack.c.l.s8.bf16 %v6259
    %v6972 = vunpack.c.l.s8.bf16 %v6260
    %v6973 = vunpack.c.l.s8.bf16 %v6261
    %v6974 = vunpack.c.l.s8.bf16 %v6262
    %v6975 = vunpack.c.l.s8.bf16 %v6263
    %v6976 = vunpack.c.l.s8.bf16 %v6264
    %v6977 = vunpack.c.l.s8.bf16 %v6265
    %v6978 = vunpack.c.l.s8.bf16 %v6266
    %v6979 = vunpack.c.l.s8.bf16 %v6267
    %v6980 = vunpack.c.l.s8.bf16 %v6268
    %v6981 = vunpack.c.h.s8.bf16 %v6253
    %v6982 = vunpack.c.h.s8.bf16 %v6254
    %v6983 = vunpack.c.h.s8.bf16 %v6255
    %v6984 = vunpack.c.h.s8.bf16 %v6256
    %v6985 = vunpack.c.h.s8.bf16 %v6257
    %v6986 = vunpack.c.h.s8.bf16 %v6258
    %v6987 = vunpack.c.h.s8.bf16 %v6259
    %v6988 = vunpack.c.h.s8.bf16 %v6260
    %v6989 = vunpack.c.h.s8.bf16 %v6261
    %v6990 = vunpack.c.h.s8.bf16 %v6262
    %v6991 = vunpack.c.h.s8.bf16 %v6263
    %v6992 = vunpack.c.h.s8.bf16 %v6264
    %v6993 = vunpack.c.h.s8.bf16 %v6265
    %v6994 = vunpack.c.h.s8.bf16 %v6266
    %v6995 = vunpack.c.h.s8.bf16 %v6267
    %v6996 = vunpack.c.h.s8.bf16 %v6268
    %v6997 = vunpack.c.l.s8.bf16 %v6269
    %v6998 = vunpack.c.l.s8.bf16 %v6270
    %v6999 = vunpack.c.l.s8.bf16 %v6271
    %v7000 = vunpack.c.l.s8.bf16 %v6272
    %v7001 = vunpack.c.l.s8.bf16 %v6273
    %v7002 = vunpack.c.l.s8.bf16 %v6274
    %v7003 = vunpack.c.l.s8.bf16 %v6275
    %v7004 = vunpack.c.l.s8.bf16 %v6276
    %v7005 = vunpack.c.l.s8.bf16 %v6277
    %v7006 = vunpack.c.l.s8.bf16 %v6278
    %v7007 = vunpack.c.l.s8.bf16 %v6279
    %v7008 = vunpack.c.l.s8.bf16 %v6280
    %v7009 = vunpack.c.l.s8.bf16 %v6281
    %v7010 = vunpack.c.l.s8.bf16 %v6282
    %v7011 = vunpack.c.l.s8.bf16 %v6283
    %v7012 = vunpack.c.l.s8.bf16 %v6284
    %v7013 = vunpack.c.h.s8.bf16 %v6269
    %v7014 = vunpack.c.h.s8.bf16 %v6270
    %v7015 = vunpack.c.h.s8.bf16 %v6271
    %v7016 = vunpack.c.h.s8.bf16 %v6272
    %v7017 = vunpack.c.h.s8.bf16 %v6273
    %v7018 = vunpack.c.h.s8.bf16 %v6274
    %v7019 = vunpack.c.h.s8.bf16 %v6275
    %v7020 = vunpack.c.h.s8.bf16 %v6276
    %v7021 = vunpack.c.h.s8.bf16 %v6277
    %v7022 = vunpack.c.h.s8.bf16 %v6278
    %v7023 = vunpack.c.h.s8.bf16 %v6279
    %v7024 = vunpack.c.h.s8.bf16 %v6280
    %v7025 = vunpack.c.h.s8.bf16 %v6281
    %v7026 = vunpack.c.h.s8.bf16 %v6282
    %v7027 = vunpack.c.h.s8.bf16 %v6283
    %v7028 = vunpack.c.h.s8.bf16 %v6284
    %v7029 = vunpack.c.l.s8.bf16 %v6285
    %v7030 = vunpack.c.l.s8.bf16 %v6286
    %v7031 = vunpack.c.l.s8.bf16 %v6287
    %v7032 = vunpack.c.l.s8.bf16 %v6288
    %v7033 = vunpack.c.l.s8.bf16 %v6289
    %v7034 = vunpack.c.l.s8.bf16 %v6290
    %v7035 = vunpack.c.l.s8.bf16 %v6291
    %v7036 = vunpack.c.l.s8.bf16 %v6292
    %v7037 = vunpack.c.l.s8.bf16 %v6293
    %v7038 = vunpack.c.l.s8.bf16 %v6294
    %v7039 = vunpack.c.l.s8.bf16 %v6295
    %v7040 = vunpack.c.l.s8.bf16 %v6296
    %v7041 = vunpack.c.l.s8.bf16 %v6297
    %v7042 = vunpack.c.l.s8.bf16 %v6298
    %v7043 = vunpack.c.l.s8.bf16 %v6299
    %v7044 = vunpack.c.l.s8.bf16 %v6300
    %v7045 = vunpack.c.h.s8.bf16 %v6285
    %v7046 = vunpack.c.h.s8.bf16 %v6286
    %v7047 = vunpack.c.h.s8.bf16 %v6287
    %v7048 = vunpack.c.h.s8.bf16 %v6288
    %v7049 = vunpack.c.h.s8.bf16 %v6289
    %v7050 = vunpack.c.h.s8.bf16 %v6290
    %v7051 = vunpack.c.h.s8.bf16 %v6291
    %v7052 = vunpack.c.h.s8.bf16 %v6292
    %v7053 = vunpack.c.h.s8.bf16 %v6293
    %v7054 = vunpack.c.h.s8.bf16 %v6294
    %v7055 = vunpack.c.h.s8.bf16 %v6295
    %v7056 = vunpack.c.h.s8.bf16 %v6296
    %v7057 = vunpack.c.h.s8.bf16 %v6297
    %v7058 = vunpack.c.h.s8.bf16 %v6298
    %v7059 = vunpack.c.h.s8.bf16 %v6299
    %v7060 = vunpack.c.h.s8.bf16 %v6300
    %v7061 = vunpack.c.l.s8.bf16 %v6301
    %v7062 = vunpack.c.l.s8.bf16 %v6302
    %v7063 = vunpack.c.l.s8.bf16 %v6303
    %v7064 = vunpack.c.l.s8.bf16 %v6304
    %v7065 = vunpack.c.l.s8.bf16 %v6305
    %v7066 = vunpack.c.l.s8.bf16 %v6306
    %v7067 = vunpack.c.l.s8.bf16 %v6307
    %v7068 = vunpack.c.l.s8.bf16 %v6308
    %v7069 = vunpack.c.l.s8.bf16 %v6309
    %v7070 = vunpack.c.l.s8.bf16 %v6310
    %v7071 = vunpack.c.l.s8.bf16 %v6311
    %v7072 = vunpack.c.l.s8.bf16 %v6312
    %v7073 = vunpack.c.l.s8.bf16 %v6313
    %v7074 = vunpack.c.l.s8.bf16 %v6314
    %v7075 = vunpack.c.l.s8.bf16 %v6315
    %v7076 = vunpack.c.l.s8.bf16 %v6316
    %v7077 = vunpack.c.h.s8.bf16 %v6301
    %v7078 = vunpack.c.h.s8.bf16 %v6302
    %v7079 = vunpack.c.h.s8.bf16 %v6303
    %v7080 = vunpack.c.h.s8.bf16 %v6304
    %v7081 = vunpack.c.h.s8.bf16 %v6305
    %v7082 = vunpack.c.h.s8.bf16 %v6306
    %v7083 = vunpack.c.h.s8.bf16 %v6307
    %v7084 = vunpack.c.h.s8.bf16 %v6308
    %v7085 = vunpack.c.h.s8.bf16 %v6309
    %v7086 = vunpack.c.h.s8.bf16 %v6310
    %v7087 = vunpack.c.h.s8.bf16 %v6311
    %v7088 = vunpack.c.h.s8.bf16 %v6312
    %v7089 = vunpack.c.h.s8.bf16 %v6313
    %v7090 = vunpack.c.h.s8.bf16 %v6314
    %v7091 = vunpack.c.h.s8.bf16 %v6315
    %v7092 = vunpack.c.h.s8.bf16 %v6316
    %v7093 = vunpack.c.l.s8.bf16 %v6317
    %v7094 = vunpack.c.l.s8.bf16 %v6318
    %v7095 = vunpack.c.l.s8.bf16 %v6319
    %v7096 = vunpack.c.l.s8.bf16 %v6320
    %v7097 = vunpack.c.l.s8.bf16 %v6321
    %v7098 = vunpack.c.l.s8.bf16 %v6322
    %v7099 = vunpack.c.l.s8.bf16 %v6323
    %v7100 = vunpack.c.l.s8.bf16 %v6324
    %v7101 = vunpack.c.l.s8.bf16 %v6325
    %v7102 = vunpack.c.l.s8.bf16 %v6326
    %v7103 = vunpack.c.l.s8.bf16 %v6327
    %v7104 = vunpack.c.l.s8.bf16 %v6328
    %v7105 = vunpack.c.l.s8.bf16 %v6329
    %v7106 = vunpack.c.l.s8.bf16 %v6330
    %v7107 = vunpack.c.l.s8.bf16 %v6331
    %v7108 = vunpack.c.l.s8.bf16 %v6332
    %v7109 = vunpack.c.h.s8.bf16 %v6317
    %v7110 = vunpack.c.h.s8.bf16 %v6318
    %v7111 = vunpack.c.h.s8.bf16 %v6319
    %v7112 = vunpack.c.h.s8.bf16 %v6320
    %v7113 = vunpack.c.h.s8.bf16 %v6321
    %v7114 = vunpack.c.h.s8.bf16 %v6322
    %v7115 = vunpack.c.h.s8.bf16 %v6323
    %v7116 = vunpack.c.h.s8.bf16 %v6324
    %v7117 = vunpack.c.h.s8.bf16 %v6325
    %v7118 = vunpack.c.h.s8.bf16 %v6326
    %v7119 = vunpack.c.h.s8.bf16 %v6327
    %v7120 = vunpack.c.h.s8.bf16 %v6328
    %v7121 = vunpack.c.h.s8.bf16 %v6329
    %v7122 = vunpack.c.h.s8.bf16 %v6330
    %v7123 = vunpack.c.h.s8.bf16 %v6331
    %v7124 = vunpack.c.h.s8.bf16 %v6332
    %v7125 = vunpack.c.l.s8.bf16 %v6333
    %v7126 = vunpack.c.l.s8.bf16 %v6334
    %v7127 = vunpack.c.l.s8.bf16 %v6335
    %v7128 = vunpack.c.l.s8.bf16 %v6336
    %v7129 = vunpack.c.l.s8.bf16 %v6337
    %v7130 = vunpack.c.l.s8.bf16 %v6338
    %v7131 = vunpack.c.l.s8.bf16 %v6339
    %v7132 = vunpack.c.l.s8.bf16 %v6340
    %v7133 = vunpack.c.l.s8.bf16 %v6341
    %v7134 = vunpack.c.l.s8.bf16 %v6342
    %v7135 = vunpack.c.l.s8.bf16 %v6343
    %v7136 = vunpack.c.l.s8.bf16 %v6344
    %v7137 = vunpack.c.l.s8.bf16 %v6345
    %v7138 = vunpack.c.l.s8.bf16 %v6346
    %v7139 = vunpack.c.l.s8.bf16 %v6347
    %v7140 = vunpack.c.l.s8.bf16 %v6348
    %v7141 = vunpack.c.h.s8.bf16 %v6333
    %v7142 = vunpack.c.h.s8.bf16 %v6334
    %v7143 = vunpack.c.h.s8.bf16 %v6335
    %v7144 = vunpack.c.h.s8.bf16 %v6336
    %v7145 = vunpack.c.h.s8.bf16 %v6337
    %v7146 = vunpack.c.h.s8.bf16 %v6338
    %v7147 = vunpack.c.h.s8.bf16 %v6339
    %v7148 = vunpack.c.h.s8.bf16 %v6340
    %v7149 = vunpack.c.h.s8.bf16 %v6341
    %v7150 = vunpack.c.h.s8.bf16 %v6342
    %v7151 = vunpack.c.h.s8.bf16 %v6343
    %v7152 = vunpack.c.h.s8.bf16 %v6344
    %v7153 = vunpack.c.h.s8.bf16 %v6345
    %v7154 = vunpack.c.h.s8.bf16 %v6346
    %v7155 = vunpack.c.h.s8.bf16 %v6347
    %v7156 = vunpack.c.h.s8.bf16 %v6348
    %v7157 = vunpack.c.l.s8.bf16 %v6349
    %v7158 = vunpack.c.l.s8.bf16 %v6350
    %v7159 = vunpack.c.l.s8.bf16 %v6351
    %v7160 = vunpack.c.l.s8.bf16 %v6352
    %v7161 = vunpack.c.l.s8.bf16 %v6353
    %v7162 = vunpack.c.l.s8.bf16 %v6354
    %v7163 = vunpack.c.l.s8.bf16 %v6355
    %v7164 = vunpack.c.l.s8.bf16 %v6356
    %v7165 = vunpack.c.l.s8.bf16 %v6357
    %v7166 = vunpack.c.l.s8.bf16 %v6358
    %v7167 = vunpack.c.l.s8.bf16 %v6359
    %v7168 = vunpack.c.l.s8.bf16 %v6360
    %v7169 = vunpack.c.l.s8.bf16 %v6361
    %v7170 = vunpack.c.l.s8.bf16 %v6362
    %v7171 = vunpack.c.l.s8.bf16 %v6363
    %v7172 = vunpack.c.l.s8.bf16 %v6364
    %v7173 = vunpack.c.h.s8.bf16 %v6349
    %v7174 = vunpack.c.h.s8.bf16 %v6350
    %v7175 = vunpack.c.h.s8.bf16 %v6351
    %v7176 = vunpack.c.h.s8.bf16 %v6352
    %v7177 = vunpack.c.h.s8.bf16 %v6353
    %v7178 = vunpack.c.h.s8.bf16 %v6354
    %v7179 = vunpack.c.h.s8.bf16 %v6355
    %v7180 = vunpack.c.h.s8.bf16 %v6356
    %v7181 = vunpack.c.h.s8.bf16 %v6357
    %v7182 = vunpack.c.h.s8.bf16 %v6358
    %v7183 = vunpack.c.h.s8.bf16 %v6359
    %v7184 = vunpack.c.h.s8.bf16 %v6360
    %v7185 = vunpack.c.h.s8.bf16 %v6361
    %v7186 = vunpack.c.h.s8.bf16 %v6362
    %v7187 = vunpack.c.h.s8.bf16 %v6363
    %v7188 = vunpack.c.h.s8.bf16 %v6364
    %v7189 = vunpack.c.l.s8.bf16 %v6365
    %v7190 = vunpack.c.l.s8.bf16 %v6366
    %v7191 = vunpack.c.l.s8.bf16 %v6367
    %v7192 = vunpack.c.l.s8.bf16 %v6368
    %v7193 = vunpack.c.l.s8.bf16 %v6369
    %v7194 = vunpack.c.l.s8.bf16 %v6370
    %v7195 = vunpack.c.l.s8.bf16 %v6371
    %v7196 = vunpack.c.l.s8.bf16 %v6372
    %v7197 = vunpack.c.l.s8.bf16 %v6373
    %v7198 = vunpack.c.l.s8.bf16 %v6374
    %v7199 = vunpack.c.l.s8.bf16 %v6375
    %v7200 = vunpack.c.l.s8.bf16 %v6376
    %v7201 = vunpack.c.l.s8.bf16 %v6377
    %v7202 = vunpack.c.l.s8.bf16 %v6378
    %v7203 = vunpack.c.l.s8.bf16 %v6379
    %v7204 = vunpack.c.l.s8.bf16 %v6380
    %v7205 = vunpack.c.h.s8.bf16 %v6365
    %v7206 = vunpack.c.h.s8.bf16 %v6366
    %v7207 = vunpack.c.h.s8.bf16 %v6367
    %v7208 = vunpack.c.h.s8.bf16 %v6368
    %v7209 = vunpack.c.h.s8.bf16 %v6369
    %v7210 = vunpack.c.h.s8.bf16 %v6370
    %v7211 = vunpack.c.h.s8.bf16 %v6371
    %v7212 = vunpack.c.h.s8.bf16 %v6372
    %v7213 = vunpack.c.h.s8.bf16 %v6373
    %v7214 = vunpack.c.h.s8.bf16 %v6374
    %v7215 = vunpack.c.h.s8.bf16 %v6375
    %v7216 = vunpack.c.h.s8.bf16 %v6376
    %v7217 = vunpack.c.h.s8.bf16 %v6377
    %v7218 = vunpack.c.h.s8.bf16 %v6378
    %v7219 = vunpack.c.h.s8.bf16 %v6379
    %v7220 = vunpack.c.h.s8.bf16 %v6380
    %v7221 = vunpack.c.l.s8.bf16 %v6381
    %v7222 = vunpack.c.l.s8.bf16 %v6382
    %v7223 = vunpack.c.l.s8.bf16 %v6383
    %v7224 = vunpack.c.l.s8.bf16 %v6384
    %v7225 = vunpack.c.l.s8.bf16 %v6385
    %v7226 = vunpack.c.l.s8.bf16 %v6386
    %v7227 = vunpack.c.l.s8.bf16 %v6387
    %v7228 = vunpack.c.l.s8.bf16 %v6388
    %v7229 = vunpack.c.l.s8.bf16 %v6389
    %v7230 = vunpack.c.l.s8.bf16 %v6390
    %v7231 = vunpack.c.l.s8.bf16 %v6391
    %v7232 = vunpack.c.l.s8.bf16 %v6392
    %v7233 = vunpack.c.l.s8.bf16 %v6393
    %v7234 = vunpack.c.l.s8.bf16 %v6394
    %v7235 = vunpack.c.l.s8.bf16 %v6395
    %v7236 = vunpack.c.l.s8.bf16 %v6396
    %v7237 = vunpack.c.h.s8.bf16 %v6381
    %v7238 = vunpack.c.h.s8.bf16 %v6382
    %v7239 = vunpack.c.h.s8.bf16 %v6383
    %v7240 = vunpack.c.h.s8.bf16 %v6384
    %v7241 = vunpack.c.h.s8.bf16 %v6385
    %v7242 = vunpack.c.h.s8.bf16 %v6386
    %v7243 = vunpack.c.h.s8.bf16 %v6387
    %v7244 = vunpack.c.h.s8.bf16 %v6388
    %v7245 = vunpack.c.h.s8.bf16 %v6389
    %v7246 = vunpack.c.h.s8.bf16 %v6390
    %v7247 = vunpack.c.h.s8.bf16 %v6391
    %v7248 = vunpack.c.h.s8.bf16 %v6392
    %v7249 = vunpack.c.h.s8.bf16 %v6393
    %v7250 = vunpack.c.h.s8.bf16 %v6394
    %v7251 = vunpack.c.h.s8.bf16 %v6395
    %v7252 = vunpack.c.h.s8.bf16 %v6396
    %v7253 = vunpack.c.l.s8.bf16 %v6397
    %v7254 = vunpack.c.l.s8.bf16 %v6398
    %v7255 = vunpack.c.l.s8.bf16 %v6399
    %v7256 = vunpack.c.l.s8.bf16 %v6400
    %v7257 = vunpack.c.l.s8.bf16 %v6401
    %v7258 = vunpack.c.l.s8.bf16 %v6402
    %v7259 = vunpack.c.l.s8.bf16 %v6403
    %v7260 = vunpack.c.l.s8.bf16 %v6404
    %v7261 = vunpack.c.l.s8.bf16 %v6405
    %v7262 = vunpack.c.l.s8.bf16 %v6406
    %v7263 = vunpack.c.l.s8.bf16 %v6407
    %v7264 = vunpack.c.l.s8.bf16 %v6408
    %v7265 = vunpack.c.l.s8.bf16 %v6409
    %v7266 = vunpack.c.l.s8.bf16 %v6410
    %v7267 = vunpack.c.l.s8.bf16 %v6411
    %v7268 = vunpack.c.l.s8.bf16 %v6412
    %v7269 = vunpack.c.h.s8.bf16 %v6397
    %v7270 = vunpack.c.h.s8.bf16 %v6398
    %v7271 = vunpack.c.h.s8.bf16 %v6399
    %v7272 = vunpack.c.h.s8.bf16 %v6400
    %v7273 = vunpack.c.h.s8.bf16 %v6401
    %v7274 = vunpack.c.h.s8.bf16 %v6402
    %v7275 = vunpack.c.h.s8.bf16 %v6403
    %v7276 = vunpack.c.h.s8.bf16 %v6404
    %v7277 = vunpack.c.h.s8.bf16 %v6405
    %v7278 = vunpack.c.h.s8.bf16 %v6406
    %v7279 = vunpack.c.h.s8.bf16 %v6407
    %v7280 = vunpack.c.h.s8.bf16 %v6408
    %v7281 = vunpack.c.h.s8.bf16 %v6409
    %v7282 = vunpack.c.h.s8.bf16 %v6410
    %v7283 = vunpack.c.h.s8.bf16 %v6411
    %v7284 = vunpack.c.h.s8.bf16 %v6412
    %v7285 = vunpack.c.l.s8.bf16 %v6413
    %v7286 = vunpack.c.l.s8.bf16 %v6414
    %v7287 = vunpack.c.l.s8.bf16 %v6415
    %v7288 = vunpack.c.l.s8.bf16 %v6416
    %v7289 = vunpack.c.l.s8.bf16 %v6417
    %v7290 = vunpack.c.l.s8.bf16 %v6418
    %v7291 = vunpack.c.l.s8.bf16 %v6419
    %v7292 = vunpack.c.l.s8.bf16 %v6420
    %v7293 = vunpack.c.l.s8.bf16 %v6421
    %v7294 = vunpack.c.l.s8.bf16 %v6422
    %v7295 = vunpack.c.l.s8.bf16 %v6423
    %v7296 = vunpack.c.l.s8.bf16 %v6424
    %v7297 = vunpack.c.l.s8.bf16 %v6425
    %v7298 = vunpack.c.l.s8.bf16 %v6426
    %v7299 = vunpack.c.l.s8.bf16 %v6427
    %v7300 = vunpack.c.l.s8.bf16 %v6428
    %v7301 = vunpack.c.h.s8.bf16 %v6413
    %v7302 = vunpack.c.h.s8.bf16 %v6414
    %v7303 = vunpack.c.h.s8.bf16 %v6415
    %v7304 = vunpack.c.h.s8.bf16 %v6416
    %v7305 = vunpack.c.h.s8.bf16 %v6417
    %v7306 = vunpack.c.h.s8.bf16 %v6418
    %v7307 = vunpack.c.h.s8.bf16 %v6419
    %v7308 = vunpack.c.h.s8.bf16 %v6420
    %v7309 = vunpack.c.h.s8.bf16 %v6421
    %v7310 = vunpack.c.h.s8.bf16 %v6422
    %v7311 = vunpack.c.h.s8.bf16 %v6423
    %v7312 = vunpack.c.h.s8.bf16 %v6424
    %v7313 = vunpack.c.h.s8.bf16 %v6425
    %v7314 = vunpack.c.h.s8.bf16 %v6426
    %v7315 = vunpack.c.h.s8.bf16 %v6427
    %v7316 = vunpack.c.h.s8.bf16 %v6428
    %v7317 = vunpack.c.l.s8.bf16 %v6429
    %v7318 = vunpack.c.l.s8.bf16 %v6430
    %v7319 = vunpack.c.l.s8.bf16 %v6431
    %v7320 = vunpack.c.l.s8.bf16 %v6432
    %v7321 = vunpack.c.l.s8.bf16 %v6433
    %v7322 = vunpack.c.l.s8.bf16 %v6434
    %v7323 = vunpack.c.l.s8.bf16 %v6435
    %v7324 = vunpack.c.l.s8.bf16 %v6436
    %v7325 = vunpack.c.l.s8.bf16 %v6437
    %v7326 = vunpack.c.l.s8.bf16 %v6438
    %v7327 = vunpack.c.l.s8.bf16 %v6439
    %v7328 = vunpack.c.l.s8.bf16 %v6440
    %v7329 = vunpack.c.l.s8.bf16 %v6441
    %v7330 = vunpack.c.l.s8.bf16 %v6442
    %v7331 = vunpack.c.l.s8.bf16 %v6443
    %v7332 = vunpack.c.l.s8.bf16 %v6444
    %v7333 = vunpack.c.h.s8.bf16 %v6429
    %v7334 = vunpack.c.h.s8.bf16 %v6430
    %v7335 = vunpack.c.h.s8.bf16 %v6431
    %v7336 = vunpack.c.h.s8.bf16 %v6432
    %v7337 = vunpack.c.h.s8.bf16 %v6433
    %v7338 = vunpack.c.h.s8.bf16 %v6434
    %v7339 = vunpack.c.h.s8.bf16 %v6435
    %v7340 = vunpack.c.h.s8.bf16 %v6436
    %v7341 = vunpack.c.h.s8.bf16 %v6437
    %v7342 = vunpack.c.h.s8.bf16 %v6438
    %v7343 = vunpack.c.h.s8.bf16 %v6439
    %v7344 = vunpack.c.h.s8.bf16 %v6440
    %v7345 = vunpack.c.h.s8.bf16 %v6441
    %v7346 = vunpack.c.h.s8.bf16 %v6442
    %v7347 = vunpack.c.h.s8.bf16 %v6443
    %v7348 = vunpack.c.h.s8.bf16 %v6444
    %v7349 = vunpack.c.l.s8.bf16 %v6445
    %v7350 = vunpack.c.l.s8.bf16 %v6446
    %v7351 = vunpack.c.l.s8.bf16 %v6447
    %v7352 = vunpack.c.l.s8.bf16 %v6448
    %v7353 = vunpack.c.l.s8.bf16 %v6449
    %v7354 = vunpack.c.l.s8.bf16 %v6450
    %v7355 = vunpack.c.l.s8.bf16 %v6451
    %v7356 = vunpack.c.l.s8.bf16 %v6452
    %v7357 = vunpack.c.l.s8.bf16 %v6453
    %v7358 = vunpack.c.l.s8.bf16 %v6454
    %v7359 = vunpack.c.l.s8.bf16 %v6455
    %v7360 = vunpack.c.l.s8.bf16 %v6456
    %v7361 = vunpack.c.l.s8.bf16 %v6457
    %v7362 = vunpack.c.l.s8.bf16 %v6458
    %v7363 = vunpack.c.l.s8.bf16 %v6459
    %v7364 = vunpack.c.l.s8.bf16 %v6460
    %v7365 = vunpack.c.h.s8.bf16 %v6445
    %v7366 = vunpack.c.h.s8.bf16 %v6446
    %v7367 = vunpack.c.h.s8.bf16 %v6447
    %v7368 = vunpack.c.h.s8.bf16 %v6448
    %v7369 = vunpack.c.h.s8.bf16 %v6449
    %v7370 = vunpack.c.h.s8.bf16 %v6450
    %v7371 = vunpack.c.h.s8.bf16 %v6451
    %v7372 = vunpack.c.h.s8.bf16 %v6452
    %v7373 = vunpack.c.h.s8.bf16 %v6453
    %v7374 = vunpack.c.h.s8.bf16 %v6454
    %v7375 = vunpack.c.h.s8.bf16 %v6455
    %v7376 = vunpack.c.h.s8.bf16 %v6456
    %v7377 = vunpack.c.h.s8.bf16 %v6457
    %v7378 = vunpack.c.h.s8.bf16 %v6458
    %v7379 = vunpack.c.h.s8.bf16 %v6459
    %v7380 = vunpack.c.h.s8.bf16 %v6460
    %v7381 = vunpack.c.l.s8.bf16 %v6461
    %v7382 = vunpack.c.l.s8.bf16 %v6462
    %v7383 = vunpack.c.l.s8.bf16 %v6463
    %v7384 = vunpack.c.l.s8.bf16 %v6464
    %v7385 = vunpack.c.l.s8.bf16 %v6465
    %v7386 = vunpack.c.l.s8.bf16 %v6466
    %v7387 = vunpack.c.l.s8.bf16 %v6467
    %v7388 = vunpack.c.l.s8.bf16 %v6468
    %v7389 = vunpack.c.l.s8.bf16 %v6469
    %v7390 = vunpack.c.l.s8.bf16 %v6470
    %v7391 = vunpack.c.l.s8.bf16 %v6471
    %v7392 = vunpack.c.l.s8.bf16 %v6472
    %v7393 = vunpack.c.l.s8.bf16 %v6473
    %v7394 = vunpack.c.l.s8.bf16 %v6474
    %v7395 = vunpack.c.l.s8.bf16 %v6475
    %v7396 = vunpack.c.l.s8.bf16 %v6476
    %v7397 = vunpack.c.h.s8.bf16 %v6461
    %v7398 = vunpack.c.h.s8.bf16 %v6462
    %v7399 = vunpack.c.h.s8.bf16 %v6463
    %v7400 = vunpack.c.h.s8.bf16 %v6464
    %v7401 = vunpack.c.h.s8.bf16 %v6465
    %v7402 = vunpack.c.h.s8.bf16 %v6466
    %v7403 = vunpack.c.h.s8.bf16 %v6467
    %v7404 = vunpack.c.h.s8.bf16 %v6468
    %v7405 = vunpack.c.h.s8.bf16 %v6469
    %v7406 = vunpack.c.h.s8.bf16 %v6470
    %v7407 = vunpack.c.h.s8.bf16 %v6471
    %v7408 = vunpack.c.h.s8.bf16 %v6472
    %v7409 = vunpack.c.h.s8.bf16 %v6473
    %v7410 = vunpack.c.h.s8.bf16 %v6474
    %v7411 = vunpack.c.h.s8.bf16 %v6475
    %v7412 = vunpack.c.h.s8.bf16 %v6476
    %v7413 = vunpack.c.l.s8.bf16 %v6477
    %v7414 = vunpack.c.l.s8.bf16 %v6478
    %v7415 = vunpack.c.l.s8.bf16 %v6479
    %v7416 = vunpack.c.l.s8.bf16 %v6480
    %v7417 = vunpack.c.l.s8.bf16 %v6481
    %v7418 = vunpack.c.l.s8.bf16 %v6482
    %v7419 = vunpack.c.l.s8.bf16 %v6483
    %v7420 = vunpack.c.l.s8.bf16 %v6484
    %v7421 = vunpack.c.l.s8.bf16 %v6485
    %v7422 = vunpack.c.l.s8.bf16 %v6486
    %v7423 = vunpack.c.l.s8.bf16 %v6487
    %v7424 = vunpack.c.l.s8.bf16 %v6488
    %v7425 = vunpack.c.l.s8.bf16 %v6489
    %v7426 = vunpack.c.l.s8.bf16 %v6490
    %v7427 = vunpack.c.l.s8.bf16 %v6491
    %v7428 = vunpack.c.l.s8.bf16 %v6492
    %v7429 = vunpack.c.h.s8.bf16 %v6477
    %v7430 = vunpack.c.h.s8.bf16 %v6478
    %v7431 = vunpack.c.h.s8.bf16 %v6479
    %v7432 = vunpack.c.h.s8.bf16 %v6480
    %v7433 = vunpack.c.h.s8.bf16 %v6481
    %v7434 = vunpack.c.h.s8.bf16 %v6482
    %v7435 = vunpack.c.h.s8.bf16 %v6483
    %v7436 = vunpack.c.h.s8.bf16 %v6484
    %v7437 = vunpack.c.h.s8.bf16 %v6485
    %v7438 = vunpack.c.h.s8.bf16 %v6486
    %v7439 = vunpack.c.h.s8.bf16 %v6487
    %v7440 = vunpack.c.h.s8.bf16 %v6488
    %v7441 = vunpack.c.h.s8.bf16 %v6489
    %v7442 = vunpack.c.h.s8.bf16 %v6490
    %v7443 = vunpack.c.h.s8.bf16 %v6491
    %v7444 = vunpack.c.h.s8.bf16 %v6492
    %v7445 = vunpack.c.l.s8.bf16 %v6493
    %v7446 = vunpack.c.l.s8.bf16 %v6494
    %v7447 = vunpack.c.l.s8.bf16 %v6495
    %v7448 = vunpack.c.l.s8.bf16 %v6496
    %v7449 = vunpack.c.l.s8.bf16 %v6497
    %v7450 = vunpack.c.l.s8.bf16 %v6498
    %v7451 = vunpack.c.l.s8.bf16 %v6499
    %v7452 = vunpack.c.l.s8.bf16 %v6500
    %v7453 = vunpack.c.l.s8.bf16 %v6501
    %v7454 = vunpack.c.l.s8.bf16 %v6502
    %v7455 = vunpack.c.l.s8.bf16 %v6503
    %v7456 = vunpack.c.l.s8.bf16 %v6504
    %v7457 = vunpack.c.l.s8.bf16 %v6505
    %v7458 = vunpack.c.l.s8.bf16 %v6506
    %v7459 = vunpack.c.l.s8.bf16 %v6507
    %v7460 = vunpack.c.l.s8.bf16 %v6508
    %v7461 = vunpack.c.h.s8.bf16 %v6493
    %v7462 = vunpack.c.h.s8.bf16 %v6494
    %v7463 = vunpack.c.h.s8.bf16 %v6495
    %v7464 = vunpack.c.h.s8.bf16 %v6496
    %v7465 = vunpack.c.h.s8.bf16 %v6497
    %v7466 = vunpack.c.h.s8.bf16 %v6498
    %v7467 = vunpack.c.h.s8.bf16 %v6499
    %v7468 = vunpack.c.h.s8.bf16 %v6500
    %v7469 = vunpack.c.h.s8.bf16 %v6501
    %v7470 = vunpack.c.h.s8.bf16 %v6502
    %v7471 = vunpack.c.h.s8.bf16 %v6503
    %v7472 = vunpack.c.h.s8.bf16 %v6504
    %v7473 = vunpack.c.h.s8.bf16 %v6505
    %v7474 = vunpack.c.h.s8.bf16 %v6506
    %v7475 = vunpack.c.h.s8.bf16 %v6507
    %v7476 = vunpack.c.h.s8.bf16 %v6508
    %v7477 = vunpack.c.l.s8.bf16 %v6509
    %v7478 = vunpack.c.l.s8.bf16 %v6510
    %v7479 = vunpack.c.l.s8.bf16 %v6511
    %v7480 = vunpack.c.l.s8.bf16 %v6512
    %v7481 = vunpack.c.l.s8.bf16 %v6513
    %v7482 = vunpack.c.l.s8.bf16 %v6514
    %v7483 = vunpack.c.l.s8.bf16 %v6515
    %v7484 = vunpack.c.l.s8.bf16 %v6516
    %v7485 = vunpack.c.l.s8.bf16 %v6517
    %v7486 = vunpack.c.l.s8.bf16 %v6518
    %v7487 = vunpack.c.l.s8.bf16 %v6519
    %v7488 = vunpack.c.l.s8.bf16 %v6520
    %v7489 = vunpack.c.l.s8.bf16 %v6521
    %v7490 = vunpack.c.l.s8.bf16 %v6522
    %v7491 = vunpack.c.l.s8.bf16 %v6523
    %v7492 = vunpack.c.l.s8.bf16 %v6524
    %v7493 = vunpack.c.h.s8.bf16 %v6509
    %v7494 = vunpack.c.h.s8.bf16 %v6510
    %v7495 = vunpack.c.h.s8.bf16 %v6511
    %v7496 = vunpack.c.h.s8.bf16 %v6512
    %v7497 = vunpack.c.h.s8.bf16 %v6513
    %v7498 = vunpack.c.h.s8.bf16 %v6514
    %v7499 = vunpack.c.h.s8.bf16 %v6515
    %v7500 = vunpack.c.h.s8.bf16 %v6516
    %v7501 = vunpack.c.h.s8.bf16 %v6517
    %v7502 = vunpack.c.h.s8.bf16 %v6518
    %v7503 = vunpack.c.h.s8.bf16 %v6519
    %v7504 = vunpack.c.h.s8.bf16 %v6520
    %v7505 = vunpack.c.h.s8.bf16 %v6521
    %v7506 = vunpack.c.h.s8.bf16 %v6522
    %v7507 = vunpack.c.h.s8.bf16 %v6523
    %v7508 = vunpack.c.h.s8.bf16 %v6524
    %v7509 = vunpack.c.l.s8.bf16 %v6525
    %v7510 = vunpack.c.l.s8.bf16 %v6526
    %v7511 = vunpack.c.l.s8.bf16 %v6527
    %v7512 = vunpack.c.l.s8.bf16 %v6528
    %v7513 = vunpack.c.l.s8.bf16 %v6529
    %v7514 = vunpack.c.l.s8.bf16 %v6530
    %v7515 = vunpack.c.l.s8.bf16 %v6531
    %v7516 = vunpack.c.l.s8.bf16 %v6532
    %v7517 = vunpack.c.l.s8.bf16 %v6533
    %v7518 = vunpack.c.l.s8.bf16 %v6534
    %v7519 = vunpack.c.l.s8.bf16 %v6535
    %v7520 = vunpack.c.l.s8.bf16 %v6536
    %v7521 = vunpack.c.l.s8.bf16 %v6537
    %v7522 = vunpack.c.l.s8.bf16 %v6538
    %v7523 = vunpack.c.l.s8.bf16 %v6539
    %v7524 = vunpack.c.l.s8.bf16 %v6540
    %v7525 = vunpack.c.h.s8.bf16 %v6525
    %v7526 = vunpack.c.h.s8.bf16 %v6526
    %v7527 = vunpack.c.h.s8.bf16 %v6527
    %v7528 = vunpack.c.h.s8.bf16 %v6528
    %v7529 = vunpack.c.h.s8.bf16 %v6529
    %v7530 = vunpack.c.h.s8.bf16 %v6530
    %v7531 = vunpack.c.h.s8.bf16 %v6531
    %v7532 = vunpack.c.h.s8.bf16 %v6532
    %v7533 = vunpack.c.h.s8.bf16 %v6533
    %v7534 = vunpack.c.h.s8.bf16 %v6534
    %v7535 = vunpack.c.h.s8.bf16 %v6535
    %v7536 = vunpack.c.h.s8.bf16 %v6536
    %v7537 = vunpack.c.h.s8.bf16 %v6537
    %v7538 = vunpack.c.h.s8.bf16 %v6538
    %v7539 = vunpack.c.h.s8.bf16 %v6539
    %v7540 = vunpack.c.h.s8.bf16 %v6540
    %v7541 = vunpack.c.l.s8.bf16 %v6541
    %v7542 = vunpack.c.l.s8.bf16 %v6542
    %v7543 = vunpack.c.l.s8.bf16 %v6543
    %v7544 = vunpack.c.l.s8.bf16 %v6544
    %v7545 = vunpack.c.l.s8.bf16 %v6545
    %v7546 = vunpack.c.l.s8.bf16 %v6546
    %v7547 = vunpack.c.l.s8.bf16 %v6547
    %v7548 = vunpack.c.l.s8.bf16 %v6548
    %v7549 = vunpack.c.l.s8.bf16 %v6549
    %v7550 = vunpack.c.l.s8.bf16 %v6550
    %v7551 = vunpack.c.l.s8.bf16 %v6551
    %v7552 = vunpack.c.l.s8.bf16 %v6552
    %v7553 = vunpack.c.l.s8.bf16 %v6553
    %v7554 = vunpack.c.l.s8.bf16 %v6554
    %v7555 = vunpack.c.l.s8.bf16 %v6555
    %v7556 = vunpack.c.l.s8.bf16 %v6556
    %v7557 = vunpack.c.h.s8.bf16 %v6541
    %v7558 = vunpack.c.h.s8.bf16 %v6542
    %v7559 = vunpack.c.h.s8.bf16 %v6543
    %v7560 = vunpack.c.h.s8.bf16 %v6544
    %v7561 = vunpack.c.h.s8.bf16 %v6545
    %v7562 = vunpack.c.h.s8.bf16 %v6546
    %v7563 = vunpack.c.h.s8.bf16 %v6547
    %v7564 = vunpack.c.h.s8.bf16 %v6548
    %v7565 = vunpack.c.h.s8.bf16 %v6549
    %v7566 = vunpack.c.h.s8.bf16 %v6550
    %v7567 = vunpack.c.h.s8.bf16 %v6551
    %v7568 = vunpack.c.h.s8.bf16 %v6552
    %v7569 = vunpack.c.h.s8.bf16 %v6553
    %v7570 = vunpack.c.h.s8.bf16 %v6554
    %v7571 = vunpack.c.h.s8.bf16 %v6555
    %v7572 = vunpack.c.h.s8.bf16 %v6556
    %v7573 = vunpack.c.l.s8.bf16 %v6557
    %v7574 = vunpack.c.l.s8.bf16 %v6558
    %v7575 = vunpack.c.l.s8.bf16 %v6559
    %v7576 = vunpack.c.l.s8.bf16 %v6560
    %v7577 = vunpack.c.l.s8.bf16 %v6561
    %v7578 = vunpack.c.l.s8.bf16 %v6562
    %v7579 = vunpack.c.l.s8.bf16 %v6563
    %v7580 = vunpack.c.l.s8.bf16 %v6564
    %v7581 = vunpack.c.l.s8.bf16 %v6565
    %v7582 = vunpack.c.l.s8.bf16 %v6566
    %v7583 = vunpack.c.l.s8.bf16 %v6567
    %v7584 = vunpack.c.l.s8.bf16 %v6568
    %v7585 = vunpack.c.l.s8.bf16 %v6569
    %v7586 = vunpack.c.l.s8.bf16 %v6570
    %v7587 = vunpack.c.l.s8.bf16 %v6571
    %v7588 = vunpack.c.l.s8.bf16 %v6572
    %v7589 = vunpack.c.h.s8.bf16 %v6557
    %v7590 = vunpack.c.h.s8.bf16 %v6558
    %v7591 = vunpack.c.h.s8.bf16 %v6559
    %v7592 = vunpack.c.h.s8.bf16 %v6560
    %v7593 = vunpack.c.h.s8.bf16 %v6561
    %v7594 = vunpack.c.h.s8.bf16 %v6562
    %v7595 = vunpack.c.h.s8.bf16 %v6563
    %v7596 = vunpack.c.h.s8.bf16 %v6564
    %v7597 = vunpack.c.h.s8.bf16 %v6565
    %v7598 = vunpack.c.h.s8.bf16 %v6566
    %v7599 = vunpack.c.h.s8.bf16 %v6567
    %v7600 = vunpack.c.h.s8.bf16 %v6568
    %v7601 = vunpack.c.h.s8.bf16 %v6569
    %v7602 = vunpack.c.h.s8.bf16 %v6570
    %v7603 = vunpack.c.h.s8.bf16 %v6571
    %v7604 = vunpack.c.h.s8.bf16 %v6572
    %7605 = vmatprep.subr.bf16.mxu0 %v6582
    %7606 = vmatpush1.bf16.msra.mxu0 %v6581
    %7607 = vmatprep.subr.bf16.mxu0 %v6598
    %7608 = vmatpush1.bf16.msra.mxu0 %v6597
    %7609 = vmatprep.subr.bf16.mxu0 %v6614
    %7610 = vmatpush1.bf16.msra.mxu0 %v6613
    %7611 = vmatprep.subr.bf16.mxu0 %v6630
    %7612 = vmatpush1.bf16.msra.mxu0 %v6629
    %7613 = vmatprep.subr.bf16.mxu0 %v6646
    %7614 = vmatpush1.bf16.msra.mxu0 %v6645
    %7615 = vmatprep.subr.bf16.mxu0 %v6662
    %7616 = vmatpush1.bf16.msra.mxu0 %v6661
    %7617 = vmatprep.subr.bf16.mxu0 %v6678
    %7618 = vmatpush1.bf16.msra.mxu0 %v6677
    %7619 = vmatprep.subr.bf16.mxu0 %v6694
    %7620 = vmatpush1.bf16.msra.mxu0 %v6693
    %7621 = vmatprep.subr.bf16.mxu0 %v6710
    %7622 = vmatpush1.bf16.msra.mxu0 %v6709
    %7623 = vmatprep.subr.bf16.mxu0 %v6726
    %7624 = vmatpush1.bf16.msra.mxu0 %v6725
    %7625 = vmatprep.subr.bf16.mxu0 %v6742
    %7626 = vmatpush1.bf16.msra.mxu0 %v6741
    %7627 = vmatprep.subr.bf16.mxu0 %v6758
    %7628 = vmatpush1.bf16.msra.mxu0 %v6757
    %7629 = vmatprep.subr.bf16.mxu0 %v6774
    %7630 = vmatpush1.bf16.msra.mxu0 %v6773
    %7631 = vmatprep.subr.bf16.mxu0 %v6790
    %7632 = vmatpush1.bf16.msra.mxu0 %v6789
    %7633 = vmatprep.subr.bf16.mxu0 %v6806
    %7634 = vmatpush1.bf16.msra.mxu0 %v6805
    %7635 = vmatprep.subr.bf16.mxu0 %v6822
    %7636 = vmatpush1.bf16.msra.mxu0 %v6821
    %7637 = vmatprep.mubr.bf16.mxu0 %v6574
    %7638 = vmatmul.mubr.bf16.gmra.mrb[0].mxu0 %v6573
    %v7639 = vpop.f32.mrb[0].mxu0
    %v7640 = vadd.f32 0.0, %v7639
    %v7641 = vpop.f32.mrb[0].mxu0
    %v7642 = vadd.f32 0.0, %v7641
    %v7643 = vpop.f32.mrb[0].mxu0
    %v7644 = vpop.f32.mrb[0].mxu0
    %7645 = vdwg.mxu0
    %7646 = vmatprep.subr.bf16.mxu0 %v6838
    %7647 = vmatpush1.bf16.msra.mxu0 %v6837
    %7648 = vmatprep.subr.bf16.mxu0 %v6854
    %7649 = vmatpush1.bf16.msra.mxu0 %v6853
    %7650 = vmatprep.subr.bf16.mxu0 %v6870
    %7651 = vmatpush1.bf16.msra.mxu0 %v6869
    %7652 = vmatprep.subr.bf16.mxu0 %v6886
    %7653 = vmatpush1.bf16.msra.mxu0 %v6885
    %7654 = vmatprep.subr.bf16.mxu0 %v6902
    %7655 = vmatpush1.bf16.msra.mxu0 %v6901
    %7656 = vmatprep.subr.bf16.mxu0 %v6918
    %7657 = vmatpush1.bf16.msra.mxu0 %v6917
    %7658 = vmatprep.subr.bf16.mxu0 %v6934
    %7659 = vmatpush1.bf16.msra.mxu0 %v6933
    %7660 = vmatprep.subr.bf16.mxu0 %v6950
    %7661 = vmatpush1.bf16.msra.mxu0 %v6949
    %7662 = vmatprep.subr.bf16.mxu0 %v6966
    %7663 = vmatpush1.bf16.msra.mxu0 %v6965
    %7664 = vmatprep.subr.bf16.mxu0 %v6982
    %7665 = vmatpush1.bf16.msra.mxu0 %v6981
    %7666 = vmatprep.subr.bf16.mxu0 %v6998
    %7667 = vmatpush1.bf16.msra.mxu0 %v6997
    %7668 = vmatprep.subr.bf16.mxu0 %v7014
    %7669 = vmatpush1.bf16.msra.mxu0 %v7013
    %7670 = vmatprep.subr.bf16.mxu0 %v7030
    %7671 = vmatpush1.bf16.msra.mxu0 %v7029
    %7672 = vmatprep.subr.bf16.mxu0 %v7046
    %7673 = vmatpush1.bf16.msra.mxu0 %v7045
    %7674 = vmatprep.subr.bf16.mxu0 %v7062
    %7675 = vmatpush1.bf16.msra.mxu0 %v7061
    %7676 = vmatprep.subr.bf16.mxu0 %v7078
    %7677 = vmatpush1.bf16.msra.mxu0 %v7077
    %7678 = vmatprep.mubr.bf16.mxu0 %v6576
    %7679 = vmatmul.mubr.bf16.gmra.mrb[0].mxu0 %v6575
    %v7680 = vpop.f32.mrb[0].mxu0
    %v7681 = vadd.f32 %v7640, %v7680
    %v7682 = vpop.f32.mrb[0].mxu0
    %v7683 = vadd.f32 %v7642, %v7682
    %v7684 = vpop.f32.mrb[0].mxu0
    %v7685 = vpop.f32.mrb[0].mxu0
    %7686 = vdwg.mxu0
    %7687 = vmatprep.subr.bf16.mxu0 %v7094
    %7688 = vmatpush1.bf16.msra.mxu0 %v7093
    %7689 = vmatprep.subr.bf16.mxu0 %v7110
    %7690 = vmatpush1.bf16.msra.mxu0 %v7109
    %7691 = vmatprep.subr.bf16.mxu0 %v7126
    %7692 = vmatpush1.bf16.msra.mxu0 %v7125
    %7693 = vmatprep.subr.bf16.mxu0 %v7142
    %7694 = vmatpush1.bf16.msra.mxu0 %v7141
    %7695 = vmatprep.subr.bf16.mxu0 %v7158
    %7696 = vmatpush1.bf16.msra.mxu0 %v7157
    %7697 = vmatprep.subr.bf16.mxu0 %v7174
    %7698 = vmatpush1.bf16.msra.mxu0 %v7173
    %7699 = vmatprep.subr.bf16.mxu0 %v7190
    %7700 = vmatpush1.bf16.msra.mxu0 %v7189
    %7701 = vmatprep.subr.bf16.mxu0 %v7206
    %7702 = vmatpush1.bf16.msra.mxu0 %v7205
    %7703 = vmatprep.subr.bf16.mxu0 %v7222
    %7704 = vmatpush1.bf16.msra.mxu0 %v7221
    %7705 = vmatprep.subr.bf16.mxu0 %v7238
    %7706 = vmatpush1.bf16.msra.mxu0 %v7237
    %7707 = vmatprep.subr.bf16.mxu0 %v7254
    %7708 = vmatpush1.bf16.msra.mxu0 %v7253
    %7709 = vmatprep.subr.bf16.mxu0 %v7270
    %7710 = vmatpush1.bf16.msra.mxu0 %v7269
    %7711 = vmatprep.subr.bf16.mxu0 %v7286
    %7712 = vmatpush1.bf16.msra.mxu0 %v7285
    %7713 = vmatprep.subr.bf16.mxu0 %v7302
    %7714 = vmatpush1.bf16.msra.mxu0 %v7301
    %7715 = vmatprep.subr.bf16.mxu0 %v7318
    %7716 = vmatpush1.bf16.msra.mxu0 %v7317
    %7717 = vmatprep.subr.bf16.mxu0 %v7334
    %7718 = vmatpush1.bf16.msra.mxu0 %v7333
    %7719 = vmatprep.mubr.bf16.mxu0 %v6578
    %7720 = vmatmul.mubr.bf16.gmra.mrb[0].mxu0 %v6577
    %v7721 = vpop.f32.mrb[0].mxu0
    %v7722 = vadd.f32 %v7681, %v7721
    %v7723 = vpop.f32.mrb[0].mxu0
    %v7724 = vadd.f32 %v7683, %v7723
    %v7725 = vpop.f32.mrb[0].mxu0
    %v7726 = vpop.f32.mrb[0].mxu0
    %7727 = vdwg.mxu0
    %7728 = vmatprep.subr.bf16.mxu0 %v7350
    %7729 = vmatpush1.bf16.msra.mxu0 %v7349
    %7730 = vmatprep.subr.bf16.mxu0 %v7366
    %7731 = vmatpush1.bf16.msra.mxu0 %v7365
    %7732 = vmatprep.subr.bf16.mxu0 %v7382
    %7733 = vmatpush1.bf16.msra.mxu0 %v7381
    %7734 = vmatprep.subr.bf16.mxu0 %v7398
    %7735 = vmatpush1.bf16.msra.mxu0 %v7397
    %7736 = vmatprep.subr.bf16.mxu0 %v7414
    %7737 = vmatpush1.bf16.msra.mxu0 %v7413
    %7738 = vmatprep.subr.bf16.mxu0 %v7430
    %7739 = vmatpush1.bf16.msra.mxu0 %v7429
    %7740 = vmatprep.subr.bf16.mxu0 %v7446
    %7741 = vmatpush1.bf16.msra.mxu0 %v7445
    %7742 = vmatprep.subr.bf16.mxu0 %v7462
    %7743 = vmatpush1.bf16.msra.mxu0 %v7461
    %7744 = vmatprep.subr.bf16.mxu0 %v7478
    %7745 = vmatpush1.bf16.msra.mxu0 %v7477
    %7746 = vmatprep.subr.bf16.mxu0 %v7494
    %7747 = vmatpush1.bf16.msra.mxu0 %v7493
    %7748 = vmatprep.subr.bf16.mxu0 %v7510
    %7749 = vmatpush1.bf16.msra.mxu0 %v7509
    %7750 = vmatprep.subr.bf16.mxu0 %v7526
    %7751 = vmatpush1.bf16.msra.mxu0 %v7525
    %7752 = vmatprep.subr.bf16.mxu0 %v7542
    %7753 = vmatpush1.bf16.msra.mxu0 %v7541
    %7754 = vmatprep.subr.bf16.mxu0 %v7558
    %7755 = vmatpush1.bf16.msra.mxu0 %v7557
    %7756 = vmatprep.subr.bf16.mxu0 %v7574
    %7757 = vmatpush1.bf16.msra.mxu0 %v7573
    %7758 = vmatprep.subr.bf16.mxu0 %v7590
    %7759 = vmatpush1.bf16.msra.mxu0 %v7589
    %7760 = vmatprep.mubr.bf16.mxu0 %v6580
    %7761 = vmatmul.mubr.bf16.gmra.mrb[0].mxu0 %v6579
    %v7762 = vpop.f32.mrb[0].mxu0
    %v7763 = vadd.f32 %v7722, %v7762
    %v7764 = vpop.f32.mrb[0].mxu0
    %v7765 = vadd.f32 %v7724, %v7764
    %v7766 = vpop.f32.mrb[0].mxu0
    %v7767 = vpop.f32.mrb[0].mxu0
    %7768 = vdwg.mxu0
    %7769 = vmatprep.subr.bf16.mxu0 %v6584
    %7770 = vmatpush1.bf16.msra.mxu0 %v6583
    %7771 = vmatprep.subr.bf16.mxu0 %v6600
    %7772 = vmatpush1.bf16.msra.mxu0 %v6599
    %7773 = vmatprep.subr.bf16.mxu0 %v6616
    %7774 = vmatpush1.bf16.msra.mxu0 %v6615
    %7775 = vmatprep.subr.bf16.mxu0 %v6632
    %7776 = vmatpush1.bf16.msra.mxu0 %v6631
    %7777 = vmatprep.subr.bf16.mxu0 %v6648
    %7778 = vmatpush1.bf16.msra.mxu0 %v6647
    %7779 = vmatprep.subr.bf16.mxu0 %v6664
    %7780 = vmatpush1.bf16.msra.mxu0 %v6663
    %7781 = vmatprep.subr.bf16.mxu0 %v6680
    %7782 = vmatpush1.bf16.msra.mxu0 %v6679
    %7783 = vmatprep.subr.bf16.mxu0 %v6696
    %7784 = vmatpush1.bf16.msra.mxu0 %v6695
    %7785 = vmatprep.subr.bf16.mxu0 %v6712
    %7786 = vmatpush1.bf16.msra.mxu0 %v6711
    %7787 = vmatprep.subr.bf16.mxu0 %v6728
    %7788 = vmatpush1.bf16.msra.mxu0 %v6727
    %7789 = vmatprep.subr.bf16.mxu0 %v6744
    %7790 = vmatpush1.bf16.msra.mxu0 %v6743
    %7791 = vmatprep.subr.bf16.mxu0 %v6760
    %7792 = vmatpush1.bf16.msra.mxu0 %v6759
    %7793 = vmatprep.subr.bf16.mxu0 %v6776
    %7794 = vmatpush1.bf16.msra.mxu0 %v6775
    %7795 = vmatprep.subr.bf16.mxu0 %v6792
    %7796 = vmatpush1.bf16.msra.mxu0 %v6791
    %7797 = vmatprep.subr.bf16.mxu0 %v6808
    %7798 = vmatpush1.bf16.msra.mxu0 %v6807
    %7799 = vmatprep.subr.bf16.mxu0 %v6824
    %7800 = vmatpush1.bf16.msra.mxu0 %v6823
    %7801 = vmatprep.mubr.bf16.mxu0 %v6574
    %7802 = vmatmul.mubr.bf16.gmra.mrb[0].mxu0 %v6573
    %v7803 = vpop.f32.mrb[0].mxu0
    %v7804 = vadd.f32 0.0, %v7803
    %v7805 = vpop.f32.mrb[0].mxu0
    %v7806 = vadd.f32 0.0, %v7805
    %v7807 = vpop.f32.mrb[0].mxu0
    %v7808 = vpop.f32.mrb[0].mxu0
    %7809 = vdwg.mxu0
    %7810 = vmatprep.subr.bf16.mxu0 %v6840
    %7811 = vmatpush1.bf16.msra.mxu0 %v6839
    %7812 = vmatprep.subr.bf16.mxu0 %v6856
    %7813 = vmatpush1.bf16.msra.mxu0 %v6855
    %7814 = vmatprep.subr.bf16.mxu0 %v6872
    %7815 = vmatpush1.bf16.msra.mxu0 %v6871
    %7816 = vmatprep.subr.bf16.mxu0 %v6888
    %7817 = vmatpush1.bf16.msra.mxu0 %v6887
    %7818 = vmatprep.subr.bf16.mxu0 %v6904
    %7819 = vmatpush1.bf16.msra.mxu0 %v6903
    %7820 = vmatprep.subr.bf16.mxu0 %v6920
    %7821 = vmatpush1.bf16.msra.mxu0 %v6919
    %7822 = vmatprep.subr.bf16.mxu0 %v6936
    %7823 = vmatpush1.bf16.msra.mxu0 %v6935
    %7824 = vmatprep.subr.bf16.mxu0 %v6952
    %7825 = vmatpush1.bf16.msra.mxu0 %v6951
    %7826 = vmatprep.subr.bf16.mxu0 %v6968
    %7827 = vmatpush1.bf16.msra.mxu0 %v6967
    %7828 = vmatprep.subr.bf16.mxu0 %v6984
    %7829 = vmatpush1.bf16.msra.mxu0 %v6983
    %7830 = vmatprep.subr.bf16.mxu0 %v7000
    %7831 = vmatpush1.bf16.msra.mxu0 %v6999
    %7832 = vmatprep.subr.bf16.mxu0 %v7016
    %7833 = vmatpush1.bf16.msra.mxu0 %v7015
    %7834 = vmatprep.subr.bf16.mxu0 %v7032
    %7835 = vmatpush1.bf16.msra.mxu0 %v7031
    %7836 = vmatprep.subr.bf16.mxu0 %v7048
    %7837 = vmatpush1.bf16.msra.mxu0 %v7047
    %7838 = vmatprep.subr.bf16.mxu0 %v7064
    %7839 = vmatpush1.bf16.msra.mxu0 %v7063
    %7840 = vmatprep.subr.bf16.mxu0 %v7080
    %7841 = vmatpush1.bf16.msra.mxu0 %v7079
    %7842 = vmatprep.mubr.bf16.mxu0 %v6576
    %7843 = vmatmul.mubr.bf16.gmra.mrb[0].mxu0 %v6575
    %v7844 = vpop.f32.mrb[0].mxu0
    %v7845 = vadd.f32 %v7804, %v7844
    %v7846 = vpop.f32.mrb[0].mxu0
    %v7847 = vadd.f32 %v7806, %v7846
    %v7848 = vpop.f32.mrb[0].mxu0
    %v7849 = vpop.f32.mrb[0].mxu0
    %7850 = vdwg.mxu0
    %7851 = vmatprep.subr.bf16.mxu0 %v7096
    %7852 = vmatpush1.bf16.msra.mxu0 %v7095
    %7853 = vmatprep.subr.bf16.mxu0 %v7112
    %7854 = vmatpush1.bf16.msra.mxu0 %v7111
    %7855 = vmatprep.subr.bf16.mxu0 %v7128
    %7856 = vmatpush1.bf16.msra.mxu0 %v7127
    %7857 = vmatprep.subr.bf16.mxu0 %v7144
    %7858 = vmatpush1.bf16.msra.mxu0 %v7143
    %7859 = vmatprep.subr.bf16.mxu0 %v7160
    %7860 = vmatpush1.bf16.msra.mxu0 %v7159
    %7861 = vmatprep.subr.bf16.mxu0 %v7176
    %7862 = vmatpush1.bf16.msra.mxu0 %v7175
    %7863 = vmatprep.subr.bf16.mxu0 %v7192
    %7864 = vmatpush1.bf16.msra.mxu0 %v7191
    %7865 = vmatprep.subr.bf16.mxu0 %v7208
    %7866 = vmatpush1.bf16.msra.mxu0 %v7207
    %7867 = vmatprep.subr.bf16.mxu0 %v7224
    %7868 = vmatpush1.bf16.msra.mxu0 %v7223
    %7869 = vmatprep.subr.bf16.mxu0 %v7240
    %7870 = vmatpush1.bf16.msra.mxu0 %v7239
    %7871 = vmatprep.subr.bf16.mxu0 %v7256
    %7872 = vmatpush1.bf16.msra.mxu0 %v7255
    %7873 = vmatprep.subr.bf16.mxu0 %v7272
    %7874 = vmatpush1.bf16.msra.mxu0 %v7271
    %7875 = vmatprep.subr.bf16.mxu0 %v7288
    %7876 = vmatpush1.bf16.msra.mxu0 %v7287
    %7877 = vmatprep.subr.bf16.mxu0 %v7304
    %7878 = vmatpush1.bf16.msra.mxu0 %v7303
    %7879 = vmatprep.subr.bf16.mxu0 %v7320
    %7880 = vmatpush1.bf16.msra.mxu0 %v7319
    %7881 = vmatprep.subr.bf16.mxu0 %v7336
    %7882 = vmatpush1.bf16.msra.mxu0 %v7335
    %7883 = vmatprep.mubr.bf16.mxu0 %v6578
    %7884 = vmatmul.mubr.bf16.gmra.mrb[0].mxu0 %v6577
    %v7885 = vpop.f32.mrb[0].mxu0
    %v7886 = vadd.f32 %v7845, %v7885
    %v7887 = vpop.f32.mrb[0].mxu0
    %v7888 = vadd.f32 %v7847, %v7887
    %v7889 = vpop.f32.mrb[0].mxu0
    %v7890 = vpop.f32.mrb[0].mxu0
    %7891 = vdwg.mxu0
    %7892 = vmatprep.subr.bf16.mxu0 %v7352
    %7893 = vmatpush1.bf16.msra.mxu0 %v7351
    %7894 = vmatprep.subr.bf16.mxu0 %v7368
    %7895 = vmatpush1.bf16.msra.mxu0 %v7367
    %7896 = vmatprep.subr.bf16.mxu0 %v7384
    %7897 = vmatpush1.bf16.msra.mxu0 %v7383
    %7898 = vmatprep.subr.bf16.mxu0 %v7400
    %7899 = vmatpush1.bf16.msra.mxu0 %v7399
    %7900 = vmatprep.subr.bf16.mxu0 %v7416
    %7901 = vmatpush1.bf16.msra.mxu0 %v7415
    %7902 = vmatprep.subr.bf16.mxu0 %v7432
    %7903 = vmatpush1.bf16.msra.mxu0 %v7431
    %7904 = vmatprep.subr.bf16.mxu0 %v7448
    %7905 = vmatpush1.bf16.msra.mxu0 %v7447
    %7906 = vmatprep.subr.bf16.mxu0 %v7464
    %7907 = vmatpush1.bf16.msra.mxu0 %v7463
    %7908 = vmatprep.subr.bf16.mxu0 %v7480
    %7909 = vmatpush1.bf16.msra.mxu0 %v7479
    %7910 = vmatprep.subr.bf16.mxu0 %v7496
    %7911 = vmatpush1.bf16.msra.mxu0 %v7495
    %7912 = vmatprep.subr.bf16.mxu0 %v7512
    %7913 = vmatpush1.bf16.msra.mxu0 %v7511
    %7914 = vmatprep.subr.bf16.mxu0 %v7528
    %7915 = vmatpush1.bf16.msra.mxu0 %v7527
    %7916 = vmatprep.subr.bf16.mxu0 %v7544
    %7917 = vmatpush1.bf16.msra.mxu0 %v7543
    %7918 = vmatprep.subr.bf16.mxu0 %v7560
    %7919 = vmatpush1.bf16.msra.mxu0 %v7559
    %7920 = vmatprep.subr.bf16.mxu0 %v7576
    %7921 = vmatpush1.bf16.msra.mxu0 %v7575
    %7922 = vmatprep.subr.bf16.mxu0 %v7592
    %7923 = vmatpush1.bf16.msra.mxu0 %v7591
    %7924 = vmatprep.mubr.bf16.mxu0 %v6580
    %7925 = vmatmul.mubr.bf16.gmra.mrb[0].mxu0 %v6579
    %v7926 = vpop.f32.mrb[0].mxu0
    %v7927 = vadd.f32 %v7886, %v7926
    %v7928 = vpop.f32.mrb[0].mxu0
    %v7929 = vadd.f32 %v7888, %v7928
    %v7930 = vpop.f32.mrb[0].mxu0
    %v7931 = vpop.f32.mrb[0].mxu0
    %7932 = vdwg.mxu0
    %7933 = vmatprep.subr.bf16.mxu0 %v6586
    %7934 = vmatpush1.bf16.msra.mxu0 %v6585
    %7935 = vmatprep.subr.bf16.mxu0 %v6602
    %7936 = vmatpush1.bf16.msra.mxu0 %v6601
    %7937 = vmatprep.subr.bf16.mxu0 %v6618
    %7938 = vmatpush1.bf16.msra.mxu0 %v6617
    %7939 = vmatprep.subr.bf16.mxu0 %v6634
    %7940 = vmatpush1.bf16.msra.mxu0 %v6633
    %7941 = vmatprep.subr.bf16.mxu0 %v6650
    %7942 = vmatpush1.bf16.msra.mxu0 %v6649
    %7943 = vmatprep.subr.bf16.mxu0 %v6666
    %7944 = vmatpush1.bf16.msra.mxu0 %v6665
    %7945 = vmatprep.subr.bf16.mxu0 %v6682
    %7946 = vmatpush1.bf16.msra.mxu0 %v6681
    %7947 = vmatprep.subr.bf16.mxu0 %v6698
    %7948 = vmatpush1.bf16.msra.mxu0 %v6697
    %7949 = vmatprep.subr.bf16.mxu0 %v6714
    %7950 = vmatpush1.bf16.msra.mxu0 %v6713
    %7951 = vmatprep.subr.bf16.mxu0 %v6730
    %7952 = vmatpush1.bf16.msra.mxu0 %v6729
    %7953 = vmatprep.subr.bf16.mxu0 %v6746
    %7954 = vmatpush1.bf16.msra.mxu0 %v6745
    %7955 = vmatprep.subr.bf16.mxu0 %v6762
    %7956 = vmatpush1.bf16.msra.mxu0 %v6761
    %7957 = vmatprep.subr.bf16.mxu0 %v6778
    %7958 = vmatpush1.bf16.msra.mxu0 %v6777
    %7959 = vmatprep.subr.bf16.mxu0 %v6794
    %7960 = vmatpush1.bf16.msra.mxu0 %v6793
    %7961 = vmatprep.subr.bf16.mxu0 %v6810
    %7962 = vmatpush1.bf16.msra.mxu0 %v6809
    %7963 = vmatprep.subr.bf16.mxu0 %v6826
    %7964 = vmatpush1.bf16.msra.mxu0 %v6825
    %7965 = vmatprep.mubr.bf16.mxu0 %v6574
    %7966 = vmatmul.mubr.bf16.gmra.mrb[0].mxu0 %v6573
    %v7967 = vpop.f32.mrb[0].mxu0
    %v7968 = vadd.f32 0.0, %v7967
    %v7969 = vpop.f32.mrb[0].mxu0
    %v7970 = vadd.f32 0.0, %v7969
    %v7971 = vpop.f32.mrb[0].mxu0
    %v7972 = vpop.f32.mrb[0].mxu0
    %7973 = vdwg.mxu0
    %7974 = vmatprep.subr.bf16.mxu0 %v6842
    %7975 = vmatpush1.bf16.msra.mxu0 %v6841
    %7976 = vmatprep.subr.bf16.mxu0 %v6858
    %7977 = vmatpush1.bf16.msra.mxu0 %v6857
    %7978 = vmatprep.subr.bf16.mxu0 %v6874
    %7979 = vmatpush1.bf16.msra.mxu0 %v6873
    %7980 = vmatprep.subr.bf16.mxu0 %v6890
    %7981 = vmatpush1.bf16.msra.mxu0 %v6889
    %7982 = vmatprep.subr.bf16.mxu0 %v6906
    %7983 = vmatpush1.bf16.msra.mxu0 %v6905
    %7984 = vmatprep.subr.bf16.mxu0 %v6922
    %7985 = vmatpush1.bf16.msra.mxu0 %v6921
    %7986 = vmatprep.subr.bf16.mxu0 %v6938
    %7987 = vmatpush1.bf16.msra.mxu0 %v6937
    %7988 = vmatprep.subr.bf16.mxu0 %v6954
    %7989 = vmatpush1.bf16.msra.mxu0 %v6953
    %7990 = vmatprep.subr.bf16.mxu0 %v6970
    %7991 = vmatpush1.bf16.msra.mxu0 %v6969
    %7992 = vmatprep.subr.bf16.mxu0 %v6986
    %7993 = vmatpush1.bf16.msra.mxu0 %v6985
    %7994 = vmatprep.subr.bf16.mxu0 %v7002
    %7995 = vmatpush1.bf16.msra.mxu0 %v7001
    %7996 = vmatprep.subr.bf16.mxu0 %v7018
    %7997 = vmatpush1.bf16.msra.mxu0 %v7017
    %7998 = vmatprep.subr.bf16.mxu0 %v7034
    %7999 = vmatpush1.bf16.msra.mxu0 %v7033
    %8000 = vmatprep.subr.bf16.mxu0 %v7050
    %8001 = vmatpush1.bf16.msra.mxu0 %v7049
    %8002 = vmatprep.subr.bf16.mxu0 %v7066
    %8003 = vmatpush1.bf16.msra.mxu0 %v7065
    %8004 = vmatprep.subr.bf16.mxu0 %v7082
    %8005 = vmatpush1.bf16.msra.mxu0 %v7081
    %8006 = vmatprep.mubr.bf16.mxu0 %v6576
    %8007 = vmatmul.mubr.bf16.gmra.mrb[0].mxu0 %v6575
    %v8008 = vpop.f32.mrb[0].mxu0
    %v8009 = vadd.f32 %v7968, %v8008
    %v8010 = vpop.f32.mrb[0].mxu0
    %v8011 = vadd.f32 %v7970, %v8010
    %v8012 = vpop.f32.mrb[0].mxu0
    %v8013 = vpop.f32.mrb[0].mxu0
    %8014 = vdwg.mxu0
    %8015 = vmatprep.subr.bf16.mxu0 %v7098
    %8016 = vmatpush1.bf16.msra.mxu0 %v7097
    %8017 = vmatprep.subr.bf16.mxu0 %v7114
    %8018 = vmatpush1.bf16.msra.mxu0 %v7113
    %8019 = vmatprep.subr.bf16.mxu0 %v7130
    %8020 = vmatpush1.bf16.msra.mxu0 %v7129
    %8021 = vmatprep.subr.bf16.mxu0 %v7146
    %8022 = vmatpush1.bf16.msra.mxu0 %v7145
    %8023 = vmatprep.subr.bf16.mxu0 %v7162
    %8024 = vmatpush1.bf16.msra.mxu0 %v7161
    %8025 = vmatprep.subr.bf16.mxu0 %v7178
    %8026 = vmatpush1.bf16.msra.mxu0 %v7177
    %8027 = vmatprep.subr.bf16.mxu0 %v7194
    %8028 = vmatpush1.bf16.msra.mxu0 %v7193
    %8029 = vmatprep.subr.bf16.mxu0 %v7210
    %8030 = vmatpush1.bf16.msra.mxu0 %v7209
    %8031 = vmatprep.subr.bf16.mxu0 %v7226
    %8032 = vmatpush1.bf16.msra.mxu0 %v7225
    %8033 = vmatprep.subr.bf16.mxu0 %v7242
    %8034 = vmatpush1.bf16.msra.mxu0 %v7241
    %8035 = vmatprep.subr.bf16.mxu0 %v7258
    %8036 = vmatpush1.bf16.msra.mxu0 %v7257
    %8037 = vmatprep.subr.bf16.mxu0 %v7274
    %8038 = vmatpush1.bf16.msra.mxu0 %v7273
    %8039 = vmatprep.subr.bf16.mxu0 %v7290
    %8040 = vmatpush1.bf16.msra.mxu0 %v7289
    %8041 = vmatprep.subr.bf16.mxu0 %v7306
    %8042 = vmatpush1.bf16.msra.mxu0 %v7305
    %8043 = vmatprep.subr.bf16.mxu0 %v7322
    %8044 = vmatpush1.bf16.msra.mxu0 %v7321
    %8045 = vmatprep.subr.bf16.mxu0 %v7338
    %8046 = vmatpush1.bf16.msra.mxu0 %v7337
    %8047 = vmatprep.mubr.bf16.mxu0 %v6578
    %8048 = vmatmul.mubr.bf16.gmra.mrb[0].mxu0 %v6577
    %v8049 = vpop.f32.mrb[0].mxu0
    %v8050 = vadd.f32 %v8009, %v8049
    %v8051 = vpop.f32.mrb[0].mxu0
    %v8052 = vadd.f32 %v8011, %v8051
    %v8053 = vpop.f32.mrb[0].mxu0
    %v8054 = vpop.f32.mrb[0].mxu0
    %8055 = vdwg.mxu0
    %8056 = vmatprep.subr.bf16.mxu0 %v7354
    %8057 = vmatpush1.bf16.msra.mxu0 %v7353
    %8058 = vmatprep.subr.bf16.mxu0 %v7370
    %8059 = vmatpush1.bf16.msra.mxu0 %v7369
    %8060 = vmatprep.subr.bf16.mxu0 %v7386
    %8061 = vmatpush1.bf16.msra.mxu0 %v7385
    %8062 = vmatprep.subr.bf16.mxu0 %v7402
    %8063 = vmatpush1.bf16.msra.mxu0 %v7401
    %8064 = vmatprep.subr.bf16.mxu0 %v7418
    %8065 = vmatpush1.bf16.msra.mxu0 %v7417
    %8066 = vmatprep.subr.bf16.mxu0 %v7434
    %8067 = vmatpush1.bf16.msra.mxu0 %v7433
    %8068 = vmatprep.subr.bf16.mxu0 %v7450
    %8069 = vmatpush1.bf16.msra.mxu0 %v7449
    %8070 = vmatprep.subr.bf16.mxu0 %v7466
    %8071 = vmatpush1.bf16.msra.mxu0 %v7465
    %8072 = vmatprep.subr.bf16.mxu0 %v7482
    %8073 = vmatpush1.bf16.msra.mxu0 %v7481
    %8074 = vmatprep.subr.bf16.mxu0 %v7498
    %8075 = vmatpush1.bf16.msra.mxu0 %v7497
    %8076 = vmatprep.subr.bf16.mxu0 %v7514
    %8077 = vmatpush1.bf16.msra.mxu0 %v7513
    %8078 = vmatprep.subr.bf16.mxu0 %v7530
    %8079 = vmatpush1.bf16.msra.mxu0 %v7529
    %8080 = vmatprep.subr.bf16.mxu0 %v7546
    %8081 = vmatpush1.bf16.msra.mxu0 %v7545
    %8082 = vmatprep.subr.bf16.mxu0 %v7562
    %8083 = vmatpush1.bf16.msra.mxu0 %v7561
    %8084 = vmatprep.subr.bf16.mxu0 %v7578
    %8085 = vmatpush1.bf16.msra.mxu0 %v7577
    %8086 = vmatprep.subr.bf16.mxu0 %v7594
    %8087 = vmatpush1.bf16.msra.mxu0 %v7593
    %8088 = vmatprep.mubr.bf16.mxu0 %v6580
    %8089 = vmatmul.mubr.bf16.gmra.mrb[0].mxu0 %v6579
    %v8090 = vpop.f32.mrb[0].mxu0
    %v8091 = vadd.f32 %v8050, %v8090
    %v8092 = vpop.f32.mrb[0].mxu0
    %v8093 = vadd.f32 %v8052, %v8092
    %v8094 = vpop.f32.mrb[0].mxu0
    %v8095 = vpop.f32.mrb[0].mxu0
    %8096 = vdwg.mxu0
    %8097 = vmatprep.subr.bf16.mxu0 %v6588
    %8098 = vmatpush1.bf16.msra.mxu0 %v6587
    %8099 = vmatprep.subr.bf16.mxu0 %v6604
    %8100 = vmatpush1.bf16.msra.mxu0 %v6603
    %8101 = vmatprep.subr.bf16.mxu0 %v6620
    %8102 = vmatpush1.bf16.msra.mxu0 %v6619
    %8103 = vmatprep.subr.bf16.mxu0 %v6636
    %8104 = vmatpush1.bf16.msra.mxu0 %v6635
    %8105 = vmatprep.subr.bf16.mxu0 %v6652
    %8106 = vmatpush1.bf16.msra.mxu0 %v6651
    %8107 = vmatprep.subr.bf16.mxu0 %v6668
    %8108 = vmatpush1.bf16.msra.mxu0 %v6667
    %8109 = vmatprep.subr.bf16.mxu0 %v6684
    %8110 = vmatpush1.bf16.msra.mxu0 %v6683
    %8111 = vmatprep.subr.bf16.mxu0 %v6700
    %8112 = vmatpush1.bf16.msra.mxu0 %v6699
    %8113 = vmatprep.subr.bf16.mxu0 %v6716
    %8114 = vmatpush1.bf16.msra.mxu0 %v6715
    %8115 = vmatprep.subr.bf16.mxu0 %v6732
    %8116 = vmatpush1.bf16.msra.mxu0 %v6731
    %8117 = vmatprep.subr.bf16.mxu0 %v6748
    %8118 = vmatpush1.bf16.msra.mxu0 %v6747
    %8119 = vmatprep.subr.bf16.mxu0 %v6764
    %8120 = vmatpush1.bf16.msra.mxu0 %v6763
    %8121 = vmatprep.subr.bf16.mxu0 %v6780
    %8122 = vmatpush1.bf16.msra.mxu0 %v6779
    %8123 = vmatprep.subr.bf16.mxu0 %v6796
    %8124 = vmatpush1.bf16.msra.mxu0 %v6795
    %8125 = vmatprep.subr.bf16.mxu0 %v6812
    %8126 = vmatpush1.bf16.msra.mxu0 %v6811
    %8127 = vmatprep.subr.bf16.mxu0 %v6828
    %8128 = vmatpush1.bf16.msra.mxu0 %v6827
    %8129 = vmatprep.mubr.bf16.mxu0 %v6574
    %8130 = vmatmul.mubr.bf16.gmra.mrb[0].mxu0 %v6573
    %v8131 = vpop.f32.mrb[0].mxu0
    %v8132 = vadd.f32 0.0, %v8131
    %v8133 = vpop.f32.mrb[0].mxu0
    %v8134 = vadd.f32 0.0, %v8133
    %v8135 = vpop.f32.mrb[0].mxu0
    %v8136 = vpop.f32.mrb[0].mxu0
    %8137 = vdwg.mxu0
    %8138 = vmatprep.subr.bf16.mxu0 %v6844
    %8139 = vmatpush1.bf16.msra.mxu0 %v6843
    %8140 = vmatprep.subr.bf16.mxu0 %v6860
    %8141 = vmatpush1.bf16.msra.mxu0 %v6859
    %8142 = vmatprep.subr.bf16.mxu0 %v6876
    %8143 = vmatpush1.bf16.msra.mxu0 %v6875
    %8144 = vmatprep.subr.bf16.mxu0 %v6892
    %8145 = vmatpush1.bf16.msra.mxu0 %v6891
    %8146 = vmatprep.subr.bf16.mxu0 %v6908
    %8147 = vmatpush1.bf16.msra.mxu0 %v6907
    %8148 = vmatprep.subr.bf16.mxu0 %v6924
    %8149 = vmatpush1.bf16.msra.mxu0 %v6923
    %8150 = vmatprep.subr.bf16.mxu0 %v6940
    %8151 = vmatpush1.bf16.msra.mxu0 %v6939
    %8152 = vmatprep.subr.bf16.mxu0 %v6956
    %8153 = vmatpush1.bf16.msra.mxu0 %v6955
    %8154 = vmatprep.subr.bf16.mxu0 %v6972
    %8155 = vmatpush1.bf16.msra.mxu0 %v6971
    %8156 = vmatprep.subr.bf16.mxu0 %v6988
    %8157 = vmatpush1.bf16.msra.mxu0 %v6987
    %8158 = vmatprep.subr.bf16.mxu0 %v7004
    %8159 = vmatpush1.bf16.msra.mxu0 %v7003
    %8160 = vmatprep.subr.bf16.mxu0 %v7020
    %8161 = vmatpush1.bf16.msra.mxu0 %v7019
    %8162 = vmatprep.subr.bf16.mxu0 %v7036
    %8163 = vmatpush1.bf16.msra.mxu0 %v7035
    %8164 = vmatprep.subr.bf16.mxu0 %v7052
    %8165 = vmatpush1.bf16.msra.mxu0 %v7051
    %8166 = vmatprep.subr.bf16.mxu0 %v7068
    %8167 = vmatpush1.bf16.msra.mxu0 %v7067
    %8168 = vmatprep.subr.bf16.mxu0 %v7084
    %8169 = vmatpush1.bf16.msra.mxu0 %v7083
    %8170 = vmatprep.mubr.bf16.mxu0 %v6576
    %8171 = vmatmul.mubr.bf16.gmra.mrb[0].mxu0 %v6575
    %v8172 = vpop.f32.mrb[0].mxu0
    %v8173 = vadd.f32 %v8132, %v8172
    %v8174 = vpop.f32.mrb[0].mxu0
    %v8175 = vadd.f32 %v8134, %v8174
    %v8176 = vpop.f32.mrb[0].mxu0
    %v8177 = vpop.f32.mrb[0].mxu0
    %8178 = vdwg.mxu0
    %8179 = vmatprep.subr.bf16.mxu0 %v7100
    %8180 = vmatpush1.bf16.msra.mxu0 %v7099
    %8181 = vmatprep.subr.bf16.mxu0 %v7116
    %8182 = vmatpush1.bf16.msra.mxu0 %v7115
    %8183 = vmatprep.subr.bf16.mxu0 %v7132
    %8184 = vmatpush1.bf16.msra.mxu0 %v7131
    %8185 = vmatprep.subr.bf16.mxu0 %v7148
    %8186 = vmatpush1.bf16.msra.mxu0 %v7147
    %8187 = vmatprep.subr.bf16.mxu0 %v7164
    %8188 = vmatpush1.bf16.msra.mxu0 %v7163
    %8189 = vmatprep.subr.bf16.mxu0 %v7180
    %8190 = vmatpush1.bf16.msra.mxu0 %v7179
    %8191 = vmatprep.subr.bf16.mxu0 %v7196
    %8192 = vmatpush1.bf16.msra.mxu0 %v7195
    %8193 = vmatprep.subr.bf16.mxu0 %v7212
    %8194 = vmatpush1.bf16.msra.mxu0 %v7211
    %8195 = vmatprep.subr.bf16.mxu0 %v7228
    %8196 = vmatpush1.bf16.msra.mxu0 %v7227
    %8197 = vmatprep.subr.bf16.mxu0 %v7244
    %8198 = vmatpush1.bf16.msra.mxu0 %v7243
    %8199 = vmatprep.subr.bf16.mxu0 %v7260
    %8200 = vmatpush1.bf16.msra.mxu0 %v7259
    %8201 = vmatprep.subr.bf16.mxu0 %v7276
    %8202 = vmatpush1.bf16.msra.mxu0 %v7275
    %8203 = vmatprep.subr.bf16.mxu0 %v7292
    %8204 = vmatpush1.bf16.msra.mxu0 %v7291
    %8205 = vmatprep.subr.bf16.mxu0 %v7308
    %8206 = vmatpush1.bf16.msra.mxu0 %v7307
    %8207 = vmatprep.subr.bf16.mxu0 %v7324
    %8208 = vmatpush1.bf16.msra.mxu0 %v7323
    %8209 = vmatprep.subr.bf16.mxu0 %v7340
    %8210 = vmatpush1.bf16.msra.mxu0 %v7339
    %8211 = vmatprep.mubr.bf16.mxu0 %v6578
    %8212 = vmatmul.mubr.bf16.gmra.mrb[0].mxu0 %v6577
    %v8213 = vpop.f32.mrb[0].mxu0
    %v8214 = vadd.f32 %v8173, %v8213
    %v8215 = vpop.f32.mrb[0].mxu0
    %v8216 = vadd.f32 %v8175, %v8215
    %v8217 = vpop.f32.mrb[0].mxu0
    %v8218 = vpop.f32.mrb[0].mxu0
    %8219 = vdwg.mxu0
    %8220 = vmatprep.subr.bf16.mxu0 %v7356
    %8221 = vmatpush1.bf16.msra.mxu0 %v7355
    %8222 = vmatprep.subr.bf16.mxu0 %v7372
    %8223 = vmatpush1.bf16.msra.mxu0 %v7371
    %8224 = vmatprep.subr.bf16.mxu0 %v7388
    %8225 = vmatpush1.bf16.msra.mxu0 %v7387
    %8226 = vmatprep.subr.bf16.mxu0 %v7404
    %8227 = vmatpush1.bf16.msra.mxu0 %v7403
    %8228 = vmatprep.subr.bf16.mxu0 %v7420
    %8229 = vmatpush1.bf16.msra.mxu0 %v7419
    %8230 = vmatprep.subr.bf16.mxu0 %v7436
    %8231 = vmatpush1.bf16.msra.mxu0 %v7435
    %8232 = vmatprep.subr.bf16.mxu0 %v7452
    %8233 = vmatpush1.bf16.msra.mxu0 %v7451
    %8234 = vmatprep.subr.bf16.mxu0 %v7468
    %8235 = vmatpush1.bf16.msra.mxu0 %v7467
    %8236 = vmatprep.subr.bf16.mxu0 %v7484
    %8237 = vmatpush1.bf16.msra.mxu0 %v7483
    %8238 = vmatprep.subr.bf16.mxu0 %v7500
    %8239 = vmatpush1.bf16.msra.mxu0 %v7499
    %8240 = vmatprep.subr.bf16.mxu0 %v7516
    %8241 = vmatpush1.bf16.msra.mxu0 %v7515
    %8242 = vmatprep.subr.bf16.mxu0 %v7532
    %8243 = vmatpush1.bf16.msra.mxu0 %v7531
    %8244 = vmatprep.subr.bf16.mxu0 %v7548
    %8245 = vmatpush1.bf16.msra.mxu0 %v7547
    %8246 = vmatprep.subr.bf16.mxu0 %v7564
    %8247 = vmatpush1.bf16.msra.mxu0 %v7563
    %8248 = vmatprep.subr.bf16.mxu0 %v7580
    %8249 = vmatpush1.bf16.msra.mxu0 %v7579
    %8250 = vmatprep.subr.bf16.mxu0 %v7596
    %8251 = vmatpush1.bf16.msra.mxu0 %v7595
    %8252 = vmatprep.mubr.bf16.mxu0 %v6580
    %8253 = vmatmul.mubr.bf16.gmra.mrb[0].mxu0 %v6579
    %v8254 = vpop.f32.mrb[0].mxu0
    %v8255 = vadd.f32 %v8214, %v8254
    %v8256 = vpop.f32.mrb[0].mxu0
    %v8257 = vadd.f32 %v8216, %v8256
    %v8258 = vpop.f32.mrb[0].mxu0
    %v8259 = vpop.f32.mrb[0].mxu0
    %8260 = vdwg.mxu0
    %8261 = vmatprep.subr.bf16.mxu0 %v6590
    %8262 = vmatpush1.bf16.msra.mxu0 %v6589
    %8263 = vmatprep.subr.bf16.mxu0 %v6606
    %8264 = vmatpush1.bf16.msra.mxu0 %v6605
    %8265 = vmatprep.subr.bf16.mxu0 %v6622
    %8266 = vmatpush1.bf16.msra.mxu0 %v6621
    %8267 = vmatprep.subr.bf16.mxu0 %v6638
    %8268 = vmatpush1.bf16.msra.mxu0 %v6637
    %8269 = vmatprep.subr.bf16.mxu0 %v6654
    %8270 = vmatpush1.bf16.msra.mxu0 %v6653
    %8271 = vmatprep.subr.bf16.mxu0 %v6670
    %8272 = vmatpush1.bf16.msra.mxu0 %v6669
    %8273 = vmatprep.subr.bf16.mxu0 %v6686
    %8274 = vmatpush1.bf16.msra.mxu0 %v6685
    %8275 = vmatprep.subr.bf16.mxu0 %v6702
    %8276 = vmatpush1.bf16.msra.mxu0 %v6701
    %8277 = vmatprep.subr.bf16.mxu0 %v6718
    %8278 = vmatpush1.bf16.msra.mxu0 %v6717
    %8279 = vmatprep.subr.bf16.mxu0 %v6734
    %8280 = vmatpush1.bf16.msra.mxu0 %v6733
    %8281 = vmatprep.subr.bf16.mxu0 %v6750
    %8282 = vmatpush1.bf16.msra.mxu0 %v6749
    %8283 = vmatprep.subr.bf16.mxu0 %v6766
    %8284 = vmatpush1.bf16.msra.mxu0 %v6765
    %8285 = vmatprep.subr.bf16.mxu0 %v6782
    %8286 = vmatpush1.bf16.msra.mxu0 %v6781
    %8287 = vmatprep.subr.bf16.mxu0 %v6798
    %8288 = vmatpush1.bf16.msra.mxu0 %v6797
    %8289 = vmatprep.subr.bf16.mxu0 %v6814
    %8290 = vmatpush1.bf16.msra.mxu0 %v6813
    %8291 = vmatprep.subr.bf16.mxu0 %v6830
    %8292 = vmatpush1.bf16.msra.mxu0 %v6829
    %8293 = vmatprep.mubr.bf16.mxu0 %v6574
    %8294 = vmatmul.mubr.bf16.gmra.mrb[0].mxu0 %v6573
    %v8295 = vpop.f32.mrb[0].mxu0
    %v8296 = vadd.f32 0.0, %v8295
    %v8297 = vpop.f32.mrb[0].mxu0
    %v8298 = vadd.f32 0.0, %v8297
    %v8299 = vpop.f32.mrb[0].mxu0
    %v8300 = vpop.f32.mrb[0].mxu0
    %8301 = vdwg.mxu0
    %8302 = vmatprep.subr.bf16.mxu0 %v6846
    %8303 = vmatpush1.bf16.msra.mxu0 %v6845
    %8304 = vmatprep.subr.bf16.mxu0 %v6862
    %8305 = vmatpush1.bf16.msra.mxu0 %v6861
    %8306 = vmatprep.subr.bf16.mxu0 %v6878
    %8307 = vmatpush1.bf16.msra.mxu0 %v6877
    %8308 = vmatprep.subr.bf16.mxu0 %v6894
    %8309 = vmatpush1.bf16.msra.mxu0 %v6893
    %8310 = vmatprep.subr.bf16.mxu0 %v6910
    %8311 = vmatpush1.bf16.msra.mxu0 %v6909
    %8312 = vmatprep.subr.bf16.mxu0 %v6926
    %8313 = vmatpush1.bf16.msra.mxu0 %v6925
    %8314 = vmatprep.subr.bf16.mxu0 %v6942
    %8315 = vmatpush1.bf16.msra.mxu0 %v6941
    %8316 = vmatprep.subr.bf16.mxu0 %v6958
    %8317 = vmatpush1.bf16.msra.mxu0 %v6957
    %8318 = vmatprep.subr.bf16.mxu0 %v6974
    %8319 = vmatpush1.bf16.msra.mxu0 %v6973
    %8320 = vmatprep.subr.bf16.mxu0 %v6990
    %8321 = vmatpush1.bf16.msra.mxu0 %v6989
    %8322 = vmatprep.subr.bf16.mxu0 %v7006
    %8323 = vmatpush1.bf16.msra.mxu0 %v7005
    %8324 = vmatprep.subr.bf16.mxu0 %v7022
    %8325 = vmatpush1.bf16.msra.mxu0 %v7021
    %8326 = vmatprep.subr.bf16.mxu0 %v7038
    %8327 = vmatpush1.bf16.msra.mxu0 %v7037
    %8328 = vmatprep.subr.bf16.mxu0 %v7054
    %8329 = vmatpush1.bf16.msra.mxu0 %v7053
    %8330 = vmatprep.subr.bf16.mxu0 %v7070
    %8331 = vmatpush1.bf16.msra.mxu0 %v7069
    %8332 = vmatprep.subr.bf16.mxu0 %v7086
    %8333 = vmatpush1.bf16.msra.mxu0 %v7085
    %8334 = vmatprep.mubr.bf16.mxu0 %v6576
    %8335 = vmatmul.mubr.bf16.gmra.mrb[0].mxu0 %v6575
    %v8336 = vpop.f32.mrb[0].mxu0
    %v8337 = vadd.f32 %v8296, %v8336
    %v8338 = vpop.f32.mrb[0].mxu0
    %v8339 = vadd.f32 %v8298, %v8338
    %v8340 = vpop.f32.mrb[0].mxu0
    %v8341 = vpop.f32.mrb[0].mxu0
    %8342 = vdwg.mxu0
    %8343 = vmatprep.subr.bf16.mxu0 %v7102
    %8344 = vmatpush1.bf16.msra.mxu0 %v7101
    %8345 = vmatprep.subr.bf16.mxu0 %v7118
    %8346 = vmatpush1.bf16.msra.mxu0 %v7117
    %8347 = vmatprep.subr.bf16.mxu0 %v7134
    %8348 = vmatpush1.bf16.msra.mxu0 %v7133
    %8349 = vmatprep.subr.bf16.mxu0 %v7150
    %8350 = vmatpush1.bf16.msra.mxu0 %v7149
    %8351 = vmatprep.subr.bf16.mxu0 %v7166
    %8352 = vmatpush1.bf16.msra.mxu0 %v7165
    %8353 = vmatprep.subr.bf16.mxu0 %v7182
    %8354 = vmatpush1.bf16.msra.mxu0 %v7181
    %8355 = vmatprep.subr.bf16.mxu0 %v7198
    %8356 = vmatpush1.bf16.msra.mxu0 %v7197
    %8357 = vmatprep.subr.bf16.mxu0 %v7214
    %8358 = vmatpush1.bf16.msra.mxu0 %v7213
    %8359 = vmatprep.subr.bf16.mxu0 %v7230
    %8360 = vmatpush1.bf16.msra.mxu0 %v7229
    %8361 = vmatprep.subr.bf16.mxu0 %v7246
    %8362 = vmatpush1.bf16.msra.mxu0 %v7245
    %8363 = vmatprep.subr.bf16.mxu0 %v7262
    %8364 = vmatpush1.bf16.msra.mxu0 %v7261
    %8365 = vmatprep.subr.bf16.mxu0 %v7278
    %8366 = vmatpush1.bf16.msra.mxu0 %v7277
    %8367 = vmatprep.subr.bf16.mxu0 %v7294
    %8368 = vmatpush1.bf16.msra.mxu0 %v7293
    %8369 = vmatprep.subr.bf16.mxu0 %v7310
    %8370 = vmatpush1.bf16.msra.mxu0 %v7309
    %8371 = vmatprep.subr.bf16.mxu0 %v7326
    %8372 = vmatpush1.bf16.msra.mxu0 %v7325
    %8373 = vmatprep.subr.bf16.mxu0 %v7342
    %8374 = vmatpush1.bf16.msra.mxu0 %v7341
    %8375 = vmatprep.mubr.bf16.mxu0 %v6578
    %8376 = vmatmul.mubr.bf16.gmra.mrb[0].mxu0 %v6577
    %v8377 = vpop.f32.mrb[0].mxu0
    %v8378 = vadd.f32 %v8337, %v8377
    %v8379 = vpop.f32.mrb[0].mxu0
    %v8380 = vadd.f32 %v8339, %v8379
    %v8381 = vpop.f32.mrb[0].mxu0
    %v8382 = vpop.f32.mrb[0].mxu0
    %8383 = vdwg.mxu0
    %8384 = vmatprep.subr.bf16.mxu0 %v7358
    %8385 = vmatpush1.bf16.msra.mxu0 %v7357
    %8386 = vmatprep.subr.bf16.mxu0 %v7374
    %8387 = vmatpush1.bf16.msra.mxu0 %v7373
    %8388 = vmatprep.subr.bf16.mxu0 %v7390
    %8389 = vmatpush1.bf16.msra.mxu0 %v7389
    %8390 = vmatprep.subr.bf16.mxu0 %v7406
    %8391 = vmatpush1.bf16.msra.mxu0 %v7405
    %8392 = vmatprep.subr.bf16.mxu0 %v7422
    %8393 = vmatpush1.bf16.msra.mxu0 %v7421
    %8394 = vmatprep.subr.bf16.mxu0 %v7438
    %8395 = vmatpush1.bf16.msra.mxu0 %v7437
    %8396 = vmatprep.subr.bf16.mxu0 %v7454
    %8397 = vmatpush1.bf16.msra.mxu0 %v7453
    %8398 = vmatprep.subr.bf16.mxu0 %v7470
    %8399 = vmatpush1.bf16.msra.mxu0 %v7469
    %8400 = vmatprep.subr.bf16.mxu0 %v7486
    %8401 = vmatpush1.bf16.msra.mxu0 %v7485
    %8402 = vmatprep.subr.bf16.mxu0 %v7502
    %8403 = vmatpush1.bf16.msra.mxu0 %v7501
    %8404 = vmatprep.subr.bf16.mxu0 %v7518
    %8405 = vmatpush1.bf16.msra.mxu0 %v7517
    %8406 = vmatprep.subr.bf16.mxu0 %v7534
    %8407 = vmatpush1.bf16.msra.mxu0 %v7533
    %8408 = vmatprep.subr.bf16.mxu0 %v7550
    %8409 = vmatpush1.bf16.msra.mxu0 %v7549
    %8410 = vmatprep.subr.bf16.mxu0 %v7566
    %8411 = vmatpush1.bf16.msra.mxu0 %v7565
    %8412 = vmatprep.subr.bf16.mxu0 %v7582
    %8413 = vmatpush1.bf16.msra.mxu0 %v7581
    %8414 = vmatprep.subr.bf16.mxu0 %v7598
    %8415 = vmatpush1.bf16.msra.mxu0 %v7597
    %8416 = vmatprep.mubr.bf16.mxu0 %v6580
    %8417 = vmatmul.mubr.bf16.gmra.mrb[0].mxu0 %v6579
    %v8418 = vpop.f32.mrb[0].mxu0
    %v8419 = vadd.f32 %v8378, %v8418
    %v8420 = vpop.f32.mrb[0].mxu0
    %v8421 = vadd.f32 %v8380, %v8420
    %v8422 = vpop.f32.mrb[0].mxu0
    %v8423 = vpop.f32.mrb[0].mxu0
    %8424 = vdwg.mxu0
    %8425 = vmatprep.subr.bf16.mxu0 %v6592
    %8426 = vmatpush1.bf16.msra.mxu0 %v6591
    %8427 = vmatprep.subr.bf16.mxu0 %v6608
    %8428 = vmatpush1.bf16.msra.mxu0 %v6607
    %8429 = vmatprep.subr.bf16.mxu0 %v6624
    %8430 = vmatpush1.bf16.msra.mxu0 %v6623
    %8431 = vmatprep.subr.bf16.mxu0 %v6640
    %8432 = vmatpush1.bf16.msra.mxu0 %v6639
    %8433 = vmatprep.subr.bf16.mxu0 %v6656
    %8434 = vmatpush1.bf16.msra.mxu0 %v6655
    %8435 = vmatprep.subr.bf16.mxu0 %v6672
    %8436 = vmatpush1.bf16.msra.mxu0 %v6671
    %8437 = vmatprep.subr.bf16.mxu0 %v6688
    %8438 = vmatpush1.bf16.msra.mxu0 %v6687
    %8439 = vmatprep.subr.bf16.mxu0 %v6704
    %8440 = vmatpush1.bf16.msra.mxu0 %v6703
    %8441 = vmatprep.subr.bf16.mxu0 %v6720
    %8442 = vmatpush1.bf16.msra.mxu0 %v6719
    %8443 = vmatprep.subr.bf16.mxu0 %v6736
    %8444 = vmatpush1.bf16.msra.mxu0 %v6735
    %8445 = vmatprep.subr.bf16.mxu0 %v6752
    %8446 = vmatpush1.bf16.msra.mxu0 %v6751
    %8447 = vmatprep.subr.bf16.mxu0 %v6768
    %8448 = vmatpush1.bf16.msra.mxu0 %v6767
    %8449 = vmatprep.subr.bf16.mxu0 %v6784
    %8450 = vmatpush1.bf16.msra.mxu0 %v6783
    %8451 = vmatprep.subr.bf16.mxu0 %v6800
    %8452 = vmatpush1.bf16.msra.mxu0 %v6799
    %8453 = vmatprep.subr.bf16.mxu0 %v6816
    %8454 = vmatpush1.bf16.msra.mxu0 %v6815
    %8455 = vmatprep.subr.bf16.mxu0 %v6832
    %8456 = vmatpush1.bf16.msra.mxu0 %v6831
    %8457 = vmatprep.mubr.bf16.mxu0 %v6574
    %8458 = vmatmul.mubr.bf16.gmra.mrb[0].mxu0 %v6573
    %v8459 = vpop.f32.mrb[0].mxu0
    %v8460 = vadd.f32 0.0, %v8459
    %v8461 = vpop.f32.mrb[0].mxu0
    %v8462 = vadd.f32 0.0, %v8461
    %v8463 = vpop.f32.mrb[0].mxu0
    %v8464 = vpop.f32.mrb[0].mxu0
    %8465 = vdwg.mxu0
    %8466 = vmatprep.subr.bf16.mxu0 %v6848
    %8467 = vmatpush1.bf16.msra.mxu0 %v6847
    %8468 = vmatprep.subr.bf16.mxu0 %v6864
    %8469 = vmatpush1.bf16.msra.mxu0 %v6863
    %8470 = vmatprep.subr.bf16.mxu0 %v6880
    %8471 = vmatpush1.bf16.msra.mxu0 %v6879
    %8472 = vmatprep.subr.bf16.mxu0 %v6896
    %8473 = vmatpush1.bf16.msra.mxu0 %v6895
    %8474 = vmatprep.subr.bf16.mxu0 %v6912
    %8475 = vmatpush1.bf16.msra.mxu0 %v6911
    %8476 = vmatprep.subr.bf16.mxu0 %v6928
    %8477 = vmatpush1.bf16.msra.mxu0 %v6927
    %8478 = vmatprep.subr.bf16.mxu0 %v6944
    %8479 = vmatpush1.bf16.msra.mxu0 %v6943
    %8480 = vmatprep.subr.bf16.mxu0 %v6960
    %8481 = vmatpush1.bf16.msra.mxu0 %v6959
    %8482 = vmatprep.subr.bf16.mxu0 %v6976
    %8483 = vmatpush1.bf16.msra.mxu0 %v6975
    %8484 = vmatprep.subr.bf16.mxu0 %v6992
    %8485 = vmatpush1.bf16.msra.mxu0 %v6991
    %8486 = vmatprep.subr.bf16.mxu0 %v7008
    %8487 = vmatpush1.bf16.msra.mxu0 %v7007
    %8488 = vmatprep.subr.bf16.mxu0 %v7024
    %8489 = vmatpush1.bf16.msra.mxu0 %v7023
    %8490 = vmatprep.subr.bf16.mxu0 %v7040
    %8491 = vmatpush1.bf16.msra.mxu0 %v7039
    %8492 = vmatprep.subr.bf16.mxu0 %v7056
    %8493 = vmatpush1.bf16.msra.mxu0 %v7055
    %8494 = vmatprep.subr.bf16.mxu0 %v7072
    %8495 = vmatpush1.bf16.msra.mxu0 %v7071
    %8496 = vmatprep.subr.bf16.mxu0 %v7088
    %8497 = vmatpush1.bf16.msra.mxu0 %v7087
    %8498 = vmatprep.mubr.bf16.mxu0 %v6576
    %8499 = vmatmul.mubr.bf16.gmra.mrb[0].mxu0 %v6575
    %v8500 = vpop.f32.mrb[0].mxu0
    %v8501 = vadd.f32 %v8460, %v8500
    %v8502 = vpop.f32.mrb[0].mxu0
    %v8503 = vadd.f32 %v8462, %v8502
    %v8504 = vpop.f32.mrb[0].mxu0
    %v8505 = vpop.f32.mrb[0].mxu0
    %8506 = vdwg.mxu0
    %8507 = vmatprep.subr.bf16.mxu0 %v7104
    %8508 = vmatpush1.bf16.msra.mxu0 %v7103
    %8509 = vmatprep.subr.bf16.mxu0 %v7120
    %8510 = vmatpush1.bf16.msra.mxu0 %v7119
    %8511 = vmatprep.subr.bf16.mxu0 %v7136
    %8512 = vmatpush1.bf16.msra.mxu0 %v7135
    %8513 = vmatprep.subr.bf16.mxu0 %v7152
    %8514 = vmatpush1.bf16.msra.mxu0 %v7151
    %8515 = vmatprep.subr.bf16.mxu0 %v7168
    %8516 = vmatpush1.bf16.msra.mxu0 %v7167
    %8517 = vmatprep.subr.bf16.mxu0 %v7184
    %8518 = vmatpush1.bf16.msra.mxu0 %v7183
    %8519 = vmatprep.subr.bf16.mxu0 %v7200
    %8520 = vmatpush1.bf16.msra.mxu0 %v7199
    %8521 = vmatprep.subr.bf16.mxu0 %v7216
    %8522 = vmatpush1.bf16.msra.mxu0 %v7215
    %8523 = vmatprep.subr.bf16.mxu0 %v7232
    %8524 = vmatpush1.bf16.msra.mxu0 %v7231
    %8525 = vmatprep.subr.bf16.mxu0 %v7248
    %8526 = vmatpush1.bf16.msra.mxu0 %v7247
    %8527 = vmatprep.subr.bf16.mxu0 %v7264
    %8528 = vmatpush1.bf16.msra.mxu0 %v7263
    %8529 = vmatprep.subr.bf16.mxu0 %v7280
    %8530 = vmatpush1.bf16.msra.mxu0 %v7279
    %8531 = vmatprep.subr.bf16.mxu0 %v7296
    %8532 = vmatpush1.bf16.msra.mxu0 %v7295
    %8533 = vmatprep.subr.bf16.mxu0 %v7312
    %8534 = vmatpush1.bf16.msra.mxu0 %v7311
    %8535 = vmatprep.subr.bf16.mxu0 %v7328
    %8536 = vmatpush1.bf16.msra.mxu0 %v7327
    %8537 = vmatprep.subr.bf16.mxu0 %v7344
    %8538 = vmatpush1.bf16.msra.mxu0 %v7343
    %8539 = vmatprep.mubr.bf16.mxu0 %v6578
    %8540 = vmatmul.mubr.bf16.gmra.mrb[0].mxu0 %v6577
    %v8541 = vpop.f32.mrb[0].mxu0
    %v8542 = vadd.f32 %v8501, %v8541
    %v8543 = vpop.f32.mrb[0].mxu0
    %v8544 = vadd.f32 %v8503, %v8543
    %v8545 = vpop.f32.mrb[0].mxu0
    %v8546 = vpop.f32.mrb[0].mxu0
    %8547 = vdwg.mxu0
    %8548 = vmatprep.subr.bf16.mxu0 %v7360
    %8549 = vmatpush1.bf16.msra.mxu0 %v7359
    %8550 = vmatprep.subr.bf16.mxu0 %v7376
    %8551 = vmatpush1.bf16.msra.mxu0 %v7375
    %8552 = vmatprep.subr.bf16.mxu0 %v7392
    %8553 = vmatpush1.bf16.msra.mxu0 %v7391
    %8554 = vmatprep.subr.bf16.mxu0 %v7408
    %8555 = vmatpush1.bf16.msra.mxu0 %v7407
    %8556 = vmatprep.subr.bf16.mxu0 %v7424
    %8557 = vmatpush1.bf16.msra.mxu0 %v7423
    %8558 = vmatprep.subr.bf16.mxu0 %v7440
    %8559 = vmatpush1.bf16.msra.mxu0 %v7439
    %8560 = vmatprep.subr.bf16.mxu0 %v7456
    %8561 = vmatpush1.bf16.msra.mxu0 %v7455
    %8562 = vmatprep.subr.bf16.mxu0 %v7472
    %8563 = vmatpush1.bf16.msra.mxu0 %v7471
    %8564 = vmatprep.subr.bf16.mxu0 %v7488
    %8565 = vmatpush1.bf16.msra.mxu0 %v7487
    %8566 = vmatprep.subr.bf16.mxu0 %v7504
    %8567 = vmatpush1.bf16.msra.mxu0 %v7503
    %8568 = vmatprep.subr.bf16.mxu0 %v7520
    %8569 = vmatpush1.bf16.msra.mxu0 %v7519
    %8570 = vmatprep.subr.bf16.mxu0 %v7536
    %8571 = vmatpush1.bf16.msra.mxu0 %v7535
    %8572 = vmatprep.subr.bf16.mxu0 %v7552
    %8573 = vmatpush1.bf16.msra.mxu0 %v7551
    %8574 = vmatprep.subr.bf16.mxu0 %v7568
    %8575 = vmatpush1.bf16.msra.mxu0 %v7567
    %8576 = vmatprep.subr.bf16.mxu0 %v7584
    %8577 = vmatpush1.bf16.msra.mxu0 %v7583
    %8578 = vmatprep.subr.bf16.mxu0 %v7600
    %8579 = vmatpush1.bf16.msra.mxu0 %v7599
    %8580 = vmatprep.mubr.bf16.mxu0 %v6580
    %8581 = vmatmul.mubr.bf16.gmra.mrb[0].mxu0 %v6579
    %v8582 = vpop.f32.mrb[0].mxu0
    %v8583 = vadd.f32 %v8542, %v8582
    %v8584 = vpop.f32.mrb[0].mxu0
    %v8585 = vadd.f32 %v8544, %v8584
    %v8586 = vpop.f32.mrb[0].mxu0
    %v8587 = vpop.f32.mrb[0].mxu0
    %8588 = vdwg.mxu0
    %8589 = vmatprep.subr.bf16.mxu0 %v6594
    %8590 = vmatpush1.bf16.msra.mxu0 %v6593
    %8591 = vmatprep.subr.bf16.mxu0 %v6610
    %8592 = vmatpush1.bf16.msra.mxu0 %v6609
    %8593 = vmatprep.subr.bf16.mxu0 %v6626
    %8594 = vmatpush1.bf16.msra.mxu0 %v6625
    %8595 = vmatprep.subr.bf16.mxu0 %v6642
    %8596 = vmatpush1.bf16.msra.mxu0 %v6641
    %8597 = vmatprep.subr.bf16.mxu0 %v6658
    %8598 = vmatpush1.bf16.msra.mxu0 %v6657
    %8599 = vmatprep.subr.bf16.mxu0 %v6674
    %8600 = vmatpush1.bf16.msra.mxu0 %v6673
    %8601 = vmatprep.subr.bf16.mxu0 %v6690
    %8602 = vmatpush1.bf16.msra.mxu0 %v6689
    %8603 = vmatprep.subr.bf16.mxu0 %v6706
    %8604 = vmatpush1.bf16.msra.mxu0 %v6705
    %8605 = vmatprep.subr.bf16.mxu0 %v6722
    %8606 = vmatpush1.bf16.msra.mxu0 %v6721
    %8607 = vmatprep.subr.bf16.mxu0 %v6738
    %8608 = vmatpush1.bf16.msra.mxu0 %v6737
    %8609 = vmatprep.subr.bf16.mxu0 %v6754
    %8610 = vmatpush1.bf16.msra.mxu0 %v6753
    %8611 = vmatprep.subr.bf16.mxu0 %v6770
    %8612 = vmatpush1.bf16.msra.mxu0 %v6769
    %8613 = vmatprep.subr.bf16.mxu0 %v6786
    %8614 = vmatpush1.bf16.msra.mxu0 %v6785
    %8615 = vmatprep.subr.bf16.mxu0 %v6802
    %8616 = vmatpush1.bf16.msra.mxu0 %v6801
    %8617 = vmatprep.subr.bf16.mxu0 %v6818
    %8618 = vmatpush1.bf16.msra.mxu0 %v6817
    %8619 = vmatprep.subr.bf16.mxu0 %v6834
    %8620 = vmatpush1.bf16.msra.mxu0 %v6833
    %8621 = vmatprep.mubr.bf16.mxu0 %v6574
    %8622 = vmatmul.mubr.bf16.gmra.mrb[0].mxu0 %v6573
    %v8623 = vpop.f32.mrb[0].mxu0
    %v8624 = vadd.f32 0.0, %v8623
    %v8625 = vpop.f32.mrb[0].mxu0
    %v8626 = vadd.f32 0.0, %v8625
    %v8627 = vpop.f32.mrb[0].mxu0
    %v8628 = vpop.f32.mrb[0].mxu0
    %8629 = vdwg.mxu0
    %8630 = vmatprep.subr.bf16.mxu0 %v6850
    %8631 = vmatpush1.bf16.msra.mxu0 %v6849
    %8632 = vmatprep.subr.bf16.mxu0 %v6866
    %8633 = vmatpush1.bf16.msra.mxu0 %v6865
    %8634 = vmatprep.subr.bf16.mxu0 %v6882
    %8635 = vmatpush1.bf16.msra.mxu0 %v6881
    %8636 = vmatprep.subr.bf16.mxu0 %v6898
    %8637 = vmatpush1.bf16.msra.mxu0 %v6897
    %8638 = vmatprep.subr.bf16.mxu0 %v6914
    %8639 = vmatpush1.bf16.msra.mxu0 %v6913
    %8640 = vmatprep.subr.bf16.mxu0 %v6930
    %8641 = vmatpush1.bf16.msra.mxu0 %v6929
    %8642 = vmatprep.subr.bf16.mxu0 %v6946
    %8643 = vmatpush1.bf16.msra.mxu0 %v6945
    %8644 = vmatprep.subr.bf16.mxu0 %v6962
    %8645 = vmatpush1.bf16.msra.mxu0 %v6961
    %8646 = vmatprep.subr.bf16.mxu0 %v6978
    %8647 = vmatpush1.bf16.msra.mxu0 %v6977
    %8648 = vmatprep.subr.bf16.mxu0 %v6994
    %8649 = vmatpush1.bf16.msra.mxu0 %v6993
    %8650 = vmatprep.subr.bf16.mxu0 %v7010
    %8651 = vmatpush1.bf16.msra.mxu0 %v7009
    %8652 = vmatprep.subr.bf16.mxu0 %v7026
    %8653 = vmatpush1.bf16.msra.mxu0 %v7025
    %8654 = vmatprep.subr.bf16.mxu0 %v7042
    %8655 = vmatpush1.bf16.msra.mxu0 %v7041
    %8656 = vmatprep.subr.bf16.mxu0 %v7058
    %8657 = vmatpush1.bf16.msra.mxu0 %v7057
    %8658 = vmatprep.subr.bf16.mxu0 %v7074
    %8659 = vmatpush1.bf16.msra.mxu0 %v7073
    %8660 = vmatprep.subr.bf16.mxu0 %v7090
    %8661 = vmatpush1.bf16.msra.mxu0 %v7089
    %8662 = vmatprep.mubr.bf16.mxu0 %v6576
    %8663 = vmatmul.mubr.bf16.gmra.mrb[0].mxu0 %v6575
    %v8664 = vpop.f32.mrb[0].mxu0
    %v8665 = vadd.f32 %v8624, %v8664
    %v8666 = vpop.f32.mrb[0].mxu0
    %v8667 = vadd.f32 %v8626, %v8666
    %v8668 = vpop.f32.mrb[0].mxu0
    %v8669 = vpop.f32.mrb[0].mxu0
    %8670 = vdwg.mxu0
    %8671 = vmatprep.subr.bf16.mxu0 %v7106
    %8672 = vmatpush1.bf16.msra.mxu0 %v7105
    %8673 = vmatprep.subr.bf16.mxu0 %v7122
    %8674 = vmatpush1.bf16.msra.mxu0 %v7121
    %8675 = vmatprep.subr.bf16.mxu0 %v7138
    %8676 = vmatpush1.bf16.msra.mxu0 %v7137
    %8677 = vmatprep.subr.bf16.mxu0 %v7154
    %8678 = vmatpush1.bf16.msra.mxu0 %v7153
    %8679 = vmatprep.subr.bf16.mxu0 %v7170
    %8680 = vmatpush1.bf16.msra.mxu0 %v7169
    %8681 = vmatprep.subr.bf16.mxu0 %v7186
    %8682 = vmatpush1.bf16.msra.mxu0 %v7185
    %8683 = vmatprep.subr.bf16.mxu0 %v7202
    %8684 = vmatpush1.bf16.msra.mxu0 %v7201
    %8685 = vmatprep.subr.bf16.mxu0 %v7218
    %8686 = vmatpush1.bf16.msra.mxu0 %v7217
    %8687 = vmatprep.subr.bf16.mxu0 %v7234
    %8688 = vmatpush1.bf16.msra.mxu0 %v7233
    %8689 = vmatprep.subr.bf16.mxu0 %v7250
    %8690 = vmatpush1.bf16.msra.mxu0 %v7249
    %8691 = vmatprep.subr.bf16.mxu0 %v7266
    %8692 = vmatpush1.bf16.msra.mxu0 %v7265
    %8693 = vmatprep.subr.bf16.mxu0 %v7282
    %8694 = vmatpush1.bf16.msra.mxu0 %v7281
    %8695 = vmatprep.subr.bf16.mxu0 %v7298
    %8696 = vmatpush1.bf16.msra.mxu0 %v7297
    %8697 = vmatprep.subr.bf16.mxu0 %v7314
    %8698 = vmatpush1.bf16.msra.mxu0 %v7313
    %8699 = vmatprep.subr.bf16.mxu0 %v7330
    %8700 = vmatpush1.bf16.msra.mxu0 %v7329
    %8701 = vmatprep.subr.bf16.mxu0 %v7346
    %8702 = vmatpush1.bf16.msra.mxu0 %v7345
    %8703 = vmatprep.mubr.bf16.mxu0 %v6578
    %8704 = vmatmul.mubr.bf16.gmra.mrb[0].mxu0 %v6577
    %v8705 = vpop.f32.mrb[0].mxu0
    %v8706 = vadd.f32 %v8665, %v8705
    %v8707 = vpop.f32.mrb[0].mxu0
    %v8708 = vadd.f32 %v8667, %v8707
    %v8709 = vpop.f32.mrb[0].mxu0
    %v8710 = vpop.f32.mrb[0].mxu0
    %8711 = vdwg.mxu0
    %8712 = vmatprep.subr.bf16.mxu0 %v7362
    %8713 = vmatpush1.bf16.msra.mxu0 %v7361
    %8714 = vmatprep.subr.bf16.mxu0 %v7378
    %8715 = vmatpush1.bf16.msra.mxu0 %v7377
    %8716 = vmatprep.subr.bf16.mxu0 %v7394
    %8717 = vmatpush1.bf16.msra.mxu0 %v7393
    %8718 = vmatprep.subr.bf16.mxu0 %v7410
    %8719 = vmatpush1.bf16.msra.mxu0 %v7409
    %8720 = vmatprep.subr.bf16.mxu0 %v7426
    %8721 = vmatpush1.bf16.msra.mxu0 %v7425
    %8722 = vmatprep.subr.bf16.mxu0 %v7442
    %8723 = vmatpush1.bf16.msra.mxu0 %v7441
    %8724 = vmatprep.subr.bf16.mxu0 %v7458
    %8725 = vmatpush1.bf16.msra.mxu0 %v7457
    %8726 = vmatprep.subr.bf16.mxu0 %v7474
    %8727 = vmatpush1.bf16.msra.mxu0 %v7473
    %8728 = vmatprep.subr.bf16.mxu0 %v7490
    %8729 = vmatpush1.bf16.msra.mxu0 %v7489
    %8730 = vmatprep.subr.bf16.mxu0 %v7506
    %8731 = vmatpush1.bf16.msra.mxu0 %v7505
    %8732 = vmatprep.subr.bf16.mxu0 %v7522
    %8733 = vmatpush1.bf16.msra.mxu0 %v7521
    %8734 = vmatprep.subr.bf16.mxu0 %v7538
    %8735 = vmatpush1.bf16.msra.mxu0 %v7537
    %8736 = vmatprep.subr.bf16.mxu0 %v7554
    %8737 = vmatpush1.bf16.msra.mxu0 %v7553
    %8738 = vmatprep.subr.bf16.mxu0 %v7570
    %8739 = vmatpush1.bf16.msra.mxu0 %v7569
    %8740 = vmatprep.subr.bf16.mxu0 %v7586
    %8741 = vmatpush1.bf16.msra.mxu0 %v7585
    %8742 = vmatprep.subr.bf16.mxu0 %v7602
    %8743 = vmatpush1.bf16.msra.mxu0 %v7601
    %8744 = vmatprep.mubr.bf16.mxu0 %v6580
    %8745 = vmatmul.mubr.bf16.gmra.mrb[0].mxu0 %v6579
    %v8746 = vpop.f32.mrb[0].mxu0
    %v8747 = vadd.f32 %v8706, %v8746
    %v8748 = vpop.f32.mrb[0].mxu0
    %v8749 = vadd.f32 %v8708, %v8748
    %v8750 = vpop.f32.mrb[0].mxu0
    %v8751 = vpop.f32.mrb[0].mxu0
    %8752 = vdwg.mxu0
    %8753 = vmatprep.subr.bf16.mxu0 %v6596
    %8754 = vmatpush1.bf16.msra.mxu0 %v6595
    %8755 = vmatprep.subr.bf16.mxu0 %v6612
    %8756 = vmatpush1.bf16.msra.mxu0 %v6611
    %8757 = vmatprep.subr.bf16.mxu0 %v6628
    %8758 = vmatpush1.bf16.msra.mxu0 %v6627
    %8759 = vmatprep.subr.bf16.mxu0 %v6644
    %8760 = vmatpush1.bf16.msra.mxu0 %v6643
    %8761 = vmatprep.subr.bf16.mxu0 %v6660
    %8762 = vmatpush1.bf16.msra.mxu0 %v6659
    %8763 = vmatprep.subr.bf16.mxu0 %v6676
    %8764 = vmatpush1.bf16.msra.mxu0 %v6675
    %8765 = vmatprep.subr.bf16.mxu0 %v6692
    %8766 = vmatpush1.bf16.msra.mxu0 %v6691
    %8767 = vmatprep.subr.bf16.mxu0 %v6708
    %8768 = vmatpush1.bf16.msra.mxu0 %v6707
    %8769 = vmatprep.subr.bf16.mxu0 %v6724
    %8770 = vmatpush1.bf16.msra.mxu0 %v6723
    %8771 = vmatprep.subr.bf16.mxu0 %v6740
    %8772 = vmatpush1.bf16.msra.mxu0 %v6739
    %8773 = vmatprep.subr.bf16.mxu0 %v6756
    %8774 = vmatpush1.bf16.msra.mxu0 %v6755
    %8775 = vmatprep.subr.bf16.mxu0 %v6772
    %8776 = vmatpush1.bf16.msra.mxu0 %v6771
    %8777 = vmatprep.subr.bf16.mxu0 %v6788
    %8778 = vmatpush1.bf16.msra.mxu0 %v6787
    %8779 = vmatprep.subr.bf16.mxu0 %v6804
    %8780 = vmatpush1.bf16.msra.mxu0 %v6803
    %8781 = vmatprep.subr.bf16.mxu0 %v6820
    %8782 = vmatpush1.bf16.msra.mxu0 %v6819
    %8783 = vmatprep.subr.bf16.mxu0 %v6836
    %8784 = vmatpush1.bf16.msra.mxu0 %v6835
    %8785 = vmatprep.mubr.bf16.mxu0 %v6574
    %8786 = vmatmul.mubr.bf16.gmra.mrb[0].mxu0 %v6573
    %v8787 = vpop.f32.mrb[0].mxu0
    %v8788 = vadd.f32 0.0, %v8787
    %v8789 = vpop.f32.mrb[0].mxu0
    %v8790 = vadd.f32 0.0, %v8789
    %v8791 = vpop.f32.mrb[0].mxu0
    %v8792 = vpop.f32.mrb[0].mxu0
    %8793 = vdwg.mxu0
    %8794 = vmatprep.subr.bf16.mxu0 %v6852
    %8795 = vmatpush1.bf16.msra.mxu0 %v6851
    %8796 = vmatprep.subr.bf16.mxu0 %v6868
    %8797 = vmatpush1.bf16.msra.mxu0 %v6867
    %8798 = vmatprep.subr.bf16.mxu0 %v6884
    %8799 = vmatpush1.bf16.msra.mxu0 %v6883
    %8800 = vmatprep.subr.bf16.mxu0 %v6900
    %8801 = vmatpush1.bf16.msra.mxu0 %v6899
    %8802 = vmatprep.subr.bf16.mxu0 %v6916
    %8803 = vmatpush1.bf16.msra.mxu0 %v6915
    %8804 = vmatprep.subr.bf16.mxu0 %v6932
    %8805 = vmatpush1.bf16.msra.mxu0 %v6931
    %8806 = vmatprep.subr.bf16.mxu0 %v6948
    %8807 = vmatpush1.bf16.msra.mxu0 %v6947
    %8808 = vmatprep.subr.bf16.mxu0 %v6964
    %8809 = vmatpush1.bf16.msra.mxu0 %v6963
    %8810 = vmatprep.subr.bf16.mxu0 %v6980
    %8811 = vmatpush1.bf16.msra.mxu0 %v6979
    %8812 = vmatprep.subr.bf16.mxu0 %v6996
    %8813 = vmatpush1.bf16.msra.mxu0 %v6995
    %8814 = vmatprep.subr.bf16.mxu0 %v7012
    %8815 = vmatpush1.bf16.msra.mxu0 %v7011
    %8816 = vmatprep.subr.bf16.mxu0 %v7028
    %8817 = vmatpush1.bf16.msra.mxu0 %v7027
    %8818 = vmatprep.subr.bf16.mxu0 %v7044
    %8819 = vmatpush1.bf16.msra.mxu0 %v7043
    %8820 = vmatprep.subr.bf16.mxu0 %v7060
    %8821 = vmatpush1.bf16.msra.mxu0 %v7059
    %8822 = vmatprep.subr.bf16.mxu0 %v7076
    %8823 = vmatpush1.bf16.msra.mxu0 %v7075
    %8824 = vmatprep.subr.bf16.mxu0 %v7092
    %8825 = vmatpush1.bf16.msra.mxu0 %v7091
    %8826 = vmatprep.mubr.bf16.mxu0 %v6576
    %8827 = vmatmul.mubr.bf16.gmra.mrb[0].mxu0 %v6575
    %v8828 = vpop.f32.mrb[0].mxu0
    %v8829 = vadd.f32 %v8788, %v8828
    %v8830 = vpop.f32.mrb[0].mxu0
    %v8831 = vadd.f32 %v8790, %v8830
    %v8832 = vpop.f32.mrb[0].mxu0
    %v8833 = vpop.f32.mrb[0].mxu0
    %8834 = vdwg.mxu0
    %8835 = vmatprep.subr.bf16.mxu0 %v7108
    %8836 = vmatpush1.bf16.msra.mxu0 %v7107
    %8837 = vmatprep.subr.bf16.mxu0 %v7124
    %8838 = vmatpush1.bf16.msra.mxu0 %v7123
    %8839 = vmatprep.subr.bf16.mxu0 %v7140
    %8840 = vmatpush1.bf16.msra.mxu0 %v7139
    %8841 = vmatprep.subr.bf16.mxu0 %v7156
    %8842 = vmatpush1.bf16.msra.mxu0 %v7155
    %8843 = vmatprep.subr.bf16.mxu0 %v7172
    %8844 = vmatpush1.bf16.msra.mxu0 %v7171
    %8845 = vmatprep.subr.bf16.mxu0 %v7188
    %8846 = vmatpush1.bf16.msra.mxu0 %v7187
    %8847 = vmatprep.subr.bf16.mxu0 %v7204
    %8848 = vmatpush1.bf16.msra.mxu0 %v7203
    %8849 = vmatprep.subr.bf16.mxu0 %v7220
    %8850 = vmatpush1.bf16.msra.mxu0 %v7219
    %8851 = vmatprep.subr.bf16.mxu0 %v7236
    %8852 = vmatpush1.bf16.msra.mxu0 %v7235
    %8853 = vmatprep.subr.bf16.mxu0 %v7252
    %8854 = vmatpush1.bf16.msra.mxu0 %v7251
    %8855 = vmatprep.subr.bf16.mxu0 %v7268
    %8856 = vmatpush1.bf16.msra.mxu0 %v7267
    %8857 = vmatprep.subr.bf16.mxu0 %v7284
    %8858 = vmatpush1.bf16.msra.mxu0 %v7283
    %8859 = vmatprep.subr.bf16.mxu0 %v7300
    %8860 = vmatpush1.bf16.msra.mxu0 %v7299
    %8861 = vmatprep.subr.bf16.mxu0 %v7316
    %8862 = vmatpush1.bf16.msra.mxu0 %v7315
    %8863 = vmatprep.subr.bf16.mxu0 %v7332
    %8864 = vmatpush1.bf16.msra.mxu0 %v7331
    %8865 = vmatprep.subr.bf16.mxu0 %v7348
    %8866 = vmatpush1.bf16.msra.mxu0 %v7347
    %8867 = vmatprep.mubr.bf16.mxu0 %v6578
    %8868 = vmatmul.mubr.bf16.gmra.mrb[0].mxu0 %v6577
    %v8869 = vpop.f32.mrb[0].mxu0
    %v8870 = vadd.f32 %v8829, %v8869
    %v8871 = vpop.f32.mrb[0].mxu0
    %v8872 = vadd.f32 %v8831, %v8871
    %v8873 = vpop.f32.mrb[0].mxu0
    %v8874 = vpop.f32.mrb[0].mxu0
    %8875 = vdwg.mxu0
    %8876 = vmatprep.subr.bf16.mxu0 %v7364
    %8877 = vmatpush1.bf16.msra.mxu0 %v7363
    %8878 = vmatprep.subr.bf16.mxu0 %v7380
    %8879 = vmatpush1.bf16.msra.mxu0 %v7379
    %8880 = vmatprep.subr.bf16.mxu0 %v7396
    %8881 = vmatpush1.bf16.msra.mxu0 %v7395
    %8882 = vmatprep.subr.bf16.mxu0 %v7412
    %8883 = vmatpush1.bf16.msra.mxu0 %v7411
    %8884 = vmatprep.subr.bf16.mxu0 %v7428
    %8885 = vmatpush1.bf16.msra.mxu0 %v7427
    %8886 = vmatprep.subr.bf16.mxu0 %v7444
    %8887 = vmatpush1.bf16.msra.mxu0 %v7443
    %8888 = vmatprep.subr.bf16.mxu0 %v7460
    %8889 = vmatpush1.bf16.msra.mxu0 %v7459
    %8890 = vmatprep.subr.bf16.mxu0 %v7476
    %8891 = vmatpush1.bf16.msra.mxu0 %v7475
    %8892 = vmatprep.subr.bf16.mxu0 %v7492
    %8893 = vmatpush1.bf16.msra.mxu0 %v7491
    %8894 = vmatprep.subr.bf16.mxu0 %v7508
    %8895 = vmatpush1.bf16.msra.mxu0 %v7507
    %8896 = vmatprep.subr.bf16.mxu0 %v7524
    %8897 = vmatpush1.bf16.msra.mxu0 %v7523
    %8898 = vmatprep.subr.bf16.mxu0 %v7540
    %8899 = vmatpush1.bf16.msra.mxu0 %v7539
    %8900 = vmatprep.subr.bf16.mxu0 %v7556
    %8901 = vmatpush1.bf16.msra.mxu0 %v7555
    %8902 = vmatprep.subr.bf16.mxu0 %v7572
    %8903 = vmatpush1.bf16.msra.mxu0 %v7571
    %8904 = vmatprep.subr.bf16.mxu0 %v7588
    %8905 = vmatpush1.bf16.msra.mxu0 %v7587
    %8906 = vmatprep.subr.bf16.mxu0 %v7604
    %8907 = vmatpush1.bf16.msra.mxu0 %v7603
    %8908 = vmatprep.mubr.bf16.mxu0 %v6580
    %8909 = vmatmul.mubr.bf16.gmra.mrb[0].mxu0 %v6579
    %v8910 = vpop.f32.mrb[0].mxu0
    %v8911 = vadd.f32 %v8870, %v8910
    %v8912 = vpop.f32.mrb[0].mxu0
    %v8913 = vadd.f32 %v8872, %v8912
    %v8914 = vpop.f32.mrb[0].mxu0
    %v8915 = vpop.f32.mrb[0].mxu0
    %8916 = vdwg.mxu0
    %s8917 = scalar_lea.vmem [#allocation13], 82
    %v8918 = vld [vmem:[%s8917] ss:$2 sm:$0xff]
    %s8919 = scalar_lea.vmem [#allocation13], 98
    %v8920 = vld [vmem:[%s8919] ss:$2 sm:$0xff]
    %v8923 = vlaneseq
    %v8924 = vshrl.u32 %v8923, 7
    %v8925 = vsub.s32 0, %v8924
    %v8926 = vrot.slane %v8918, %v8925
    %v8927 = vlaneseq
    %v8928 = vshrl.u32 %v8927, 7
    %v8929 = vsub.s32 1, %v8928
    %v8930 = vrot.slane %v8918, %v8929
    %v8931 = vlaneseq
    %v8932 = vshrl.u32 %v8931, 7
    %v8933 = vsub.s32 2, %v8932
    %v8934 = vrot.slane %v8918, %v8933
    %v8935 = vlaneseq
    %v8936 = vshrl.u32 %v8935, 7
    %v8937 = vsub.s32 3, %v8936
    %v8938 = vrot.slane %v8918, %v8937
    %v8939 = vlaneseq
    %v8940 = vshrl.u32 %v8939, 7
    %v8941 = vsub.s32 4, %v8940
    %v8942 = vrot.slane %v8918, %v8941
    %v8943 = vlaneseq
    %v8944 = vshrl.u32 %v8943, 7
    %v8945 = vsub.s32 5, %v8944
    %v8946 = vrot.slane %v8918, %v8945
    %v8947 = vlaneseq
    %v8948 = vshrl.u32 %v8947, 7
    %v8949 = vsub.s32 6, %v8948
    %v8950 = vrot.slane %v8918, %v8949
    %v8951 = vlaneseq
    %v8952 = vshrl.u32 %v8951, 7
    %v8953 = vsub.s32 7, %v8952
    %v8954 = vrot.slane %v8918, %v8953
    %v8955 = vlaneseq
    %v8956 = vshrl.u32 %v8955, 7
    %v8957 = vsub.s32 0, %v8956
    %v8958 = vrot.slane %v8920, %v8957
    %v8959 = vlaneseq
    %v8960 = vshrl.u32 %v8959, 7
    %v8961 = vsub.s32 1, %v8960
    %v8962 = vrot.slane %v8920, %v8961
    %v8963 = vlaneseq
    %v8964 = vshrl.u32 %v8963, 7
    %v8965 = vsub.s32 2, %v8964
    %v8966 = vrot.slane %v8920, %v8965
    %v8967 = vlaneseq
    %v8968 = vshrl.u32 %v8967, 7
    %v8969 = vsub.s32 3, %v8968
    %v8970 = vrot.slane %v8920, %v8969
    %v8971 = vlaneseq
    %v8972 = vshrl.u32 %v8971, 7
    %v8973 = vsub.s32 4, %v8972
    %v8974 = vrot.slane %v8920, %v8973
    %v8975 = vlaneseq
    %v8976 = vshrl.u32 %v8975, 7
    %v8977 = vsub.s32 5, %v8976
    %v8978 = vrot.slane %v8920, %v8977
    %v8979 = vlaneseq
    %v8980 = vshrl.u32 %v8979, 7
    %v8981 = vsub.s32 6, %v8980
    %v8982 = vrot.slane %v8920, %v8981
    %v8983 = vlaneseq
    %v8984 = vshrl.u32 %v8983, 7
    %v8985 = vsub.s32 7, %v8984
    %v8986 = vrot.slane %v8920, %v8985
    %v9003 = vmul.f32 %v7763, %v8926
    %v9004 = vmul.f32 %v7765, %v8930
    %v9005 = vmul.f32 %v7927, %v8934
    %v9006 = vmul.f32 %v7929, %v8938
    %v9007 = vmul.f32 %v8091, %v8942
    %v9008 = vmul.f32 %v8093, %v8946
    %v9009 = vmul.f32 %v8255, %v8950
    %v9010 = vmul.f32 %v8257, %v8954
    %v9011 = vmul.f32 %v8419, %v8958
    %v9012 = vmul.f32 %v8421, %v8962
    %v9013 = vmul.f32 %v8583, %v8966
    %v9014 = vmul.f32 %v8585, %v8970
    %v9015 = vmul.f32 %v8747, %v8974
    %v9016 = vmul.f32 %v8749, %v8978
    %v9017 = vmul.f32 %v8911, %v8982
    %v9018 = vmul.f32 %v8913, %v8986
    %s9019 = scalar_lea.vmem [#allocation13], 83
    %v9020 = vld [vmem:[%s9019] ss:$2 sm:$0xff]
    %s9021 = scalar_lea.vmem [#allocation13], 99
    %v9022 = vld [vmem:[%s9021] ss:$2 sm:$0xff]
    %v9025 = vlaneseq
    %v9026 = vshrl.u32 %v9025, 7
    %v9027 = vsub.s32 0, %v9026
    %v9028 = vrot.slane %v9020, %v9027
    %v9029 = vlaneseq
    %v9030 = vshrl.u32 %v9029, 7
    %v9031 = vsub.s32 1, %v9030
    %v9032 = vrot.slane %v9020, %v9031
    %v9033 = vlaneseq
    %v9034 = vshrl.u32 %v9033, 7
    %v9035 = vsub.s32 2, %v9034
    %v9036 = vrot.slane %v9020, %v9035
    %v9037 = vlaneseq
    %v9038 = vshrl.u32 %v9037, 7
    %v9039 = vsub.s32 3, %v9038
    %v9040 = vrot.slane %v9020, %v9039
    %v9041 = vlaneseq
    %v9042 = vshrl.u32 %v9041, 7
    %v9043 = vsub.s32 4, %v9042
    %v9044 = vrot.slane %v9020, %v9043
    %v9045 = vlaneseq
    %v9046 = vshrl.u32 %v9045, 7
    %v9047 = vsub.s32 5, %v9046
    %v9048 = vrot.slane %v9020, %v9047
    %v9049 = vlaneseq
    %v9050 = vshrl.u32 %v9049, 7
    %v9051 = vsub.s32 6, %v9050
    %v9052 = vrot.slane %v9020, %v9051
    %v9053 = vlaneseq
    %v9054 = vshrl.u32 %v9053, 7
    %v9055 = vsub.s32 7, %v9054
    %v9056 = vrot.slane %v9020, %v9055
    %v9057 = vlaneseq
    %v9058 = vshrl.u32 %v9057, 7
    %v9059 = vsub.s32 0, %v9058
    %v9060 = vrot.slane %v9022, %v9059
    %v9061 = vlaneseq
    %v9062 = vshrl.u32 %v9061, 7
    %v9063 = vsub.s32 1, %v9062
    %v9064 = vrot.slane %v9022, %v9063
    %v9065 = vlaneseq
    %v9066 = vshrl.u32 %v9065, 7
    %v9067 = vsub.s32 2, %v9066
    %v9068 = vrot.slane %v9022, %v9067
    %v9069 = vlaneseq
    %v9070 = vshrl.u32 %v9069, 7
    %v9071 = vsub.s32 3, %v9070
    %v9072 = vrot.slane %v9022, %v9071
    %v9073 = vlaneseq
    %v9074 = vshrl.u32 %v9073, 7
    %v9075 = vsub.s32 4, %v9074
    %v9076 = vrot.slane %v9022, %v9075
    %v9077 = vlaneseq
    %v9078 = vshrl.u32 %v9077, 7
    %v9079 = vsub.s32 5, %v9078
    %v9080 = vrot.slane %v9022, %v9079
    %v9081 = vlaneseq
    %v9082 = vshrl.u32 %v9081, 7
    %v9083 = vsub.s32 6, %v9082
    %v9084 = vrot.slane %v9022, %v9083
    %v9085 = vlaneseq
    %v9086 = vshrl.u32 %v9085, 7
    %v9087 = vsub.s32 7, %v9086
    %v9088 = vrot.slane %v9022, %v9087
    %v9105 = vadd.f32 %v9003, %v9028
    %v9106 = vadd.f32 %v9004, %v9032
    %v9107 = vadd.f32 %v9005, %v9036
    %v9108 = vadd.f32 %v9006, %v9040
    %v9109 = vadd.f32 %v9007, %v9044
    %v9110 = vadd.f32 %v9008, %v9048
    %v9111 = vadd.f32 %v9009, %v9052
    %v9112 = vadd.f32 %v9010, %v9056
    %v9113 = vadd.f32 %v9011, %v9060
    %v9114 = vadd.f32 %v9012, %v9064
    %v9115 = vadd.f32 %v9013, %v9068
    %v9116 = vadd.f32 %v9014, %v9072
    %v9117 = vadd.f32 %v9015, %v9076
    %v9118 = vadd.f32 %v9016, %v9080
    %v9119 = vadd.f32 %v9017, %v9084
    %v9120 = vadd.f32 %v9018, %v9088
    %v9121 = vmax.f32 %v9105, 0.0
    %v9122 = vmax.f32 %v9106, 0.0
    %v9123 = vmax.f32 %v9107, 0.0
    %v9124 = vmax.f32 %v9108, 0.0
    %v9125 = vmax.f32 %v9109, 0.0
    %v9126 = vmax.f32 %v9110, 0.0
    %v9127 = vmax.f32 %v9111, 0.0
    %v9128 = vmax.f32 %v9112, 0.0
    %v9129 = vmax.f32 %v9113, 0.0
    %v9130 = vmax.f32 %v9114, 0.0
    %v9131 = vmax.f32 %v9115, 0.0
    %v9132 = vmax.f32 %v9116, 0.0
    %v9133 = vmax.f32 %v9117, 0.0
    %v9134 = vmax.f32 %v9118, 0.0
    %v9135 = vmax.f32 %v9119, 0.0
    %v9136 = vmax.f32 %v9120, 0.0
    %s9137 = smul.u32 %s1113, 2
    %s9138 = sshll.u32 %s9137, 4
    %9139 = dma.done %s156, %s9138
    %v9140 = vld [vmem:[#allocation6] sm:$0xff]
    %v9141 = vld [vmem:[#allocation6 + $0x8] sm:$0xff]
    %v9142 = vld [vmem:[#allocation6 + $0x10] sm:$0xff]
    %v9143 = vld [vmem:[#allocation6 + $0x18] sm:$0xff]
    %v9144 = vld [vmem:[#allocation6 + $0x20] sm:$0xff]
    %v9145 = vld [vmem:[#allocation6 + $0x28] sm:$0xff]
    %v9146 = vld [vmem:[#allocation6 + $0x30] sm:$0xff]
    %v9147 = vld [vmem:[#allocation6 + $0x38] sm:$0xff]
    %v9148 = vld [vmem:[#allocation6 + $0x40] sm:$0xff]
    %v9149 = vld [vmem:[#allocation6 + $0x48] sm:$0xff]
    %v9150 = vld [vmem:[#allocation6 + $0x50] sm:$0xff]
    %v9151 = vld [vmem:[#allocation6 + $0x58] sm:$0xff]
    %v9152 = vld [vmem:[#allocation6 + $0x60] sm:$0xff]
    %v9153 = vld [vmem:[#allocation6 + $0x68] sm:$0xff]
    %v9154 = vld [vmem:[#allocation6 + $0x70] sm:$0xff]
    %v9155 = vld [vmem:[#allocation6 + $0x78] sm:$0xff]
    %v9156 = vld [vmem:[#allocation6 + $0x80] sm:$0xff]
    %v9157 = vld [vmem:[#allocation6 + $0x88] sm:$0xff]
    %v9158 = vld [vmem:[#allocation6 + $0x90] sm:$0xff]
    %v9159 = vld [vmem:[#allocation6 + $0x98] sm:$0xff]
    %v9160 = vld [vmem:[#allocation6 + $0xa0] sm:$0xff]
    %v9161 = vld [vmem:[#allocation6 + $0xa8] sm:$0xff]
    %v9162 = vld [vmem:[#allocation6 + $0xb0] sm:$0xff]
    %v9163 = vld [vmem:[#allocation6 + $0xb8] sm:$0xff]
    %v9164 = vld [vmem:[#allocation6 + $0xc0] sm:$0xff]
    %v9165 = vld [vmem:[#allocation6 + $0xc8] sm:$0xff]
    %v9166 = vld [vmem:[#allocation6 + $0xd0] sm:$0xff]
    %v9167 = vld [vmem:[#allocation6 + $0xd8] sm:$0xff]
    %v9168 = vld [vmem:[#allocation6 + $0xe0] sm:$0xff]
    %v9169 = vld [vmem:[#allocation6 + $0xe8] sm:$0xff]
    %v9170 = vld [vmem:[#allocation6 + $0xf0] sm:$0xff]
    %v9171 = vld [vmem:[#allocation6 + $0xf8] sm:$0xff]
    %v9172 = vld [vmem:[#allocation6 + $0x100] sm:$0xff]
    %v9173 = vld [vmem:[#allocation6 + $0x108] sm:$0xff]
    %v9174 = vld [vmem:[#allocation6 + $0x110] sm:$0xff]
    %v9175 = vld [vmem:[#allocation6 + $0x118] sm:$0xff]
    %v9176 = vld [vmem:[#allocation6 + $0x120] sm:$0xff]
    %v9177 = vld [vmem:[#allocation6 + $0x128] sm:$0xff]
    %v9178 = vld [vmem:[#allocation6 + $0x130] sm:$0xff]
    %v9179 = vld [vmem:[#allocation6 + $0x138] sm:$0xff]
    %v9180 = vld [vmem:[#allocation6 + $0x140] sm:$0xff]
    %v9181 = vld [vmem:[#allocation6 + $0x148] sm:$0xff]
    %v9182 = vld [vmem:[#allocation6 + $0x150] sm:$0xff]
    %v9183 = vld [vmem:[#allocation6 + $0x158] sm:$0xff]
    %v9184 = vld [vmem:[#allocation6 + $0x160] sm:$0xff]
    %v9185 = vld [vmem:[#allocation6 + $0x168] sm:$0xff]
    %v9186 = vld [vmem:[#allocation6 + $0x170] sm:$0xff]
    %v9187 = vld [vmem:[#allocation6 + $0x178] sm:$0xff]
    %v9188 = vld [vmem:[#allocation6 + $0x180] sm:$0xff]
    %v9189 = vld [vmem:[#allocation6 + $0x188] sm:$0xff]
    %v9190 = vld [vmem:[#allocation6 + $0x190] sm:$0xff]
    %v9191 = vld [vmem:[#allocation6 + $0x198] sm:$0xff]
    %v9192 = vld [vmem:[#allocation6 + $0x1a0] sm:$0xff]
    %v9193 = vld [vmem:[#allocation6 + $0x1a8] sm:$0xff]
    %v9194 = vld [vmem:[#allocation6 + $0x1b0] sm:$0xff]
    %v9195 = vld [vmem:[#allocation6 + $0x1b8] sm:$0xff]
    %v9196 = vld [vmem:[#allocation6 + $0x1c0] sm:$0xff]
    %v9197 = vld [vmem:[#allocation6 + $0x1c8] sm:$0xff]
    %v9198 = vld [vmem:[#allocation6 + $0x1d0] sm:$0xff]
    %v9199 = vld [vmem:[#allocation6 + $0x1d8] sm:$0xff]
    %v9200 = vld [vmem:[#allocation6 + $0x1e0] sm:$0xff]
    %v9201 = vld [vmem:[#allocation6 + $0x1e8] sm:$0xff]
    %v9202 = vld [vmem:[#allocation6 + $0x1f0] sm:$0xff]
    %v9203 = vld [vmem:[#allocation6 + $0x1f8] sm:$0xff]
    %v9204 = vld [vmem:[#allocation6 + $0x200] sm:$0xff]
    %v9205 = vld [vmem:[#allocation6 + $0x208] sm:$0xff]
    %v9206 = vld [vmem:[#allocation6 + $0x210] sm:$0xff]
    %v9207 = vld [vmem:[#allocation6 + $0x218] sm:$0xff]
    %v9208 = vld [vmem:[#allocation6 + $0x220] sm:$0xff]
    %v9209 = vld [vmem:[#allocation6 + $0x228] sm:$0xff]
    %v9210 = vld [vmem:[#allocation6 + $0x230] sm:$0xff]
    %v9211 = vld [vmem:[#allocation6 + $0x238] sm:$0xff]
    %v9212 = vld [vmem:[#allocation6 + $0x240] sm:$0xff]
    %v9213 = vld [vmem:[#allocation6 + $0x248] sm:$0xff]
    %v9214 = vld [vmem:[#allocation6 + $0x250] sm:$0xff]
    %v9215 = vld [vmem:[#allocation6 + $0x258] sm:$0xff]
    %v9216 = vld [vmem:[#allocation6 + $0x260] sm:$0xff]
    %v9217 = vld [vmem:[#allocation6 + $0x268] sm:$0xff]
    %v9218 = vld [vmem:[#allocation6 + $0x270] sm:$0xff]
    %v9219 = vld [vmem:[#allocation6 + $0x278] sm:$0xff]
    %v9220 = vld [vmem:[#allocation6 + $0x280] sm:$0xff]
    %v9221 = vld [vmem:[#allocation6 + $0x288] sm:$0xff]
    %v9222 = vld [vmem:[#allocation6 + $0x290] sm:$0xff]
    %v9223 = vld [vmem:[#allocation6 + $0x298] sm:$0xff]
    %v9224 = vld [vmem:[#allocation6 + $0x2a0] sm:$0xff]
    %v9225 = vld [vmem:[#allocation6 + $0x2a8] sm:$0xff]
    %v9226 = vld [vmem:[#allocation6 + $0x2b0] sm:$0xff]
    %v9227 = vld [vmem:[#allocation6 + $0x2b8] sm:$0xff]
    %v9228 = vld [vmem:[#allocation6 + $0x2c0] sm:$0xff]
    %v9229 = vld [vmem:[#allocation6 + $0x2c8] sm:$0xff]
    %v9230 = vld [vmem:[#allocation6 + $0x2d0] sm:$0xff]
    %v9231 = vld [vmem:[#allocation6 + $0x2d8] sm:$0xff]
    %v9232 = vld [vmem:[#allocation6 + $0x2e0] sm:$0xff]
    %v9233 = vld [vmem:[#allocation6 + $0x2e8] sm:$0xff]
    %v9234 = vld [vmem:[#allocation6 + $0x2f0] sm:$0xff]
    %v9235 = vld [vmem:[#allocation6 + $0x2f8] sm:$0xff]
    %v9236 = vld [vmem:[#allocation6 + $0x300] sm:$0xff]
    %v9237 = vld [vmem:[#allocation6 + $0x308] sm:$0xff]
    %v9238 = vld [vmem:[#allocation6 + $0x310] sm:$0xff]
    %v9239 = vld [vmem:[#allocation6 + $0x318] sm:$0xff]
    %v9240 = vld [vmem:[#allocation6 + $0x320] sm:$0xff]
    %v9241 = vld [vmem:[#allocation6 + $0x328] sm:$0xff]
    %v9242 = vld [vmem:[#allocation6 + $0x330] sm:$0xff]
    %v9243 = vld [vmem:[#allocation6 + $0x338] sm:$0xff]
    %v9244 = vld [vmem:[#allocation6 + $0x340] sm:$0xff]
    %v9245 = vld [vmem:[#allocation6 + $0x348] sm:$0xff]
    %v9246 = vld [vmem:[#allocation6 + $0x350] sm:$0xff]
    %v9247 = vld [vmem:[#allocation6 + $0x358] sm:$0xff]
    %v9248 = vld [vmem:[#allocation6 + $0x360] sm:$0xff]
    %v9249 = vld [vmem:[#allocation6 + $0x368] sm:$0xff]
    %v9250 = vld [vmem:[#allocation6 + $0x370] sm:$0xff]
    %v9251 = vld [vmem:[#allocation6 + $0x378] sm:$0xff]
    %v9252 = vld [vmem:[#allocation6 + $0x380] sm:$0xff]
    %v9253 = vld [vmem:[#allocation6 + $0x388] sm:$0xff]
    %v9254 = vld [vmem:[#allocation6 + $0x390] sm:$0xff]
    %v9255 = vld [vmem:[#allocation6 + $0x398] sm:$0xff]
    %v9256 = vld [vmem:[#allocation6 + $0x3a0] sm:$0xff]
    %v9257 = vld [vmem:[#allocation6 + $0x3a8] sm:$0xff]
    %v9258 = vld [vmem:[#allocation6 + $0x3b0] sm:$0xff]
    %v9259 = vld [vmem:[#allocation6 + $0x3b8] sm:$0xff]
    %v9260 = vld [vmem:[#allocation6 + $0x3c0] sm:$0xff]
    %v9261 = vld [vmem:[#allocation6 + $0x3c8] sm:$0xff]
    %v9262 = vld [vmem:[#allocation6 + $0x3d0] sm:$0xff]
    %v9263 = vld [vmem:[#allocation6 + $0x3d8] sm:$0xff]
    %v9264 = vld [vmem:[#allocation6 + $0x3e0] sm:$0xff]
    %v9265 = vld [vmem:[#allocation6 + $0x3e8] sm:$0xff]
    %v9266 = vld [vmem:[#allocation6 + $0x3f0] sm:$0xff]
    %v9267 = vld [vmem:[#allocation6 + $0x3f8] sm:$0xff]
    %v9268 = vpack.c.bf16 %v9121, %v9121
    %v9269 = vpack.c.bf16 %v9122, %v9122
    %v9270 = vpack.c.bf16 %v9123, %v9123
    %v9271 = vpack.c.bf16 %v9124, %v9124
    %v9272 = vpack.c.bf16 %v9125, %v9125
    %v9273 = vpack.c.bf16 %v9126, %v9126
    %v9274 = vpack.c.bf16 %v9127, %v9127
    %v9275 = vpack.c.bf16 %v9128, %v9128
    %v9276 = vpack.c.bf16 %v9129, %v9129
    %v9277 = vpack.c.bf16 %v9130, %v9130
    %v9278 = vpack.c.bf16 %v9131, %v9131
    %v9279 = vpack.c.bf16 %v9132, %v9132
    %v9280 = vpack.c.bf16 %v9133, %v9133
    %v9281 = vpack.c.bf16 %v9134, %v9134
    %v9282 = vpack.c.bf16 %v9135, %v9135
    %v9283 = vpack.c.bf16 %v9136, %v9136
    %v9284 = vunpack.c.l.s8.bf16 %v9140
    %v9285 = vunpack.c.l.s8.bf16 %v9141
    %v9286 = vunpack.c.h.s8.bf16 %v9140
    %v9287 = vunpack.c.h.s8.bf16 %v9141
    %v9288 = vunpack.c.l.s8.bf16 %v9142
    %v9289 = vunpack.c.l.s8.bf16 %v9143
    %v9290 = vunpack.c.h.s8.bf16 %v9142
    %v9291 = vunpack.c.h.s8.bf16 %v9143
    %v9292 = vunpack.c.l.s8.bf16 %v9144
    %v9293 = vunpack.c.l.s8.bf16 %v9145
    %v9294 = vunpack.c.h.s8.bf16 %v9144
    %v9295 = vunpack.c.h.s8.bf16 %v9145
    %v9296 = vunpack.c.l.s8.bf16 %v9146
    %v9297 = vunpack.c.l.s8.bf16 %v9147
    %v9298 = vunpack.c.h.s8.bf16 %v9146
    %v9299 = vunpack.c.h.s8.bf16 %v9147
    %v9300 = vunpack.c.l.s8.bf16 %v9148
    %v9301 = vunpack.c.l.s8.bf16 %v9149
    %v9302 = vunpack.c.h.s8.bf16 %v9148
    %v9303 = vunpack.c.h.s8.bf16 %v9149
    %v9304 = vunpack.c.l.s8.bf16 %v9150
    %v9305 = vunpack.c.l.s8.bf16 %v9151
    %v9306 = vunpack.c.h.s8.bf16 %v9150
    %v9307 = vunpack.c.h.s8.bf16 %v9151
    %v9308 = vunpack.c.l.s8.bf16 %v9152
    %v9309 = vunpack.c.l.s8.bf16 %v9153
    %v9310 = vunpack.c.h.s8.bf16 %v9152
    %v9311 = vunpack.c.h.s8.bf16 %v9153
    %v9312 = vunpack.c.l.s8.bf16 %v9154
    %v9313 = vunpack.c.l.s8.bf16 %v9155
    %v9314 = vunpack.c.h.s8.bf16 %v9154
    %v9315 = vunpack.c.h.s8.bf16 %v9155
    %v9316 = vunpack.c.l.s8.bf16 %v9156
    %v9317 = vunpack.c.l.s8.bf16 %v9157
    %v9318 = vunpack.c.h.s8.bf16 %v9156
    %v9319 = vunpack.c.h.s8.bf16 %v9157
    %v9320 = vunpack.c.l.s8.bf16 %v9158
    %v9321 = vunpack.c.l.s8.bf16 %v9159
    %v9322 = vunpack.c.h.s8.bf16 %v9158
    %v9323 = vunpack.c.h.s8.bf16 %v9159
    %v9324 = vunpack.c.l.s8.bf16 %v9160
    %v9325 = vunpack.c.l.s8.bf16 %v9161
    %v9326 = vunpack.c.h.s8.bf16 %v9160
    %v9327 = vunpack.c.h.s8.bf16 %v9161
    %v9328 = vunpack.c.l.s8.bf16 %v9162
    %v9329 = vunpack.c.l.s8.bf16 %v9163
    %v9330 = vunpack.c.h.s8.bf16 %v9162
    %v9331 = vunpack.c.h.s8.bf16 %v9163
    %v9332 = vunpack.c.l.s8.bf16 %v9164
    %v9333 = vunpack.c.l.s8.bf16 %v9165
    %v9334 = vunpack.c.h.s8.bf16 %v9164
    %v9335 = vunpack.c.h.s8.bf16 %v9165
    %v9336 = vunpack.c.l.s8.bf16 %v9166
    %v9337 = vunpack.c.l.s8.bf16 %v9167
    %v9338 = vunpack.c.h.s8.bf16 %v9166
    %v9339 = vunpack.c.h.s8.bf16 %v9167
    %v9340 = vunpack.c.l.s8.bf16 %v9168
    %v9341 = vunpack.c.l.s8.bf16 %v9169
    %v9342 = vunpack.c.h.s8.bf16 %v9168
    %v9343 = vunpack.c.h.s8.bf16 %v9169
    %v9344 = vunpack.c.l.s8.bf16 %v9170
    %v9345 = vunpack.c.l.s8.bf16 %v9171
    %v9346 = vunpack.c.h.s8.bf16 %v9170
    %v9347 = vunpack.c.h.s8.bf16 %v9171
    %v9348 = vunpack.c.l.s8.bf16 %v9172
    %v9349 = vunpack.c.l.s8.bf16 %v9173
    %v9350 = vunpack.c.h.s8.bf16 %v9172
    %v9351 = vunpack.c.h.s8.bf16 %v9173
    %v9352 = vunpack.c.l.s8.bf16 %v9174
    %v9353 = vunpack.c.l.s8.bf16 %v9175
    %v9354 = vunpack.c.h.s8.bf16 %v9174
    %v9355 = vunpack.c.h.s8.bf16 %v9175
    %v9356 = vunpack.c.l.s8.bf16 %v9176
    %v9357 = vunpack.c.l.s8.bf16 %v9177
    %v9358 = vunpack.c.h.s8.bf16 %v9176
    %v9359 = vunpack.c.h.s8.bf16 %v9177
    %v9360 = vunpack.c.l.s8.bf16 %v9178
    %v9361 = vunpack.c.l.s8.bf16 %v9179
    %v9362 = vunpack.c.h.s8.bf16 %v9178
    %v9363 = vunpack.c.h.s8.bf16 %v9179
    %v9364 = vunpack.c.l.s8.bf16 %v9180
    %v9365 = vunpack.c.l.s8.bf16 %v9181
    %v9366 = vunpack.c.h.s8.bf16 %v9180
    %v9367 = vunpack.c.h.s8.bf16 %v9181
    %v9368 = vunpack.c.l.s8.bf16 %v9182
    %v9369 = vunpack.c.l.s8.bf16 %v9183
    %v9370 = vunpack.c.h.s8.bf16 %v9182
    %v9371 = vunpack.c.h.s8.bf16 %v9183
    %v9372 = vunpack.c.l.s8.bf16 %v9184
    %v9373 = vunpack.c.l.s8.bf16 %v9185
    %v9374 = vunpack.c.h.s8.bf16 %v9184
    %v9375 = vunpack.c.h.s8.bf16 %v9185
    %v9376 = vunpack.c.l.s8.bf16 %v9186
    %v9377 = vunpack.c.l.s8.bf16 %v9187
    %v9378 = vunpack.c.h.s8.bf16 %v9186
    %v9379 = vunpack.c.h.s8.bf16 %v9187
    %v9380 = vunpack.c.l.s8.bf16 %v9188
    %v9381 = vunpack.c.l.s8.bf16 %v9189
    %v9382 = vunpack.c.h.s8.bf16 %v9188
    %v9383 = vunpack.c.h.s8.bf16 %v9189
    %v9384 = vunpack.c.l.s8.bf16 %v9190
    %v9385 = vunpack.c.l.s8.bf16 %v9191
    %v9386 = vunpack.c.h.s8.bf16 %v9190
    %v9387 = vunpack.c.h.s8.bf16 %v9191
    %v9388 = vunpack.c.l.s8.bf16 %v9192
    %v9389 = vunpack.c.l.s8.bf16 %v9193
    %v9390 = vunpack.c.h.s8.bf16 %v9192
    %v9391 = vunpack.c.h.s8.bf16 %v9193
    %v9392 = vunpack.c.l.s8.bf16 %v9194
    %v9393 = vunpack.c.l.s8.bf16 %v9195
    %v9394 = vunpack.c.h.s8.bf16 %v9194
    %v9395 = vunpack.c.h.s8.bf16 %v9195
    %v9396 = vunpack.c.l.s8.bf16 %v9196
    %v9397 = vunpack.c.l.s8.bf16 %v9197
    %v9398 = vunpack.c.h.s8.bf16 %v9196
    %v9399 = vunpack.c.h.s8.bf16 %v9197
    %v9400 = vunpack.c.l.s8.bf16 %v9198
    %v9401 = vunpack.c.l.s8.bf16 %v9199
    %v9402 = vunpack.c.h.s8.bf16 %v9198
    %v9403 = vunpack.c.h.s8.bf16 %v9199
    %v9404 = vunpack.c.l.s8.bf16 %v9200
    %v9405 = vunpack.c.l.s8.bf16 %v9201
    %v9406 = vunpack.c.h.s8.bf16 %v9200
    %v9407 = vunpack.c.h.s8.bf16 %v9201
    %v9408 = vunpack.c.l.s8.bf16 %v9202
    %v9409 = vunpack.c.l.s8.bf16 %v9203
    %v9410 = vunpack.c.h.s8.bf16 %v9202
    %v9411 = vunpack.c.h.s8.bf16 %v9203
    %v9412 = vunpack.c.l.s8.bf16 %v9204
    %v9413 = vunpack.c.l.s8.bf16 %v9205
    %v9414 = vunpack.c.h.s8.bf16 %v9204
    %v9415 = vunpack.c.h.s8.bf16 %v9205
    %v9416 = vunpack.c.l.s8.bf16 %v9206
    %v9417 = vunpack.c.l.s8.bf16 %v9207
    %v9418 = vunpack.c.h.s8.bf16 %v9206
    %v9419 = vunpack.c.h.s8.bf16 %v9207
    %v9420 = vunpack.c.l.s8.bf16 %v9208
    %v9421 = vunpack.c.l.s8.bf16 %v9209
    %v9422 = vunpack.c.h.s8.bf16 %v9208
    %v9423 = vunpack.c.h.s8.bf16 %v9209
    %v9424 = vunpack.c.l.s8.bf16 %v9210
    %v9425 = vunpack.c.l.s8.bf16 %v9211
    %v9426 = vunpack.c.h.s8.bf16 %v9210
    %v9427 = vunpack.c.h.s8.bf16 %v9211
    %v9428 = vunpack.c.l.s8.bf16 %v9212
    %v9429 = vunpack.c.l.s8.bf16 %v9213
    %v9430 = vunpack.c.h.s8.bf16 %v9212
    %v9431 = vunpack.c.h.s8.bf16 %v9213
    %v9432 = vunpack.c.l.s8.bf16 %v9214
    %v9433 = vunpack.c.l.s8.bf16 %v9215
    %v9434 = vunpack.c.h.s8.bf16 %v9214
    %v9435 = vunpack.c.h.s8.bf16 %v9215
    %v9436 = vunpack.c.l.s8.bf16 %v9216
    %v9437 = vunpack.c.l.s8.bf16 %v9217
    %v9438 = vunpack.c.h.s8.bf16 %v9216
    %v9439 = vunpack.c.h.s8.bf16 %v9217
    %v9440 = vunpack.c.l.s8.bf16 %v9218
    %v9441 = vunpack.c.l.s8.bf16 %v9219
    %v9442 = vunpack.c.h.s8.bf16 %v9218
    %v9443 = vunpack.c.h.s8.bf16 %v9219
    %v9444 = vunpack.c.l.s8.bf16 %v9220
    %v9445 = vunpack.c.l.s8.bf16 %v9221
    %v9446 = vunpack.c.h.s8.bf16 %v9220
    %v9447 = vunpack.c.h.s8.bf16 %v9221
    %v9448 = vunpack.c.l.s8.bf16 %v9222
    %v9449 = vunpack.c.l.s8.bf16 %v9223
    %v9450 = vunpack.c.h.s8.bf16 %v9222
    %v9451 = vunpack.c.h.s8.bf16 %v9223
    %v9452 = vunpack.c.l.s8.bf16 %v9224
    %v9453 = vunpack.c.l.s8.bf16 %v9225
    %v9454 = vunpack.c.h.s8.bf16 %v9224
    %v9455 = vunpack.c.h.s8.bf16 %v9225
    %v9456 = vunpack.c.l.s8.bf16 %v9226
    %v9457 = vunpack.c.l.s8.bf16 %v9227
    %v9458 = vunpack.c.h.s8.bf16 %v9226
    %v9459 = vunpack.c.h.s8.bf16 %v9227
    %v9460 = vunpack.c.l.s8.bf16 %v9228
    %v9461 = vunpack.c.l.s8.bf16 %v9229
    %v9462 = vunpack.c.h.s8.bf16 %v9228
    %v9463 = vunpack.c.h.s8.bf16 %v9229
    %v9464 = vunpack.c.l.s8.bf16 %v9230
    %v9465 = vunpack.c.l.s8.bf16 %v9231
    %v9466 = vunpack.c.h.s8.bf16 %v9230
    %v9467 = vunpack.c.h.s8.bf16 %v9231
    %v9468 = vunpack.c.l.s8.bf16 %v9232
    %v9469 = vunpack.c.l.s8.bf16 %v9233
    %v9470 = vunpack.c.h.s8.bf16 %v9232
    %v9471 = vunpack.c.h.s8.bf16 %v9233
    %v9472 = vunpack.c.l.s8.bf16 %v9234
    %v9473 = vunpack.c.l.s8.bf16 %v9235
    %v9474 = vunpack.c.h.s8.bf16 %v9234
    %v9475 = vunpack.c.h.s8.bf16 %v9235
    %v9476 = vunpack.c.l.s8.bf16 %v9236
    %v9477 = vunpack.c.l.s8.bf16 %v9237
    %v9478 = vunpack.c.h.s8.bf16 %v9236
    %v9479 = vunpack.c.h.s8.bf16 %v9237
    %v9480 = vunpack.c.l.s8.bf16 %v9238
    %v9481 = vunpack.c.l.s8.bf16 %v9239
    %v9482 = vunpack.c.h.s8.bf16 %v9238
    %v9483 = vunpack.c.h.s8.bf16 %v9239
    %v9484 = vunpack.c.l.s8.bf16 %v9240
    %v9485 = vunpack.c.l.s8.bf16 %v9241
    %v9486 = vunpack.c.h.s8.bf16 %v9240
    %v9487 = vunpack.c.h.s8.bf16 %v9241
    %v9488 = vunpack.c.l.s8.bf16 %v9242
    %v9489 = vunpack.c.l.s8.bf16 %v9243
    %v9490 = vunpack.c.h.s8.bf16 %v9242
    %v9491 = vunpack.c.h.s8.bf16 %v9243
    %v9492 = vunpack.c.l.s8.bf16 %v9244
    %v9493 = vunpack.c.l.s8.bf16 %v9245
    %v9494 = vunpack.c.h.s8.bf16 %v9244
    %v9495 = vunpack.c.h.s8.bf16 %v9245
    %v9496 = vunpack.c.l.s8.bf16 %v9246
    %v9497 = vunpack.c.l.s8.bf16 %v9247
    %v9498 = vunpack.c.h.s8.bf16 %v9246
    %v9499 = vunpack.c.h.s8.bf16 %v9247
    %v9500 = vunpack.c.l.s8.bf16 %v9248
    %v9501 = vunpack.c.l.s8.bf16 %v9249
    %v9502 = vunpack.c.h.s8.bf16 %v9248
    %v9503 = vunpack.c.h.s8.bf16 %v9249
    %v9504 = vunpack.c.l.s8.bf16 %v9250
    %v9505 = vunpack.c.l.s8.bf16 %v9251
    %v9506 = vunpack.c.h.s8.bf16 %v9250
    %v9507 = vunpack.c.h.s8.bf16 %v9251
    %v9508 = vunpack.c.l.s8.bf16 %v9252
    %v9509 = vunpack.c.l.s8.bf16 %v9253
    %v9510 = vunpack.c.h.s8.bf16 %v9252
    %v9511 = vunpack.c.h.s8.bf16 %v9253
    %v9512 = vunpack.c.l.s8.bf16 %v9254
    %v9513 = vunpack.c.l.s8.bf16 %v9255
    %v9514 = vunpack.c.h.s8.bf16 %v9254
    %v9515 = vunpack.c.h.s8.bf16 %v9255
    %v9516 = vunpack.c.l.s8.bf16 %v9256
    %v9517 = vunpack.c.l.s8.bf16 %v9257
    %v9518 = vunpack.c.h.s8.bf16 %v9256
    %v9519 = vunpack.c.h.s8.bf16 %v9257
    %v9520 = vunpack.c.l.s8.bf16 %v9258
    %v9521 = vunpack.c.l.s8.bf16 %v9259
    %v9522 = vunpack.c.h.s8.bf16 %v9258
    %v9523 = vunpack.c.h.s8.bf16 %v9259
    %v9524 = vunpack.c.l.s8.bf16 %v9260
    %v9525 = vunpack.c.l.s8.bf16 %v9261
    %v9526 = vunpack.c.h.s8.bf16 %v9260
    %v9527 = vunpack.c.h.s8.bf16 %v9261
    %v9528 = vunpack.c.l.s8.bf16 %v9262
    %v9529 = vunpack.c.l.s8.bf16 %v9263
    %v9530 = vunpack.c.h.s8.bf16 %v9262
    %v9531 = vunpack.c.h.s8.bf16 %v9263
    %v9532 = vunpack.c.l.s8.bf16 %v9264
    %v9533 = vunpack.c.l.s8.bf16 %v9265
    %v9534 = vunpack.c.h.s8.bf16 %v9264
    %v9535 = vunpack.c.h.s8.bf16 %v9265
    %v9536 = vunpack.c.l.s8.bf16 %v9266
    %v9537 = vunpack.c.l.s8.bf16 %v9267
    %v9538 = vunpack.c.h.s8.bf16 %v9266
    %v9539 = vunpack.c.h.s8.bf16 %v9267
    %9540 = vmatprep.subr.bf16.mxu0 %v9285
    %9541 = vmatpush1.bf16.msra.mxu0 %v9284
    %9542 = vmatprep.subr.bf16.mxu0 %v9287
    %9543 = vmatpush1.bf16.msra.mxu0 %v9286
    %9544 = vmatprep.subr.bf16.mxu0 %v9289
    %9545 = vmatpush1.bf16.msra.mxu0 %v9288
    %9546 = vmatprep.subr.bf16.mxu0 %v9291
    %9547 = vmatpush1.bf16.msra.mxu0 %v9290
    %9548 = vmatprep.subr.bf16.mxu0 %v9293
    %9549 = vmatpush1.bf16.msra.mxu0 %v9292
    %9550 = vmatprep.subr.bf16.mxu0 %v9295
    %9551 = vmatpush1.bf16.msra.mxu0 %v9294
    %9552 = vmatprep.subr.bf16.mxu0 %v9297
    %9553 = vmatpush1.bf16.msra.mxu0 %v9296
    %9554 = vmatprep.subr.bf16.mxu0 %v9299
    %9555 = vmatpush1.bf16.msra.mxu0 %v9298
    %9556 = vmatprep.subr.bf16.mxu0 %v9301
    %9557 = vmatpush1.bf16.msra.mxu0 %v9300
    %9558 = vmatprep.subr.bf16.mxu0 %v9303
    %9559 = vmatpush1.bf16.msra.mxu0 %v9302
    %9560 = vmatprep.subr.bf16.mxu0 %v9305
    %9561 = vmatpush1.bf16.msra.mxu0 %v9304
    %9562 = vmatprep.subr.bf16.mxu0 %v9307
    %9563 = vmatpush1.bf16.msra.mxu0 %v9306
    %9564 = vmatprep.subr.bf16.mxu0 %v9309
    %9565 = vmatpush1.bf16.msra.mxu0 %v9308
    %9566 = vmatprep.subr.bf16.mxu0 %v9311
    %9567 = vmatpush1.bf16.msra.mxu0 %v9310
    %9568 = vmatprep.subr.bf16.mxu0 %v9313
    %9569 = vmatpush1.bf16.msra.mxu0 %v9312
    %9570 = vmatprep.subr.bf16.mxu0 %v9315
    %9571 = vmatpush1.bf16.msra.mxu0 %v9314
    %9572 = vmatprep.mubr.bf16.mxu0 %v9269
    %9573 = vmatmul.mubr.bf16.gmra.mrb[0].mxu0 %v9268
    %v9574 = vpop.f32.mrb[0].mxu0
    %v9575 = vadd.f32 0.0, %v9574
    %v9576 = vpop.f32.mrb[0].mxu0
    %v9577 = vadd.f32 0.0, %v9576
    %v9578 = vpop.f32.mrb[0].mxu0
    %v9579 = vpop.f32.mrb[0].mxu0
    %9580 = vdwg.mxu0
    %9581 = vmatprep.subr.bf16.mxu0 %v9317
    %9582 = vmatpush1.bf16.msra.mxu0 %v9316
    %9583 = vmatprep.subr.bf16.mxu0 %v9319
    %9584 = vmatpush1.bf16.msra.mxu0 %v9318
    %9585 = vmatprep.subr.bf16.mxu0 %v9321
    %9586 = vmatpush1.bf16.msra.mxu0 %v9320
    %9587 = vmatprep.subr.bf16.mxu0 %v9323
    %9588 = vmatpush1.bf16.msra.mxu0 %v9322
    %9589 = vmatprep.subr.bf16.mxu0 %v9325
    %9590 = vmatpush1.bf16.msra.mxu0 %v9324
    %9591 = vmatprep.subr.bf16.mxu0 %v9327
    %9592 = vmatpush1.bf16.msra.mxu0 %v9326
    %9593 = vmatprep.subr.bf16.mxu0 %v9329
    %9594 = vmatpush1.bf16.msra.mxu0 %v9328
    %9595 = vmatprep.subr.bf16.mxu0 %v9331
    %9596 = vmatpush1.bf16.msra.mxu0 %v9330
    %9597 = vmatprep.subr.bf16.mxu0 %v9333
    %9598 = vmatpush1.bf16.msra.mxu0 %v9332
    %9599 = vmatprep.subr.bf16.mxu0 %v9335
    %9600 = vmatpush1.bf16.msra.mxu0 %v9334
    %9601 = vmatprep.subr.bf16.mxu0 %v9337
    %9602 = vmatpush1.bf16.msra.mxu0 %v9336
    %9603 = vmatprep.subr.bf16.mxu0 %v9339
    %9604 = vmatpush1.bf16.msra.mxu0 %v9338
    %9605 = vmatprep.subr.bf16.mxu0 %v9341
    %9606 = vmatpush1.bf16.msra.mxu0 %v9340
    %9607 = vmatprep.subr.bf16.mxu0 %v9343
    %9608 = vmatpush1.bf16.msra.mxu0 %v9342
    %9609 = vmatprep.subr.bf16.mxu0 %v9345
    %9610 = vmatpush1.bf16.msra.mxu0 %v9344
    %9611 = vmatprep.subr.bf16.mxu0 %v9347
    %9612 = vmatpush1.bf16.msra.mxu0 %v9346
    %9613 = vmatprep.mubr.bf16.mxu0 %v9271
    %9614 = vmatmul.mubr.bf16.gmra.mrb[0].mxu0 %v9270
    %v9615 = vpop.f32.mrb[0].mxu0
    %v9616 = vadd.f32 %v9575, %v9615
    %v9617 = vpop.f32.mrb[0].mxu0
    %v9618 = vadd.f32 %v9577, %v9617
    %v9619 = vpop.f32.mrb[0].mxu0
    %v9620 = vpop.f32.mrb[0].mxu0
    %9621 = vdwg.mxu0
    %9622 = vmatprep.subr.bf16.mxu0 %v9349
    %9623 = vmatpush1.bf16.msra.mxu0 %v9348
    %9624 = vmatprep.subr.bf16.mxu0 %v9351
    %9625 = vmatpush1.bf16.msra.mxu0 %v9350
    %9626 = vmatprep.subr.bf16.mxu0 %v9353
    %9627 = vmatpush1.bf16.msra.mxu0 %v9352
    %9628 = vmatprep.subr.bf16.mxu0 %v9355
    %9629 = vmatpush1.bf16.msra.mxu0 %v9354
    %9630 = vmatprep.subr.bf16.mxu0 %v9357
    %9631 = vmatpush1.bf16.msra.mxu0 %v9356
    %9632 = vmatprep.subr.bf16.mxu0 %v9359
    %9633 = vmatpush1.bf16.msra.mxu0 %v9358
    %9634 = vmatprep.subr.bf16.mxu0 %v9361
    %9635 = vmatpush1.bf16.msra.mxu0 %v9360
    %9636 = vmatprep.subr.bf16.mxu0 %v9363
    %9637 = vmatpush1.bf16.msra.mxu0 %v9362
    %9638 = vmatprep.subr.bf16.mxu0 %v9365
    %9639 = vmatpush1.bf16.msra.mxu0 %v9364
    %9640 = vmatprep.subr.bf16.mxu0 %v9367
    %9641 = vmatpush1.bf16.msra.mxu0 %v9366
    %9642 = vmatprep.subr.bf16.mxu0 %v9369
    %9643 = vmatpush1.bf16.msra.mxu0 %v9368
    %9644 = vmatprep.subr.bf16.mxu0 %v9371
    %9645 = vmatpush1.bf16.msra.mxu0 %v9370
    %9646 = vmatprep.subr.bf16.mxu0 %v9373
    %9647 = vmatpush1.bf16.msra.mxu0 %v9372
    %9648 = vmatprep.subr.bf16.mxu0 %v9375
    %9649 = vmatpush1.bf16.msra.mxu0 %v9374
    %9650 = vmatprep.subr.bf16.mxu0 %v9377
    %9651 = vmatpush1.bf16.msra.mxu0 %v9376
    %9652 = vmatprep.subr.bf16.mxu0 %v9379
    %9653 = vmatpush1.bf16.msra.mxu0 %v9378
    %9654 = vmatprep.mubr.bf16.mxu0 %v9273
    %9655 = vmatmul.mubr.bf16.gmra.mrb[0].mxu0 %v9272
    %v9656 = vpop.f32.mrb[0].mxu0
    %v9657 = vadd.f32 %v9616, %v9656
    %v9658 = vpop.f32.mrb[0].mxu0
    %v9659 = vadd.f32 %v9618, %v9658
    %v9660 = vpop.f32.mrb[0].mxu0
    %v9661 = vpop.f32.mrb[0].mxu0
    %9662 = vdwg.mxu0
    %9663 = vmatprep.subr.bf16.mxu0 %v9381
    %9664 = vmatpush1.bf16.msra.mxu0 %v9380
    %9665 = vmatprep.subr.bf16.mxu0 %v9383
    %9666 = vmatpush1.bf16.msra.mxu0 %v9382
    %9667 = vmatprep.subr.bf16.mxu0 %v9385
    %9668 = vmatpush1.bf16.msra.mxu0 %v9384
    %9669 = vmatprep.subr.bf16.mxu0 %v9387
    %9670 = vmatpush1.bf16.msra.mxu0 %v9386
    %9671 = vmatprep.subr.bf16.mxu0 %v9389
    %9672 = vmatpush1.bf16.msra.mxu0 %v9388
    %9673 = vmatprep.subr.bf16.mxu0 %v9391
    %9674 = vmatpush1.bf16.msra.mxu0 %v9390
    %9675 = vmatprep.subr.bf16.mxu0 %v9393
    %9676 = vmatpush1.bf16.msra.mxu0 %v9392
    %9677 = vmatprep.subr.bf16.mxu0 %v9395
    %9678 = vmatpush1.bf16.msra.mxu0 %v9394
    %9679 = vmatprep.subr.bf16.mxu0 %v9397
    %9680 = vmatpush1.bf16.msra.mxu0 %v9396
    %9681 = vmatprep.subr.bf16.mxu0 %v9399
    %9682 = vmatpush1.bf16.msra.mxu0 %v9398
    %9683 = vmatprep.subr.bf16.mxu0 %v9401
    %9684 = vmatpush1.bf16.msra.mxu0 %v9400
    %9685 = vmatprep.subr.bf16.mxu0 %v9403
    %9686 = vmatpush1.bf16.msra.mxu0 %v9402
    %9687 = vmatprep.subr.bf16.mxu0 %v9405
    %9688 = vmatpush1.bf16.msra.mxu0 %v9404
    %9689 = vmatprep.subr.bf16.mxu0 %v9407
    %9690 = vmatpush1.bf16.msra.mxu0 %v9406
    %9691 = vmatprep.subr.bf16.mxu0 %v9409
    %9692 = vmatpush1.bf16.msra.mxu0 %v9408
    %9693 = vmatprep.subr.bf16.mxu0 %v9411
    %9694 = vmatpush1.bf16.msra.mxu0 %v9410
    %9695 = vmatprep.mubr.bf16.mxu0 %v9275
    %9696 = vmatmul.mubr.bf16.gmra.mrb[0].mxu0 %v9274
    %v9697 = vpop.f32.mrb[0].mxu0
    %v9698 = vadd.f32 %v9657, %v9697
    %v9699 = vpop.f32.mrb[0].mxu0
    %v9700 = vadd.f32 %v9659, %v9699
    %v9701 = vpop.f32.mrb[0].mxu0
    %v9702 = vpop.f32.mrb[0].mxu0
    %9703 = vdwg.mxu0
    %9704 = vmatprep.subr.bf16.mxu0 %v9413
    %9705 = vmatpush1.bf16.msra.mxu0 %v9412
    %9706 = vmatprep.subr.bf16.mxu0 %v9415
    %9707 = vmatpush1.bf16.msra.mxu0 %v9414
    %9708 = vmatprep.subr.bf16.mxu0 %v9417
    %9709 = vmatpush1.bf16.msra.mxu0 %v9416
    %9710 = vmatprep.subr.bf16.mxu0 %v9419
    %9711 = vmatpush1.bf16.msra.mxu0 %v9418
    %9712 = vmatprep.subr.bf16.mxu0 %v9421
    %9713 = vmatpush1.bf16.msra.mxu0 %v9420
    %9714 = vmatprep.subr.bf16.mxu0 %v9423
    %9715 = vmatpush1.bf16.msra.mxu0 %v9422
    %9716 = vmatprep.subr.bf16.mxu0 %v9425
    %9717 = vmatpush1.bf16.msra.mxu0 %v9424
    %9718 = vmatprep.subr.bf16.mxu0 %v9427
    %9719 = vmatpush1.bf16.msra.mxu0 %v9426
    %9720 = vmatprep.subr.bf16.mxu0 %v9429
    %9721 = vmatpush1.bf16.msra.mxu0 %v9428
    %9722 = vmatprep.subr.bf16.mxu0 %v9431
    %9723 = vmatpush1.bf16.msra.mxu0 %v9430
    %9724 = vmatprep.subr.bf16.mxu0 %v9433
    %9725 = vmatpush1.bf16.msra.mxu0 %v9432
    %9726 = vmatprep.subr.bf16.mxu0 %v9435
    %9727 = vmatpush1.bf16.msra.mxu0 %v9434
    %9728 = vmatprep.subr.bf16.mxu0 %v9437
    %9729 = vmatpush1.bf16.msra.mxu0 %v9436
    %9730 = vmatprep.subr.bf16.mxu0 %v9439
    %9731 = vmatpush1.bf16.msra.mxu0 %v9438
    %9732 = vmatprep.subr.bf16.mxu0 %v9441
    %9733 = vmatpush1.bf16.msra.mxu0 %v9440
    %9734 = vmatprep.subr.bf16.mxu0 %v9443
    %9735 = vmatpush1.bf16.msra.mxu0 %v9442
    %9736 = vmatprep.mubr.bf16.mxu0 %v9277
    %9737 = vmatmul.mubr.bf16.gmra.mrb[0].mxu0 %v9276
    %v9738 = vpop.f32.mrb[0].mxu0
    %v9739 = vadd.f32 %v9698, %v9738
    %v9740 = vpop.f32.mrb[0].mxu0
    %v9741 = vadd.f32 %v9700, %v9740
    %v9742 = vpop.f32.mrb[0].mxu0
    %v9743 = vpop.f32.mrb[0].mxu0
    %9744 = vdwg.mxu0
    %9745 = vmatprep.subr.bf16.mxu0 %v9445
    %9746 = vmatpush1.bf16.msra.mxu0 %v9444
    %9747 = vmatprep.subr.bf16.mxu0 %v9447
    %9748 = vmatpush1.bf16.msra.mxu0 %v9446
    %9749 = vmatprep.subr.bf16.mxu0 %v9449
    %9750 = vmatpush1.bf16.msra.mxu0 %v9448
    %9751 = vmatprep.subr.bf16.mxu0 %v9451
    %9752 = vmatpush1.bf16.msra.mxu0 %v9450
    %9753 = vmatprep.subr.bf16.mxu0 %v9453
    %9754 = vmatpush1.bf16.msra.mxu0 %v9452
    %9755 = vmatprep.subr.bf16.mxu0 %v9455
    %9756 = vmatpush1.bf16.msra.mxu0 %v9454
    %9757 = vmatprep.subr.bf16.mxu0 %v9457
    %9758 = vmatpush1.bf16.msra.mxu0 %v9456
    %9759 = vmatprep.subr.bf16.mxu0 %v9459
    %9760 = vmatpush1.bf16.msra.mxu0 %v9458
    %9761 = vmatprep.subr.bf16.mxu0 %v9461
    %9762 = vmatpush1.bf16.msra.mxu0 %v9460
    %9763 = vmatprep.subr.bf16.mxu0 %v9463
    %9764 = vmatpush1.bf16.msra.mxu0 %v9462
    %9765 = vmatprep.subr.bf16.mxu0 %v9465
    %9766 = vmatpush1.bf16.msra.mxu0 %v9464
    %9767 = vmatprep.subr.bf16.mxu0 %v9467
    %9768 = vmatpush1.bf16.msra.mxu0 %v9466
    %9769 = vmatprep.subr.bf16.mxu0 %v9469
    %9770 = vmatpush1.bf16.msra.mxu0 %v9468
    %9771 = vmatprep.subr.bf16.mxu0 %v9471
    %9772 = vmatpush1.bf16.msra.mxu0 %v9470
    %9773 = vmatprep.subr.bf16.mxu0 %v9473
    %9774 = vmatpush1.bf16.msra.mxu0 %v9472
    %9775 = vmatprep.subr.bf16.mxu0 %v9475
    %9776 = vmatpush1.bf16.msra.mxu0 %v9474
    %9777 = vmatprep.mubr.bf16.mxu0 %v9279
    %9778 = vmatmul.mubr.bf16.gmra.mrb[0].mxu0 %v9278
    %v9779 = vpop.f32.mrb[0].mxu0
    %v9780 = vadd.f32 %v9739, %v9779
    %v9781 = vpop.f32.mrb[0].mxu0
    %v9782 = vadd.f32 %v9741, %v9781
    %v9783 = vpop.f32.mrb[0].mxu0
    %v9784 = vpop.f32.mrb[0].mxu0
    %9785 = vdwg.mxu0
    %9786 = vmatprep.subr.bf16.mxu0 %v9477
    %9787 = vmatpush1.bf16.msra.mxu0 %v9476
    %9788 = vmatprep.subr.bf16.mxu0 %v9479
    %9789 = vmatpush1.bf16.msra.mxu0 %v9478
    %9790 = vmatprep.subr.bf16.mxu0 %v9481
    %9791 = vmatpush1.bf16.msra.mxu0 %v9480
    %9792 = vmatprep.subr.bf16.mxu0 %v9483
    %9793 = vmatpush1.bf16.msra.mxu0 %v9482
    %9794 = vmatprep.subr.bf16.mxu0 %v9485
    %9795 = vmatpush1.bf16.msra.mxu0 %v9484
    %9796 = vmatprep.subr.bf16.mxu0 %v9487
    %9797 = vmatpush1.bf16.msra.mxu0 %v9486
    %9798 = vmatprep.subr.bf16.mxu0 %v9489
    %9799 = vmatpush1.bf16.msra.mxu0 %v9488
    %9800 = vmatprep.subr.bf16.mxu0 %v9491
    %9801 = vmatpush1.bf16.msra.mxu0 %v9490
    %9802 = vmatprep.subr.bf16.mxu0 %v9493
    %9803 = vmatpush1.bf16.msra.mxu0 %v9492
    %9804 = vmatprep.subr.bf16.mxu0 %v9495
    %9805 = vmatpush1.bf16.msra.mxu0 %v9494
    %9806 = vmatprep.subr.bf16.mxu0 %v9497
    %9807 = vmatpush1.bf16.msra.mxu0 %v9496
    %9808 = vmatprep.subr.bf16.mxu0 %v9499
    %9809 = vmatpush1.bf16.msra.mxu0 %v9498
    %9810 = vmatprep.subr.bf16.mxu0 %v9501
    %9811 = vmatpush1.bf16.msra.mxu0 %v9500
    %9812 = vmatprep.subr.bf16.mxu0 %v9503
    %9813 = vmatpush1.bf16.msra.mxu0 %v9502
    %9814 = vmatprep.subr.bf16.mxu0 %v9505
    %9815 = vmatpush1.bf16.msra.mxu0 %v9504
    %9816 = vmatprep.subr.bf16.mxu0 %v9507
    %9817 = vmatpush1.bf16.msra.mxu0 %v9506
    %9818 = vmatprep.mubr.bf16.mxu0 %v9281
    %9819 = vmatmul.mubr.bf16.gmra.mrb[0].mxu0 %v9280
    %v9820 = vpop.f32.mrb[0].mxu0
    %v9821 = vadd.f32 %v9780, %v9820
    %v9822 = vpop.f32.mrb[0].mxu0
    %v9823 = vadd.f32 %v9782, %v9822
    %v9824 = vpop.f32.mrb[0].mxu0
    %v9825 = vpop.f32.mrb[0].mxu0
    %9826 = vdwg.mxu0
    %9827 = vmatprep.subr.bf16.mxu0 %v9509
    %9828 = vmatpush1.bf16.msra.mxu0 %v9508
    %9829 = vmatprep.subr.bf16.mxu0 %v9511
    %9830 = vmatpush1.bf16.msra.mxu0 %v9510
    %9831 = vmatprep.subr.bf16.mxu0 %v9513
    %9832 = vmatpush1.bf16.msra.mxu0 %v9512
    %9833 = vmatprep.subr.bf16.mxu0 %v9515
    %9834 = vmatpush1.bf16.msra.mxu0 %v9514
    %9835 = vmatprep.subr.bf16.mxu0 %v9517
    %9836 = vmatpush1.bf16.msra.mxu0 %v9516
    %9837 = vmatprep.subr.bf16.mxu0 %v9519
    %9838 = vmatpush1.bf16.msra.mxu0 %v9518
    %9839 = vmatprep.subr.bf16.mxu0 %v9521
    %9840 = vmatpush1.bf16.msra.mxu0 %v9520
    %9841 = vmatprep.subr.bf16.mxu0 %v9523
    %9842 = vmatpush1.bf16.msra.mxu0 %v9522
    %9843 = vmatprep.subr.bf16.mxu0 %v9525
    %9844 = vmatpush1.bf16.msra.mxu0 %v9524
    %9845 = vmatprep.subr.bf16.mxu0 %v9527
    %9846 = vmatpush1.bf16.msra.mxu0 %v9526
    %9847 = vmatprep.subr.bf16.mxu0 %v9529
    %9848 = vmatpush1.bf16.msra.mxu0 %v9528
    %9849 = vmatprep.subr.bf16.mxu0 %v9531
    %9850 = vmatpush1.bf16.msra.mxu0 %v9530
    %9851 = vmatprep.subr.bf16.mxu0 %v9533
    %9852 = vmatpush1.bf16.msra.mxu0 %v9532
    %9853 = vmatprep.subr.bf16.mxu0 %v9535
    %9854 = vmatpush1.bf16.msra.mxu0 %v9534
    %9855 = vmatprep.subr.bf16.mxu0 %v9537
    %9856 = vmatpush1.bf16.msra.mxu0 %v9536
    %9857 = vmatprep.subr.bf16.mxu0 %v9539
    %9858 = vmatpush1.bf16.msra.mxu0 %v9538
    %9859 = vmatprep.mubr.bf16.mxu0 %v9283
    %9860 = vmatmul.mubr.bf16.gmra.mrb[0].mxu0 %v9282
    %v9861 = vpop.f32.mrb[0].mxu0
    %v9862 = vadd.f32 %v9821, %v9861
    %v9863 = vpop.f32.mrb[0].mxu0
    %v9864 = vadd.f32 %v9823, %v9863
    %v9865 = vpop.f32.mrb[0].mxu0
    %v9866 = vpop.f32.mrb[0].mxu0
    %9867 = vdwg.mxu0
    %s9868 = scalar_lea.vmem [#allocation13], 114
    %v9869 = vld [vmem:[%s9868] ss:$2 sm:$0x3]
    %v9871 = vlaneseq
    %v9872 = vshrl.u32 %v9871, 7
    %v9873 = vsub.s32 0, %v9872
    %v9874 = vrot.slane %v9869, %v9873
    %v9875 = vlaneseq
    %v9876 = vshrl.u32 %v9875, 7
    %v9877 = vsub.s32 1, %v9876
    %v9878 = vrot.slane %v9869, %v9877
    %v9881 = vmul.f32 %v9862, %v9874
    %v9882 = vmul.f32 %v9864, %v9878
    %s9883 = scalar_lea.vmem [#allocation13], 115
    %v9884 = vld [vmem:[%s9883] ss:$2 sm:$0x3]
    %v9886 = vlaneseq
    %v9887 = vshrl.u32 %v9886, 7
    %v9888 = vsub.s32 0, %v9887
    %v9889 = vrot.slane %v9884, %v9888
    %v9890 = vlaneseq
    %v9891 = vshrl.u32 %v9890, 7
    %v9892 = vsub.s32 1, %v9891
    %v9893 = vrot.slane %v9884, %v9892
    %v9896 = vadd.f32 %v9881, %v9889
    %v9897 = vadd.f32 %v9882, %v9893
    %v9898 = vxor.u32 %v9896, 2147483648
    %v9899 = vxor.u32 %v9897, 2147483648
    %v9900 = vmul.f32 %v9898, 1.442695
    %v9901 = vpow.pop %v9900
    %v9902 = vmul.f32 %v9899, 1.442695
    %v9903 = vpow.pop %v9902
    %v9904 = vadd.f32 %v9901, 1.0
    %v9905 = vadd.f32 %v9903, 1.0
    %v9906 = vrcp.pop %v9904
    %v9907 = vmul.f32 1.0, %v9906
    %v9908 = vrcp.pop %v9905
    %v9909 = vmul.f32 1.0, %v9908
    %v9912 = vcombine.low %v9907, %v9909
    %v9914 = vunpack.c.l.s4 1983009808
    %v9915 = vunpack.c.0.s8 %v9914
    %v9916 = vlaneseq
    %v9917 = vshrl.u32 %v9916, 7
    %v9918 = vsub.s32 %v9915, %v9917
    %v9919 = vrot.slane %v9912, %v9918
    %9921 = vst [vmem:[#allocation19] sm:$0xf] %v9919
    // Predicated region
    $region70: #{tpu_custom_call.1} parent=1 // pred_check
      _
    $region71: #{tpu_custom_call.1} parent=1 // pred_check_branch
      %9923 = sbr.rel (0) target = $region73
    $region72: #{tpu_custom_call.1} parent=1 // pred_region
      %s9925 = ssub.s32 64, 64
      %9926 = vsyncadd [#allocation10], %s9925
      %s9928 = sshll.u32 [#allocation19], 4
      %s9929 = int_to_ptr.vmem [resolvable:$true] %s9928
      %9931 = dma.vmem_to_hbm [thread:$0]  %s9929, 64, %s11, [#allocation10]
    $region73: #{tpu_custom_call.1} parent=1 // pred_fallthru
      _
    // Predicated region
    $region74: #{tpu_custom_call.1} parent=1 // pred_check
      _
    $region75: #{tpu_custom_call.1} parent=1 // pred_check_branch
      %9933 = sbr.rel (0) target = $region77
    $region76: #{tpu_custom_call.1} parent=1 // pred_region
      %s9935 = ssub.s32 16, 16
      %9936 = vsyncadd [#allocation21], %s9935
      %s9938 = sshll.u32 [#allocation20], 4
      %s9939 = int_to_ptr.vmem [resolvable:$true] %s9938
      %9941 = dma.vmem_to_hbm [thread:$0]  %s9939, 16, %s12, [#allocation21]
    $region77: #{tpu_custom_call.1} parent=1 // pred_fallthru
      _
    // Predicated region
    $region78: #{tpu_custom_call.1} parent=1 // pred_check
      _
    $region79: #{tpu_custom_call.1} parent=1 // pred_check_branch
      %9943 = sbr.rel (0) target = $region81
    $region80: #{tpu_custom_call.1} parent=1 // pred_region
      %9944 = dma.done [#allocation10], 64
    $region81: #{tpu_custom_call.1} parent=1 // pred_fallthru
      _
    // Predicated region
    $region82: #{tpu_custom_call.1} parent=1 // pred_check
      _
    $region83: #{tpu_custom_call.1} parent=1 // pred_check_branch
      %9946 = sbr.rel (0) target = $region85
    $region84: #{tpu_custom_call.1} parent=1 // pred_region
      %9947 = dma.done [#allocation21], 16
    $region85: #{tpu_custom_call.1} parent=1 // pred_fallthru
      _
    %9948 = vsyncpa [#allocation9], 1
    %9949 = vsyncpa [#allocation12], 1
    %9950 = vsyncpa [#allocation15], 1
    %9951 = vsyncpa [#allocation18], 1
    %9952 = vsyncpa [#allocation10], 1
    %9953 = vsyncpa [#allocation21], 1
  %9954 = vsyncmov [#allocation7]
  %s9955 = vpop.sfrf %9954
  %p9956 = scmp.eq.s32.totalorder %s9955, 0
  %p9957 = pneg %p9956
  %9959 = shalt.err (%p9957)
  %s9960 = scalar_lea.sflag [#allocation7], 1
  %9961 = vsyncmov %s9960
  %s9962 = vpop.sfrf %9961
  %p9963 = scmp.eq.s32.totalorder %s9962, 0
  %p9964 = pneg %p9963
  %9966 = shalt.err (%p9964)
  %s9967 = scalar_lea.sflag [#allocation7], 2
  %9968 = vsyncmov %s9967
  %s9969 = vpop.sfrf %9968
  %p9970 = scmp.eq.s32.totalorder %s9969, 0
  %p9971 = pneg %p9970
  %9973 = shalt.err (%p9971)
  %s9974 = scalar_lea.sflag [#allocation7], 3
  %9975 = vsyncmov %s9974
  %s9976 = vpop.sfrf %9975
  %p9977 = scmp.eq.s32.totalorder %s9976, 0
  %p9978 = pneg %p9977
  %9980 = shalt.err (%p9978)
  %s9981 = scalar_lea.sflag [#allocation7], 4
  %9982 = vsyncmov %s9981
  %s9983 = vpop.sfrf %9982
  %p9984 = scmp.eq.s32.totalorder %s9983, 0
  %p9985 = pneg %p9984
  %9987 = shalt.err (%p9985)

</llo_original>
